<compile_context>
chip_gen: v7x
topology: tpu7x:2x2x1
jax: 0.10.0
libtpu: 0.0.40
codegen_flags: <defaults>
</compile_context>

<pallas_src>
import numpy as np

import jax
import jax.numpy as jnp
from jax.experimental import pallas as pl
from jax.experimental.pallas import tpu as pltpu


CP = 128  # lane-tile width: every channel dimension is zero-padded to 128 lanes

# Fixed kernel argument order (wrapper args, in_specs and kernel unpacking all use this).
_ARGS = (
    'x', 'emb', 'p_avg16', 'p_avg8', 's_max8',
    'b0_w0', 'b0_b0', 'b0_w1', 'b0_b1', 'b0_w2', 'b0_b2',
    'at_wth', 'at_wph', 'at_wg', 'at_wo', 'at_sigma',
    'b1_w0', 'b1_b0', 'b1_w1', 'b1_b1', 'b1_w2', 'b1_b2',
    'b2_w1', 'b2_b1', 'b2_w2', 'b2_b2',
    'b3_w1', 'b3_b1', 'b3_w2', 'b3_b2',
    'w_lin', 'b_lin',
)


# ----------------------------------------------------------------------------
# Host-side helpers: pooling matrices and weight preprocessing
# ----------------------------------------------------------------------------
def _avg_mat(H):
    """(Ho*Ho, H*H) bf16 matrix: 2x2/stride-2 average pooling over row-major (H, H) rows."""
    Ho = H // 2
    m = np.zeros((Ho * Ho, H * H), np.float32)
    for ho in range(Ho):
        for wo in range(Ho):
            for dy in (0, 1):
                for dx in (0, 1):
                    m[ho * Ho + wo, (2 * ho + dy) * H + 2 * wo + dx] = 0.25
    return jnp.asarray(m, jnp.bfloat16)


def _maxsel_mats(H):
    """(4, Ho*Ho, H*H) bf16 row-select matrices: 2x2 max pool = max of 4 selected rows."""
    Ho = H // 2
    s = np.zeros((4, Ho * Ho, H * H), np.float32)
    for t, (dy, dx) in enumerate(((0, 0), (0, 1), (1, 0), (1, 1))):
        for ho in range(Ho):
            for wo in range(Ho):
                s[t, ho * Ho + wo, (2 * ho + dy) * H + 2 * wo + dx] = 1.0
    return jnp.asarray(s, jnp.bfloat16)


def apply_spectral_norm(w, iters=20):
    """Deterministic power-iteration spectral norm (host-side weight preprocessing)."""
    m = w.reshape(w.shape[0], -1).astype(jnp.float32)
    u = jnp.ones((m.shape[0],), jnp.float32)
    u = u / jnp.linalg.norm(u)
    for _ in range(iters):
        v = m.T @ u
        v = v / (jnp.linalg.norm(v) + 1e-12)
        u = m @ v
        u = u / (jnp.linalg.norm(u) + 1e-12)
    sigma = u @ (m @ v)
    return w / sigma


def _prep_conv3(w_oihw, C):
    """PyTorch OIHW 3x3 weight -> (3, 128, 128) bf16.

    Row index of W[dy] is dx*C + cin (matching the dx-in-lane packing of the pad
    scratch, slot width = C lanes); column index is cout.  Unused rows/cols are zero."""
    cout, cin = w_oihw.shape[0], w_oihw.shape[1]
    w = jnp.transpose(w_oihw, (2, 3, 1, 0))                    # (dy, dx, cin, cout)
    wf = jnp.zeros((3, 3, C, CP), jnp.float32)
    wf = wf.at[:, :, :cin, :cout].set(w)
    wk = jnp.zeros((3, CP, CP), jnp.float32)
    wk = wk.at[:, :3 * C, :].set(wf.reshape(3, 3 * C, CP))
    return wk.astype(jnp.bfloat16)


def _prep_conv1(w_oihw):
    """PyTorch OIHW 1x1 weight -> (128, 128) bf16 matmul weight (zero-padded)."""
    cout, cin = w_oihw.shape[0], w_oihw.shape[1]
    wf = jnp.zeros((CP, CP), jnp.float32)
    wf = wf.at[:cin, :cout].set(jnp.transpose(w_oihw[:, :, 0, 0], (1, 0)))
    return wf.astype(jnp.bfloat16)


# ----------------------------------------------------------------------------
# Fused forward kernel (one sample per grid step)
# ----------------------------------------------------------------------------
def _make_kernel(C, H0):
    H1, H2 = H0 // 2, H0 // 4
    bf16, f32 = jnp.bfloat16, jnp.float32
    n_in = len(_ARGS)

    def kernel(*refs):
        r = dict(zip(_ARGS, refs[:n_in]))
        o_ref = refs[n_in]
        pad_a, pad_b, pad_c = refs[n_in + 1:]

        # Only the dy-border pages of each pad scratch must be zero (the interior is fully
        # overwritten by every conv).  Done per grid step so each TensorCore's private
        # scratch is initialised under the parallel grid.
        for pad_ref, hw in ((pad_a, H0), (pad_b, H1), (pad_c, H2)):
            z = jnp.zeros((1, hw, CP), bf16)
            pad_ref[0:1] = z
            pad_ref[hw + 1:hw + 2] = z

        def conv3x3(x_flat, w_ref, b_ref, pad_ref, hw, pre_relu):
            """(hw*hw, 128) f32 -> (hw*hw, 128) f32.  Fused ReLU + 3x3 conv (padding=1).

            dx lives in the lane dimension of the pad scratch (lane slots hold the
            left / centre / right column-shifted activation), so the conv is 3
            accumulated MXU dots (one per dy) and the only ref slicing is the dy
            page offset, which is always aligned."""
            x = jnp.maximum(x_flat, 0.0) if pre_relu else x_flat
            xc = x.reshape(hw, hw, CP)[:, :, :C].astype(bf16)           # (hw, hw, C)
            zc = jnp.zeros((hw, 1, C), bf16)
            left = jnp.concatenate([zc, xc[:, :hw - 1, :]], axis=1)     # dx = 0 slot
            right = jnp.concatenate([xc[:, 1:, :], zc], axis=1)         # dx = 2 slot
            pieces = [left, xc, right]
            if CP > 3 * C:
                pieces.append(jnp.zeros((hw, hw, CP - 3 * C), bf16))
            packed = jnp.concatenate(pieces, axis=-1)                   # (hw, hw, 128)
            pad_ref[1:hw + 1] = packed                                  # full-width store

            def tap(dy):
                v = pad_ref[dy:dy + hw].reshape(hw * hw, CP)            # aligned page slice
                return jnp.dot(v, w_ref[dy], preferred_element_type=f32)

            return tap(0) + tap(1) + tap(2) + b_ref[...]

        def conv1x1(x_flat, w_ref, b_ref=None):
            y = jnp.dot(x_flat.astype(bf16), w_ref[...], preferred_element_type=f32)
            return y if b_ref is None else y + b_ref[...]

        def avg_pool(x_flat, p_ref):            # 2x2/stride-2 avg pool as one bf16 matmul
            return jnp.dot(p_ref[...], x_flat.astype(bf16), preferred_element_type=f32)

        def max_pool(x_flat, s_ref):            # 2x2/stride-2 max pool via 4 row-selects
            xb = x_flat.astype(bf16)
            m = jnp.dot(s_ref[0], xb, preferred_element_type=f32)
            for t in range(1, 4):
                m = jnp.maximum(m, jnp.dot(s_ref[t], xb, preferred_element_type=f32))
            return m

        # ---- block 0: DiscOptBlock(3 -> C), 16x16 -> 8x8 ---------------------
        x_flat = r['x'][0]                                   # (H0*H0, 128), real lanes 0:3
        h = conv3x3(x_flat, r['b0_w1'], r['b0_b1'], pad_a, H0, pre_relu=False)
        h = conv3x3(h, r['b0_w2'], r['b0_b2'], pad_a, H0, pre_relu=True)
        h = avg_pool(h, r['p_avg16'])
        sc = avg_pool(x_flat, r['p_avg16'])
        sc = conv1x1(sc, r['b0_w0'], r['b0_b0'])
        h = h + sc                                           # (H1*H1, 128)

        # ---- Self_Attn at 8x8, C channels -------------------------------------
        # TODO(synk): Self_Attn class body was not provided in the prompt; this follows the
        # standard studioGAN/SAGAN pattern (1x1 theta/phi/g without bias, 2x2 maxpool on
        # phi/g, softmax attention, 1x1 output conv, x + sigma * attn_g).
        theta = conv1x1(h, r['at_wth'])                      # real lanes 0:C//8
        phi = max_pool(conv1x1(h, r['at_wph']), r['s_max8'])
        g = max_pool(conv1x1(h, r['at_wg']), r['s_max8'])    # real lanes 0:C//2
        s = jnp.einsum('qc,kc->qk', theta.astype(bf16), phi.astype(bf16),
                       preferred_element_type=f32)           # (H1*H1, H2*H2)
        s = s - jnp.max(s, axis=-1, keepdims=True)
        p = jnp.exp(s)
        p = p / jnp.sum(p, axis=-1, keepdims=True)           # exact softmax
        att = jnp.dot(p.astype(bf16), g.astype(bf16), preferred_element_type=f32)
        att = conv1x1(att, r['at_wo'])
        h = h + r['at_sigma'][...] * att

        # ---- block 1: DiscBlock(C -> C), downsample 8x8 -> 4x4 ----------------
        sc = conv1x1(h, r['b1_w0'], r['b1_b0'])
        sc = avg_pool(sc, r['p_avg8'])
        t = conv3x3(h, r['b1_w1'], r['b1_b1'], pad_b, H1, pre_relu=True)
        t = conv3x3(t, r['b1_w2'], r['b1_b2'], pad_b, H1, pre_relu=True)
        t = avg_pool(t, r['p_avg8'])
        h = t + sc                                           # (H2*H2, 128)

        # ---- blocks 2, 3: DiscBlock(C -> C), no downsample, 4x4 ---------------
        for nm in ('b2', 'b3'):
            t = conv3x3(h, r[nm + '_w1'], r[nm + '_b1'], pad_c, H2, pre_relu=True)
            t = conv3x3(t, r[nm + '_w2'], r[nm + '_b2'], pad_c, H2, pre_relu=True)
            h = h + t

        # ---- head: ReLU -> spatial sum -> linear + label projection -----------
        h = jnp.maximum(h, 0.0)
        hs = jnp.sum(h, axis=0, keepdims=True)               # (1, 128)
        w = r['w_lin'][...] + r['emb'][0]                     # fold projection into linear
        out = jnp.sum(hs * w, axis=1, keepdims=True) + r['b_lin'][...]
        o_ref[...] = out.reshape(1, 1, 1)

    return kernel


def discriminator_forward(x_nchw, label, params):
    """Forward pass of Discriminator_cifar10 (d_spectral_norm=True).

    x_nchw: (B, 3, H, W) f32 (PyTorch layout), label: (B,) int.  Returns (B,) f32."""
    x = jnp.transpose(x_nchw, (0, 2, 3, 1)).astype(jnp.float32)       # NHWC
    B, H0, _, cin = x.shape
    C = params['emb'].shape[1]
    assert H0 % 4 == 0 and 3 * C <= CP and cin <= C
    H1, H2 = H0 // 2, H0 // 4

    # Input: zero-pad channels to 128 lanes, flatten spatial to matmul rows.
    x = jnp.pad(x, ((0, 0), (0, 0), (0, 0), (0, CP - cin))).reshape(B, H0 * H0, CP)
    # Label-embedding rows (projection head), zero-padded to 128 lanes.
    emb = jnp.zeros((B, 1, CP), jnp.float32).at[:, 0, :C].set(params['emb'][label])

    bundle = {k: v for k, v in params.items() if k != 'emb'}
    bundle.update(x=x, emb=emb,
                  p_avg16=_avg_mat(H0), p_avg8=_avg_mat(H1), s_max8=_maxsel_mats(H1))
    args = [bundle[k] for k in _ARGS]

    def spec(name, a):
        if name == 'x':
            return pl.BlockSpec((1, H0 * H0, CP), lambda b: (b, 0, 0))
        if name == 'emb':
            return pl.BlockSpec((1, 1, CP), lambda b: (b, 0, 0))
        zeros = (0,) * a.ndim
        return pl.BlockSpec(a.shape, lambda b, _z=zeros: _z)           # shared, resident

    out = pl.pallas_call(
        _make_kernel(C, H0),
        grid=(B,),
        out_shape=jax.ShapeDtypeStruct((B, 1, 1), jnp.float32),
        in_specs=[spec(k, a) for k, a in zip(_ARGS, args)],
        out_specs=pl.BlockSpec((1, 1, 1), lambda b: (b, 0, 0)),
        scratch_shapes=[
            pltpu.VMEM((H0 + 2, H0, CP), jnp.bfloat16),   # pad buf @16x16 (dx in lanes)
            pltpu.VMEM((H1 + 2, H1, CP), jnp.bfloat16),   # pad buf @8x8
            pltpu.VMEM((H2 + 2, H2, CP), jnp.bfloat16),   # pad buf @4x4
        ],
        compiler_params=pltpu.CompilerParams(dimension_semantics=("parallel",)),
    )(*args)
    return out[:, 0, 0]


# ----------------------------------------------------------------------------
# Deterministic synthetic parameters (spectral norm applied as weight glue)
# ----------------------------------------------------------------------------
def init_params(key, d_conv_dim=16, num_classes=10):
    C = d_conv_dim * 2
    assert 3 * C <= CP, "dx-in-lane packing needs 3*C <= 128"
    keys = iter(jax.random.split(key, 64))

    def conv_oihw(cout, cin, k):
        w = jax.random.normal(next(keys), (cout, cin, k, k), jnp.float32) * 0.2
        return apply_spectral_norm(w)

    def bias(c):
        b = jax.random.normal(next(keys), (c,), jnp.float32) * 0.05
        return jnp.zeros((1, CP), jnp.float32).at[0, :c].set(b)

    p = {}
    # DiscOptBlock(3 -> C)
    p['b0_w1'] = _prep_conv3(conv_oihw(C, 3, 3), C); p['b0_b1'] = bias(C)
    p['b0_w2'] = _prep_conv3(conv_oihw(C, C, 3), C); p['b0_b2'] = bias(C)
    p['b0_w0'] = _prep_conv1(conv_oihw(C, 3, 1));    p['b0_b0'] = bias(C)
    # Self_Attn(C).  sigma is 0 at PyTorch init; use 0.3 so the attention path
    # actually contributes in this synthetic test (deterministic).
    p['at_wth'] = _prep_conv1(conv_oihw(C // 8, C, 1))
    p['at_wph'] = _prep_conv1(conv_oihw(C // 8, C, 1))
    p['at_wg'] = _prep_conv1(conv_oihw(C // 2, C, 1))
    p['at_wo'] = _prep_conv1(conv_oihw(C, C // 2, 1))
    p['at_sigma'] = jnp.full((1, 1), 0.3, jnp.float32)
    # DiscBlock(C -> C), downsample
    p['b1_w0'] = _prep_conv1(conv_oihw(C, C, 1));    p['b1_b0'] = bias(C)
    p['b1_w1'] = _prep_conv3(conv_oihw(C, C, 3), C); p['b1_b1'] = bias(C)
    p['b1_w2'] = _prep_conv3(conv_oihw(C, C, 3), C); p['b1_b2'] = bias(C)
    # DiscBlock(C -> C), no downsample, x2
    for nm in ('b2', 'b3'):
        p[nm + '_w1'] = _prep_conv3(conv_oihw(C, C, 3), C); p[nm + '_b1'] = bias(C)
        p[nm + '_w2'] = _prep_conv3(conv_oihw(C, C, 3), C); p[nm + '_b2'] = bias(C)
    # snlinear(C -> 1) and sn_embedding(num_classes, C)
    wl = apply_spectral_norm(jax.random.normal(next(keys), (1, C), jnp.float32) * 0.2)
    p['w_lin'] = jnp.zeros((1, CP), jnp.float32).at[0, :C].set(wl[0])
    p['b_lin'] = (jax.random.normal(next(keys), (1,), jnp.float32) * 0.05).reshape(1, 1)
    p['emb'] = apply_spectral_norm(
        jax.random.normal(next(keys), (num_classes, C), jnp.float32) * 0.2)
    return p


if __name__ == "__main__":
    key = jax.random.PRNGKey(0)
    kx, kl, kp = jax.random.split(key, 3)

    B, C_in, H, W = 2, 3, 16, 16                              # small CIFAR-like input
    x = jax.random.normal(kx, (B, C_in, H, W), jnp.float32)   # NCHW like PyTorch
    label = jax.random.randint(kl, (B,), 0, 10)
    params = init_params(kp, d_conv_dim=16, num_classes=10)   # channels = 32

    fwd = jax.jit(discriminator_forward)
    out = jax.block_until_ready(fwd(x, label, params))
    assert out.shape == (B,) and out.dtype == jnp.float32
    assert bool(jnp.all(jnp.isfinite(out)))
    print("KERNEL_OK")
</pallas_src>

<mosaic_0001>
module attributes {stable_mosaic.version = 11 : i64} {
  func.func @kernel(%arg0: i32, %arg1: memref<1x256x128xf32, #tpu.memory_space<vmem>>, %arg2: memref<1x1x128xf32, #tpu.memory_space<vmem>>, %arg3: memref<64x256xbf16, #tpu.memory_space<vmem>>, %arg4: memref<16x64xbf16, #tpu.memory_space<vmem>>, %arg5: memref<4x16x64xbf16, #tpu.memory_space<vmem>>, %arg6: memref<128x128xbf16, #tpu.memory_space<vmem>>, %arg7: memref<1x128xf32, #tpu.memory_space<vmem>>, %arg8: memref<3x128x128xbf16, #tpu.memory_space<vmem>>, %arg9: memref<1x128xf32, #tpu.memory_space<vmem>>, %arg10: memref<3x128x128xbf16, #tpu.memory_space<vmem>>, %arg11: memref<1x128xf32, #tpu.memory_space<vmem>>, %arg12: memref<128x128xbf16, #tpu.memory_space<vmem>>, %arg13: memref<128x128xbf16, #tpu.memory_space<vmem>>, %arg14: memref<128x128xbf16, #tpu.memory_space<vmem>>, %arg15: memref<128x128xbf16, #tpu.memory_space<vmem>>, %arg16: memref<1x1xf32, #tpu.memory_space<vmem>>, %arg17: memref<128x128xbf16, #tpu.memory_space<vmem>>, %arg18: memref<1x128xf32, #tpu.memory_space<vmem>>, %arg19: memref<3x128x128xbf16, #tpu.memory_space<vmem>>, %arg20: memref<1x128xf32, #tpu.memory_space<vmem>>, %arg21: memref<3x128x128xbf16, #tpu.memory_space<vmem>>, %arg22: memref<1x128xf32, #tpu.memory_space<vmem>>, %arg23: memref<3x128x128xbf16, #tpu.memory_space<vmem>>, %arg24: memref<1x128xf32, #tpu.memory_space<vmem>>, %arg25: memref<3x128x128xbf16, #tpu.memory_space<vmem>>, %arg26: memref<1x128xf32, #tpu.memory_space<vmem>>, %arg27: memref<3x128x128xbf16, #tpu.memory_space<vmem>>, %arg28: memref<1x128xf32, #tpu.memory_space<vmem>>, %arg29: memref<3x128x128xbf16, #tpu.memory_space<vmem>>, %arg30: memref<1x128xf32, #tpu.memory_space<vmem>>, %arg31: memref<1x128xf32, #tpu.memory_space<vmem>>, %arg32: memref<1x1xf32, #tpu.memory_space<vmem>>, %arg33: memref<1x1x1xf32, #tpu.memory_space<vmem>>, %arg34: memref<18x16x128xbf16, #tpu.memory_space<vmem>>, %arg35: memref<10x8x128xbf16, #tpu.memory_space<vmem>>, %arg36: memref<6x4x128xbf16, #tpu.memory_space<vmem>>) attributes {dimension_semantics = [#tpu.dimension_semantics<parallel>], iteration_bounds = array<i64: 2>, scalar_prefetch = 0 : i64, scratch_operands = 3 : i64, tpu.core_type = #tpu.core_type<tc>, window_params = [{transform_indices = @transform_0, window_bounds = array<i64: 1, 256, 128>}, {transform_indices = @transform_1, window_bounds = array<i64: 1, 1, 128>}, {pipeline_mode = #tpu.pipeline_mode<synchronous>, transform_indices = @transform_2, window_bounds = array<i64: 64, 256>}, {pipeline_mode = #tpu.pipeline_mode<synchronous>, transform_indices = @transform_3, window_bounds = array<i64: 16, 64>}, {pipeline_mode = #tpu.pipeline_mode<synchronous>, transform_indices = @transform_4, window_bounds = array<i64: 4, 16, 64>}, {pipeline_mode = #tpu.pipeline_mode<synchronous>, transform_indices = @transform_5, window_bounds = array<i64: 128, 128>}, {pipeline_mode = #tpu.pipeline_mode<synchronous>, transform_indices = @transform_6, window_bounds = array<i64: 1, 128>}, {pipeline_mode = #tpu.pipeline_mode<synchronous>, transform_indices = @transform_7, window_bounds = array<i64: 3, 128, 128>}, {pipeline_mode = #tpu.pipeline_mode<synchronous>, transform_indices = @transform_8, window_bounds = array<i64: 1, 128>}, {pipeline_mode = #tpu.pipeline_mode<synchronous>, transform_indices = @transform_9, window_bounds = array<i64: 3, 128, 128>}, {pipeline_mode = #tpu.pipeline_mode<synchronous>, transform_indices = @transform_10, window_bounds = array<i64: 1, 128>}, {pipeline_mode = #tpu.pipeline_mode<synchronous>, transform_indices = @transform_11, window_bounds = array<i64: 128, 128>}, {pipeline_mode = #tpu.pipeline_mode<synchronous>, transform_indices = @transform_12, window_bounds = array<i64: 128, 128>}, {pipeline_mode = #tpu.pipeline_mode<synchronous>, transform_indices = @transform_13, window_bounds = array<i64: 128, 128>}, {pipeline_mode = #tpu.pipeline_mode<synchronous>, transform_indices = @transform_14, window_bounds = array<i64: 128, 128>}, {pipeline_mode = #tpu.pipeline_mode<synchronous>, transform_indices = @transform_15, window_bounds = array<i64: 1, 1>}, {pipeline_mode = #tpu.pipeline_mode<synchronous>, transform_indices = @transform_16, window_bounds = array<i64: 128, 128>}, {pipeline_mode = #tpu.pipeline_mode<synchronous>, transform_indices = @transform_17, window_bounds = array<i64: 1, 128>}, {pipeline_mode = #tpu.pipeline_mode<synchronous>, transform_indices = @transform_18, window_bounds = array<i64: 3, 128, 128>}, {pipeline_mode = #tpu.pipeline_mode<synchronous>, transform_indices = @transform_19, window_bounds = array<i64: 1, 128>}, {pipeline_mode = #tpu.pipeline_mode<synchronous>, transform_indices = @transform_20, window_bounds = array<i64: 3, 128, 128>}, {pipeline_mode = #tpu.pipeline_mode<synchronous>, transform_indices = @transform_21, window_bounds = array<i64: 1, 128>}, {pipeline_mode = #tpu.pipeline_mode<synchronous>, transform_indices = @transform_22, window_bounds = array<i64: 3, 128, 128>}, {pipeline_mode = #tpu.pipeline_mode<synchronous>, transform_indices = @transform_23, window_bounds = array<i64: 1, 128>}, {pipeline_mode = #tpu.pipeline_mode<synchronous>, transform_indices = @transform_24, window_bounds = array<i64: 3, 128, 128>}, {pipeline_mode = #tpu.pipeline_mode<synchronous>, transform_indices = @transform_25, window_bounds = array<i64: 1, 128>}, {pipeline_mode = #tpu.pipeline_mode<synchronous>, transform_indices = @transform_26, window_bounds = array<i64: 3, 128, 128>}, {pipeline_mode = #tpu.pipeline_mode<synchronous>, transform_indices = @transform_27, window_bounds = array<i64: 1, 128>}, {pipeline_mode = #tpu.pipeline_mode<synchronous>, transform_indices = @transform_28, window_bounds = array<i64: 3, 128, 128>}, {pipeline_mode = #tpu.pipeline_mode<synchronous>, transform_indices = @transform_29, window_bounds = array<i64: 1, 128>}, {pipeline_mode = #tpu.pipeline_mode<synchronous>, transform_indices = @transform_30, window_bounds = array<i64: 1, 128>}, {pipeline_mode = #tpu.pipeline_mode<synchronous>, transform_indices = @transform_31, window_bounds = array<i64: 1, 1>}, {transform_indices = @transform_32, window_bounds = array<i64: 1, 1, 1>}]} {
    %cst = arith.constant 0.000000e+00 : bf16
    %0 = vector.broadcast %cst : bf16 to vector<1x16x128xbf16>
    %c0 = arith.constant 0 : index
    %c0_0 = arith.constant 0 : index
    %c0_1 = arith.constant 0 : index
    %1 = vector.load %arg34[%c0, %c0_0, %c0_1] : memref<18x16x128xbf16, #tpu.memory_space<vmem>>, vector<1x16x128xbf16>
    tpu.vector_store %arg34[%c0, %c0_0, %c0_1], %0 {strides = array<i32>} : memref<18x16x128xbf16, #tpu.memory_space<vmem>>, vector<1x16x128xbf16>,
    %c17 = arith.constant 17 : index
    %c0_2 = arith.constant 0 : index
    %c0_3 = arith.constant 0 : index
    %2 = vector.load %arg34[%c17, %c0_2, %c0_3] : memref<18x16x128xbf16, #tpu.memory_space<vmem>>, vector<1x16x128xbf16>
    tpu.vector_store %arg34[%c17, %c0_2, %c0_3], %0 {strides = array<i32>} : memref<18x16x128xbf16, #tpu.memory_space<vmem>>, vector<1x16x128xbf16>,
    %cst_4 = arith.constant 0.000000e+00 : bf16
    %3 = vector.broadcast %cst_4 : bf16 to vector<1x8x128xbf16>
    %c0_5 = arith.constant 0 : index
    %c0_6 = arith.constant 0 : index
    %c0_7 = arith.constant 0 : index
    %4 = vector.load %arg35[%c0_5, %c0_6, %c0_7] : memref<10x8x128xbf16, #tpu.memory_space<vmem>>, vector<1x8x128xbf16>
    tpu.vector_store %arg35[%c0_5, %c0_6, %c0_7], %3 {strides = array<i32>} : memref<10x8x128xbf16, #tpu.memory_space<vmem>>, vector<1x8x128xbf16>,
    %c9 = arith.constant 9 : index
    %c0_8 = arith.constant 0 : index
    %c0_9 = arith.constant 0 : index
    %5 = vector.load %arg35[%c9, %c0_8, %c0_9] : memref<10x8x128xbf16, #tpu.memory_space<vmem>>, vector<1x8x128xbf16>
    tpu.vector_store %arg35[%c9, %c0_8, %c0_9], %3 {strides = array<i32>} : memref<10x8x128xbf16, #tpu.memory_space<vmem>>, vector<1x8x128xbf16>,
    %cst_10 = arith.constant 0.000000e+00 : bf16
    %6 = vector.broadcast %cst_10 : bf16 to vector<1x4x128xbf16>
    %c0_11 = arith.constant 0 : index
    %c0_12 = arith.constant 0 : index
    %c0_13 = arith.constant 0 : index
    %7 = vector.load %arg36[%c0_11, %c0_12, %c0_13] : memref<6x4x128xbf16, #tpu.memory_space<vmem>>, vector<1x4x128xbf16>
    tpu.vector_store %arg36[%c0_11, %c0_12, %c0_13], %6 {strides = array<i32>} : memref<6x4x128xbf16, #tpu.memory_space<vmem>>, vector<1x4x128xbf16>,
    %c5 = arith.constant 5 : index
    %c0_14 = arith.constant 0 : index
    %c0_15 = arith.constant 0 : index
    %8 = vector.load %arg36[%c5, %c0_14, %c0_15] : memref<6x4x128xbf16, #tpu.memory_space<vmem>>, vector<1x4x128xbf16>
    tpu.vector_store %arg36[%c5, %c0_14, %c0_15], %6 {strides = array<i32>} : memref<6x4x128xbf16, #tpu.memory_space<vmem>>, vector<1x4x128xbf16>,
    %c0_16 = arith.constant 0 : index
    %c0_17 = arith.constant 0 : index
    %c0_18 = arith.constant 0 : index
    %9 = vector.load %arg1[%c0_16, %c0_17, %c0_18] : memref<1x256x128xf32, #tpu.memory_space<vmem>>, vector<1x256x128xf32>
    %10 = vector.shape_cast %9 : vector<1x256x128xf32> to vector<256x128xf32>
    %11 = vector.shape_cast %10 : vector<256x128xf32> to vector<16x16x128xf32>
    %12 = vector.extract_strided_slice %11 {offsets = [0, 0, 0], sizes = [16, 16, 32], strides = [1, 1, 1]} : vector<16x16x128xf32> to vector<16x16x32xf32>
    %13 = arith.truncf %12 : vector<16x16x32xf32> to vector<16x16x32xbf16>
    %cst_19 = arith.constant 0.000000e+00 : bf16
    %14 = vector.broadcast %cst_19 : bf16 to vector<16x1x32xbf16>
    %15 = vector.extract_strided_slice %13 {offsets = [0, 0, 0], sizes = [16, 15, 32], strides = [1, 1, 1]} : vector<16x16x32xbf16> to vector<16x15x32xbf16>
    %16 = tpu.concatenate %14, %15 in 1 : vector<16x1x32xbf16>, vector<16x15x32xbf16> -> vector<16x16x32xbf16>
    %17 = vector.extract_strided_slice %13 {offsets = [0, 1, 0], sizes = [16, 15, 32], strides = [1, 1, 1]} : vector<16x16x32xbf16> to vector<16x15x32xbf16>
    %18 = tpu.concatenate %17, %14 in 1 : vector<16x15x32xbf16>, vector<16x1x32xbf16> -> vector<16x16x32xbf16>
    %cst_20 = arith.constant 0.000000e+00 : bf16
    %19 = vector.broadcast %cst_20 : bf16 to vector<16x16x32xbf16>
    %20 = tpu.concatenate %16, %13, %18, %19 in 2 : vector<16x16x32xbf16>, vector<16x16x32xbf16>, vector<16x16x32xbf16>, vector<16x16x32xbf16> -> vector<16x16x128xbf16>
    %c1 = arith.constant 1 : index
    %c0_21 = arith.constant 0 : index
    %c0_22 = arith.constant 0 : index
    %21 = vector.load %arg34[%c1, %c0_21, %c0_22] : memref<18x16x128xbf16, #tpu.memory_space<vmem>>, vector<16x16x128xbf16>
    tpu.vector_store %arg34[%c1, %c0_21, %c0_22], %20 {strides = array<i32>} : memref<18x16x128xbf16, #tpu.memory_space<vmem>>, vector<16x16x128xbf16>,
    %c0_23 = arith.constant 0 : index
    %c0_24 = arith.constant 0 : index
    %c0_25 = arith.constant 0 : index
    %22 = vector.load %arg34[%c0_23, %c0_24, %c0_25] : memref<18x16x128xbf16, #tpu.memory_space<vmem>>, vector<16x16x128xbf16>
    %23 = vector.shape_cast %22 : vector<16x16x128xbf16> to vector<256x128xbf16>
    %c0_26 = arith.constant 0 : index
    %c0_27 = arith.constant 0 : index
    %c0_28 = arith.constant 0 : index
    %24 = vector.load %arg8[%c0_26, %c0_27, %c0_28] : memref<3x128x128xbf16, #tpu.memory_space<vmem>>, vector<1x128x128xbf16>
    %25 = vector.shape_cast %24 : vector<1x128x128xbf16> to vector<128x128xbf16>
    %cst_29 = arith.constant dense<0.000000e+00> : vector<256x128xf32>
    %26 = tpu.matmul %23, %25, %cst_29 {dimension_numbers = #tpu.dot_dimension_numbers<[1], [0], [0], [1], [0, 0, 1, 1], [], []>} : vector<256x128xbf16>, vector<128x128xbf16>, vector<256x128xf32> -> vector<256x128xf32>
    %c1_30 = arith.constant 1 : index
    %c0_31 = arith.constant 0 : index
    %c0_32 = arith.constant 0 : index
    %27 = vector.load %arg34[%c1_30, %c0_31, %c0_32] : memref<18x16x128xbf16, #tpu.memory_space<vmem>>, vector<16x16x128xbf16>
    %28 = vector.shape_cast %27 : vector<16x16x128xbf16> to vector<256x128xbf16>
    %c1_33 = arith.constant 1 : index
    %c0_34 = arith.constant 0 : index
    %c0_35 = arith.constant 0 : index
    %29 = vector.load %arg8[%c1_33, %c0_34, %c0_35] : memref<3x128x128xbf16, #tpu.memory_space<vmem>>, vector<1x128x128xbf16>
    %30 = vector.shape_cast %29 : vector<1x128x128xbf16> to vector<128x128xbf16>
    %cst_36 = arith.constant dense<0.000000e+00> : vector<256x128xf32>
    %31 = tpu.matmul %28, %30, %cst_36 {dimension_numbers = #tpu.dot_dimension_numbers<[1], [0], [0], [1], [0, 0, 1, 1], [], []>} : vector<256x128xbf16>, vector<128x128xbf16>, vector<256x128xf32> -> vector<256x128xf32>
    %32 = arith.addf %26, %31 : vector<256x128xf32>
    %c2 = arith.constant 2 : index
    %c0_37 = arith.constant 0 : index
    %c0_38 = arith.constant 0 : index
    %33 = vector.load %arg34[%c2, %c0_37, %c0_38] : memref<18x16x128xbf16, #tpu.memory_space<vmem>>, vector<16x16x128xbf16>
    %34 = vector.shape_cast %33 : vector<16x16x128xbf16> to vector<256x128xbf16>
    %c2_39 = arith.constant 2 : index
    %c0_40 = arith.constant 0 : index
    %c0_41 = arith.constant 0 : index
    %35 = vector.load %arg8[%c2_39, %c0_40, %c0_41] : memref<3x128x128xbf16, #tpu.memory_space<vmem>>, vector<1x128x128xbf16>
    %36 = vector.shape_cast %35 : vector<1x128x128xbf16> to vector<128x128xbf16>
    %cst_42 = arith.constant dense<0.000000e+00> : vector<256x128xf32>
    %37 = tpu.matmul %34, %36, %cst_42 {dimension_numbers = #tpu.dot_dimension_numbers<[1], [0], [0], [1], [0, 0, 1, 1], [], []>} : vector<256x128xbf16>, vector<128x128xbf16>, vector<256x128xf32> -> vector<256x128xf32>
    %38 = arith.addf %32, %37 : vector<256x128xf32>
    %c0_43 = arith.constant 0 : index
    %c0_44 = arith.constant 0 : index
    %39 = vector.load %arg9[%c0_43, %c0_44] : memref<1x128xf32, #tpu.memory_space<vmem>>, vector<1x128xf32>
    %40 = vector.broadcast %39 : vector<1x128xf32> to vector<256x128xf32>
    %41 = arith.addf %38, %40 : vector<256x128xf32>
    %cst_45 = arith.constant 0.000000e+00 : f32
    %42 = vector.broadcast %cst_45 : f32 to vector<256x128xf32>
    %43 = arith.maximumf %41, %42 : vector<256x128xf32>
    %44 = vector.shape_cast %43 : vector<256x128xf32> to vector<16x16x128xf32>
    %45 = vector.extract_strided_slice %44 {offsets = [0, 0, 0], sizes = [16, 16, 32], strides = [1, 1, 1]} : vector<16x16x128xf32> to vector<16x16x32xf32>
    %46 = arith.truncf %45 : vector<16x16x32xf32> to vector<16x16x32xbf16>
    %cst_46 = arith.constant 0.000000e+00 : bf16
    %47 = vector.broadcast %cst_46 : bf16 to vector<16x1x32xbf16>
    %48 = vector.extract_strided_slice %46 {offsets = [0, 0, 0], sizes = [16, 15, 32], strides = [1, 1, 1]} : vector<16x16x32xbf16> to vector<16x15x32xbf16>
    %49 = tpu.concatenate %47, %48 in 1 : vector<16x1x32xbf16>, vector<16x15x32xbf16> -> vector<16x16x32xbf16>
    %50 = vector.extract_strided_slice %46 {offsets = [0, 1, 0], sizes = [16, 15, 32], strides = [1, 1, 1]} : vector<16x16x32xbf16> to vector<16x15x32xbf16>
    %51 = tpu.concatenate %50, %47 in 1 : vector<16x15x32xbf16>, vector<16x1x32xbf16> -> vector<16x16x32xbf16>
    %cst_47 = arith.constant 0.000000e+00 : bf16
    %52 = vector.broadcast %cst_47 : bf16 to vector<16x16x32xbf16>
    %53 = tpu.concatenate %49, %46, %51, %52 in 2 : vector<16x16x32xbf16>, vector<16x16x32xbf16>, vector<16x16x32xbf16>, vector<16x16x32xbf16> -> vector<16x16x128xbf16>
    %c1_48 = arith.constant 1 : index
    %c0_49 = arith.constant 0 : index
    %c0_50 = arith.constant 0 : index
    %54 = vector.load %arg34[%c1_48, %c0_49, %c0_50] : memref<18x16x128xbf16, #tpu.memory_space<vmem>>, vector<16x16x128xbf16>
    tpu.vector_store %arg34[%c1_48, %c0_49, %c0_50], %53 {strides = array<i32>} : memref<18x16x128xbf16, #tpu.memory_space<vmem>>, vector<16x16x128xbf16>,
    %c0_51 = arith.constant 0 : index
    %c0_52 = arith.constant 0 : index
    %c0_53 = arith.constant 0 : index
    %55 = vector.load %arg34[%c0_51, %c0_52, %c0_53] : memref<18x16x128xbf16, #tpu.memory_space<vmem>>, vector<16x16x128xbf16>
    %56 = vector.shape_cast %55 : vector<16x16x128xbf16> to vector<256x128xbf16>
    %c0_54 = arith.constant 0 : index
    %c0_55 = arith.constant 0 : index
    %c0_56 = arith.constant 0 : index
    %57 = vector.load %arg10[%c0_54, %c0_55, %c0_56] : memref<3x128x128xbf16, #tpu.memory_space<vmem>>, vector<1x128x128xbf16>
    %58 = vector.shape_cast %57 : vector<1x128x128xbf16> to vector<128x128xbf16>
    %cst_57 = arith.constant dense<0.000000e+00> : vector<256x128xf32>
    %59 = tpu.matmul %56, %58, %cst_57 {dimension_numbers = #tpu.dot_dimension_numbers<[1], [0], [0], [1], [0, 0, 1, 1], [], []>} : vector<256x128xbf16>, vector<128x128xbf16>, vector<256x128xf32> -> vector<256x128xf32>
    %c1_58 = arith.constant 1 : index
    %c0_59 = arith.constant 0 : index
    %c0_60 = arith.constant 0 : index
    %60 = vector.load %arg34[%c1_58, %c0_59, %c0_60] : memref<18x16x128xbf16, #tpu.memory_space<vmem>>, vector<16x16x128xbf16>
    %61 = vector.shape_cast %60 : vector<16x16x128xbf16> to vector<256x128xbf16>
    %c1_61 = arith.constant 1 : index
    %c0_62 = arith.constant 0 : index
    %c0_63 = arith.constant 0 : index
    %62 = vector.load %arg10[%c1_61, %c0_62, %c0_63] : memref<3x128x128xbf16, #tpu.memory_space<vmem>>, vector<1x128x128xbf16>
    %63 = vector.shape_cast %62 : vector<1x128x128xbf16> to vector<128x128xbf16>
    %cst_64 = arith.constant dense<0.000000e+00> : vector<256x128xf32>
    %64 = tpu.matmul %61, %63, %cst_64 {dimension_numbers = #tpu.dot_dimension_numbers<[1], [0], [0], [1], [0, 0, 1, 1], [], []>} : vector<256x128xbf16>, vector<128x128xbf16>, vector<256x128xf32> -> vector<256x128xf32>
    %65 = arith.addf %59, %64 : vector<256x128xf32>
    %c2_65 = arith.constant 2 : index
    %c0_66 = arith.constant 0 : index
    %c0_67 = arith.constant 0 : index
    %66 = vector.load %arg34[%c2_65, %c0_66, %c0_67] : memref<18x16x128xbf16, #tpu.memory_space<vmem>>, vector<16x16x128xbf16>
    %67 = vector.shape_cast %66 : vector<16x16x128xbf16> to vector<256x128xbf16>
    %c2_68 = arith.constant 2 : index
    %c0_69 = arith.constant 0 : index
    %c0_70 = arith.constant 0 : index
    %68 = vector.load %arg10[%c2_68, %c0_69, %c0_70] : memref<3x128x128xbf16, #tpu.memory_space<vmem>>, vector<1x128x128xbf16>
    %69 = vector.shape_cast %68 : vector<1x128x128xbf16> to vector<128x128xbf16>
    %cst_71 = arith.constant dense<0.000000e+00> : vector<256x128xf32>
    %70 = tpu.matmul %67, %69, %cst_71 {dimension_numbers = #tpu.dot_dimension_numbers<[1], [0], [0], [1], [0, 0, 1, 1], [], []>} : vector<256x128xbf16>, vector<128x128xbf16>, vector<256x128xf32> -> vector<256x128xf32>
    %71 = arith.addf %65, %70 : vector<256x128xf32>
    %c0_72 = arith.constant 0 : index
    %c0_73 = arith.constant 0 : index
    %72 = vector.load %arg11[%c0_72, %c0_73] : memref<1x128xf32, #tpu.memory_space<vmem>>, vector<1x128xf32>
    %73 = vector.broadcast %72 : vector<1x128xf32> to vector<256x128xf32>
    %74 = arith.addf %71, %73 : vector<256x128xf32>
    %c0_74 = arith.constant 0 : index
    %c0_75 = arith.constant 0 : index
    %75 = vector.load %arg3[%c0_74, %c0_75] : memref<64x256xbf16, #tpu.memory_space<vmem>>, vector<64x256xbf16>
    %76 = arith.truncf %74 : vector<256x128xf32> to vector<256x128xbf16>
    %cst_76 = arith.constant dense<0.000000e+00> : vector<64x128xf32>
    %77 = tpu.matmul %75, %76, %cst_76 {dimension_numbers = #tpu.dot_dimension_numbers<[1], [0], [0], [1], [0, 0, 1, 1], [], []>} : vector<64x256xbf16>, vector<256x128xbf16>, vector<64x128xf32> -> vector<64x128xf32>
    %c0_77 = arith.constant 0 : index
    %c0_78 = arith.constant 0 : index
    %78 = vector.load %arg3[%c0_77, %c0_78] : memref<64x256xbf16, #tpu.memory_space<vmem>>, vector<64x256xbf16>
    %79 = arith.truncf %10 : vector<256x128xf32> to vector<256x128xbf16>
    %cst_79 = arith.constant dense<0.000000e+00> : vector<64x128xf32>
    %80 = tpu.matmul %78, %79, %cst_79 {dimension_numbers = #tpu.dot_dimension_numbers<[1], [0], [0], [1], [0, 0, 1, 1], [], []>} : vector<64x256xbf16>, vector<256x128xbf16>, vector<64x128xf32> -> vector<64x128xf32>
    %81 = arith.truncf %80 : vector<64x128xf32> to vector<64x128xbf16>
    %c0_80 = arith.constant 0 : index
    %c0_81 = arith.constant 0 : index
    %82 = vector.load %arg6[%c0_80, %c0_81] : memref<128x128xbf16, #tpu.memory_space<vmem>>, vector<128x128xbf16>
    %cst_82 = arith.constant dense<0.000000e+00> : vector<64x128xf32>
    %83 = tpu.matmul %81, %82, %cst_82 {dimension_numbers = #tpu.dot_dimension_numbers<[1], [0], [0], [1], [0, 0, 1, 1], [], []>} : vector<64x128xbf16>, vector<128x128xbf16>, vector<64x128xf32> -> vector<64x128xf32>
    %c0_83 = arith.constant 0 : index
    %c0_84 = arith.constant 0 : index
    %84 = vector.load %arg7[%c0_83, %c0_84] : memref<1x128xf32, #tpu.memory_space<vmem>>, vector<1x128xf32>
    %85 = vector.broadcast %84 : vector<1x128xf32> to vector<64x128xf32>
    %86 = arith.addf %83, %85 : vector<64x128xf32>
    %87 = arith.addf %77, %86 : vector<64x128xf32>
    %88 = arith.truncf %87 : vector<64x128xf32> to vector<64x128xbf16>
    %c0_85 = arith.constant 0 : index
    %c0_86 = arith.constant 0 : index
    %89 = vector.load %arg12[%c0_85, %c0_86] : memref<128x128xbf16, #tpu.memory_space<vmem>>, vector<128x128xbf16>
    %cst_87 = arith.constant dense<0.000000e+00> : vector<64x128xf32>
    %90 = tpu.matmul %88, %89, %cst_87 {dimension_numbers = #tpu.dot_dimension_numbers<[1], [0], [0], [1], [0, 0, 1, 1], [], []>} : vector<64x128xbf16>, vector<128x128xbf16>, vector<64x128xf32> -> vector<64x128xf32>
    %91 = arith.truncf %87 : vector<64x128xf32> to vector<64x128xbf16>
    %c0_88 = arith.constant 0 : index
    %c0_89 = arith.constant 0 : index
    %92 = vector.load %arg13[%c0_88, %c0_89] : memref<128x128xbf16, #tpu.memory_space<vmem>>, vector<128x128xbf16>
    %cst_90 = arith.constant dense<0.000000e+00> : vector<64x128xf32>
    %93 = tpu.matmul %91, %92, %cst_90 {dimension_numbers = #tpu.dot_dimension_numbers<[1], [0], [0], [1], [0, 0, 1, 1], [], []>} : vector<64x128xbf16>, vector<128x128xbf16>, vector<64x128xf32> -> vector<64x128xf32>
    %94 = arith.truncf %93 : vector<64x128xf32> to vector<64x128xbf16>
    %c0_91 = arith.constant 0 : index
    %c0_92 = arith.constant 0 : index
    %c0_93 = arith.constant 0 : index
    %95 = vector.load %arg5[%c0_91, %c0_92, %c0_93] : memref<4x16x64xbf16, #tpu.memory_space<vmem>>, vector<1x16x64xbf16>
    %96 = vector.shape_cast %95 : vector<1x16x64xbf16> to vector<16x64xbf16>
    %cst_94 = arith.constant dense<0.000000e+00> : vector<16x128xf32>
    %97 = tpu.matmul %96, %94, %cst_94 {dimension_numbers = #tpu.dot_dimension_numbers<[1], [0], [0], [1], [0, 0, 1, 1], [], []>} : vector<16x64xbf16>, vector<64x128xbf16>, vector<16x128xf32> -> vector<16x128xf32>
    %c1_95 = arith.constant 1 : index
    %c0_96 = arith.constant 0 : index
    %c0_97 = arith.constant 0 : index
    %98 = vector.load %arg5[%c1_95, %c0_96, %c0_97] : memref<4x16x64xbf16, #tpu.memory_space<vmem>>, vector<1x16x64xbf16>
    %99 = vector.shape_cast %98 : vector<1x16x64xbf16> to vector<16x64xbf16>
    %cst_98 = arith.constant dense<0.000000e+00> : vector<16x128xf32>
    %100 = tpu.matmul %99, %94, %cst_98 {dimension_numbers = #tpu.dot_dimension_numbers<[1], [0], [0], [1], [0, 0, 1, 1], [], []>} : vector<16x64xbf16>, vector<64x128xbf16>, vector<16x128xf32> -> vector<16x128xf32>
    %101 = arith.maximumf %97, %100 : vector<16x128xf32>
    %c2_99 = arith.constant 2 : index
    %c0_100 = arith.constant 0 : index
    %c0_101 = arith.constant 0 : index
    %102 = vector.load %arg5[%c2_99, %c0_100, %c0_101] : memref<4x16x64xbf16, #tpu.memory_space<vmem>>, vector<1x16x64xbf16>
    %103 = vector.shape_cast %102 : vector<1x16x64xbf16> to vector<16x64xbf16>
    %cst_102 = arith.constant dense<0.000000e+00> : vector<16x128xf32>
    %104 = tpu.matmul %103, %94, %cst_102 {dimension_numbers = #tpu.dot_dimension_numbers<[1], [0], [0], [1], [0, 0, 1, 1], [], []>} : vector<16x64xbf16>, vector<64x128xbf16>, vector<16x128xf32> -> vector<16x128xf32>
    %105 = arith.maximumf %101, %104 : vector<16x128xf32>
    %c3 = arith.constant 3 : index
    %c0_103 = arith.constant 0 : index
    %c0_104 = arith.constant 0 : index
    %106 = vector.load %arg5[%c3, %c0_103, %c0_104] : memref<4x16x64xbf16, #tpu.memory_space<vmem>>, vector<1x16x64xbf16>
    %107 = vector.shape_cast %106 : vector<1x16x64xbf16> to vector<16x64xbf16>
    %cst_105 = arith.constant dense<0.000000e+00> : vector<16x128xf32>
    %108 = tpu.matmul %107, %94, %cst_105 {dimension_numbers = #tpu.dot_dimension_numbers<[1], [0], [0], [1], [0, 0, 1, 1], [], []>} : vector<16x64xbf16>, vector<64x128xbf16>, vector<16x128xf32> -> vector<16x128xf32>
    %109 = arith.maximumf %105, %108 : vector<16x128xf32>
    %110 = arith.truncf %87 : vector<64x128xf32> to vector<64x128xbf16>
    %c0_106 = arith.constant 0 : index
    %c0_107 = arith.constant 0 : index
    %111 = vector.load %arg14[%c0_106, %c0_107] : memref<128x128xbf16, #tpu.memory_space<vmem>>, vector<128x128xbf16>
    %cst_108 = arith.constant dense<0.000000e+00> : vector<64x128xf32>
    %112 = tpu.matmul %110, %111, %cst_108 {dimension_numbers = #tpu.dot_dimension_numbers<[1], [0], [0], [1], [0, 0, 1, 1], [], []>} : vector<64x128xbf16>, vector<128x128xbf16>, vector<64x128xf32> -> vector<64x128xf32>
    %113 = arith.truncf %112 : vector<64x128xf32> to vector<64x128xbf16>
    %c0_109 = arith.constant 0 : index
    %c0_110 = arith.constant 0 : index
    %c0_111 = arith.constant 0 : index
    %114 = vector.load %arg5[%c0_109, %c0_110, %c0_111] : memref<4x16x64xbf16, #tpu.memory_space<vmem>>, vector<1x16x64xbf16>
    %115 = vector.shape_cast %114 : vector<1x16x64xbf16> to vector<16x64xbf16>
    %cst_112 = arith.constant dense<0.000000e+00> : vector<16x128xf32>
    %116 = tpu.matmul %115, %113, %cst_112 {dimension_numbers = #tpu.dot_dimension_numbers<[1], [0], [0], [1], [0, 0, 1, 1], [], []>} : vector<16x64xbf16>, vector<64x128xbf16>, vector<16x128xf32> -> vector<16x128xf32>
    %c1_113 = arith.constant 1 : index
    %c0_114 = arith.constant 0 : index
    %c0_115 = arith.constant 0 : index
    %117 = vector.load %arg5[%c1_113, %c0_114, %c0_115] : memref<4x16x64xbf16, #tpu.memory_space<vmem>>, vector<1x16x64xbf16>
    %118 = vector.shape_cast %117 : vector<1x16x64xbf16> to vector<16x64xbf16>
    %cst_116 = arith.constant dense<0.000000e+00> : vector<16x128xf32>
    %119 = tpu.matmul %118, %113, %cst_116 {dimension_numbers = #tpu.dot_dimension_numbers<[1], [0], [0], [1], [0, 0, 1, 1], [], []>} : vector<16x64xbf16>, vector<64x128xbf16>, vector<16x128xf32> -> vector<16x128xf32>
    %120 = arith.maximumf %116, %119 : vector<16x128xf32>
    %c2_117 = arith.constant 2 : index
    %c0_118 = arith.constant 0 : index
    %c0_119 = arith.constant 0 : index
    %121 = vector.load %arg5[%c2_117, %c0_118, %c0_119] : memref<4x16x64xbf16, #tpu.memory_space<vmem>>, vector<1x16x64xbf16>
    %122 = vector.shape_cast %121 : vector<1x16x64xbf16> to vector<16x64xbf16>
    %cst_120 = arith.constant dense<0.000000e+00> : vector<16x128xf32>
    %123 = tpu.matmul %122, %113, %cst_120 {dimension_numbers = #tpu.dot_dimension_numbers<[1], [0], [0], [1], [0, 0, 1, 1], [], []>} : vector<16x64xbf16>, vector<64x128xbf16>, vector<16x128xf32> -> vector<16x128xf32>
    %124 = arith.maximumf %120, %123 : vector<16x128xf32>
    %c3_121 = arith.constant 3 : index
    %c0_122 = arith.constant 0 : index
    %c0_123 = arith.constant 0 : index
    %125 = vector.load %arg5[%c3_121, %c0_122, %c0_123] : memref<4x16x64xbf16, #tpu.memory_space<vmem>>, vector<1x16x64xbf16>
    %126 = vector.shape_cast %125 : vector<1x16x64xbf16> to vector<16x64xbf16>
    %cst_124 = arith.constant dense<0.000000e+00> : vector<16x128xf32>
    %127 = tpu.matmul %126, %113, %cst_124 {dimension_numbers = #tpu.dot_dimension_numbers<[1], [0], [0], [1], [0, 0, 1, 1], [], []>} : vector<16x64xbf16>, vector<64x128xbf16>, vector<16x128xf32> -> vector<16x128xf32>
    %128 = arith.maximumf %124, %127 : vector<16x128xf32>
    %129 = arith.truncf %90 : vector<64x128xf32> to vector<64x128xbf16>
    %130 = arith.truncf %109 : vector<16x128xf32> to vector<16x128xbf16>
    "tpu.trace_start"() <{level = 10 : i32, message = "qc,kc->qk"}> : () -> ()
    %cst_125 = arith.constant dense<0.000000e+00> : vector<64x16xf32>
    %131 = tpu.matmul %129, %130, %cst_125 {dimension_numbers = #tpu.dot_dimension_numbers<[1], [1], [0], [0], [0, 0, 1, 0], [], []>} : vector<64x128xbf16>, vector<16x128xbf16>, vector<64x16xf32> -> vector<64x16xf32>
    "tpu.trace_stop"() : () -> ()
    %cst_126 = arith.constant dense<0xFF800000> : vector<64xf32>
    %132 = vector.multi_reduction <maximumf>, %131, %cst_126 [1] : vector<64x16xf32> to vector<64xf32>
    %133 = vector.shape_cast %132 : vector<64xf32> to vector<64x1xf32>
    %134 = vector.broadcast %133 : vector<64x1xf32> to vector<64x16xf32>
    %135 = arith.subf %131, %134 : vector<64x16xf32>
    %136 = math.exp %135 : vector<64x16xf32>
    %cst_127 = arith.constant dense<0.000000e+00> : vector<64xf32>
    %137 = vector.multi_reduction <add>, %136, %cst_127 [1] : vector<64x16xf32> to vector<64xf32>
    %138 = vector.shape_cast %137 : vector<64xf32> to vector<64x1xf32>
    %139 = vector.broadcast %138 : vector<64x1xf32> to vector<64x16xf32>
    %140 = arith.divf %136, %139 : vector<64x16xf32>
    %141 = arith.truncf %140 : vector<64x16xf32> to vector<64x16xbf16>
    %142 = arith.truncf %128 : vector<16x128xf32> to vector<16x128xbf16>
    %cst_128 = arith.constant dense<0.000000e+00> : vector<64x128xf32>
    %143 = tpu.matmul %141, %142, %cst_128 {dimension_numbers = #tpu.dot_dimension_numbers<[1], [0], [0], [1], [0, 0, 1, 1], [], []>} : vector<64x16xbf16>, vector<16x128xbf16>, vector<64x128xf32> -> vector<64x128xf32>
    %144 = arith.truncf %143 : vector<64x128xf32> to vector<64x128xbf16>
    %c0_129 = arith.constant 0 : index
    %c0_130 = arith.constant 0 : index
    %145 = vector.load %arg15[%c0_129, %c0_130] : memref<128x128xbf16, #tpu.memory_space<vmem>>, vector<128x128xbf16>
    %cst_131 = arith.constant dense<0.000000e+00> : vector<64x128xf32>
    %146 = tpu.matmul %144, %145, %cst_131 {dimension_numbers = #tpu.dot_dimension_numbers<[1], [0], [0], [1], [0, 0, 1, 1], [], []>} : vector<64x128xbf16>, vector<128x128xbf16>, vector<64x128xf32> -> vector<64x128xf32>
    %c0_132 = arith.constant 0 : index
    %c0_133 = arith.constant 0 : index
    %147 = vector.load %arg16[%c0_132, %c0_133] : memref<1x1xf32, #tpu.memory_space<vmem>>, vector<1x1xf32>
    %148 = vector.broadcast %147 : vector<1x1xf32> to vector<64x128xf32>
    %149 = arith.mulf %148, %146 : vector<64x128xf32>
    %150 = arith.addf %87, %149 : vector<64x128xf32>
    %151 = arith.truncf %150 : vector<64x128xf32> to vector<64x128xbf16>
    %c0_134 = arith.constant 0 : index
    %c0_135 = arith.constant 0 : index
    %152 = vector.load %arg17[%c0_134, %c0_135] : memref<128x128xbf16, #tpu.memory_space<vmem>>, vector<128x128xbf16>
    %cst_136 = arith.constant dense<0.000000e+00> : vector<64x128xf32>
    %153 = tpu.matmul %151, %152, %cst_136 {dimension_numbers = #tpu.dot_dimension_numbers<[1], [0], [0], [1], [0, 0, 1, 1], [], []>} : vector<64x128xbf16>, vector<128x128xbf16>, vector<64x128xf32> -> vector<64x128xf32>
    %c0_137 = arith.constant 0 : index
    %c0_138 = arith.constant 0 : index
    %154 = vector.load %arg18[%c0_137, %c0_138] : memref<1x128xf32, #tpu.memory_space<vmem>>, vector<1x128xf32>
    %155 = vector.broadcast %154 : vector<1x128xf32> to vector<64x128xf32>
    %156 = arith.addf %153, %155 : vector<64x128xf32>
    %c0_139 = arith.constant 0 : index
    %c0_140 = arith.constant 0 : index
    %157 = vector.load %arg4[%c0_139, %c0_140] : memref<16x64xbf16, #tpu.memory_space<vmem>>, vector<16x64xbf16>
    %158 = arith.truncf %156 : vector<64x128xf32> to vector<64x128xbf16>
    %cst_141 = arith.constant dense<0.000000e+00> : vector<16x128xf32>
    %159 = tpu.matmul %157, %158, %cst_141 {dimension_numbers = #tpu.dot_dimension_numbers<[1], [0], [0], [1], [0, 0, 1, 1], [], []>} : vector<16x64xbf16>, vector<64x128xbf16>, vector<16x128xf32> -> vector<16x128xf32>
    %cst_142 = arith.constant 0.000000e+00 : f32
    %160 = vector.broadcast %cst_142 : f32 to vector<64x128xf32>
    %161 = arith.maximumf %150, %160 : vector<64x128xf32>
    %162 = vector.shape_cast %161 : vector<64x128xf32> to vector<8x8x128xf32>
    %163 = vector.extract_strided_slice %162 {offsets = [0, 0, 0], sizes = [8, 8, 32], strides = [1, 1, 1]} : vector<8x8x128xf32> to vector<8x8x32xf32>
    %164 = arith.truncf %163 : vector<8x8x32xf32> to vector<8x8x32xbf16>
    %cst_143 = arith.constant 0.000000e+00 : bf16
    %165 = vector.broadcast %cst_143 : bf16 to vector<8x1x32xbf16>
    %166 = vector.extract_strided_slice %164 {offsets = [0, 0, 0], sizes = [8, 7, 32], strides = [1, 1, 1]} : vector<8x8x32xbf16> to vector<8x7x32xbf16>
    %167 = tpu.concatenate %165, %166 in 1 : vector<8x1x32xbf16>, vector<8x7x32xbf16> -> vector<8x8x32xbf16>
    %168 = vector.extract_strided_slice %164 {offsets = [0, 1, 0], sizes = [8, 7, 32], strides = [1, 1, 1]} : vector<8x8x32xbf16> to vector<8x7x32xbf16>
    %169 = tpu.concatenate %168, %165 in 1 : vector<8x7x32xbf16>, vector<8x1x32xbf16> -> vector<8x8x32xbf16>
    %cst_144 = arith.constant 0.000000e+00 : bf16
    %170 = vector.broadcast %cst_144 : bf16 to vector<8x8x32xbf16>
    %171 = tpu.concatenate %167, %164, %169, %170 in 2 : vector<8x8x32xbf16>, vector<8x8x32xbf16>, vector<8x8x32xbf16>, vector<8x8x32xbf16> -> vector<8x8x128xbf16>
    %c1_145 = arith.constant 1 : index
    %c0_146 = arith.constant 0 : index
    %c0_147 = arith.constant 0 : index
    %172 = vector.load %arg35[%c1_145, %c0_146, %c0_147] : memref<10x8x128xbf16, #tpu.memory_space<vmem>>, vector<8x8x128xbf16>
    tpu.vector_store %arg35[%c1_145, %c0_146, %c0_147], %171 {strides = array<i32>} : memref<10x8x128xbf16, #tpu.memory_space<vmem>>, vector<8x8x128xbf16>,
    %c0_148 = arith.constant 0 : index
    %c0_149 = arith.constant 0 : index
    %c0_150 = arith.constant 0 : index
    %173 = vector.load %arg35[%c0_148, %c0_149, %c0_150] : memref<10x8x128xbf16, #tpu.memory_space<vmem>>, vector<8x8x128xbf16>
    %174 = vector.shape_cast %173 : vector<8x8x128xbf16> to vector<64x128xbf16>
    %c0_151 = arith.constant 0 : index
    %c0_152 = arith.constant 0 : index
    %c0_153 = arith.constant 0 : index
    %175 = vector.load %arg19[%c0_151, %c0_152, %c0_153] : memref<3x128x128xbf16, #tpu.memory_space<vmem>>, vector<1x128x128xbf16>
    %176 = vector.shape_cast %175 : vector<1x128x128xbf16> to vector<128x128xbf16>
    %cst_154 = arith.constant dense<0.000000e+00> : vector<64x128xf32>
    %177 = tpu.matmul %174, %176, %cst_154 {dimension_numbers = #tpu.dot_dimension_numbers<[1], [0], [0], [1], [0, 0, 1, 1], [], []>} : vector<64x128xbf16>, vector<128x128xbf16>, vector<64x128xf32> -> vector<64x128xf32>
    %c1_155 = arith.constant 1 : index
    %c0_156 = arith.constant 0 : index
    %c0_157 = arith.constant 0 : index
    %178 = vector.load %arg35[%c1_155, %c0_156, %c0_157] : memref<10x8x128xbf16, #tpu.memory_space<vmem>>, vector<8x8x128xbf16>
    %179 = vector.shape_cast %178 : vector<8x8x128xbf16> to vector<64x128xbf16>
    %c1_158 = arith.constant 1 : index
    %c0_159 = arith.constant 0 : index
    %c0_160 = arith.constant 0 : index
    %180 = vector.load %arg19[%c1_158, %c0_159, %c0_160] : memref<3x128x128xbf16, #tpu.memory_space<vmem>>, vector<1x128x128xbf16>
    %181 = vector.shape_cast %180 : vector<1x128x128xbf16> to vector<128x128xbf16>
    %cst_161 = arith.constant dense<0.000000e+00> : vector<64x128xf32>
    %182 = tpu.matmul %179, %181, %cst_161 {dimension_numbers = #tpu.dot_dimension_numbers<[1], [0], [0], [1], [0, 0, 1, 1], [], []>} : vector<64x128xbf16>, vector<128x128xbf16>, vector<64x128xf32> -> vector<64x128xf32>
    %183 = arith.addf %177, %182 : vector<64x128xf32>
    %c2_162 = arith.constant 2 : index
    %c0_163 = arith.constant 0 : index
    %c0_164 = arith.constant 0 : index
    %184 = vector.load %arg35[%c2_162, %c0_163, %c0_164] : memref<10x8x128xbf16, #tpu.memory_space<vmem>>, vector<8x8x128xbf16>
    %185 = vector.shape_cast %184 : vector<8x8x128xbf16> to vector<64x128xbf16>
    %c2_165 = arith.constant 2 : index
    %c0_166 = arith.constant 0 : index
    %c0_167 = arith.constant 0 : index
    %186 = vector.load %arg19[%c2_165, %c0_166, %c0_167] : memref<3x128x128xbf16, #tpu.memory_space<vmem>>, vector<1x128x128xbf16>
    %187 = vector.shape_cast %186 : vector<1x128x128xbf16> to vector<128x128xbf16>
    %cst_168 = arith.constant dense<0.000000e+00> : vector<64x128xf32>
    %188 = tpu.matmul %185, %187, %cst_168 {dimension_numbers = #tpu.dot_dimension_numbers<[1], [0], [0], [1], [0, 0, 1, 1], [], []>} : vector<64x128xbf16>, vector<128x128xbf16>, vector<64x128xf32> -> vector<64x128xf32>
    %189 = arith.addf %183, %188 : vector<64x128xf32>
    %c0_169 = arith.constant 0 : index
    %c0_170 = arith.constant 0 : index
    %190 = vector.load %arg20[%c0_169, %c0_170] : memref<1x128xf32, #tpu.memory_space<vmem>>, vector<1x128xf32>
    %191 = vector.broadcast %190 : vector<1x128xf32> to vector<64x128xf32>
    %192 = arith.addf %189, %191 : vector<64x128xf32>
    %cst_171 = arith.constant 0.000000e+00 : f32
    %193 = vector.broadcast %cst_171 : f32 to vector<64x128xf32>
    %194 = arith.maximumf %192, %193 : vector<64x128xf32>
    %195 = vector.shape_cast %194 : vector<64x128xf32> to vector<8x8x128xf32>
    %196 = vector.extract_strided_slice %195 {offsets = [0, 0, 0], sizes = [8, 8, 32], strides = [1, 1, 1]} : vector<8x8x128xf32> to vector<8x8x32xf32>
    %197 = arith.truncf %196 : vector<8x8x32xf32> to vector<8x8x32xbf16>
    %cst_172 = arith.constant 0.000000e+00 : bf16
    %198 = vector.broadcast %cst_172 : bf16 to vector<8x1x32xbf16>
    %199 = vector.extract_strided_slice %197 {offsets = [0, 0, 0], sizes = [8, 7, 32], strides = [1, 1, 1]} : vector<8x8x32xbf16> to vector<8x7x32xbf16>
    %200 = tpu.concatenate %198, %199 in 1 : vector<8x1x32xbf16>, vector<8x7x32xbf16> -> vector<8x8x32xbf16>
    %201 = vector.extract_strided_slice %197 {offsets = [0, 1, 0], sizes = [8, 7, 32], strides = [1, 1, 1]} : vector<8x8x32xbf16> to vector<8x7x32xbf16>
    %202 = tpu.concatenate %201, %198 in 1 : vector<8x7x32xbf16>, vector<8x1x32xbf16> -> vector<8x8x32xbf16>
    %cst_173 = arith.constant 0.000000e+00 : bf16
    %203 = vector.broadcast %cst_173 : bf16 to vector<8x8x32xbf16>
    %204 = tpu.concatenate %200, %197, %202, %203 in 2 : vector<8x8x32xbf16>, vector<8x8x32xbf16>, vector<8x8x32xbf16>, vector<8x8x32xbf16> -> vector<8x8x128xbf16>
    %c1_174 = arith.constant 1 : index
    %c0_175 = arith.constant 0 : index
    %c0_176 = arith.constant 0 : index
    %205 = vector.load %arg35[%c1_174, %c0_175, %c0_176] : memref<10x8x128xbf16, #tpu.memory_space<vmem>>, vector<8x8x128xbf16>
    tpu.vector_store %arg35[%c1_174, %c0_175, %c0_176], %204 {strides = array<i32>} : memref<10x8x128xbf16, #tpu.memory_space<vmem>>, vector<8x8x128xbf16>,
    %c0_177 = arith.constant 0 : index
    %c0_178 = arith.constant 0 : index
    %c0_179 = arith.constant 0 : index
    %206 = vector.load %arg35[%c0_177, %c0_178, %c0_179] : memref<10x8x128xbf16, #tpu.memory_space<vmem>>, vector<8x8x128xbf16>
    %207 = vector.shape_cast %206 : vector<8x8x128xbf16> to vector<64x128xbf16>
    %c0_180 = arith.constant 0 : index
    %c0_181 = arith.constant 0 : index
    %c0_182 = arith.constant 0 : index
    %208 = vector.load %arg21[%c0_180, %c0_181, %c0_182] : memref<3x128x128xbf16, #tpu.memory_space<vmem>>, vector<1x128x128xbf16>
    %209 = vector.shape_cast %208 : vector<1x128x128xbf16> to vector<128x128xbf16>
    %cst_183 = arith.constant dense<0.000000e+00> : vector<64x128xf32>
    %210 = tpu.matmul %207, %209, %cst_183 {dimension_numbers = #tpu.dot_dimension_numbers<[1], [0], [0], [1], [0, 0, 1, 1], [], []>} : vector<64x128xbf16>, vector<128x128xbf16>, vector<64x128xf32> -> vector<64x128xf32>
    %c1_184 = arith.constant 1 : index
    %c0_185 = arith.constant 0 : index
    %c0_186 = arith.constant 0 : index
    %211 = vector.load %arg35[%c1_184, %c0_185, %c0_186] : memref<10x8x128xbf16, #tpu.memory_space<vmem>>, vector<8x8x128xbf16>
    %212 = vector.shape_cast %211 : vector<8x8x128xbf16> to vector<64x128xbf16>
    %c1_187 = arith.constant 1 : index
    %c0_188 = arith.constant 0 : index
    %c0_189 = arith.constant 0 : index
    %213 = vector.load %arg21[%c1_187, %c0_188, %c0_189] : memref<3x128x128xbf16, #tpu.memory_space<vmem>>, vector<1x128x128xbf16>
    %214 = vector.shape_cast %213 : vector<1x128x128xbf16> to vector<128x128xbf16>
    %cst_190 = arith.constant dense<0.000000e+00> : vector<64x128xf32>
    %215 = tpu.matmul %212, %214, %cst_190 {dimension_numbers = #tpu.dot_dimension_numbers<[1], [0], [0], [1], [0, 0, 1, 1], [], []>} : vector<64x128xbf16>, vector<128x128xbf16>, vector<64x128xf32> -> vector<64x128xf32>
    %216 = arith.addf %210, %215 : vector<64x128xf32>
    %c2_191 = arith.constant 2 : index
    %c0_192 = arith.constant 0 : index
    %c0_193 = arith.constant 0 : index
    %217 = vector.load %arg35[%c2_191, %c0_192, %c0_193] : memref<10x8x128xbf16, #tpu.memory_space<vmem>>, vector<8x8x128xbf16>
    %218 = vector.shape_cast %217 : vector<8x8x128xbf16> to vector<64x128xbf16>
    %c2_194 = arith.constant 2 : index
    %c0_195 = arith.constant 0 : index
    %c0_196 = arith.constant 0 : index
    %219 = vector.load %arg21[%c2_194, %c0_195, %c0_196] : memref<3x128x128xbf16, #tpu.memory_space<vmem>>, vector<1x128x128xbf16>
    %220 = vector.shape_cast %219 : vector<1x128x128xbf16> to vector<128x128xbf16>
    %cst_197 = arith.constant dense<0.000000e+00> : vector<64x128xf32>
    %221 = tpu.matmul %218, %220, %cst_197 {dimension_numbers = #tpu.dot_dimension_numbers<[1], [0], [0], [1], [0, 0, 1, 1], [], []>} : vector<64x128xbf16>, vector<128x128xbf16>, vector<64x128xf32> -> vector<64x128xf32>
    %222 = arith.addf %216, %221 : vector<64x128xf32>
    %c0_198 = arith.constant 0 : index
    %c0_199 = arith.constant 0 : index
    %223 = vector.load %arg22[%c0_198, %c0_199] : memref<1x128xf32, #tpu.memory_space<vmem>>, vector<1x128xf32>
    %224 = vector.broadcast %223 : vector<1x128xf32> to vector<64x128xf32>
    %225 = arith.addf %222, %224 : vector<64x128xf32>
    %c0_200 = arith.constant 0 : index
    %c0_201 = arith.constant 0 : index
    %226 = vector.load %arg4[%c0_200, %c0_201] : memref<16x64xbf16, #tpu.memory_space<vmem>>, vector<16x64xbf16>
    %227 = arith.truncf %225 : vector<64x128xf32> to vector<64x128xbf16>
    %cst_202 = arith.constant dense<0.000000e+00> : vector<16x128xf32>
    %228 = tpu.matmul %226, %227, %cst_202 {dimension_numbers = #tpu.dot_dimension_numbers<[1], [0], [0], [1], [0, 0, 1, 1], [], []>} : vector<16x64xbf16>, vector<64x128xbf16>, vector<16x128xf32> -> vector<16x128xf32>
    %229 = arith.addf %228, %159 : vector<16x128xf32>
    %cst_203 = arith.constant 0.000000e+00 : f32
    %230 = vector.broadcast %cst_203 : f32 to vector<16x128xf32>
    %231 = arith.maximumf %229, %230 : vector<16x128xf32>
    %232 = vector.shape_cast %231 : vector<16x128xf32> to vector<4x4x128xf32>
    %233 = vector.extract_strided_slice %232 {offsets = [0, 0, 0], sizes = [4, 4, 32], strides = [1, 1, 1]} : vector<4x4x128xf32> to vector<4x4x32xf32>
    %234 = arith.truncf %233 : vector<4x4x32xf32> to vector<4x4x32xbf16>
    %cst_204 = arith.constant 0.000000e+00 : bf16
    %235 = vector.broadcast %cst_204 : bf16 to vector<4x1x32xbf16>
    %236 = vector.extract_strided_slice %234 {offsets = [0, 0, 0], sizes = [4, 3, 32], strides = [1, 1, 1]} : vector<4x4x32xbf16> to vector<4x3x32xbf16>
    %237 = tpu.concatenate %235, %236 in 1 : vector<4x1x32xbf16>, vector<4x3x32xbf16> -> vector<4x4x32xbf16>
    %238 = vector.extract_strided_slice %234 {offsets = [0, 1, 0], sizes = [4, 3, 32], strides = [1, 1, 1]} : vector<4x4x32xbf16> to vector<4x3x32xbf16>
    %239 = tpu.concatenate %238, %235 in 1 : vector<4x3x32xbf16>, vector<4x1x32xbf16> -> vector<4x4x32xbf16>
    %cst_205 = arith.constant 0.000000e+00 : bf16
    %240 = vector.broadcast %cst_205 : bf16 to vector<4x4x32xbf16>
    %241 = tpu.concatenate %237, %234, %239, %240 in 2 : vector<4x4x32xbf16>, vector<4x4x32xbf16>, vector<4x4x32xbf16>, vector<4x4x32xbf16> -> vector<4x4x128xbf16>
    %c1_206 = arith.constant 1 : index
    %c0_207 = arith.constant 0 : index
    %c0_208 = arith.constant 0 : index
    %242 = vector.load %arg36[%c1_206, %c0_207, %c0_208] : memref<6x4x128xbf16, #tpu.memory_space<vmem>>, vector<4x4x128xbf16>
    tpu.vector_store %arg36[%c1_206, %c0_207, %c0_208], %241 {strides = array<i32>} : memref<6x4x128xbf16, #tpu.memory_space<vmem>>, vector<4x4x128xbf16>,
    %c0_209 = arith.constant 0 : index
    %c0_210 = arith.constant 0 : index
    %c0_211 = arith.constant 0 : index
    %243 = vector.load %arg36[%c0_209, %c0_210, %c0_211] : memref<6x4x128xbf16, #tpu.memory_space<vmem>>, vector<4x4x128xbf16>
    %244 = vector.shape_cast %243 : vector<4x4x128xbf16> to vector<16x128xbf16>
    %c0_212 = arith.constant 0 : index
    %c0_213 = arith.constant 0 : index
    %c0_214 = arith.constant 0 : index
    %245 = vector.load %arg23[%c0_212, %c0_213, %c0_214] : memref<3x128x128xbf16, #tpu.memory_space<vmem>>, vector<1x128x128xbf16>
    %246 = vector.shape_cast %245 : vector<1x128x128xbf16> to vector<128x128xbf16>
    %cst_215 = arith.constant dense<0.000000e+00> : vector<16x128xf32>
    %247 = tpu.matmul %244, %246, %cst_215 {dimension_numbers = #tpu.dot_dimension_numbers<[1], [0], [0], [1], [0, 0, 1, 1], [], []>} : vector<16x128xbf16>, vector<128x128xbf16>, vector<16x128xf32> -> vector<16x128xf32>
    %c1_216 = arith.constant 1 : index
    %c0_217 = arith.constant 0 : index
    %c0_218 = arith.constant 0 : index
    %248 = vector.load %arg36[%c1_216, %c0_217, %c0_218] : memref<6x4x128xbf16, #tpu.memory_space<vmem>>, vector<4x4x128xbf16>
    %249 = vector.shape_cast %248 : vector<4x4x128xbf16> to vector<16x128xbf16>
    %c1_219 = arith.constant 1 : index
    %c0_220 = arith.constant 0 : index
    %c0_221 = arith.constant 0 : index
    %250 = vector.load %arg23[%c1_219, %c0_220, %c0_221] : memref<3x128x128xbf16, #tpu.memory_space<vmem>>, vector<1x128x128xbf16>
    %251 = vector.shape_cast %250 : vector<1x128x128xbf16> to vector<128x128xbf16>
    %cst_222 = arith.constant dense<0.000000e+00> : vector<16x128xf32>
    %252 = tpu.matmul %249, %251, %cst_222 {dimension_numbers = #tpu.dot_dimension_numbers<[1], [0], [0], [1], [0, 0, 1, 1], [], []>} : vector<16x128xbf16>, vector<128x128xbf16>, vector<16x128xf32> -> vector<16x128xf32>
    %253 = arith.addf %247, %252 : vector<16x128xf32>
    %c2_223 = arith.constant 2 : index
    %c0_224 = arith.constant 0 : index
    %c0_225 = arith.constant 0 : index
    %254 = vector.load %arg36[%c2_223, %c0_224, %c0_225] : memref<6x4x128xbf16, #tpu.memory_space<vmem>>, vector<4x4x128xbf16>
    %255 = vector.shape_cast %254 : vector<4x4x128xbf16> to vector<16x128xbf16>
    %c2_226 = arith.constant 2 : index
    %c0_227 = arith.constant 0 : index
    %c0_228 = arith.constant 0 : index
    %256 = vector.load %arg23[%c2_226, %c0_227, %c0_228] : memref<3x128x128xbf16, #tpu.memory_space<vmem>>, vector<1x128x128xbf16>
    %257 = vector.shape_cast %256 : vector<1x128x128xbf16> to vector<128x128xbf16>
    %cst_229 = arith.constant dense<0.000000e+00> : vector<16x128xf32>
    %258 = tpu.matmul %255, %257, %cst_229 {dimension_numbers = #tpu.dot_dimension_numbers<[1], [0], [0], [1], [0, 0, 1, 1], [], []>} : vector<16x128xbf16>, vector<128x128xbf16>, vector<16x128xf32> -> vector<16x128xf32>
    %259 = arith.addf %253, %258 : vector<16x128xf32>
    %c0_230 = arith.constant 0 : index
    %c0_231 = arith.constant 0 : index
    %260 = vector.load %arg24[%c0_230, %c0_231] : memref<1x128xf32, #tpu.memory_space<vmem>>, vector<1x128xf32>
    %261 = vector.broadcast %260 : vector<1x128xf32> to vector<16x128xf32>
    %262 = arith.addf %259, %261 : vector<16x128xf32>
    %cst_232 = arith.constant 0.000000e+00 : f32
    %263 = vector.broadcast %cst_232 : f32 to vector<16x128xf32>
    %264 = arith.maximumf %262, %263 : vector<16x128xf32>
    %265 = vector.shape_cast %264 : vector<16x128xf32> to vector<4x4x128xf32>
    %266 = vector.extract_strided_slice %265 {offsets = [0, 0, 0], sizes = [4, 4, 32], strides = [1, 1, 1]} : vector<4x4x128xf32> to vector<4x4x32xf32>
    %267 = arith.truncf %266 : vector<4x4x32xf32> to vector<4x4x32xbf16>
    %cst_233 = arith.constant 0.000000e+00 : bf16
    %268 = vector.broadcast %cst_233 : bf16 to vector<4x1x32xbf16>
    %269 = vector.extract_strided_slice %267 {offsets = [0, 0, 0], sizes = [4, 3, 32], strides = [1, 1, 1]} : vector<4x4x32xbf16> to vector<4x3x32xbf16>
    %270 = tpu.concatenate %268, %269 in 1 : vector<4x1x32xbf16>, vector<4x3x32xbf16> -> vector<4x4x32xbf16>
    %271 = vector.extract_strided_slice %267 {offsets = [0, 1, 0], sizes = [4, 3, 32], strides = [1, 1, 1]} : vector<4x4x32xbf16> to vector<4x3x32xbf16>
    %272 = tpu.concatenate %271, %268 in 1 : vector<4x3x32xbf16>, vector<4x1x32xbf16> -> vector<4x4x32xbf16>
    %cst_234 = arith.constant 0.000000e+00 : bf16
    %273 = vector.broadcast %cst_234 : bf16 to vector<4x4x32xbf16>
    %274 = tpu.concatenate %270, %267, %272, %273 in 2 : vector<4x4x32xbf16>, vector<4x4x32xbf16>, vector<4x4x32xbf16>, vector<4x4x32xbf16> -> vector<4x4x128xbf16>
    %c1_235 = arith.constant 1 : index
    %c0_236 = arith.constant 0 : index
    %c0_237 = arith.constant 0 : index
    %275 = vector.load %arg36[%c1_235, %c0_236, %c0_237] : memref<6x4x128xbf16, #tpu.memory_space<vmem>>, vector<4x4x128xbf16>
    tpu.vector_store %arg36[%c1_235, %c0_236, %c0_237], %274 {strides = array<i32>} : memref<6x4x128xbf16, #tpu.memory_space<vmem>>, vector<4x4x128xbf16>,
    %c0_238 = arith.constant 0 : index
    %c0_239 = arith.constant 0 : index
    %c0_240 = arith.constant 0 : index
    %276 = vector.load %arg36[%c0_238, %c0_239, %c0_240] : memref<6x4x128xbf16, #tpu.memory_space<vmem>>, vector<4x4x128xbf16>
    %277 = vector.shape_cast %276 : vector<4x4x128xbf16> to vector<16x128xbf16>
    %c0_241 = arith.constant 0 : index
    %c0_242 = arith.constant 0 : index
    %c0_243 = arith.constant 0 : index
    %278 = vector.load %arg25[%c0_241, %c0_242, %c0_243] : memref<3x128x128xbf16, #tpu.memory_space<vmem>>, vector<1x128x128xbf16>
    %279 = vector.shape_cast %278 : vector<1x128x128xbf16> to vector<128x128xbf16>
    %cst_244 = arith.constant dense<0.000000e+00> : vector<16x128xf32>
    %280 = tpu.matmul %277, %279, %cst_244 {dimension_numbers = #tpu.dot_dimension_numbers<[1], [0], [0], [1], [0, 0, 1, 1], [], []>} : vector<16x128xbf16>, vector<128x128xbf16>, vector<16x128xf32> -> vector<16x128xf32>
    %c1_245 = arith.constant 1 : index
    %c0_246 = arith.constant 0 : index
    %c0_247 = arith.constant 0 : index
    %281 = vector.load %arg36[%c1_245, %c0_246, %c0_247] : memref<6x4x128xbf16, #tpu.memory_space<vmem>>, vector<4x4x128xbf16>
    %282 = vector.shape_cast %281 : vector<4x4x128xbf16> to vector<16x128xbf16>
    %c1_248 = arith.constant 1 : index
    %c0_249 = arith.constant 0 : index
    %c0_250 = arith.constant 0 : index
    %283 = vector.load %arg25[%c1_248, %c0_249, %c0_250] : memref<3x128x128xbf16, #tpu.memory_space<vmem>>, vector<1x128x128xbf16>
    %284 = vector.shape_cast %283 : vector<1x128x128xbf16> to vector<128x128xbf16>
    %cst_251 = arith.constant dense<0.000000e+00> : vector<16x128xf32>
    %285 = tpu.matmul %282, %284, %cst_251 {dimension_numbers = #tpu.dot_dimension_numbers<[1], [0], [0], [1], [0, 0, 1, 1], [], []>} : vector<16x128xbf16>, vector<128x128xbf16>, vector<16x128xf32> -> vector<16x128xf32>
    %286 = arith.addf %280, %285 : vector<16x128xf32>
    %c2_252 = arith.constant 2 : index
    %c0_253 = arith.constant 0 : index
    %c0_254 = arith.constant 0 : index
    %287 = vector.load %arg36[%c2_252, %c0_253, %c0_254] : memref<6x4x128xbf16, #tpu.memory_space<vmem>>, vector<4x4x128xbf16>
    %288 = vector.shape_cast %287 : vector<4x4x128xbf16> to vector<16x128xbf16>
    %c2_255 = arith.constant 2 : index
    %c0_256 = arith.constant 0 : index
    %c0_257 = arith.constant 0 : index
    %289 = vector.load %arg25[%c2_255, %c0_256, %c0_257] : memref<3x128x128xbf16, #tpu.memory_space<vmem>>, vector<1x128x128xbf16>
    %290 = vector.shape_cast %289 : vector<1x128x128xbf16> to vector<128x128xbf16>
    %cst_258 = arith.constant dense<0.000000e+00> : vector<16x128xf32>
    %291 = tpu.matmul %288, %290, %cst_258 {dimension_numbers = #tpu.dot_dimension_numbers<[1], [0], [0], [1], [0, 0, 1, 1], [], []>} : vector<16x128xbf16>, vector<128x128xbf16>, vector<16x128xf32> -> vector<16x128xf32>
    %292 = arith.addf %286, %291 : vector<16x128xf32>
    %c0_259 = arith.constant 0 : index
    %c0_260 = arith.constant 0 : index
    %293 = vector.load %arg26[%c0_259, %c0_260] : memref<1x128xf32, #tpu.memory_space<vmem>>, vector<1x128xf32>
    %294 = vector.broadcast %293 : vector<1x128xf32> to vector<16x128xf32>
    %295 = arith.addf %292, %294 : vector<16x128xf32>
    %296 = arith.addf %229, %295 : vector<16x128xf32>
    %cst_261 = arith.constant 0.000000e+00 : f32
    %297 = vector.broadcast %cst_261 : f32 to vector<16x128xf32>
    %298 = arith.maximumf %296, %297 : vector<16x128xf32>
    %299 = vector.shape_cast %298 : vector<16x128xf32> to vector<4x4x128xf32>
    %300 = vector.extract_strided_slice %299 {offsets = [0, 0, 0], sizes = [4, 4, 32], strides = [1, 1, 1]} : vector<4x4x128xf32> to vector<4x4x32xf32>
    %301 = arith.truncf %300 : vector<4x4x32xf32> to vector<4x4x32xbf16>
    %cst_262 = arith.constant 0.000000e+00 : bf16
    %302 = vector.broadcast %cst_262 : bf16 to vector<4x1x32xbf16>
    %303 = vector.extract_strided_slice %301 {offsets = [0, 0, 0], sizes = [4, 3, 32], strides = [1, 1, 1]} : vector<4x4x32xbf16> to vector<4x3x32xbf16>
    %304 = tpu.concatenate %302, %303 in 1 : vector<4x1x32xbf16>, vector<4x3x32xbf16> -> vector<4x4x32xbf16>
    %305 = vector.extract_strided_slice %301 {offsets = [0, 1, 0], sizes = [4, 3, 32], strides = [1, 1, 1]} : vector<4x4x32xbf16> to vector<4x3x32xbf16>
    %306 = tpu.concatenate %305, %302 in 1 : vector<4x3x32xbf16>, vector<4x1x32xbf16> -> vector<4x4x32xbf16>
    %cst_263 = arith.constant 0.000000e+00 : bf16
    %307 = vector.broadcast %cst_263 : bf16 to vector<4x4x32xbf16>
    %308 = tpu.concatenate %304, %301, %306, %307 in 2 : vector<4x4x32xbf16>, vector<4x4x32xbf16>, vector<4x4x32xbf16>, vector<4x4x32xbf16> -> vector<4x4x128xbf16>
    %c1_264 = arith.constant 1 : index
    %c0_265 = arith.constant 0 : index
    %c0_266 = arith.constant 0 : index
    %309 = vector.load %arg36[%c1_264, %c0_265, %c0_266] : memref<6x4x128xbf16, #tpu.memory_space<vmem>>, vector<4x4x128xbf16>
    tpu.vector_store %arg36[%c1_264, %c0_265, %c0_266], %308 {strides = array<i32>} : memref<6x4x128xbf16, #tpu.memory_space<vmem>>, vector<4x4x128xbf16>,
    %c0_267 = arith.constant 0 : index
    %c0_268 = arith.constant 0 : index
    %c0_269 = arith.constant 0 : index
    %310 = vector.load %arg36[%c0_267, %c0_268, %c0_269] : memref<6x4x128xbf16, #tpu.memory_space<vmem>>, vector<4x4x128xbf16>
    %311 = vector.shape_cast %310 : vector<4x4x128xbf16> to vector<16x128xbf16>
    %c0_270 = arith.constant 0 : index
    %c0_271 = arith.constant 0 : index
    %c0_272 = arith.constant 0 : index
    %312 = vector.load %arg27[%c0_270, %c0_271, %c0_272] : memref<3x128x128xbf16, #tpu.memory_space<vmem>>, vector<1x128x128xbf16>
    %313 = vector.shape_cast %312 : vector<1x128x128xbf16> to vector<128x128xbf16>
    %cst_273 = arith.constant dense<0.000000e+00> : vector<16x128xf32>
    %314 = tpu.matmul %311, %313, %cst_273 {dimension_numbers = #tpu.dot_dimension_numbers<[1], [0], [0], [1], [0, 0, 1, 1], [], []>} : vector<16x128xbf16>, vector<128x128xbf16>, vector<16x128xf32> -> vector<16x128xf32>
    %c1_274 = arith.constant 1 : index
    %c0_275 = arith.constant 0 : index
    %c0_276 = arith.constant 0 : index
    %315 = vector.load %arg36[%c1_274, %c0_275, %c0_276] : memref<6x4x128xbf16, #tpu.memory_space<vmem>>, vector<4x4x128xbf16>
    %316 = vector.shape_cast %315 : vector<4x4x128xbf16> to vector<16x128xbf16>
    %c1_277 = arith.constant 1 : index
    %c0_278 = arith.constant 0 : index
    %c0_279 = arith.constant 0 : index
    %317 = vector.load %arg27[%c1_277, %c0_278, %c0_279] : memref<3x128x128xbf16, #tpu.memory_space<vmem>>, vector<1x128x128xbf16>
    %318 = vector.shape_cast %317 : vector<1x128x128xbf16> to vector<128x128xbf16>
    %cst_280 = arith.constant dense<0.000000e+00> : vector<16x128xf32>
    %319 = tpu.matmul %316, %318, %cst_280 {dimension_numbers = #tpu.dot_dimension_numbers<[1], [0], [0], [1], [0, 0, 1, 1], [], []>} : vector<16x128xbf16>, vector<128x128xbf16>, vector<16x128xf32> -> vector<16x128xf32>
    %320 = arith.addf %314, %319 : vector<16x128xf32>
    %c2_281 = arith.constant 2 : index
    %c0_282 = arith.constant 0 : index
    %c0_283 = arith.constant 0 : index
    %321 = vector.load %arg36[%c2_281, %c0_282, %c0_283] : memref<6x4x128xbf16, #tpu.memory_space<vmem>>, vector<4x4x128xbf16>
    %322 = vector.shape_cast %321 : vector<4x4x128xbf16> to vector<16x128xbf16>
    %c2_284 = arith.constant 2 : index
    %c0_285 = arith.constant 0 : index
    %c0_286 = arith.constant 0 : index
    %323 = vector.load %arg27[%c2_284, %c0_285, %c0_286] : memref<3x128x128xbf16, #tpu.memory_space<vmem>>, vector<1x128x128xbf16>
    %324 = vector.shape_cast %323 : vector<1x128x128xbf16> to vector<128x128xbf16>
    %cst_287 = arith.constant dense<0.000000e+00> : vector<16x128xf32>
    %325 = tpu.matmul %322, %324, %cst_287 {dimension_numbers = #tpu.dot_dimension_numbers<[1], [0], [0], [1], [0, 0, 1, 1], [], []>} : vector<16x128xbf16>, vector<128x128xbf16>, vector<16x128xf32> -> vector<16x128xf32>
    %326 = arith.addf %320, %325 : vector<16x128xf32>
    %c0_288 = arith.constant 0 : index
    %c0_289 = arith.constant 0 : index
    %327 = vector.load %arg28[%c0_288, %c0_289] : memref<1x128xf32, #tpu.memory_space<vmem>>, vector<1x128xf32>
    %328 = vector.broadcast %327 : vector<1x128xf32> to vector<16x128xf32>
    %329 = arith.addf %326, %328 : vector<16x128xf32>
    %cst_290 = arith.constant 0.000000e+00 : f32
    %330 = vector.broadcast %cst_290 : f32 to vector<16x128xf32>
    %331 = arith.maximumf %329, %330 : vector<16x128xf32>
    %332 = vector.shape_cast %331 : vector<16x128xf32> to vector<4x4x128xf32>
    %333 = vector.extract_strided_slice %332 {offsets = [0, 0, 0], sizes = [4, 4, 32], strides = [1, 1, 1]} : vector<4x4x128xf32> to vector<4x4x32xf32>
    %334 = arith.truncf %333 : vector<4x4x32xf32> to vector<4x4x32xbf16>
    %cst_291 = arith.constant 0.000000e+00 : bf16
    %335 = vector.broadcast %cst_291 : bf16 to vector<4x1x32xbf16>
    %336 = vector.extract_strided_slice %334 {offsets = [0, 0, 0], sizes = [4, 3, 32], strides = [1, 1, 1]} : vector<4x4x32xbf16> to vector<4x3x32xbf16>
    %337 = tpu.concatenate %335, %336 in 1 : vector<4x1x32xbf16>, vector<4x3x32xbf16> -> vector<4x4x32xbf16>
    %338 = vector.extract_strided_slice %334 {offsets = [0, 1, 0], sizes = [4, 3, 32], strides = [1, 1, 1]} : vector<4x4x32xbf16> to vector<4x3x32xbf16>
    %339 = tpu.concatenate %338, %335 in 1 : vector<4x3x32xbf16>, vector<4x1x32xbf16> -> vector<4x4x32xbf16>
    %cst_292 = arith.constant 0.000000e+00 : bf16
    %340 = vector.broadcast %cst_292 : bf16 to vector<4x4x32xbf16>
    %341 = tpu.concatenate %337, %334, %339, %340 in 2 : vector<4x4x32xbf16>, vector<4x4x32xbf16>, vector<4x4x32xbf16>, vector<4x4x32xbf16> -> vector<4x4x128xbf16>
    %c1_293 = arith.constant 1 : index
    %c0_294 = arith.constant 0 : index
    %c0_295 = arith.constant 0 : index
    %342 = vector.load %arg36[%c1_293, %c0_294, %c0_295] : memref<6x4x128xbf16, #tpu.memory_space<vmem>>, vector<4x4x128xbf16>
    tpu.vector_store %arg36[%c1_293, %c0_294, %c0_295], %341 {strides = array<i32>} : memref<6x4x128xbf16, #tpu.memory_space<vmem>>, vector<4x4x128xbf16>,
    %c0_296 = arith.constant 0 : index
    %c0_297 = arith.constant 0 : index
    %c0_298 = arith.constant 0 : index
    %343 = vector.load %arg36[%c0_296, %c0_297, %c0_298] : memref<6x4x128xbf16, #tpu.memory_space<vmem>>, vector<4x4x128xbf16>
    %344 = vector.shape_cast %343 : vector<4x4x128xbf16> to vector<16x128xbf16>
    %c0_299 = arith.constant 0 : index
    %c0_300 = arith.constant 0 : index
    %c0_301 = arith.constant 0 : index
    %345 = vector.load %arg29[%c0_299, %c0_300, %c0_301] : memref<3x128x128xbf16, #tpu.memory_space<vmem>>, vector<1x128x128xbf16>
    %346 = vector.shape_cast %345 : vector<1x128x128xbf16> to vector<128x128xbf16>
    %cst_302 = arith.constant dense<0.000000e+00> : vector<16x128xf32>
    %347 = tpu.matmul %344, %346, %cst_302 {dimension_numbers = #tpu.dot_dimension_numbers<[1], [0], [0], [1], [0, 0, 1, 1], [], []>} : vector<16x128xbf16>, vector<128x128xbf16>, vector<16x128xf32> -> vector<16x128xf32>
    %c1_303 = arith.constant 1 : index
    %c0_304 = arith.constant 0 : index
    %c0_305 = arith.constant 0 : index
    %348 = vector.load %arg36[%c1_303, %c0_304, %c0_305] : memref<6x4x128xbf16, #tpu.memory_space<vmem>>, vector<4x4x128xbf16>
    %349 = vector.shape_cast %348 : vector<4x4x128xbf16> to vector<16x128xbf16>
    %c1_306 = arith.constant 1 : index
    %c0_307 = arith.constant 0 : index
    %c0_308 = arith.constant 0 : index
    %350 = vector.load %arg29[%c1_306, %c0_307, %c0_308] : memref<3x128x128xbf16, #tpu.memory_space<vmem>>, vector<1x128x128xbf16>
    %351 = vector.shape_cast %350 : vector<1x128x128xbf16> to vector<128x128xbf16>
    %cst_309 = arith.constant dense<0.000000e+00> : vector<16x128xf32>
    %352 = tpu.matmul %349, %351, %cst_309 {dimension_numbers = #tpu.dot_dimension_numbers<[1], [0], [0], [1], [0, 0, 1, 1], [], []>} : vector<16x128xbf16>, vector<128x128xbf16>, vector<16x128xf32> -> vector<16x128xf32>
    %353 = arith.addf %347, %352 : vector<16x128xf32>
    %c2_310 = arith.constant 2 : index
    %c0_311 = arith.constant 0 : index
    %c0_312 = arith.constant 0 : index
    %354 = vector.load %arg36[%c2_310, %c0_311, %c0_312] : memref<6x4x128xbf16, #tpu.memory_space<vmem>>, vector<4x4x128xbf16>
    %355 = vector.shape_cast %354 : vector<4x4x128xbf16> to vector<16x128xbf16>
    %c2_313 = arith.constant 2 : index
    %c0_314 = arith.constant 0 : index
    %c0_315 = arith.constant 0 : index
    %356 = vector.load %arg29[%c2_313, %c0_314, %c0_315] : memref<3x128x128xbf16, #tpu.memory_space<vmem>>, vector<1x128x128xbf16>
    %357 = vector.shape_cast %356 : vector<1x128x128xbf16> to vector<128x128xbf16>
    %cst_316 = arith.constant dense<0.000000e+00> : vector<16x128xf32>
    %358 = tpu.matmul %355, %357, %cst_316 {dimension_numbers = #tpu.dot_dimension_numbers<[1], [0], [0], [1], [0, 0, 1, 1], [], []>} : vector<16x128xbf16>, vector<128x128xbf16>, vector<16x128xf32> -> vector<16x128xf32>
    %359 = arith.addf %353, %358 : vector<16x128xf32>
    %c0_317 = arith.constant 0 : index
    %c0_318 = arith.constant 0 : index
    %360 = vector.load %arg30[%c0_317, %c0_318] : memref<1x128xf32, #tpu.memory_space<vmem>>, vector<1x128xf32>
    %361 = vector.broadcast %360 : vector<1x128xf32> to vector<16x128xf32>
    %362 = arith.addf %359, %361 : vector<16x128xf32>
    %363 = arith.addf %296, %362 : vector<16x128xf32>
    %cst_319 = arith.constant 0.000000e+00 : f32
    %364 = vector.broadcast %cst_319 : f32 to vector<16x128xf32>
    %365 = arith.maximumf %363, %364 : vector<16x128xf32>
    %cst_320 = arith.constant dense<0.000000e+00> : vector<128xf32>
    %366 = vector.multi_reduction <add>, %365, %cst_320 [0] : vector<16x128xf32> to vector<128xf32>
    %367 = vector.shape_cast %366 : vector<128xf32> to vector<1x128xf32>
    %c0_321 = arith.constant 0 : index
    %c0_322 = arith.constant 0 : index
    %368 = vector.load %arg31[%c0_321, %c0_322] : memref<1x128xf32, #tpu.memory_space<vmem>>, vector<1x128xf32>
    %c0_323 = arith.constant 0 : index
    %c0_324 = arith.constant 0 : index
    %c0_325 = arith.constant 0 : index
    %369 = vector.load %arg2[%c0_323, %c0_324, %c0_325] : memref<1x1x128xf32, #tpu.memory_space<vmem>>, vector<1x1x128xf32>
    %370 = vector.shape_cast %369 : vector<1x1x128xf32> to vector<1x128xf32>
    %371 = arith.addf %368, %370 : vector<1x128xf32>
    %372 = arith.mulf %367, %371 : vector<1x128xf32>
    %cst_326 = arith.constant dense<0.000000e+00> : vector<1xf32>
    %373 = vector.multi_reduction <add>, %372, %cst_326 [1] : vector<1x128xf32> to vector<1xf32>
    %374 = vector.shape_cast %373 : vector<1xf32> to vector<1x1xf32>
    %c0_327 = arith.constant 0 : index
    %c0_328 = arith.constant 0 : index
    %375 = vector.load %arg32[%c0_327, %c0_328] : memref<1x1xf32, #tpu.memory_space<vmem>>, vector<1x1xf32>
    %376 = arith.addf %374, %375 : vector<1x1xf32>
    %377 = vector.shape_cast %376 : vector<1x1xf32> to vector<1x1x1xf32>
    %c0_329 = arith.constant 0 : index
    %c0_330 = arith.constant 0 : index
    %c0_331 = arith.constant 0 : index
    %378 = vector.load %arg33[%c0_329, %c0_330, %c0_331] : memref<1x1x1xf32, #tpu.memory_space<vmem>>, vector<1x1x1xf32>
    tpu.vector_store %arg33[%c0_329, %c0_330, %c0_331], %377 {strides = array<i32>} : memref<1x1x1xf32, #tpu.memory_space<vmem>>, vector<1x1x1xf32>,
    return
  }
  func.func @transform_0(%arg0: i32) -> (i32, i32, i32) {
    %c0_i32 = arith.constant 0 : i32
    %c0_i32_0 = arith.constant 0 : i32
    %c0_i32_1 = arith.constant 0 : i32
    return %arg0, %c0_i32, %c0_i32_0 : i32, i32, i32
  }
  func.func @transform_1(%arg0: i32) -> (i32, i32, i32) {
    %c0_i32 = arith.constant 0 : i32
    %c0_i32_0 = arith.constant 0 : i32
    %c0_i32_1 = arith.constant 0 : i32
    return %arg0, %c0_i32, %c0_i32_0 : i32, i32, i32
  }
  func.func @transform_2(%arg0: i32) -> (i32, i32) {
    %c0_i32 = arith.constant 0 : i32
    %c0_i32_0 = arith.constant 0 : i32
    %c0_i32_1 = arith.constant 0 : i32
    return %c0_i32, %c0_i32_0 : i32, i32
  }
  func.func @transform_3(%arg0: i32) -> (i32, i32) {
    %c0_i32 = arith.constant 0 : i32
    %c0_i32_0 = arith.constant 0 : i32
    %c0_i32_1 = arith.constant 0 : i32
    return %c0_i32, %c0_i32_0 : i32, i32
  }
  func.func @transform_4(%arg0: i32) -> (i32, i32, i32) {
    %c0_i32 = arith.constant 0 : i32
    %c0_i32_0 = arith.constant 0 : i32
    %c0_i32_1 = arith.constant 0 : i32
    %c0_i32_2 = arith.constant 0 : i32
    return %c0_i32, %c0_i32_0, %c0_i32_1 : i32, i32, i32
  }
  func.func @transform_5(%arg0: i32) -> (i32, i32) {
    %c0_i32 = arith.constant 0 : i32
    %c0_i32_0 = arith.constant 0 : i32
    %c0_i32_1 = arith.constant 0 : i32
    return %c0_i32, %c0_i32_0 : i32, i32
  }
  func.func @transform_6(%arg0: i32) -> (i32, i32) {
    %c0_i32 = arith.constant 0 : i32
    %c0_i32_0 = arith.constant 0 : i32
    %c0_i32_1 = arith.constant 0 : i32
    return %c0_i32, %c0_i32_0 : i32, i32
  }
  func.func @transform_7(%arg0: i32) -> (i32, i32, i32) {
    %c0_i32 = arith.constant 0 : i32
    %c0_i32_0 = arith.constant 0 : i32
    %c0_i32_1 = arith.constant 0 : i32
    %c0_i32_2 = arith.constant 0 : i32
    return %c0_i32, %c0_i32_0, %c0_i32_1 : i32, i32, i32
  }
  func.func @transform_8(%arg0: i32) -> (i32, i32) {
    %c0_i32 = arith.constant 0 : i32
    %c0_i32_0 = arith.constant 0 : i32
    %c0_i32_1 = arith.constant 0 : i32
    return %c0_i32, %c0_i32_0 : i32, i32
  }
  func.func @transform_9(%arg0: i32) -> (i32, i32, i32) {
    %c0_i32 = arith.constant 0 : i32
    %c0_i32_0 = arith.constant 0 : i32
    %c0_i32_1 = arith.constant 0 : i32
    %c0_i32_2 = arith.constant 0 : i32
    return %c0_i32, %c0_i32_0, %c0_i32_1 : i32, i32, i32
  }
  func.func @transform_10(%arg0: i32) -> (i32, i32) {
    %c0_i32 = arith.constant 0 : i32
    %c0_i32_0 = arith.constant 0 : i32
    %c0_i32_1 = arith.constant 0 : i32
    return %c0_i32, %c0_i32_0 : i32, i32
  }
  func.func @transform_11(%arg0: i32) -> (i32, i32) {
    %c0_i32 = arith.constant 0 : i32
    %c0_i32_0 = arith.constant 0 : i32
    %c0_i32_1 = arith.constant 0 : i32
    return %c0_i32, %c0_i32_0 : i32, i32
  }
  func.func @transform_12(%arg0: i32) -> (i32, i32) {
    %c0_i32 = arith.constant 0 : i32
    %c0_i32_0 = arith.constant 0 : i32
    %c0_i32_1 = arith.constant 0 : i32
    return %c0_i32, %c0_i32_0 : i32, i32
  }
  func.func @transform_13(%arg0: i32) -> (i32, i32) {
    %c0_i32 = arith.constant 0 : i32
    %c0_i32_0 = arith.constant 0 : i32
    %c0_i32_1 = arith.constant 0 : i32
    return %c0_i32, %c0_i32_0 : i32, i32
  }
  func.func @transform_14(%arg0: i32) -> (i32, i32) {
    %c0_i32 = arith.constant 0 : i32
    %c0_i32_0 = arith.constant 0 : i32
    %c0_i32_1 = arith.constant 0 : i32
    return %c0_i32, %c0_i32_0 : i32, i32
  }
  func.func @transform_15(%arg0: i32) -> (i32, i32) {
    %c0_i32 = arith.constant 0 : i32
    %c0_i32_0 = arith.constant 0 : i32
    %c0_i32_1 = arith.constant 0 : i32
    return %c0_i32, %c0_i32_0 : i32, i32
  }
  func.func @transform_16(%arg0: i32) -> (i32, i32) {
    %c0_i32 = arith.constant 0 : i32
    %c0_i32_0 = arith.constant 0 : i32
    %c0_i32_1 = arith.constant 0 : i32
    return %c0_i32, %c0_i32_0 : i32, i32
  }
  func.func @transform_17(%arg0: i32) -> (i32, i32) {
    %c0_i32 = arith.constant 0 : i32
    %c0_i32_0 = arith.constant 0 : i32
    %c0_i32_1 = arith.constant 0 : i32
    return %c0_i32, %c0_i32_0 : i32, i32
  }
  func.func @transform_18(%arg0: i32) -> (i32, i32, i32) {
    %c0_i32 = arith.constant 0 : i32
    %c0_i32_0 = arith.constant 0 : i32
    %c0_i32_1 = arith.constant 0 : i32
    %c0_i32_2 = arith.constant 0 : i32
    return %c0_i32, %c0_i32_0, %c0_i32_1 : i32, i32, i32
  }
  func.func @transform_19(%arg0: i32) -> (i32, i32) {
    %c0_i32 = arith.constant 0 : i32
    %c0_i32_0 = arith.constant 0 : i32
    %c0_i32_1 = arith.constant 0 : i32
    return %c0_i32, %c0_i32_0 : i32, i32
  }
  func.func @transform_20(%arg0: i32) -> (i32, i32, i32) {
    %c0_i32 = arith.constant 0 : i32
    %c0_i32_0 = arith.constant 0 : i32
    %c0_i32_1 = arith.constant 0 : i32
    %c0_i32_2 = arith.constant 0 : i32
    return %c0_i32, %c0_i32_0, %c0_i32_1 : i32, i32, i32
  }
  func.func @transform_21(%arg0: i32) -> (i32, i32) {
    %c0_i32 = arith.constant 0 : i32
    %c0_i32_0 = arith.constant 0 : i32
    %c0_i32_1 = arith.constant 0 : i32
    return %c0_i32, %c0_i32_0 : i32, i32
  }
  func.func @transform_22(%arg0: i32) -> (i32, i32, i32) {
    %c0_i32 = arith.constant 0 : i32
    %c0_i32_0 = arith.constant 0 : i32
    %c0_i32_1 = arith.constant 0 : i32
    %c0_i32_2 = arith.constant 0 : i32
    return %c0_i32, %c0_i32_0, %c0_i32_1 : i32, i32, i32
  }
  func.func @transform_23(%arg0: i32) -> (i32, i32) {
    %c0_i32 = arith.constant 0 : i32
    %c0_i32_0 = arith.constant 0 : i32
    %c0_i32_1 = arith.constant 0 : i32
    return %c0_i32, %c0_i32_0 : i32, i32
  }
  func.func @transform_24(%arg0: i32) -> (i32, i32, i32) {
    %c0_i32 = arith.constant 0 : i32
    %c0_i32_0 = arith.constant 0 : i32
    %c0_i32_1 = arith.constant 0 : i32
    %c0_i32_2 = arith.constant 0 : i32
    return %c0_i32, %c0_i32_0, %c0_i32_1 : i32, i32, i32
  }
  func.func @transform_25(%arg0: i32) -> (i32, i32) {
    %c0_i32 = arith.constant 0 : i32
    %c0_i32_0 = arith.constant 0 : i32
    %c0_i32_1 = arith.constant 0 : i32
    return %c0_i32, %c0_i32_0 : i32, i32
  }
  func.func @transform_26(%arg0: i32) -> (i32, i32, i32) {
    %c0_i32 = arith.constant 0 : i32
    %c0_i32_0 = arith.constant 0 : i32
    %c0_i32_1 = arith.constant 0 : i32
    %c0_i32_2 = arith.constant 0 : i32
    return %c0_i32, %c0_i32_0, %c0_i32_1 : i32, i32, i32
  }
  func.func @transform_27(%arg0: i32) -> (i32, i32) {
    %c0_i32 = arith.constant 0 : i32
    %c0_i32_0 = arith.constant 0 : i32
    %c0_i32_1 = arith.constant 0 : i32
    return %c0_i32, %c0_i32_0 : i32, i32
  }
  func.func @transform_28(%arg0: i32) -> (i32, i32, i32) {
    %c0_i32 = arith.constant 0 : i32
    %c0_i32_0 = arith.constant 0 : i32
    %c0_i32_1 = arith.constant 0 : i32
    %c0_i32_2 = arith.constant 0 : i32
    return %c0_i32, %c0_i32_0, %c0_i32_1 : i32, i32, i32
  }
  func.func @transform_29(%arg0: i32) -> (i32, i32) {
    %c0_i32 = arith.constant 0 : i32
    %c0_i32_0 = arith.constant 0 : i32
    %c0_i32_1 = arith.constant 0 : i32
    return %c0_i32, %c0_i32_0 : i32, i32
  }
  func.func @transform_30(%arg0: i32) -> (i32, i32) {
    %c0_i32 = arith.constant 0 : i32
    %c0_i32_0 = arith.constant 0 : i32
    %c0_i32_1 = arith.constant 0 : i32
    return %c0_i32, %c0_i32_0 : i32, i32
  }
  func.func @transform_31(%arg0: i32) -> (i32, i32) {
    %c0_i32 = arith.constant 0 : i32
    %c0_i32_0 = arith.constant 0 : i32
    %c0_i32_1 = arith.constant 0 : i32
    return %c0_i32, %c0_i32_0 : i32, i32
  }
  func.func @transform_32(%arg0: i32) -> (i32, i32, i32) {
    %c0_i32 = arith.constant 0 : i32
    %c0_i32_0 = arith.constant 0 : i32
    %c0_i32_1 = arith.constant 0 : i32
    return %arg0, %c0_i32, %c0_i32_0 : i32, i32, i32
  }
}

</mosaic_0001>

<llo_original>
// kernel: discriminator_forward.1
$region0: #{discriminator_forward.1}
  #allocation0 [shape = 'u32[]', space=smem, size = 0x4, offset = 0x4, fixed_abs, tag = 'smem constant byte address 0x4 - core index']
  #allocation1 [shape = 'u32[144,128]{1,0:T(1,128)}', space=vmem, size = 0x12000, scoped, tag = 'internal scratch']
  #allocation2 [shape = 'bf16[18,16,128]{2,1,0:T(16,128)(2,1)}', space=vmem, size = 0x12000, scoped, tag = 'scratch operand']
  #allocation3 [shape = 'bf16[10,8,128]{2,1,0:T(8,128)(2,1)}', space=vmem, size = 0x5000, scoped, tag = 'scratch operand']
  #allocation4 [shape = 'bf16[6,4,128]{2,1,0:T(4,128)(2,1)}', space=vmem, size = 0x1800, scoped, tag = 'scratch operand']
  #allocation5 [shape = 'f32[1,1]{1,0:T(1,128)S(1)}', space=vmem, size = 0x200, scoped, tag = 'scoped memory for discriminator_forward.1']
  #allocation6 [shape = 'f32[1,1]{1,0:T(1,128)S(1)}', space=vmem, size = 0x200, scoped, tag = 'scoped memory for discriminator_forward.1']
  %s0 = inlined_call_operand.smem [shape: u32[33], index: -1, kind: input, shape index: {}]
  %s1 = sld [smem:[%s0]]
  %s2 = scalar_lea.smem %s0, 1
  %s3 = sld [smem:[%s2]]
  %s4 = scalar_lea.smem %s0, 2
  %s5 = sld [smem:[%s4]]
  %s6 = scalar_lea.smem %s0, 3
  %s7 = sld [smem:[%s6]]
  %s8 = scalar_lea.smem %s0, 4
  %s9 = sld [smem:[%s8]]
  %s10 = scalar_lea.smem %s0, 5
  %s11 = sld [smem:[%s10]]
  %s12 = scalar_lea.smem %s0, 6
  %s13 = sld [smem:[%s12]]
  %s14 = scalar_lea.smem %s0, 7
  %s15 = sld [smem:[%s14]]
  %s16 = scalar_lea.smem %s0, 8
  %s17 = sld [smem:[%s16]]
  %s18 = scalar_lea.smem %s0, 9
  %s19 = sld [smem:[%s18]]
  %s20 = scalar_lea.smem %s0, 10
  %s21 = sld [smem:[%s20]]
  %s22 = scalar_lea.smem %s0, 11
  %s23 = sld [smem:[%s22]]
  %s24 = scalar_lea.smem %s0, 12
  %s25 = sld [smem:[%s24]]
  %s26 = scalar_lea.smem %s0, 13
  %s27 = sld [smem:[%s26]]
  %s28 = scalar_lea.smem %s0, 14
  %s29 = sld [smem:[%s28]]
  %s30 = scalar_lea.smem %s0, 15
  %s31 = sld [smem:[%s30]]
  %s32 = scalar_lea.smem %s0, 16
  %s33 = sld [smem:[%s32]]
  %s34 = scalar_lea.smem %s0, 17
  %s35 = sld [smem:[%s34]]
  %s36 = scalar_lea.smem %s0, 18
  %s37 = sld [smem:[%s36]]
  %s38 = scalar_lea.smem %s0, 19
  %s39 = sld [smem:[%s38]]
  %s40 = scalar_lea.smem %s0, 20
  %s41 = sld [smem:[%s40]]
  %s42 = scalar_lea.smem %s0, 21
  %s43 = sld [smem:[%s42]]
  %s44 = scalar_lea.smem %s0, 22
  %s45 = sld [smem:[%s44]]
  %s46 = scalar_lea.smem %s0, 23
  %s47 = sld [smem:[%s46]]
  %s48 = scalar_lea.smem %s0, 24
  %s49 = sld [smem:[%s48]]
  %s50 = scalar_lea.smem %s0, 25
  %s51 = sld [smem:[%s50]]
  %s52 = scalar_lea.smem %s0, 26
  %s53 = sld [smem:[%s52]]
  %s54 = scalar_lea.smem %s0, 27
  %s55 = sld [smem:[%s54]]
  %s56 = scalar_lea.smem %s0, 28
  %s57 = sld [smem:[%s56]]
  %s58 = scalar_lea.smem %s0, 29
  %s59 = sld [smem:[%s58]]
  %s60 = scalar_lea.smem %s0, 30
  %s61 = sld [smem:[%s60]]
  %s62 = scalar_lea.smem %s0, 31
  %s63 = sld [smem:[%s62]]
  %s64 = scalar_lea.smem %s0, 32
  %s65 = sld [smem:[%s64]]
  %s66 = sld [smem:[#allocation0]]
  $region189: #{discriminator_forward.1} parent=0
    _
  %s68 = ssub.s32 1, %s66
  %s69 = scalar_select 0, %s68, %s66
  %v70 = vstv %s31
  %71 = vst [vmem:[#allocation5] sm:$0x1] %v70
  %v72 = vstv %s63
  %73 = vst [vmem:[#allocation6] sm:$0x1] %v72
  $region1: #{discriminator_forward.1} parent=0
    #allocation7 [shape = 'u8[32768]{0}', space=vmem, size = 0x8000, scoped, tag = 'input window, operand 14, single buffered']
    #allocation8 [shape = 's32[2]{0}', space=sflag, size = 0x8, scoped, tag = 'scoped memory for discriminator_forward.1']
    #allocation9 [shape = 'u8[32768]{0}', space=vmem, size = 0x8000, scoped, tag = 'input window, operand 16, single buffered']
    #allocation10 [shape = 's32[1]{0}', space=sflag, size = 0x4, scoped, tag = 'scoped memory for discriminator_forward.1']
    #allocation11 [shape = 'u8[512]{0}', space=vmem, size = 0x400, scoped, tag = 'input window, operand 23, single buffered']
    #allocation12 [shape = 'u8[512]{0}', space=vmem, size = 0x400, scoped, tag = 'input window, operand 25, single buffered']
    #allocation13 [shape = 's32[1]{0}', space=sflag, size = 0x4, scoped, tag = 'scoped memory for discriminator_forward.1']
    #allocation14 [shape = 'u8[512]{0}', space=vmem, size = 0x400, scoped, tag = 'input window, operand 27, single buffered']
    #allocation15 [shape = 'u8[512]{0}', space=vmem, size = 0x400, scoped, tag = 'input window, operand 29, single buffered']
    #allocation16 [shape = 's32[1]{0}', space=sflag, size = 0x4, scoped, tag = 'scoped memory for discriminator_forward.1']
    #allocation17 [shape = 'u8[512]{0}', space=vmem, size = 0x400, scoped, tag = 'input window, operand 30, single buffered']
    %74 = vsyncpa [#allocation8], 0
    %75 = vsyncpa [#allocation10], 0
    %76 = vsyncpa [#allocation13], 0
    %77 = vsyncpa [#allocation16], 0
    loop: start=0, step=1, limit=4
    $region2: #{discriminator_forward.1} parent=1 // loop_pre_header
      _
    $region3: #{discriminator_forward.1} parent=1 // loop_header
      %s79 = sphi 0, %s83
      %p80 = scmp.ge.s32.totalorder %s79, 4
      %s89 = sphi 0, %s91
      %s92 = sphi 0, %s89
      %s93 = sphi 0, %s92
      %s109 = sphi 0, %s93
      %s115 = sphi 0, %s117
      %s118 = sphi 0, %s115
      %s119 = sphi 0, %s118
      %s135 = sphi 0, %s119
      %s139 = sphi 0, %s139
      %s141 = sphi 0, %s139
      %s142 = sphi 0, %s141
      %s156 = sphi 0, %s142
      %s160 = sphi 0, %s160
      %s162 = sphi 0, %s160
      %s163 = sphi 0, %s162
      %s177 = sphi 0, %s163
      %s181 = sphi 0, %s181
      %s183 = sphi 0, %s181
      %s184 = sphi 0, %s183
      %s198 = sphi 0, %s184
      %s202 = sphi 0, %s202
      %s204 = sphi 0, %s202
      %s205 = sphi 0, %s204
      %s219 = sphi 0, %s205
      %s223 = sphi 0, %s223
      %s225 = sphi 0, %s223
      %s226 = sphi 0, %s225
      %s240 = sphi 0, %s226
      %s244 = sphi 0, %s244
      %s246 = sphi 0, %s244
      %s247 = sphi 0, %s246
      %s261 = sphi 0, %s247
      %s265 = sphi 0, %s265
      %s267 = sphi 0, %s265
      %s268 = sphi 0, %s267
      %s282 = sphi 0, %s268
      %s286 = sphi 0, %s286
      %s288 = sphi 0, %s286
      %s289 = sphi 0, %s288
      %s303 = sphi 0, %s289
      %s307 = sphi 0, %s307
      %s309 = sphi 0, %s307
      %s310 = sphi 0, %s309
      %s324 = sphi 0, %s310
      %s328 = sphi 0, %s328
      %s330 = sphi 0, %s328
      %s331 = sphi 0, %s330
      %s345 = sphi 0, %s331
      %s349 = sphi 0, %s349
      %s351 = sphi 0, %s349
      %s352 = sphi 0, %s351
      %s366 = sphi 0, %s352
      %s370 = sphi 0, %s370
      %s372 = sphi 0, %s370
      %s373 = sphi 0, %s372
      %s387 = sphi 0, %s373
      %s391 = sphi 0, %s391
      %s393 = sphi 0, %s391
      %s394 = sphi 0, %s393
      %s408 = sphi 0, %s394
      %s412 = sphi 0, %s412
      %s414 = sphi 0, %s412
      %s415 = sphi 0, %s414
      %s429 = sphi 0, %s415
      %s433 = sphi 0, %s433
      %s435 = sphi 0, %s433
      %s436 = sphi 0, %s435
      %s450 = sphi 0, %s436
      %s454 = sphi 0, %s454
      %s456 = sphi 0, %s454
      %s457 = sphi 0, %s456
      %s471 = sphi 0, %s457
      %s475 = sphi 0, %s475
      %s477 = sphi 0, %s475
      %s478 = sphi 0, %s477
      %s492 = sphi 0, %s478
      %s496 = sphi 0, %s496
      %s498 = sphi 0, %s496
      %s499 = sphi 0, %s498
      %s513 = sphi 0, %s499
      %s517 = sphi 0, %s517
      %s519 = sphi 0, %s517
      %s520 = sphi 0, %s519
      %s534 = sphi 0, %s520
      %s538 = sphi 0, %s538
      %s540 = sphi 0, %s538
      %s541 = sphi 0, %s540
      %s555 = sphi 0, %s541
      %s559 = sphi 0, %s559
      %s561 = sphi 0, %s559
      %s562 = sphi 0, %s561
      %s576 = sphi 0, %s562
      %s580 = sphi 0, %s580
      %s582 = sphi 0, %s580
      %s583 = sphi 0, %s582
      %s597 = sphi 0, %s583
      %s601 = sphi 0, %s601
      %s603 = sphi 0, %s601
      %s604 = sphi 0, %s603
      %s618 = sphi 0, %s604
      %s622 = sphi 0, %s622
      %s624 = sphi 0, %s622
      %s625 = sphi 0, %s624
      %s639 = sphi 0, %s625
      %s643 = sphi 0, %s643
      %s645 = sphi 0, %s643
      %s646 = sphi 0, %s645
      %s660 = sphi 0, %s646
      %s664 = sphi 0, %s664
      %s666 = sphi 0, %s664
      %s667 = sphi 0, %s666
      %s681 = sphi 0, %s667
      %s685 = sphi 0, %s685
      %s687 = sphi 0, %s685
      %s688 = sphi 0, %s687
      %s702 = sphi 0, %s688
      %s706 = sphi 0, %s706
      %s708 = sphi 0, %s706
      %s709 = sphi 0, %s708
      %s723 = sphi 0, %s709
      %s727 = sphi 0, %s727
      %s729 = sphi 0, %s727
      %s730 = sphi 0, %s729
      %s744 = sphi 0, %s730
      %s748 = sphi 0, %s748
      %s750 = sphi 0, %s748
      %s751 = sphi 0, %s750
      %s765 = sphi 0, %s751
      %s771 = sphi 0, %s773
      %s774 = sphi 0, %s771
      %s775 = sphi 0, %s774
      %s791 = sphi 0, %s775
    $region4: #{discriminator_forward.1} parent=1 // loop_header_branch
      %82 = sbr.rel (%p80) target = $region8
    $region5: #{discriminator_forward.1} parent=1 // loop_body
      %s84 = ssub.s32 %s79, 1
      %s85 = ssub.s32 %s79, 2
      %s86 = sadd.s32 %s79, 1
      %s87 = ssub.s32 %s79, %s86
      %p88 = scmp.eq.s32.totalorder %s87, 0
      %s90 = sadd.s32 %s89, 1
      %s91 = scalar_select %p88, %s89, %s90
      %p94 = pneg %p88
      %p95 = scmp.eq.s32.totalorder %s79, 1
      %p96 = por %p94, %p95
      %p97 = scmp.ne.s32.totalorder %s89, %s92
      %p98 = scmp.eq.s32.totalorder %s79, 0
      %p99 = por %p97, %p98
      %p100 = scmp.ne.s32.totalorder %s89, %s92
      %p101 = scmp.eq.s32.totalorder %s84, 1
      %p102 = por %p100, %p101
      %p103 = scmp.ne.s32.totalorder %s92, %s93
      %p104 = scmp.eq.s32.totalorder %s84, 0
      %p105 = por %p103, %p104
      %p106 = scmp.ne.s32.totalorder %s92, %s93
      %p107 = scmp.eq.s32.totalorder %s85, 1
      %p108 = por %p106, %p107
      %p110 = scmp.ne.s32.totalorder %s93, %s109
      %p111 = scmp.eq.s32.totalorder %s85, 0
      %p112 = por %p110, %p111
      %s113 = ssub.s32 %s79, %s86
      %p114 = scmp.eq.s32.totalorder %s113, 0
      %s116 = sadd.s32 %s115, 1
      %s117 = scalar_select %p114, %s115, %s116
      %p120 = pneg %p114
      %p121 = scmp.eq.s32.totalorder %s79, 1
      %p122 = por %p120, %p121
      %p123 = scmp.ne.s32.totalorder %s115, %s118
      %p124 = scmp.eq.s32.totalorder %s79, 0
      %p125 = por %p123, %p124
      %p126 = scmp.ne.s32.totalorder %s115, %s118
      %p127 = scmp.eq.s32.totalorder %s84, 1
      %p128 = por %p126, %p127
      %p129 = scmp.ne.s32.totalorder %s118, %s119
      %p130 = scmp.eq.s32.totalorder %s84, 0
      %p131 = por %p129, %p130
      %p132 = scmp.ne.s32.totalorder %s118, %s119
      %p133 = scmp.eq.s32.totalorder %s85, 1
      %p134 = por %p132, %p133
      %p136 = scmp.ne.s32.totalorder %s119, %s135
      %p137 = scmp.eq.s32.totalorder %s85, 0
      %p138 = por %p136, %p137
      %s140 = sadd.s32 %s139, 1
      %p143 = scmp.eq.s32.totalorder %s79, 1
      %p144 = scmp.ne.s32.totalorder %s139, %s141
      %p145 = scmp.eq.s32.totalorder %s79, 0
      %p146 = por %p144, %p145
      %p147 = scmp.ne.s32.totalorder %s139, %s141
      %p148 = scmp.eq.s32.totalorder %s84, 1
      %p149 = por %p147, %p148
      %p150 = scmp.ne.s32.totalorder %s141, %s142
      %p151 = scmp.eq.s32.totalorder %s84, 0
      %p152 = por %p150, %p151
      %p153 = scmp.ne.s32.totalorder %s141, %s142
      %p154 = scmp.eq.s32.totalorder %s85, 1
      %p155 = por %p153, %p154
      %p157 = scmp.ne.s32.totalorder %s142, %s156
      %p158 = scmp.eq.s32.totalorder %s85, 0
      %p159 = por %p157, %p158
      %s161 = sadd.s32 %s160, 1
      %p164 = scmp.eq.s32.totalorder %s79, 1
      %p165 = scmp.ne.s32.totalorder %s160, %s162
      %p166 = scmp.eq.s32.totalorder %s79, 0
      %p167 = por %p165, %p166
      %p168 = scmp.ne.s32.totalorder %s160, %s162
      %p169 = scmp.eq.s32.totalorder %s84, 1
      %p170 = por %p168, %p169
      %p171 = scmp.ne.s32.totalorder %s162, %s163
      %p172 = scmp.eq.s32.totalorder %s84, 0
      %p173 = por %p171, %p172
      %p174 = scmp.ne.s32.totalorder %s162, %s163
      %p175 = scmp.eq.s32.totalorder %s85, 1
      %p176 = por %p174, %p175
      %p178 = scmp.ne.s32.totalorder %s163, %s177
      %p179 = scmp.eq.s32.totalorder %s85, 0
      %p180 = por %p178, %p179
      %s182 = sadd.s32 %s181, 1
      %p185 = scmp.eq.s32.totalorder %s79, 1
      %p186 = scmp.ne.s32.totalorder %s181, %s183
      %p187 = scmp.eq.s32.totalorder %s79, 0
      %p188 = por %p186, %p187
      %p189 = scmp.ne.s32.totalorder %s181, %s183
      %p190 = scmp.eq.s32.totalorder %s84, 1
      %p191 = por %p189, %p190
      %p192 = scmp.ne.s32.totalorder %s183, %s184
      %p193 = scmp.eq.s32.totalorder %s84, 0
      %p194 = por %p192, %p193
      %p195 = scmp.ne.s32.totalorder %s183, %s184
      %p196 = scmp.eq.s32.totalorder %s85, 1
      %p197 = por %p195, %p196
      %p199 = scmp.ne.s32.totalorder %s184, %s198
      %p200 = scmp.eq.s32.totalorder %s85, 0
      %p201 = por %p199, %p200
      %s203 = sadd.s32 %s202, 1
      %p206 = scmp.eq.s32.totalorder %s79, 1
      %p207 = scmp.ne.s32.totalorder %s202, %s204
      %p208 = scmp.eq.s32.totalorder %s79, 0
      %p209 = por %p207, %p208
      %p210 = scmp.ne.s32.totalorder %s202, %s204
      %p211 = scmp.eq.s32.totalorder %s84, 1
      %p212 = por %p210, %p211
      %p213 = scmp.ne.s32.totalorder %s204, %s205
      %p214 = scmp.eq.s32.totalorder %s84, 0
      %p215 = por %p213, %p214
      %p216 = scmp.ne.s32.totalorder %s204, %s205
      %p217 = scmp.eq.s32.totalorder %s85, 1
      %p218 = por %p216, %p217
      %p220 = scmp.ne.s32.totalorder %s205, %s219
      %p221 = scmp.eq.s32.totalorder %s85, 0
      %p222 = por %p220, %p221
      %s224 = sadd.s32 %s223, 1
      %p227 = scmp.eq.s32.totalorder %s79, 1
      %p228 = scmp.ne.s32.totalorder %s223, %s225
      %p229 = scmp.eq.s32.totalorder %s79, 0
      %p230 = por %p228, %p229
      %p231 = scmp.ne.s32.totalorder %s223, %s225
      %p232 = scmp.eq.s32.totalorder %s84, 1
      %p233 = por %p231, %p232
      %p234 = scmp.ne.s32.totalorder %s225, %s226
      %p235 = scmp.eq.s32.totalorder %s84, 0
      %p236 = por %p234, %p235
      %p237 = scmp.ne.s32.totalorder %s225, %s226
      %p238 = scmp.eq.s32.totalorder %s85, 1
      %p239 = por %p237, %p238
      %p241 = scmp.ne.s32.totalorder %s226, %s240
      %p242 = scmp.eq.s32.totalorder %s85, 0
      %p243 = por %p241, %p242
      %s245 = sadd.s32 %s244, 1
      %p248 = scmp.eq.s32.totalorder %s79, 1
      %p249 = scmp.ne.s32.totalorder %s244, %s246
      %p250 = scmp.eq.s32.totalorder %s79, 0
      %p251 = por %p249, %p250
      %p252 = scmp.ne.s32.totalorder %s244, %s246
      %p253 = scmp.eq.s32.totalorder %s84, 1
      %p254 = por %p252, %p253
      %p255 = scmp.ne.s32.totalorder %s246, %s247
      %p256 = scmp.eq.s32.totalorder %s84, 0
      %p257 = por %p255, %p256
      %p258 = scmp.ne.s32.totalorder %s246, %s247
      %p259 = scmp.eq.s32.totalorder %s85, 1
      %p260 = por %p258, %p259
      %p262 = scmp.ne.s32.totalorder %s247, %s261
      %p263 = scmp.eq.s32.totalorder %s85, 0
      %p264 = por %p262, %p263
      %s266 = sadd.s32 %s265, 1
      %p269 = scmp.eq.s32.totalorder %s79, 1
      %p270 = scmp.ne.s32.totalorder %s265, %s267
      %p271 = scmp.eq.s32.totalorder %s79, 0
      %p272 = por %p270, %p271
      %p273 = scmp.ne.s32.totalorder %s265, %s267
      %p274 = scmp.eq.s32.totalorder %s84, 1
      %p275 = por %p273, %p274
      %p276 = scmp.ne.s32.totalorder %s267, %s268
      %p277 = scmp.eq.s32.totalorder %s84, 0
      %p278 = por %p276, %p277
      %p279 = scmp.ne.s32.totalorder %s267, %s268
      %p280 = scmp.eq.s32.totalorder %s85, 1
      %p281 = por %p279, %p280
      %p283 = scmp.ne.s32.totalorder %s268, %s282
      %p284 = scmp.eq.s32.totalorder %s85, 0
      %p285 = por %p283, %p284
      %s287 = sadd.s32 %s286, 1
      %p290 = scmp.eq.s32.totalorder %s79, 1
      %p291 = scmp.ne.s32.totalorder %s286, %s288
      %p292 = scmp.eq.s32.totalorder %s79, 0
      %p293 = por %p291, %p292
      %p294 = scmp.ne.s32.totalorder %s286, %s288
      %p295 = scmp.eq.s32.totalorder %s84, 1
      %p296 = por %p294, %p295
      %p297 = scmp.ne.s32.totalorder %s288, %s289
      %p298 = scmp.eq.s32.totalorder %s84, 0
      %p299 = por %p297, %p298
      %p300 = scmp.ne.s32.totalorder %s288, %s289
      %p301 = scmp.eq.s32.totalorder %s85, 1
      %p302 = por %p300, %p301
      %p304 = scmp.ne.s32.totalorder %s289, %s303
      %p305 = scmp.eq.s32.totalorder %s85, 0
      %p306 = por %p304, %p305
      %s308 = sadd.s32 %s307, 1
      %p311 = scmp.eq.s32.totalorder %s79, 1
      %p312 = scmp.ne.s32.totalorder %s307, %s309
      %p313 = scmp.eq.s32.totalorder %s79, 0
      %p314 = por %p312, %p313
      %p315 = scmp.ne.s32.totalorder %s307, %s309
      %p316 = scmp.eq.s32.totalorder %s84, 1
      %p317 = por %p315, %p316
      %p318 = scmp.ne.s32.totalorder %s309, %s310
      %p319 = scmp.eq.s32.totalorder %s84, 0
      %p320 = por %p318, %p319
      %p321 = scmp.ne.s32.totalorder %s309, %s310
      %p322 = scmp.eq.s32.totalorder %s85, 1
      %p323 = por %p321, %p322
      %p325 = scmp.ne.s32.totalorder %s310, %s324
      %p326 = scmp.eq.s32.totalorder %s85, 0
      %p327 = por %p325, %p326
      %s329 = sadd.s32 %s328, 1
      %p332 = scmp.eq.s32.totalorder %s79, 1
      %p333 = scmp.ne.s32.totalorder %s328, %s330
      %p334 = scmp.eq.s32.totalorder %s79, 0
      %p335 = por %p333, %p334
      %p336 = scmp.ne.s32.totalorder %s328, %s330
      %p337 = scmp.eq.s32.totalorder %s84, 1
      %p338 = por %p336, %p337
      %p339 = scmp.ne.s32.totalorder %s330, %s331
      %p340 = scmp.eq.s32.totalorder %s84, 0
      %p341 = por %p339, %p340
      %p342 = scmp.ne.s32.totalorder %s330, %s331
      %p343 = scmp.eq.s32.totalorder %s85, 1
      %p344 = por %p342, %p343
      %p346 = scmp.ne.s32.totalorder %s331, %s345
      %p347 = scmp.eq.s32.totalorder %s85, 0
      %p348 = por %p346, %p347
      %s350 = sadd.s32 %s349, 1
      %p353 = scmp.eq.s32.totalorder %s79, 1
      %p354 = scmp.ne.s32.totalorder %s349, %s351
      %p355 = scmp.eq.s32.totalorder %s79, 0
      %p356 = por %p354, %p355
      %p357 = scmp.ne.s32.totalorder %s349, %s351
      %p358 = scmp.eq.s32.totalorder %s84, 1
      %p359 = por %p357, %p358
      %p360 = scmp.ne.s32.totalorder %s351, %s352
      %p361 = scmp.eq.s32.totalorder %s84, 0
      %p362 = por %p360, %p361
      %p363 = scmp.ne.s32.totalorder %s351, %s352
      %p364 = scmp.eq.s32.totalorder %s85, 1
      %p365 = por %p363, %p364
      %p367 = scmp.ne.s32.totalorder %s352, %s366
      %p368 = scmp.eq.s32.totalorder %s85, 0
      %p369 = por %p367, %p368
      %s371 = sadd.s32 %s370, 1
      %p374 = scmp.eq.s32.totalorder %s79, 1
      %p375 = scmp.ne.s32.totalorder %s370, %s372
      %p376 = scmp.eq.s32.totalorder %s79, 0
      %p377 = por %p375, %p376
      %p378 = scmp.ne.s32.totalorder %s370, %s372
      %p379 = scmp.eq.s32.totalorder %s84, 1
      %p380 = por %p378, %p379
      %p381 = scmp.ne.s32.totalorder %s372, %s373
      %p382 = scmp.eq.s32.totalorder %s84, 0
      %p383 = por %p381, %p382
      %p384 = scmp.ne.s32.totalorder %s372, %s373
      %p385 = scmp.eq.s32.totalorder %s85, 1
      %p386 = por %p384, %p385
      %p388 = scmp.ne.s32.totalorder %s373, %s387
      %p389 = scmp.eq.s32.totalorder %s85, 0
      %p390 = por %p388, %p389
      %s392 = sadd.s32 %s391, 1
      %p395 = scmp.eq.s32.totalorder %s79, 1
      %p396 = scmp.ne.s32.totalorder %s391, %s393
      %p397 = scmp.eq.s32.totalorder %s79, 0
      %p398 = por %p396, %p397
      %p399 = scmp.ne.s32.totalorder %s391, %s393
      %p400 = scmp.eq.s32.totalorder %s84, 1
      %p401 = por %p399, %p400
      %p402 = scmp.ne.s32.totalorder %s393, %s394
      %p403 = scmp.eq.s32.totalorder %s84, 0
      %p404 = por %p402, %p403
      %p405 = scmp.ne.s32.totalorder %s393, %s394
      %p406 = scmp.eq.s32.totalorder %s85, 1
      %p407 = por %p405, %p406
      %p409 = scmp.ne.s32.totalorder %s394, %s408
      %p410 = scmp.eq.s32.totalorder %s85, 0
      %p411 = por %p409, %p410
      %s413 = sadd.s32 %s412, 1
      %p416 = scmp.eq.s32.totalorder %s79, 1
      %p417 = scmp.ne.s32.totalorder %s412, %s414
      %p418 = scmp.eq.s32.totalorder %s79, 0
      %p419 = por %p417, %p418
      %p420 = scmp.ne.s32.totalorder %s412, %s414
      %p421 = scmp.eq.s32.totalorder %s84, 1
      %p422 = por %p420, %p421
      %p423 = scmp.ne.s32.totalorder %s414, %s415
      %p424 = scmp.eq.s32.totalorder %s84, 0
      %p425 = por %p423, %p424
      %p426 = scmp.ne.s32.totalorder %s414, %s415
      %p427 = scmp.eq.s32.totalorder %s85, 1
      %p428 = por %p426, %p427
      %p430 = scmp.ne.s32.totalorder %s415, %s429
      %p431 = scmp.eq.s32.totalorder %s85, 0
      %p432 = por %p430, %p431
      %s434 = sadd.s32 %s433, 1
      %p437 = scmp.eq.s32.totalorder %s79, 1
      %p438 = scmp.ne.s32.totalorder %s433, %s435
      %p439 = scmp.eq.s32.totalorder %s79, 0
      %p440 = por %p438, %p439
      %p441 = scmp.ne.s32.totalorder %s433, %s435
      %p442 = scmp.eq.s32.totalorder %s84, 1
      %p443 = por %p441, %p442
      %p444 = scmp.ne.s32.totalorder %s435, %s436
      %p445 = scmp.eq.s32.totalorder %s84, 0
      %p446 = por %p444, %p445
      %p447 = scmp.ne.s32.totalorder %s435, %s436
      %p448 = scmp.eq.s32.totalorder %s85, 1
      %p449 = por %p447, %p448
      %p451 = scmp.ne.s32.totalorder %s436, %s450
      %p452 = scmp.eq.s32.totalorder %s85, 0
      %p453 = por %p451, %p452
      %s455 = sadd.s32 %s454, 1
      %p458 = scmp.eq.s32.totalorder %s79, 1
      %p459 = scmp.ne.s32.totalorder %s454, %s456
      %p460 = scmp.eq.s32.totalorder %s79, 0
      %p461 = por %p459, %p460
      %p462 = scmp.ne.s32.totalorder %s454, %s456
      %p463 = scmp.eq.s32.totalorder %s84, 1
      %p464 = por %p462, %p463
      %p465 = scmp.ne.s32.totalorder %s456, %s457
      %p466 = scmp.eq.s32.totalorder %s84, 0
      %p467 = por %p465, %p466
      %p468 = scmp.ne.s32.totalorder %s456, %s457
      %p469 = scmp.eq.s32.totalorder %s85, 1
      %p470 = por %p468, %p469
      %p472 = scmp.ne.s32.totalorder %s457, %s471
      %p473 = scmp.eq.s32.totalorder %s85, 0
      %p474 = por %p472, %p473
      %s476 = sadd.s32 %s475, 1
      %p479 = scmp.eq.s32.totalorder %s79, 1
      %p480 = scmp.ne.s32.totalorder %s475, %s477
      %p481 = scmp.eq.s32.totalorder %s79, 0
      %p482 = por %p480, %p481
      %p483 = scmp.ne.s32.totalorder %s475, %s477
      %p484 = scmp.eq.s32.totalorder %s84, 1
      %p485 = por %p483, %p484
      %p486 = scmp.ne.s32.totalorder %s477, %s478
      %p487 = scmp.eq.s32.totalorder %s84, 0
      %p488 = por %p486, %p487
      %p489 = scmp.ne.s32.totalorder %s477, %s478
      %p490 = scmp.eq.s32.totalorder %s85, 1
      %p491 = por %p489, %p490
      %p493 = scmp.ne.s32.totalorder %s478, %s492
      %p494 = scmp.eq.s32.totalorder %s85, 0
      %p495 = por %p493, %p494
      %s497 = sadd.s32 %s496, 1
      %p500 = scmp.eq.s32.totalorder %s79, 1
      %p501 = scmp.ne.s32.totalorder %s496, %s498
      %p502 = scmp.eq.s32.totalorder %s79, 0
      %p503 = por %p501, %p502
      %p504 = scmp.ne.s32.totalorder %s496, %s498
      %p505 = scmp.eq.s32.totalorder %s84, 1
      %p506 = por %p504, %p505
      %p507 = scmp.ne.s32.totalorder %s498, %s499
      %p508 = scmp.eq.s32.totalorder %s84, 0
      %p509 = por %p507, %p508
      %p510 = scmp.ne.s32.totalorder %s498, %s499
      %p511 = scmp.eq.s32.totalorder %s85, 1
      %p512 = por %p510, %p511
      %p514 = scmp.ne.s32.totalorder %s499, %s513
      %p515 = scmp.eq.s32.totalorder %s85, 0
      %p516 = por %p514, %p515
      %s518 = sadd.s32 %s517, 1
      %p521 = scmp.eq.s32.totalorder %s79, 1
      %p522 = scmp.ne.s32.totalorder %s517, %s519
      %p523 = scmp.eq.s32.totalorder %s79, 0
      %p524 = por %p522, %p523
      %p525 = scmp.ne.s32.totalorder %s517, %s519
      %p526 = scmp.eq.s32.totalorder %s84, 1
      %p527 = por %p525, %p526
      %p528 = scmp.ne.s32.totalorder %s519, %s520
      %p529 = scmp.eq.s32.totalorder %s84, 0
      %p530 = por %p528, %p529
      %p531 = scmp.ne.s32.totalorder %s519, %s520
      %p532 = scmp.eq.s32.totalorder %s85, 1
      %p533 = por %p531, %p532
      %p535 = scmp.ne.s32.totalorder %s520, %s534
      %p536 = scmp.eq.s32.totalorder %s85, 0
      %p537 = por %p535, %p536
      %s539 = sadd.s32 %s538, 1
      %p542 = scmp.eq.s32.totalorder %s79, 1
      %p543 = scmp.ne.s32.totalorder %s538, %s540
      %p544 = scmp.eq.s32.totalorder %s79, 0
      %p545 = por %p543, %p544
      %p546 = scmp.ne.s32.totalorder %s538, %s540
      %p547 = scmp.eq.s32.totalorder %s84, 1
      %p548 = por %p546, %p547
      %p549 = scmp.ne.s32.totalorder %s540, %s541
      %p550 = scmp.eq.s32.totalorder %s84, 0
      %p551 = por %p549, %p550
      %p552 = scmp.ne.s32.totalorder %s540, %s541
      %p553 = scmp.eq.s32.totalorder %s85, 1
      %p554 = por %p552, %p553
      %p556 = scmp.ne.s32.totalorder %s541, %s555
      %p557 = scmp.eq.s32.totalorder %s85, 0
      %p558 = por %p556, %p557
      %s560 = sadd.s32 %s559, 1
      %p563 = scmp.eq.s32.totalorder %s79, 1
      %p564 = scmp.ne.s32.totalorder %s559, %s561
      %p565 = scmp.eq.s32.totalorder %s79, 0
      %p566 = por %p564, %p565
      %p567 = scmp.ne.s32.totalorder %s559, %s561
      %p568 = scmp.eq.s32.totalorder %s84, 1
      %p569 = por %p567, %p568
      %p570 = scmp.ne.s32.totalorder %s561, %s562
      %p571 = scmp.eq.s32.totalorder %s84, 0
      %p572 = por %p570, %p571
      %p573 = scmp.ne.s32.totalorder %s561, %s562
      %p574 = scmp.eq.s32.totalorder %s85, 1
      %p575 = por %p573, %p574
      %p577 = scmp.ne.s32.totalorder %s562, %s576
      %p578 = scmp.eq.s32.totalorder %s85, 0
      %p579 = por %p577, %p578
      %s581 = sadd.s32 %s580, 1
      %p584 = scmp.eq.s32.totalorder %s79, 1
      %p585 = scmp.ne.s32.totalorder %s580, %s582
      %p586 = scmp.eq.s32.totalorder %s79, 0
      %p587 = por %p585, %p586
      %p588 = scmp.ne.s32.totalorder %s580, %s582
      %p589 = scmp.eq.s32.totalorder %s84, 1
      %p590 = por %p588, %p589
      %p591 = scmp.ne.s32.totalorder %s582, %s583
      %p592 = scmp.eq.s32.totalorder %s84, 0
      %p593 = por %p591, %p592
      %p594 = scmp.ne.s32.totalorder %s582, %s583
      %p595 = scmp.eq.s32.totalorder %s85, 1
      %p596 = por %p594, %p595
      %p598 = scmp.ne.s32.totalorder %s583, %s597
      %p599 = scmp.eq.s32.totalorder %s85, 0
      %p600 = por %p598, %p599
      %s602 = sadd.s32 %s601, 1
      %p605 = scmp.eq.s32.totalorder %s79, 1
      %p606 = scmp.ne.s32.totalorder %s601, %s603
      %p607 = scmp.eq.s32.totalorder %s79, 0
      %p608 = por %p606, %p607
      %p609 = scmp.ne.s32.totalorder %s601, %s603
      %p610 = scmp.eq.s32.totalorder %s84, 1
      %p611 = por %p609, %p610
      %p612 = scmp.ne.s32.totalorder %s603, %s604
      %p613 = scmp.eq.s32.totalorder %s84, 0
      %p614 = por %p612, %p613
      %p615 = scmp.ne.s32.totalorder %s603, %s604
      %p616 = scmp.eq.s32.totalorder %s85, 1
      %p617 = por %p615, %p616
      %p619 = scmp.ne.s32.totalorder %s604, %s618
      %p620 = scmp.eq.s32.totalorder %s85, 0
      %p621 = por %p619, %p620
      %s623 = sadd.s32 %s622, 1
      %p626 = scmp.eq.s32.totalorder %s79, 1
      %p627 = scmp.ne.s32.totalorder %s622, %s624
      %p628 = scmp.eq.s32.totalorder %s79, 0
      %p629 = por %p627, %p628
      %p630 = scmp.ne.s32.totalorder %s622, %s624
      %p631 = scmp.eq.s32.totalorder %s84, 1
      %p632 = por %p630, %p631
      %p633 = scmp.ne.s32.totalorder %s624, %s625
      %p634 = scmp.eq.s32.totalorder %s84, 0
      %p635 = por %p633, %p634
      %p636 = scmp.ne.s32.totalorder %s624, %s625
      %p637 = scmp.eq.s32.totalorder %s85, 1
      %p638 = por %p636, %p637
      %p640 = scmp.ne.s32.totalorder %s625, %s639
      %p641 = scmp.eq.s32.totalorder %s85, 0
      %p642 = por %p640, %p641
      %s644 = sadd.s32 %s643, 1
      %p647 = scmp.eq.s32.totalorder %s79, 1
      %p648 = scmp.ne.s32.totalorder %s643, %s645
      %p649 = scmp.eq.s32.totalorder %s79, 0
      %p650 = por %p648, %p649
      %p651 = scmp.ne.s32.totalorder %s643, %s645
      %p652 = scmp.eq.s32.totalorder %s84, 1
      %p653 = por %p651, %p652
      %p654 = scmp.ne.s32.totalorder %s645, %s646
      %p655 = scmp.eq.s32.totalorder %s84, 0
      %p656 = por %p654, %p655
      %p657 = scmp.ne.s32.totalorder %s645, %s646
      %p658 = scmp.eq.s32.totalorder %s85, 1
      %p659 = por %p657, %p658
      %p661 = scmp.ne.s32.totalorder %s646, %s660
      %p662 = scmp.eq.s32.totalorder %s85, 0
      %p663 = por %p661, %p662
      %s665 = sadd.s32 %s664, 1
      %p668 = scmp.eq.s32.totalorder %s79, 1
      %p669 = scmp.ne.s32.totalorder %s664, %s666
      %p670 = scmp.eq.s32.totalorder %s79, 0
      %p671 = por %p669, %p670
      %p672 = scmp.ne.s32.totalorder %s664, %s666
      %p673 = scmp.eq.s32.totalorder %s84, 1
      %p674 = por %p672, %p673
      %p675 = scmp.ne.s32.totalorder %s666, %s667
      %p676 = scmp.eq.s32.totalorder %s84, 0
      %p677 = por %p675, %p676
      %p678 = scmp.ne.s32.totalorder %s666, %s667
      %p679 = scmp.eq.s32.totalorder %s85, 1
      %p680 = por %p678, %p679
      %p682 = scmp.ne.s32.totalorder %s667, %s681
      %p683 = scmp.eq.s32.totalorder %s85, 0
      %p684 = por %p682, %p683
      %s686 = sadd.s32 %s685, 1
      %p689 = scmp.eq.s32.totalorder %s79, 1
      %p690 = scmp.ne.s32.totalorder %s685, %s687
      %p691 = scmp.eq.s32.totalorder %s79, 0
      %p692 = por %p690, %p691
      %p693 = scmp.ne.s32.totalorder %s685, %s687
      %p694 = scmp.eq.s32.totalorder %s84, 1
      %p695 = por %p693, %p694
      %p696 = scmp.ne.s32.totalorder %s687, %s688
      %p697 = scmp.eq.s32.totalorder %s84, 0
      %p698 = por %p696, %p697
      %p699 = scmp.ne.s32.totalorder %s687, %s688
      %p700 = scmp.eq.s32.totalorder %s85, 1
      %p701 = por %p699, %p700
      %p703 = scmp.ne.s32.totalorder %s688, %s702
      %p704 = scmp.eq.s32.totalorder %s85, 0
      %p705 = por %p703, %p704
      %s707 = sadd.s32 %s706, 1
      %p710 = scmp.eq.s32.totalorder %s79, 1
      %p711 = scmp.ne.s32.totalorder %s706, %s708
      %p712 = scmp.eq.s32.totalorder %s79, 0
      %p713 = por %p711, %p712
      %p714 = scmp.ne.s32.totalorder %s706, %s708
      %p715 = scmp.eq.s32.totalorder %s84, 1
      %p716 = por %p714, %p715
      %p717 = scmp.ne.s32.totalorder %s708, %s709
      %p718 = scmp.eq.s32.totalorder %s84, 0
      %p719 = por %p717, %p718
      %p720 = scmp.ne.s32.totalorder %s708, %s709
      %p721 = scmp.eq.s32.totalorder %s85, 1
      %p722 = por %p720, %p721
      %p724 = scmp.ne.s32.totalorder %s709, %s723
      %p725 = scmp.eq.s32.totalorder %s85, 0
      %p726 = por %p724, %p725
      %s728 = sadd.s32 %s727, 1
      %p731 = scmp.eq.s32.totalorder %s79, 1
      %p732 = scmp.ne.s32.totalorder %s727, %s729
      %p733 = scmp.eq.s32.totalorder %s79, 0
      %p734 = por %p732, %p733
      %p735 = scmp.ne.s32.totalorder %s727, %s729
      %p736 = scmp.eq.s32.totalorder %s84, 1
      %p737 = por %p735, %p736
      %p738 = scmp.ne.s32.totalorder %s729, %s730
      %p739 = scmp.eq.s32.totalorder %s84, 0
      %p740 = por %p738, %p739
      %p741 = scmp.ne.s32.totalorder %s729, %s730
      %p742 = scmp.eq.s32.totalorder %s85, 1
      %p743 = por %p741, %p742
      %p745 = scmp.ne.s32.totalorder %s730, %s744
      %p746 = scmp.eq.s32.totalorder %s85, 0
      %p747 = por %p745, %p746
      %s749 = sadd.s32 %s748, 1
      %p752 = scmp.eq.s32.totalorder %s79, 1
      %p753 = scmp.ne.s32.totalorder %s748, %s750
      %p754 = scmp.eq.s32.totalorder %s79, 0
      %p755 = por %p753, %p754
      %p756 = scmp.ne.s32.totalorder %s748, %s750
      %p757 = scmp.eq.s32.totalorder %s84, 1
      %p758 = por %p756, %p757
      %p759 = scmp.ne.s32.totalorder %s750, %s751
      %p760 = scmp.eq.s32.totalorder %s84, 0
      %p761 = por %p759, %p760
      %p762 = scmp.ne.s32.totalorder %s750, %s751
      %p763 = scmp.eq.s32.totalorder %s85, 1
      %p764 = por %p762, %p763
      %p766 = scmp.ne.s32.totalorder %s751, %s765
      %p767 = scmp.eq.s32.totalorder %s85, 0
      %p768 = por %p766, %p767
      %s769 = ssub.s32 %s79, %s86
      %p770 = scmp.eq.s32.totalorder %s769, 0
      %s772 = sadd.s32 %s771, 1
      %s773 = scalar_select %p770, %s771, %s772
      %p776 = pneg %p770
      %p777 = scmp.eq.s32.totalorder %s79, 1
      %p778 = por %p776, %p777
      %p779 = scmp.ne.s32.totalorder %s771, %s774
      %p780 = scmp.eq.s32.totalorder %s79, 0
      %p781 = por %p779, %p780
      %p782 = scmp.ne.s32.totalorder %s771, %s774
      %p783 = scmp.eq.s32.totalorder %s84, 1
      %p784 = por %p782, %p783
      %p785 = scmp.ne.s32.totalorder %s774, %s775
      %p786 = scmp.eq.s32.totalorder %s84, 0
      %p787 = por %p785, %p786
      %p788 = scmp.ne.s32.totalorder %s774, %s775
      %p789 = scmp.eq.s32.totalorder %s85, 1
      %p790 = por %p788, %p789
      %p792 = scmp.ne.s32.totalorder %s775, %s791
      %p793 = scmp.eq.s32.totalorder %s85, 0
      %p794 = por %p792, %p793
      %p795 = scmp.le.s32.totalorder 1, %s79
      %p796 = scmp.lt.s32.totalorder %s79, 3
      %p797 = pnand %p795, %p796
      %p798 = pneg %p797
      // Predicated region
      $region9: #{discriminator_forward.1} parent=5 // pred_check
        _
      $region10: #{discriminator_forward.1} parent=5 // pred_check_branch
        %800 = sbr.rel (%p797) target = $region12
      $region11: #{discriminator_forward.1} parent=5 // pred_region
        %s801 = ssub.s32 %s79, 1
        // Predicated region
        $region13: #{discriminator_forward.1} parent=11 // pred_check
          %p802 = pneg %p152
        $region14: #{discriminator_forward.1} parent=11 // pred_check_branch
          %804 = sbr.rel (%p802) target = $region16
        $region15: #{discriminator_forward.1} parent=11 // pred_region
          _
        $region16: #{discriminator_forward.1} parent=11 // pred_fallthru
          _
        // Predicated region
        $region17: #{discriminator_forward.1} parent=11 // pred_check
          %p805 = pneg %p173
        $region18: #{discriminator_forward.1} parent=11 // pred_check_branch
          %807 = sbr.rel (%p805) target = $region20
        $region19: #{discriminator_forward.1} parent=11 // pred_region
          _
        $region20: #{discriminator_forward.1} parent=11 // pred_fallthru
          _
        // Predicated region
        $region21: #{discriminator_forward.1} parent=11 // pred_check
          %p808 = pneg %p194
        $region22: #{discriminator_forward.1} parent=11 // pred_check_branch
          %810 = sbr.rel (%p808) target = $region24
        $region23: #{discriminator_forward.1} parent=11 // pred_region
          _
        $region24: #{discriminator_forward.1} parent=11 // pred_fallthru
          _
        // Predicated region
        $region25: #{discriminator_forward.1} parent=11 // pred_check
          %p811 = pneg %p215
        $region26: #{discriminator_forward.1} parent=11 // pred_check_branch
          %813 = sbr.rel (%p811) target = $region28
        $region27: #{discriminator_forward.1} parent=11 // pred_region
          _
        $region28: #{discriminator_forward.1} parent=11 // pred_fallthru
          _
        // Predicated region
        $region29: #{discriminator_forward.1} parent=11 // pred_check
          %p814 = pneg %p236
        $region30: #{discriminator_forward.1} parent=11 // pred_check_branch
          %816 = sbr.rel (%p814) target = $region32
        $region31: #{discriminator_forward.1} parent=11 // pred_region
          _
        $region32: #{discriminator_forward.1} parent=11 // pred_fallthru
          _
        // Predicated region
        $region33: #{discriminator_forward.1} parent=11 // pred_check
          %p817 = pneg %p257
        $region34: #{discriminator_forward.1} parent=11 // pred_check_branch
          %819 = sbr.rel (%p817) target = $region36
        $region35: #{discriminator_forward.1} parent=11 // pred_region
          _
        $region36: #{discriminator_forward.1} parent=11 // pred_fallthru
          _
        // Predicated region
        $region37: #{discriminator_forward.1} parent=11 // pred_check
          %p820 = pneg %p278
        $region38: #{discriminator_forward.1} parent=11 // pred_check_branch
          %822 = sbr.rel (%p820) target = $region40
        $region39: #{discriminator_forward.1} parent=11 // pred_region
          _
        $region40: #{discriminator_forward.1} parent=11 // pred_fallthru
          _
        // Predicated region
        $region41: #{discriminator_forward.1} parent=11 // pred_check
          %p823 = pneg %p299
        $region42: #{discriminator_forward.1} parent=11 // pred_check_branch
          %825 = sbr.rel (%p823) target = $region44
        $region43: #{discriminator_forward.1} parent=11 // pred_region
          _
        $region44: #{discriminator_forward.1} parent=11 // pred_fallthru
          _
        // Predicated region
        $region45: #{discriminator_forward.1} parent=11 // pred_check
          %p826 = pneg %p320
        $region46: #{discriminator_forward.1} parent=11 // pred_check_branch
          %828 = sbr.rel (%p826) target = $region48
        $region47: #{discriminator_forward.1} parent=11 // pred_region
          _
        $region48: #{discriminator_forward.1} parent=11 // pred_fallthru
          _
        // Predicated region
        $region49: #{discriminator_forward.1} parent=11 // pred_check
          %p829 = pneg %p341
        $region50: #{discriminator_forward.1} parent=11 // pred_check_branch
          %831 = sbr.rel (%p829) target = $region52
        $region51: #{discriminator_forward.1} parent=11 // pred_region
          _
        $region52: #{discriminator_forward.1} parent=11 // pred_fallthru
          _
        // Predicated region
        $region53: #{discriminator_forward.1} parent=11 // pred_check
          %p832 = pneg %p362
        $region54: #{discriminator_forward.1} parent=11 // pred_check_branch
          %834 = sbr.rel (%p832) target = $region56
        $region55: #{discriminator_forward.1} parent=11 // pred_region
          _
        $region56: #{discriminator_forward.1} parent=11 // pred_fallthru
          _
        // Predicated region
        $region57: #{discriminator_forward.1} parent=11 // pred_check
          %p835 = pneg %p383
        $region58: #{discriminator_forward.1} parent=11 // pred_check_branch
          %837 = sbr.rel (%p835) target = $region60
        $region59: #{discriminator_forward.1} parent=11 // pred_region
          _
        $region60: #{discriminator_forward.1} parent=11 // pred_fallthru
          _
        // Predicated region
        $region61: #{discriminator_forward.1} parent=11 // pred_check
          %p838 = pneg %p404
        $region62: #{discriminator_forward.1} parent=11 // pred_check_branch
          %840 = sbr.rel (%p838) target = $region64
        $region63: #{discriminator_forward.1} parent=11 // pred_region
          %s842 = ssub.s32 1024, 1024
          %843 = vsyncadd [#allocation8], %s842
          %s844 = sshll.u32 [#allocation7], 4
          %s845 = int_to_ptr.vmem [resolvable:$true] %s844
          %850 = dma.hbm_to_vmem [thread:$0]  %s29, 1024, %s845, [#allocation8], 64, 64, 4
        $region64: #{discriminator_forward.1} parent=11 // pred_fallthru
          _
        // Predicated region
        $region65: #{discriminator_forward.1} parent=11 // pred_check
          %p851 = pneg %p425
        $region66: #{discriminator_forward.1} parent=11 // pred_check_branch
          %853 = sbr.rel (%p851) target = $region68
        $region67: #{discriminator_forward.1} parent=11 // pred_region
          _
        $region68: #{discriminator_forward.1} parent=11 // pred_fallthru
          _
        // Predicated region
        $region69: #{discriminator_forward.1} parent=11 // pred_check
          %p854 = pneg %p446
        $region70: #{discriminator_forward.1} parent=11 // pred_check_branch
          %856 = sbr.rel (%p854) target = $region72
        $region71: #{discriminator_forward.1} parent=11 // pred_region
          %s858 = ssub.s32 1024, 1024
          %859 = vsyncadd [#allocation10], %s858
          %s860 = sshll.u32 [#allocation9], 4
          %s861 = int_to_ptr.vmem [resolvable:$true] %s860
          %866 = dma.hbm_to_vmem [thread:$0]  %s33, 1024, %s861, [#allocation10], 64, 64, 4
        $region72: #{discriminator_forward.1} parent=11 // pred_fallthru
          _
        // Predicated region
        $region73: #{discriminator_forward.1} parent=11 // pred_check
          %p867 = pneg %p467
        $region74: #{discriminator_forward.1} parent=11 // pred_check_branch
          %869 = sbr.rel (%p867) target = $region76
        $region75: #{discriminator_forward.1} parent=11 // pred_region
          _
        $region76: #{discriminator_forward.1} parent=11 // pred_fallthru
          _
        // Predicated region
        $region77: #{discriminator_forward.1} parent=11 // pred_check
          %p870 = pneg %p488
        $region78: #{discriminator_forward.1} parent=11 // pred_check_branch
          %872 = sbr.rel (%p870) target = $region80
        $region79: #{discriminator_forward.1} parent=11 // pred_region
          _
        $region80: #{discriminator_forward.1} parent=11 // pred_fallthru
          _
        // Predicated region
        $region81: #{discriminator_forward.1} parent=11 // pred_check
          %p873 = pneg %p509
        $region82: #{discriminator_forward.1} parent=11 // pred_check_branch
          %875 = sbr.rel (%p873) target = $region84
        $region83: #{discriminator_forward.1} parent=11 // pred_region
          _
        $region84: #{discriminator_forward.1} parent=11 // pred_fallthru
          _
        // Predicated region
        $region85: #{discriminator_forward.1} parent=11 // pred_check
          %p876 = pneg %p530
        $region86: #{discriminator_forward.1} parent=11 // pred_check_branch
          %878 = sbr.rel (%p876) target = $region88
        $region87: #{discriminator_forward.1} parent=11 // pred_region
          _
        $region88: #{discriminator_forward.1} parent=11 // pred_fallthru
          _
        // Predicated region
        $region89: #{discriminator_forward.1} parent=11 // pred_check
          %p879 = pneg %p551
        $region90: #{discriminator_forward.1} parent=11 // pred_check_branch
          %881 = sbr.rel (%p879) target = $region92
        $region91: #{discriminator_forward.1} parent=11 // pred_region
          _
        $region92: #{discriminator_forward.1} parent=11 // pred_fallthru
          _
        // Predicated region
        $region93: #{discriminator_forward.1} parent=11 // pred_check
          %p882 = pneg %p572
        $region94: #{discriminator_forward.1} parent=11 // pred_check_branch
          %884 = sbr.rel (%p882) target = $region96
        $region95: #{discriminator_forward.1} parent=11 // pred_region
          _
        $region96: #{discriminator_forward.1} parent=11 // pred_fallthru
          _
        // Predicated region
        $region97: #{discriminator_forward.1} parent=11 // pred_check
          %p885 = pneg %p593
        $region98: #{discriminator_forward.1} parent=11 // pred_check_branch
          %887 = sbr.rel (%p885) target = $region100
        $region99: #{discriminator_forward.1} parent=11 // pred_region
          %s889 = ssub.s32 16, 16
          %890 = vsyncadd [#allocation10], %s889
          %s892 = sshll.u32 [#allocation11], 4
          %s893 = int_to_ptr.vmem [resolvable:$true] %s892
          %895 = dma.hbm_to_vmem [thread:$0]  %s47, 16, %s893, [#allocation10]
        $region100: #{discriminator_forward.1} parent=11 // pred_fallthru
          _
        // Predicated region
        $region101: #{discriminator_forward.1} parent=11 // pred_check
          %p896 = pneg %p614
        $region102: #{discriminator_forward.1} parent=11 // pred_check_branch
          %898 = sbr.rel (%p896) target = $region104
        $region103: #{discriminator_forward.1} parent=11 // pred_region
          _
        $region104: #{discriminator_forward.1} parent=11 // pred_fallthru
          _
        // Predicated region
        $region105: #{discriminator_forward.1} parent=11 // pred_check
          %p899 = pneg %p635
        $region106: #{discriminator_forward.1} parent=11 // pred_check_branch
          %901 = sbr.rel (%p899) target = $region108
        $region107: #{discriminator_forward.1} parent=11 // pred_region
          %s903 = ssub.s32 16, 16
          %904 = vsyncadd [#allocation13], %s903
          %s906 = sshll.u32 [#allocation12], 4
          %s907 = int_to_ptr.vmem [resolvable:$true] %s906
          %909 = dma.hbm_to_vmem [thread:$0]  %s51, 16, %s907, [#allocation13]
        $region108: #{discriminator_forward.1} parent=11 // pred_fallthru
          _
        // Predicated region
        $region109: #{discriminator_forward.1} parent=11 // pred_check
          %p910 = pneg %p656
        $region110: #{discriminator_forward.1} parent=11 // pred_check_branch
          %912 = sbr.rel (%p910) target = $region112
        $region111: #{discriminator_forward.1} parent=11 // pred_region
          _
        $region112: #{discriminator_forward.1} parent=11 // pred_fallthru
          _
        // Predicated region
        $region113: #{discriminator_forward.1} parent=11 // pred_check
          %p913 = pneg %p677
        $region114: #{discriminator_forward.1} parent=11 // pred_check_branch
          %915 = sbr.rel (%p913) target = $region116
        $region115: #{discriminator_forward.1} parent=11 // pred_region
          %s917 = ssub.s32 16, 16
          %918 = vsyncadd [#allocation13], %s917
          %s920 = sshll.u32 [#allocation14], 4
          %s921 = int_to_ptr.vmem [resolvable:$true] %s920
          %923 = dma.hbm_to_vmem [thread:$0]  %s55, 16, %s921, [#allocation13]
        $region116: #{discriminator_forward.1} parent=11 // pred_fallthru
          _
        // Predicated region
        $region117: #{discriminator_forward.1} parent=11 // pred_check
          %p924 = pneg %p698
        $region118: #{discriminator_forward.1} parent=11 // pred_check_branch
          %926 = sbr.rel (%p924) target = $region120
        $region119: #{discriminator_forward.1} parent=11 // pred_region
          _
        $region120: #{discriminator_forward.1} parent=11 // pred_fallthru
          _
        // Predicated region
        $region121: #{discriminator_forward.1} parent=11 // pred_check
          %p927 = pneg %p719
        $region122: #{discriminator_forward.1} parent=11 // pred_check_branch
          %929 = sbr.rel (%p927) target = $region124
        $region123: #{discriminator_forward.1} parent=11 // pred_region
          %s931 = ssub.s32 16, 16
          %932 = vsyncadd [#allocation16], %s931
          %s934 = sshll.u32 [#allocation15], 4
          %s935 = int_to_ptr.vmem [resolvable:$true] %s934
          %937 = dma.hbm_to_vmem [thread:$0]  %s59, 16, %s935, [#allocation16]
        $region124: #{discriminator_forward.1} parent=11 // pred_fallthru
          _
        // Predicated region
        $region125: #{discriminator_forward.1} parent=11 // pred_check
          %p938 = pneg %p740
        $region126: #{discriminator_forward.1} parent=11 // pred_check_branch
          %940 = sbr.rel (%p938) target = $region128
        $region127: #{discriminator_forward.1} parent=11 // pred_region
          %s942 = ssub.s32 16, 16
          %943 = vsyncadd [#allocation16], %s942
          %s945 = sshll.u32 [#allocation17], 4
          %s946 = int_to_ptr.vmem [resolvable:$true] %s945
          %948 = dma.hbm_to_vmem [thread:$0]  %s61, 16, %s946, [#allocation16]
        $region128: #{discriminator_forward.1} parent=11 // pred_fallthru
          _
        // Predicated region
        $region129: #{discriminator_forward.1} parent=11 // pred_check
          %p949 = pneg %p761
        $region130: #{discriminator_forward.1} parent=11 // pred_check_branch
          %951 = sbr.rel (%p949) target = $region132
        $region131: #{discriminator_forward.1} parent=11 // pred_region
          _
        $region132: #{discriminator_forward.1} parent=11 // pred_fallthru
          _
      $region12: #{discriminator_forward.1} parent=5 // pred_fallthru
        _
      %p952 = scmp.lt.s32.totalorder %s79, 2
      // Predicated region
      $region133: #{discriminator_forward.1} parent=5 // pred_check
        %p953 = pneg %p952
      $region134: #{discriminator_forward.1} parent=5 // pred_check_branch
        %955 = sbr.rel (%p953) target = $region136
      $region135: #{discriminator_forward.1} parent=5 // pred_region
        // Predicated region
        $region137: #{discriminator_forward.1} parent=135 // pred_check
          %p956 = pneg %p99
        $region138: #{discriminator_forward.1} parent=135 // pred_check_branch
          %958 = sbr.rel (%p956) target = $region140
        $region139: #{discriminator_forward.1} parent=135 // pred_region
          %p959 = scmp.lt.s32.totalorder %s79, 1
          %s960 = scalar_select %p959, %s79, 1
          %s961 = smul.addr %s960, 32
          %s962 = smul.addr %s961, 8
          %s963 = scalar_lea.vmem %s1, %s962
        $region140: #{discriminator_forward.1} parent=135 // pred_fallthru
          _
        // Predicated region
        $region141: #{discriminator_forward.1} parent=135 // pred_check
          %p964 = pneg %p125
        $region142: #{discriminator_forward.1} parent=135 // pred_check_branch
          %966 = sbr.rel (%p964) target = $region144
        $region143: #{discriminator_forward.1} parent=135 // pred_region
          %p967 = scmp.lt.s32.totalorder %s79, 1
          %s968 = scalar_select %p967, %s79, 1
          %s969 = scalar_lea.vmem %s3, %s968
        $region144: #{discriminator_forward.1} parent=135 // pred_fallthru
          _
      $region136: #{discriminator_forward.1} parent=5 // pred_fallthru
        _
      %p970 = scmp.le.s32.totalorder 1, %s79
      %p971 = scmp.lt.s32.totalorder %s79, 3
      %p972 = pnand %p970, %p971
      %p973 = pneg %p972
      // Predicated region
      $region145: #{discriminator_forward.1} parent=5 // pred_check
        _
      $region146: #{discriminator_forward.1} parent=5 // pred_check_branch
        %975 = sbr.rel (%p972) target = $region148
      $region147: #{discriminator_forward.1} parent=5 // pred_region
        %s976 = ssub.s32 %s79, 1
        // Predicated region
        $region149: #{discriminator_forward.1} parent=147 // pred_check
          %p977 = pneg %p404
        $region150: #{discriminator_forward.1} parent=147 // pred_check_branch
          %979 = sbr.rel (%p977) target = $region152
        $region151: #{discriminator_forward.1} parent=147 // pred_region
          %980 = dma.done [#allocation8], 1024
        $region152: #{discriminator_forward.1} parent=147 // pred_fallthru
          _
        // Predicated region
        $region153: #{discriminator_forward.1} parent=147 // pred_check
          %p981 = pneg %p446
        $region154: #{discriminator_forward.1} parent=147 // pred_check_branch
          %983 = sbr.rel (%p981) target = $region156
        $region155: #{discriminator_forward.1} parent=147 // pred_region
          %984 = dma.done [#allocation10], 1024
        $region156: #{discriminator_forward.1} parent=147 // pred_fallthru
          _
        // Predicated region
        $region157: #{discriminator_forward.1} parent=147 // pred_check
          %p985 = pneg %p593
        $region158: #{discriminator_forward.1} parent=147 // pred_check_branch
          %987 = sbr.rel (%p985) target = $region160
        $region159: #{discriminator_forward.1} parent=147 // pred_region
          %988 = dma.done [#allocation10], 16
        $region160: #{discriminator_forward.1} parent=147 // pred_fallthru
          _
        // Predicated region
        $region161: #{discriminator_forward.1} parent=147 // pred_check
          %p989 = pneg %p635
        $region162: #{discriminator_forward.1} parent=147 // pred_check_branch
          %991 = sbr.rel (%p989) target = $region164
        $region163: #{discriminator_forward.1} parent=147 // pred_region
          %992 = dma.done [#allocation13], 16
        $region164: #{discriminator_forward.1} parent=147 // pred_fallthru
          _
        // Predicated region
        $region165: #{discriminator_forward.1} parent=147 // pred_check
          %p993 = pneg %p677
        $region166: #{discriminator_forward.1} parent=147 // pred_check_branch
          %995 = sbr.rel (%p993) target = $region168
        $region167: #{discriminator_forward.1} parent=147 // pred_region
          %996 = dma.done [#allocation13], 16
        $region168: #{discriminator_forward.1} parent=147 // pred_fallthru
          _
        // Predicated region
        $region169: #{discriminator_forward.1} parent=147 // pred_check
          %p997 = pneg %p719
        $region170: #{discriminator_forward.1} parent=147 // pred_check_branch
          %999 = sbr.rel (%p997) target = $region172
        $region171: #{discriminator_forward.1} parent=147 // pred_region
          %1000 = dma.done [#allocation16], 16
        $region172: #{discriminator_forward.1} parent=147 // pred_fallthru
          _
        // Predicated region
        $region173: #{discriminator_forward.1} parent=147 // pred_check
          %p1001 = pneg %p740
        $region174: #{discriminator_forward.1} parent=147 // pred_check_branch
          %1003 = sbr.rel (%p1001) target = $region176
        $region175: #{discriminator_forward.1} parent=147 // pred_region
          %1004 = dma.done [#allocation16], 16
        $region176: #{discriminator_forward.1} parent=147 // pred_fallthru
          _
        %p1005 = scmp.lt.s32.totalorder %s84, 1
        %s1006 = scalar_select %p1005, %s84, 1
        %s1007 = smul.addr %s1006, 32
        %s1008 = smul.addr %s1007, 8
        %s1009 = scalar_lea.vmem %s1, %s1008
        %p1010 = pneg %p105
        %p1011 = pneg %p102
        %p1012 = scmp.lt.s32.totalorder %s84, 1
        %s1013 = scalar_select %p1012, %s84, 1
        %s1014 = scalar_lea.vmem %s3, %s1013
        %p1015 = pneg %p131
        %p1016 = pneg %p128
        %p1017 = pneg %p152
        %p1018 = pneg %p149
        %p1019 = pneg %p173
        %p1020 = pneg %p170
        %p1021 = pneg %p194
        %p1022 = pneg %p191
        %p1023 = pneg %p215
        %p1024 = pneg %p212
        %p1025 = pneg %p236
        %p1026 = pneg %p233
        %p1027 = pneg %p257
        %p1028 = pneg %p254
        %p1029 = pneg %p278
        %p1030 = pneg %p275
        %p1031 = pneg %p299
        %p1032 = pneg %p296
        %p1033 = pneg %p320
        %p1034 = pneg %p317
        %p1035 = pneg %p341
        %p1036 = pneg %p338
        %p1037 = pneg %p362
        %p1038 = pneg %p359
        %p1039 = pneg %p383
        %p1040 = pneg %p380
        %p1041 = pneg %p404
        %p1042 = pneg %p401
        %p1043 = pneg %p425
        %p1044 = pneg %p422
        %p1045 = pneg %p446
        %p1046 = pneg %p443
        %p1047 = pneg %p467
        %p1048 = pneg %p464
        %p1049 = pneg %p488
        %p1050 = pneg %p485
        %p1051 = pneg %p509
        %p1052 = pneg %p506
        %p1053 = pneg %p530
        %p1054 = pneg %p527
        %p1055 = pneg %p551
        %p1056 = pneg %p548
        %p1057 = pneg %p572
        %p1058 = pneg %p569
        %p1059 = pneg %p593
        %p1060 = pneg %p590
        %p1061 = pneg %p614
        %p1062 = pneg %p611
        %p1063 = pneg %p635
        %p1064 = pneg %p632
        %p1065 = pneg %p656
        %p1066 = pneg %p653
        %p1067 = pneg %p677
        %p1068 = pneg %p674
        %p1069 = pneg %p698
        %p1070 = pneg %p695
        %p1071 = pneg %p719
        %p1072 = pneg %p716
        %p1073 = pneg %p740
        %p1074 = pneg %p737
        %p1075 = pneg %p761
        %p1076 = pneg %p758
        %p1077 = pneg %p787
        %p1078 = pneg %p784
        %p1079 = scmp.lt.s32.totalorder %s84, 1
        %s1080 = scalar_select %p1079, %s84, 1
        %s1081 = scalar_lea.vmem %s65, %s1080
        %p1082 = scmp.lt.s32.totalorder %s84, 1
        %s1083 = scalar_select %p1082, %s84, 1
        %s1084 = smul.addr %s1083, 32
        %s1085 = smul.addr %s1084, 8
        %s1086 = scalar_lea.vmem %s1, %s1085
        %p1087 = scmp.lt.s32.totalorder %s84, 1
        %s1088 = scalar_select %p1087, %s84, 1
        %s1089 = scalar_lea.vmem %s3, %s1088
        %p1090 = scmp.lt.s32.totalorder %s84, 1
        %s1091 = scalar_select %p1090, %s84, 1
        %s1092 = scalar_lea.vmem %s65, %s1091
        %1094 = vst [vmem:[#allocation2] sm:$0xff] 0
        %s1095 = scalar_lea.vmem [#allocation2], 136
        %1096 = vst [vmem:[%s1095] sm:$0xff] 0
        %1097 = vst [vmem:[#allocation3] sm:$0xf] 0
        %s1098 = scalar_lea.vmem [#allocation3], 36
        %1099 = vst [vmem:[%s1098] sm:$0xf] 0
        %1100 = vst [vmem:[#allocation4] sm:$0x3] 0
        %s1101 = scalar_lea.vmem [#allocation4], 10
        %1102 = vst [vmem:[%s1101] sm:$0x3] 0
        %v1103 = vld [vmem:[%s1086] sm:$0xff]
        %v1104 = vld [vmem:[%s1086 + $0x8] sm:$0xff]
        %v1105 = vld [vmem:[%s1086 + $0x10] sm:$0xff]
        %v1106 = vld [vmem:[%s1086 + $0x18] sm:$0xff]
        %v1107 = vld [vmem:[%s1086 + $0x20] sm:$0xff]
        %v1108 = vld [vmem:[%s1086 + $0x28] sm:$0xff]
        %v1109 = vld [vmem:[%s1086 + $0x30] sm:$0xff]
        %v1110 = vld [vmem:[%s1086 + $0x38] sm:$0xff]
        %v1111 = vld [vmem:[%s1086 + $0x40] sm:$0xff]
        %v1112 = vld [vmem:[%s1086 + $0x48] sm:$0xff]
        %v1113 = vld [vmem:[%s1086 + $0x50] sm:$0xff]
        %v1114 = vld [vmem:[%s1086 + $0x58] sm:$0xff]
        %v1115 = vld [vmem:[%s1086 + $0x60] sm:$0xff]
        %v1116 = vld [vmem:[%s1086 + $0x68] sm:$0xff]
        %v1117 = vld [vmem:[%s1086 + $0x70] sm:$0xff]
        %v1118 = vld [vmem:[%s1086 + $0x78] sm:$0xff]
        %v1119 = vld [vmem:[%s1086 + $0x80] sm:$0xff]
        %v1120 = vld [vmem:[%s1086 + $0x88] sm:$0xff]
        %v1121 = vld [vmem:[%s1086 + $0x90] sm:$0xff]
        %v1122 = vld [vmem:[%s1086 + $0x98] sm:$0xff]
        %v1123 = vld [vmem:[%s1086 + $0xa0] sm:$0xff]
        %v1124 = vld [vmem:[%s1086 + $0xa8] sm:$0xff]
        %v1125 = vld [vmem:[%s1086 + $0xb0] sm:$0xff]
        %v1126 = vld [vmem:[%s1086 + $0xb8] sm:$0xff]
        %v1127 = vld [vmem:[%s1086 + $0xc0] sm:$0xff]
        %v1128 = vld [vmem:[%s1086 + $0xc8] sm:$0xff]
        %v1129 = vld [vmem:[%s1086 + $0xd0] sm:$0xff]
        %v1130 = vld [vmem:[%s1086 + $0xd8] sm:$0xff]
        %v1131 = vld [vmem:[%s1086 + $0xe0] sm:$0xff]
        %v1132 = vld [vmem:[%s1086 + $0xe8] sm:$0xff]
        %v1133 = vld [vmem:[%s1086 + $0xf0] sm:$0xff]
        %v1134 = vld [vmem:[%s1086 + $0xf8] sm:$0xff]
        %v1135 = vpack.c.bf16 %v1104, %v1103
        %v1136 = vpack.c.bf16 %v1106, %v1105
        %v1137 = vpack.c.bf16 %v1108, %v1107
        %v1138 = vpack.c.bf16 %v1110, %v1109
        %v1139 = vpack.c.bf16 %v1112, %v1111
        %v1140 = vpack.c.bf16 %v1114, %v1113
        %v1141 = vpack.c.bf16 %v1116, %v1115
        %v1142 = vpack.c.bf16 %v1118, %v1117
        %v1143 = vpack.c.bf16 %v1120, %v1119
        %v1144 = vpack.c.bf16 %v1122, %v1121
        %v1145 = vpack.c.bf16 %v1124, %v1123
        %v1146 = vpack.c.bf16 %v1126, %v1125
        %v1147 = vpack.c.bf16 %v1128, %v1127
        %v1148 = vpack.c.bf16 %v1130, %v1129
        %v1149 = vpack.c.bf16 %v1132, %v1131
        %v1150 = vpack.c.bf16 %v1134, %v1133
        %v1152 = vshrl.u32 %v1135, 16
        %v1154 = vrot.slane %v1152, 7
        %v1155 = vshll.u32 %v1135, 16
        %v1157 = vor.u32 %v1154, %v1155
        %v1159 = vshrl.u32 %v1136, 16
        %v1161 = vrot.slane %v1159, 7
        %v1162 = vshll.u32 %v1136, 16
        %v1164 = vor.u32 %v1161, %v1162
        %v1166 = vshrl.u32 %v1137, 16
        %v1168 = vrot.slane %v1166, 7
        %v1169 = vshll.u32 %v1137, 16
        %v1171 = vor.u32 %v1168, %v1169
        %v1173 = vshrl.u32 %v1138, 16
        %v1175 = vrot.slane %v1173, 7
        %v1176 = vshll.u32 %v1138, 16
        %v1178 = vor.u32 %v1175, %v1176
        %v1180 = vshrl.u32 %v1139, 16
        %v1182 = vrot.slane %v1180, 7
        %v1183 = vshll.u32 %v1139, 16
        %v1185 = vor.u32 %v1182, %v1183
        %v1187 = vshrl.u32 %v1140, 16
        %v1189 = vrot.slane %v1187, 7
        %v1190 = vshll.u32 %v1140, 16
        %v1192 = vor.u32 %v1189, %v1190
        %v1194 = vshrl.u32 %v1141, 16
        %v1196 = vrot.slane %v1194, 7
        %v1197 = vshll.u32 %v1141, 16
        %v1199 = vor.u32 %v1196, %v1197
        %v1201 = vshrl.u32 %v1142, 16
        %v1203 = vrot.slane %v1201, 7
        %v1204 = vshll.u32 %v1142, 16
        %v1206 = vor.u32 %v1203, %v1204
        %v1208 = vshrl.u32 %v1143, 16
        %v1210 = vrot.slane %v1208, 7
        %v1211 = vshll.u32 %v1143, 16
        %v1213 = vor.u32 %v1210, %v1211
        %v1215 = vshrl.u32 %v1144, 16
        %v1217 = vrot.slane %v1215, 7
        %v1218 = vshll.u32 %v1144, 16
        %v1220 = vor.u32 %v1217, %v1218
        %v1222 = vshrl.u32 %v1145, 16
        %v1224 = vrot.slane %v1222, 7
        %v1225 = vshll.u32 %v1145, 16
        %v1227 = vor.u32 %v1224, %v1225
        %v1229 = vshrl.u32 %v1146, 16
        %v1231 = vrot.slane %v1229, 7
        %v1232 = vshll.u32 %v1146, 16
        %v1234 = vor.u32 %v1231, %v1232
        %v1236 = vshrl.u32 %v1147, 16
        %v1238 = vrot.slane %v1236, 7
        %v1239 = vshll.u32 %v1147, 16
        %v1241 = vor.u32 %v1238, %v1239
        %v1243 = vshrl.u32 %v1148, 16
        %v1245 = vrot.slane %v1243, 7
        %v1246 = vshll.u32 %v1148, 16
        %v1248 = vor.u32 %v1245, %v1246
        %v1250 = vshrl.u32 %v1149, 16
        %v1252 = vrot.slane %v1250, 7
        %v1253 = vshll.u32 %v1149, 16
        %v1255 = vor.u32 %v1252, %v1253
        %v1257 = vshrl.u32 %v1150, 16
        %v1259 = vrot.slane %v1257, 7
        %v1260 = vshll.u32 %v1150, 16
        %v1262 = vor.u32 %v1259, %v1260
        %vm1279 = vcmask 1040384
        %vm1280 = vsmask.f32 256
        %vm1281 = vmand %vm1279, %vm1280
        %v1282 = vsel %vm1281, 0, %v1157
        %v1283 = vsel %vm1281, 0, %v1164
        %v1284 = vsel %vm1281, 0, %v1171
        %v1285 = vsel %vm1281, 0, %v1178
        %v1286 = vsel %vm1281, 0, %v1185
        %v1287 = vsel %vm1281, 0, %v1192
        %v1288 = vsel %vm1281, 0, %v1199
        %v1289 = vsel %vm1281, 0, %v1206
        %v1290 = vsel %vm1281, 0, %v1213
        %v1291 = vsel %vm1281, 0, %v1220
        %v1292 = vsel %vm1281, 0, %v1227
        %v1293 = vsel %vm1281, 0, %v1234
        %v1294 = vsel %vm1281, 0, %v1241
        %v1295 = vsel %vm1281, 0, %v1248
        %v1296 = vsel %vm1281, 0, %v1255
        %v1297 = vsel %vm1281, 0, %v1262
        %v1298 = vrot.slane %v1155, 1
        %v1299 = vor.u32 %v1152, %v1298
        %v1300 = vrot.slane %v1162, 1
        %v1301 = vor.u32 %v1159, %v1300
        %v1302 = vrot.slane %v1169, 1
        %v1303 = vor.u32 %v1166, %v1302
        %v1304 = vrot.slane %v1176, 1
        %v1305 = vor.u32 %v1173, %v1304
        %v1306 = vrot.slane %v1183, 1
        %v1307 = vor.u32 %v1180, %v1306
        %v1308 = vrot.slane %v1190, 1
        %v1309 = vor.u32 %v1187, %v1308
        %v1310 = vrot.slane %v1197, 1
        %v1311 = vor.u32 %v1194, %v1310
        %v1312 = vrot.slane %v1204, 1
        %v1313 = vor.u32 %v1201, %v1312
        %v1314 = vrot.slane %v1211, 1
        %v1315 = vor.u32 %v1208, %v1314
        %v1316 = vrot.slane %v1218, 1
        %v1317 = vor.u32 %v1215, %v1316
        %v1318 = vrot.slane %v1225, 1
        %v1319 = vor.u32 %v1222, %v1318
        %v1320 = vrot.slane %v1232, 1
        %v1321 = vor.u32 %v1229, %v1320
        %v1322 = vrot.slane %v1239, 1
        %v1323 = vor.u32 %v1236, %v1322
        %v1324 = vrot.slane %v1246, 1
        %v1325 = vor.u32 %v1243, %v1324
        %v1326 = vrot.slane %v1253, 1
        %v1327 = vor.u32 %v1250, %v1326
        %v1328 = vrot.slane %v1260, 1
        %v1329 = vor.u32 %v1257, %v1328
        %vm1346 = vcmask 1047552
        %vm1347 = vsmask.f32 7424
        %vm1348 = vmand %vm1346, %vm1347
        %v1349 = vsel %vm1348, %v1299, 0
        %v1350 = vsel %vm1348, %v1301, 0
        %v1351 = vsel %vm1348, %v1303, 0
        %v1352 = vsel %vm1348, %v1305, 0
        %v1353 = vsel %vm1348, %v1307, 0
        %v1354 = vsel %vm1348, %v1309, 0
        %v1355 = vsel %vm1348, %v1311, 0
        %v1356 = vsel %vm1348, %v1313, 0
        %v1357 = vsel %vm1348, %v1315, 0
        %v1358 = vsel %vm1348, %v1317, 0
        %v1359 = vsel %vm1348, %v1319, 0
        %v1360 = vsel %vm1348, %v1321, 0
        %v1361 = vsel %vm1348, %v1323, 0
        %v1362 = vsel %vm1348, %v1325, 0
        %v1363 = vsel %vm1348, %v1327, 0
        %v1364 = vsel %vm1348, %v1329, 0
        %1381 = vrot.lane.b32.xlu0 %v1135, 32
        %v1382 = vpop.permute.xlu0 %1381
        %1383 = vrot.lane.b32.xlu0 %v1136, 32
        %v1384 = vpop.permute.xlu0 %1383
        %1385 = vrot.lane.b32.xlu0 %v1137, 32
        %v1386 = vpop.permute.xlu0 %1385
        %1387 = vrot.lane.b32.xlu0 %v1138, 32
        %v1388 = vpop.permute.xlu0 %1387
        %1389 = vrot.lane.b32.xlu0 %v1139, 32
        %v1390 = vpop.permute.xlu0 %1389
        %1391 = vrot.lane.b32.xlu0 %v1140, 32
        %v1392 = vpop.permute.xlu0 %1391
        %1393 = vrot.lane.b32.xlu0 %v1141, 32
        %v1394 = vpop.permute.xlu0 %1393
        %1395 = vrot.lane.b32.xlu0 %v1142, 32
        %v1396 = vpop.permute.xlu0 %1395
        %1397 = vrot.lane.b32.xlu0 %v1143, 32
        %v1398 = vpop.permute.xlu0 %1397
        %1399 = vrot.lane.b32.xlu0 %v1144, 32
        %v1400 = vpop.permute.xlu0 %1399
        %1401 = vrot.lane.b32.xlu0 %v1145, 32
        %v1402 = vpop.permute.xlu0 %1401
        %1403 = vrot.lane.b32.xlu0 %v1146, 32
        %v1404 = vpop.permute.xlu0 %1403
        %1405 = vrot.lane.b32.xlu0 %v1147, 32
        %v1406 = vpop.permute.xlu0 %1405
        %1407 = vrot.lane.b32.xlu0 %v1148, 32
        %v1408 = vpop.permute.xlu0 %1407
        %1409 = vrot.lane.b32.xlu0 %v1149, 32
        %v1410 = vpop.permute.xlu0 %1409
        %1411 = vrot.lane.b32.xlu0 %v1150, 32
        %v1412 = vpop.permute.xlu0 %1411
        %1429 = vrot.lane.b32.xlu0 %v1349, 64
        %v1430 = vpop.permute.xlu0 %1429
        %1431 = vrot.lane.b32.xlu0 %v1350, 64
        %v1432 = vpop.permute.xlu0 %1431
        %1433 = vrot.lane.b32.xlu0 %v1351, 64
        %v1434 = vpop.permute.xlu0 %1433
        %1435 = vrot.lane.b32.xlu0 %v1352, 64
        %v1436 = vpop.permute.xlu0 %1435
        %1437 = vrot.lane.b32.xlu0 %v1353, 64
        %v1438 = vpop.permute.xlu0 %1437
        %1439 = vrot.lane.b32.xlu0 %v1354, 64
        %v1440 = vpop.permute.xlu0 %1439
        %1441 = vrot.lane.b32.xlu0 %v1355, 64
        %v1442 = vpop.permute.xlu0 %1441
        %1443 = vrot.lane.b32.xlu0 %v1356, 64
        %v1444 = vpop.permute.xlu0 %1443
        %1445 = vrot.lane.b32.xlu0 %v1357, 64
        %v1446 = vpop.permute.xlu0 %1445
        %1447 = vrot.lane.b32.xlu0 %v1358, 64
        %v1448 = vpop.permute.xlu0 %1447
        %1449 = vrot.lane.b32.xlu0 %v1359, 64
        %v1450 = vpop.permute.xlu0 %1449
        %1451 = vrot.lane.b32.xlu0 %v1360, 64
        %v1452 = vpop.permute.xlu0 %1451
        %1453 = vrot.lane.b32.xlu0 %v1361, 64
        %v1454 = vpop.permute.xlu0 %1453
        %1455 = vrot.lane.b32.xlu0 %v1362, 64
        %v1456 = vpop.permute.xlu0 %1455
        %1457 = vrot.lane.b32.xlu0 %v1363, 64
        %v1458 = vpop.permute.xlu0 %1457
        %1459 = vrot.lane.b32.xlu0 %v1364, 64
        %v1460 = vpop.permute.xlu0 %1459
        %vm1461 = vcmask 261120
        %v1464 = vsel %vm1461, %v1282, %v1382
        %v1467 = vsel %vm1461, %v1283, %v1384
        %v1470 = vsel %vm1461, %v1284, %v1386
        %v1473 = vsel %vm1461, %v1285, %v1388
        %v1476 = vsel %vm1461, %v1286, %v1390
        %v1479 = vsel %vm1461, %v1287, %v1392
        %v1482 = vsel %vm1461, %v1288, %v1394
        %v1485 = vsel %vm1461, %v1289, %v1396
        %v1488 = vsel %vm1461, %v1290, %v1398
        %v1491 = vsel %vm1461, %v1291, %v1400
        %v1494 = vsel %vm1461, %v1292, %v1402
        %v1497 = vsel %vm1461, %v1293, %v1404
        %v1500 = vsel %vm1461, %v1294, %v1406
        %v1503 = vsel %vm1461, %v1295, %v1408
        %v1506 = vsel %vm1461, %v1296, %v1410
        %v1509 = vsel %vm1461, %v1297, %v1412
        %vm1510 = vcmask 523264
        %v1512 = vsel %vm1510, %v1464, %v1430
        %v1514 = vsel %vm1510, %v1467, %v1432
        %v1516 = vsel %vm1510, %v1470, %v1434
        %v1518 = vsel %vm1510, %v1473, %v1436
        %v1520 = vsel %vm1510, %v1476, %v1438
        %v1522 = vsel %vm1510, %v1479, %v1440
        %v1524 = vsel %vm1510, %v1482, %v1442
        %v1526 = vsel %vm1510, %v1485, %v1444
        %v1528 = vsel %vm1510, %v1488, %v1446
        %v1530 = vsel %vm1510, %v1491, %v1448
        %v1532 = vsel %vm1510, %v1494, %v1450
        %v1534 = vsel %vm1510, %v1497, %v1452
        %v1536 = vsel %vm1510, %v1500, %v1454
        %v1538 = vsel %vm1510, %v1503, %v1456
        %v1540 = vsel %vm1510, %v1506, %v1458
        %v1542 = vsel %vm1510, %v1509, %v1460
        %vm1543 = vcmask 785408
        %v1545 = vsel %vm1543, %v1512, 0
        %v1547 = vsel %vm1543, %v1514, 0
        %v1549 = vsel %vm1543, %v1516, 0
        %v1551 = vsel %vm1543, %v1518, 0
        %v1553 = vsel %vm1543, %v1520, 0
        %v1555 = vsel %vm1543, %v1522, 0
        %v1557 = vsel %vm1543, %v1524, 0
        %v1559 = vsel %vm1543, %v1526, 0
        %v1561 = vsel %vm1543, %v1528, 0
        %v1563 = vsel %vm1543, %v1530, 0
        %v1565 = vsel %vm1543, %v1532, 0
        %v1567 = vsel %vm1543, %v1534, 0
        %v1569 = vsel %vm1543, %v1536, 0
        %v1571 = vsel %vm1543, %v1538, 0
        %v1573 = vsel %vm1543, %v1540, 0
        %v1575 = vsel %vm1543, %v1542, 0
        %s1577 = scalar_lea.vmem [#allocation2], 8
        %1578 = vst [vmem:[%s1577] sm:$0xff] %v1545
        %1579 = vst [vmem:[%s1577 + $0x8] sm:$0xff] %v1547
        %1580 = vst [vmem:[%s1577 + $0x10] sm:$0xff] %v1549
        %1581 = vst [vmem:[%s1577 + $0x18] sm:$0xff] %v1551
        %1582 = vst [vmem:[%s1577 + $0x20] sm:$0xff] %v1553
        %1583 = vst [vmem:[%s1577 + $0x28] sm:$0xff] %v1555
        %1584 = vst [vmem:[%s1577 + $0x30] sm:$0xff] %v1557
        %1585 = vst [vmem:[%s1577 + $0x38] sm:$0xff] %v1559
        %1586 = vst [vmem:[%s1577 + $0x40] sm:$0xff] %v1561
        %1587 = vst [vmem:[%s1577 + $0x48] sm:$0xff] %v1563
        %1588 = vst [vmem:[%s1577 + $0x50] sm:$0xff] %v1565
        %1589 = vst [vmem:[%s1577 + $0x58] sm:$0xff] %v1567
        %1590 = vst [vmem:[%s1577 + $0x60] sm:$0xff] %v1569
        %1591 = vst [vmem:[%s1577 + $0x68] sm:$0xff] %v1571
        %1592 = vst [vmem:[%s1577 + $0x70] sm:$0xff] %v1573
        %1593 = vst [vmem:[%s1577 + $0x78] sm:$0xff] %v1575
        %v1594 = vld [vmem:[#allocation2] sm:$0xff]
        %v1595 = vld [vmem:[#allocation2 + $0x8] sm:$0xff]
        %v1596 = vld [vmem:[#allocation2 + $0x10] sm:$0xff]
        %v1597 = vld [vmem:[#allocation2 + $0x18] sm:$0xff]
        %v1598 = vld [vmem:[#allocation2 + $0x20] sm:$0xff]
        %v1599 = vld [vmem:[#allocation2 + $0x28] sm:$0xff]
        %v1600 = vld [vmem:[#allocation2 + $0x30] sm:$0xff]
        %v1601 = vld [vmem:[#allocation2 + $0x38] sm:$0xff]
        %v1602 = vld [vmem:[#allocation2 + $0x40] sm:$0xff]
        %v1603 = vld [vmem:[#allocation2 + $0x48] sm:$0xff]
        %v1604 = vld [vmem:[#allocation2 + $0x50] sm:$0xff]
        %v1605 = vld [vmem:[#allocation2 + $0x58] sm:$0xff]
        %v1606 = vld [vmem:[#allocation2 + $0x60] sm:$0xff]
        %v1607 = vld [vmem:[#allocation2 + $0x68] sm:$0xff]
        %v1608 = vld [vmem:[#allocation2 + $0x70] sm:$0xff]
        %v1609 = vld [vmem:[#allocation2 + $0x78] sm:$0xff]
        %v1610 = vld [vmem:[%s15] sm:$0xf]
        %v1611 = vld [vmem:[%s15 + $0x4] sm:$0xf]
        %v1612 = vld [vmem:[%s15 + $0x8] sm:$0xf]
        %v1613 = vld [vmem:[%s15 + $0xc] sm:$0xf]
        %v1614 = vld [vmem:[%s15 + $0x10] sm:$0xf]
        %v1615 = vld [vmem:[%s15 + $0x14] sm:$0xf]
        %v1616 = vld [vmem:[%s15 + $0x18] sm:$0xf]
        %v1617 = vld [vmem:[%s15 + $0x1c] sm:$0xf]
        %v1618 = vld [vmem:[%s15 + $0x20] sm:$0xf]
        %v1619 = vld [vmem:[%s15 + $0x24] sm:$0xf]
        %v1620 = vld [vmem:[%s15 + $0x28] sm:$0xf]
        %v1621 = vld [vmem:[%s15 + $0x2c] sm:$0xf]
        %v1622 = vld [vmem:[%s15 + $0x30] sm:$0xf]
        %v1623 = vld [vmem:[%s15 + $0x34] sm:$0xf]
        %v1624 = vld [vmem:[%s15 + $0x38] sm:$0xf]
        %v1625 = vld [vmem:[%s15 + $0x3c] sm:$0xf]
        %v1626 = vld [vmem:[%s1577] sm:$0xff]
        %v1627 = vld [vmem:[%s1577 + $0x8] sm:$0xff]
        %v1628 = vld [vmem:[%s1577 + $0x10] sm:$0xff]
        %v1629 = vld [vmem:[%s1577 + $0x18] sm:$0xff]
        %v1630 = vld [vmem:[%s1577 + $0x20] sm:$0xff]
        %v1631 = vld [vmem:[%s1577 + $0x28] sm:$0xff]
        %v1632 = vld [vmem:[%s1577 + $0x30] sm:$0xff]
        %v1633 = vld [vmem:[%s1577 + $0x38] sm:$0xff]
        %v1634 = vld [vmem:[%s1577 + $0x40] sm:$0xff]
        %v1635 = vld [vmem:[%s1577 + $0x48] sm:$0xff]
        %v1636 = vld [vmem:[%s1577 + $0x50] sm:$0xff]
        %v1637 = vld [vmem:[%s1577 + $0x58] sm:$0xff]
        %v1638 = vld [vmem:[%s1577 + $0x60] sm:$0xff]
        %v1639 = vld [vmem:[%s1577 + $0x68] sm:$0xff]
        %v1640 = vld [vmem:[%s1577 + $0x70] sm:$0xff]
        %v1641 = vld [vmem:[%s1577 + $0x78] sm:$0xff]
        %s1642 = scalar_lea.vmem %s15, 64
        %v1643 = vld [vmem:[%s1642] sm:$0xf]
        %v1644 = vld [vmem:[%s1642 + $0x4] sm:$0xf]
        %v1645 = vld [vmem:[%s1642 + $0x8] sm:$0xf]
        %v1646 = vld [vmem:[%s1642 + $0xc] sm:$0xf]
        %v1647 = vld [vmem:[%s1642 + $0x10] sm:$0xf]
        %v1648 = vld [vmem:[%s1642 + $0x14] sm:$0xf]
        %v1649 = vld [vmem:[%s1642 + $0x18] sm:$0xf]
        %v1650 = vld [vmem:[%s1642 + $0x1c] sm:$0xf]
        %v1651 = vld [vmem:[%s1642 + $0x20] sm:$0xf]
        %v1652 = vld [vmem:[%s1642 + $0x24] sm:$0xf]
        %v1653 = vld [vmem:[%s1642 + $0x28] sm:$0xf]
        %v1654 = vld [vmem:[%s1642 + $0x2c] sm:$0xf]
        %v1655 = vld [vmem:[%s1642 + $0x30] sm:$0xf]
        %v1656 = vld [vmem:[%s1642 + $0x34] sm:$0xf]
        %v1657 = vld [vmem:[%s1642 + $0x38] sm:$0xf]
        %v1658 = vld [vmem:[%s1642 + $0x3c] sm:$0xf]
        %v1675 = vunpack.c.l.b16 %v1643
        %v1676 = vunpack.c.l.b16 %v1644
        %v1677 = vunpack.c.l.b16 %v1645
        %v1678 = vunpack.c.l.b16 %v1646
        %v1679 = vunpack.c.l.b16 %v1647
        %v1680 = vunpack.c.l.b16 %v1648
        %v1681 = vunpack.c.l.b16 %v1649
        %v1682 = vunpack.c.l.b16 %v1650
        %v1683 = vunpack.c.l.b16 %v1651
        %v1684 = vunpack.c.l.b16 %v1652
        %v1685 = vunpack.c.l.b16 %v1653
        %v1686 = vunpack.c.l.b16 %v1654
        %v1687 = vunpack.c.l.b16 %v1655
        %v1688 = vunpack.c.l.b16 %v1656
        %v1689 = vunpack.c.l.b16 %v1657
        %v1690 = vunpack.c.l.b16 %v1658
        %v1691 = vpack.c.b16 %v1676, %v1675
        %v1692 = vpack.c.b16 %v1678, %v1677
        %v1693 = vpack.c.b16 %v1680, %v1679
        %v1694 = vpack.c.b16 %v1682, %v1681
        %v1695 = vpack.c.b16 %v1684, %v1683
        %v1696 = vpack.c.b16 %v1686, %v1685
        %v1697 = vpack.c.b16 %v1688, %v1687
        %v1698 = vpack.c.b16 %v1690, %v1689
        %1707 = vmatprep.subr.bf16.mxu0 0
        %1708 = vmatpush1.bf16.msra.mxu0 %v1691
        %1709 = vmatprep.subr.bf16.mxu0 0
        %1710 = vmatpush1.bf16.msra.mxu0 %v1692
        %1711 = vmatprep.subr.bf16.mxu0 0
        %1712 = vmatpush1.bf16.msra.mxu0 %v1693
        %1713 = vmatprep.subr.bf16.mxu0 0
        %1714 = vmatpush1.bf16.msra.mxu0 %v1694
        %1715 = vmatprep.subr.bf16.mxu0 0
        %1716 = vmatpush1.bf16.msra.mxu0 %v1695
        %1717 = vmatprep.subr.bf16.mxu0 0
        %1718 = vmatpush1.bf16.msra.mxu0 %v1696
        %1719 = vmatprep.subr.bf16.mxu0 0
        %1720 = vmatpush1.bf16.msra.mxu0 %v1697
        %1721 = vmatprep.subr.bf16.mxu0 0
        %1722 = vmatpush1.bf16.msra.mxu0 %v1698
        %1723 = vmatprep.subr.bf16.mxu0 0
        %1724 = vmatpush1.bf16.msra.mxu0 0
        %1725 = vmatprep.subr.bf16.mxu0 0
        %1726 = vmatpush1.bf16.msra.mxu0 0
        %1727 = vmatprep.subr.bf16.mxu0 0
        %1728 = vmatpush1.bf16.msra.mxu0 0
        %1729 = vmatprep.subr.bf16.mxu0 0
        %1730 = vmatpush1.bf16.msra.mxu0 0
        %1731 = vmatprep.subr.bf16.mxu0 0
        %1732 = vmatpush1.bf16.msra.mxu0 0
        %1733 = vmatprep.subr.bf16.mxu0 0
        %1734 = vmatpush1.bf16.msra.mxu0 0
        %1735 = vmatprep.subr.bf16.mxu0 0
        %1736 = vmatpush1.bf16.msra.mxu0 0
        %1737 = vmatprep.subr.bf16.mxu0 0
        %1738 = vmatpush1.bf16.msra.mxu0 0
        %1739 = vmatprep.mubr.bf16.mxu0 0
        %1740 = vmatmul.mubr.bf16.gmra.mrb[0].mxu0 %v1626
        %v1741 = vpop.f32.mrb[0].mxu0
        %v1742 = vadd.f32 0.0, %v1741
        %v1743 = vpop.f32.mrb[0].mxu0
        %v1744 = vpop.f32.mrb[0].mxu0
        %v1745 = vadd.f32 0.0, %v1744
        %v1746 = vpop.f32.mrb[0].mxu0
        %1747 = vmatprep.mubr.bf16.mxu0 0
        %1748 = vmatmul.mubr.bf16.gmra.mrb[0].mxu0 %v1627
        %v1749 = vpop.f32.mrb[0].mxu0
        %v1750 = vadd.f32 0.0, %v1749
        %v1751 = vpop.f32.mrb[0].mxu0
        %v1752 = vpop.f32.mrb[0].mxu0
        %v1753 = vadd.f32 0.0, %v1752
        %v1754 = vpop.f32.mrb[0].mxu0
        %1755 = vmatprep.mubr.bf16.mxu0 0
        %1756 = vmatmul.mubr.bf16.gmra.mrb[0].mxu0 %v1628
        %v1757 = vpop.f32.mrb[0].mxu0
        %v1758 = vadd.f32 0.0, %v1757
        %v1759 = vpop.f32.mrb[0].mxu0
        %v1760 = vpop.f32.mrb[0].mxu0
        %v1761 = vadd.f32 0.0, %v1760
        %v1762 = vpop.f32.mrb[0].mxu0
        %1763 = vmatprep.mubr.bf16.mxu0 0
        %1764 = vmatmul.mubr.bf16.gmra.mrb[0].mxu0 %v1629
        %v1765 = vpop.f32.mrb[0].mxu0
        %v1766 = vadd.f32 0.0, %v1765
        %v1767 = vpop.f32.mrb[0].mxu0
        %v1768 = vpop.f32.mrb[0].mxu0
        %v1769 = vadd.f32 0.0, %v1768
        %v1770 = vpop.f32.mrb[0].mxu0
        %1771 = vmatprep.mubr.bf16.mxu0 0
        %1772 = vmatmul.mubr.bf16.gmra.mrb[0].mxu0 %v1630
        %v1773 = vpop.f32.mrb[0].mxu0
        %v1774 = vadd.f32 0.0, %v1773
        %v1775 = vpop.f32.mrb[0].mxu0
        %v1776 = vpop.f32.mrb[0].mxu0
        %v1777 = vadd.f32 0.0, %v1776
        %v1778 = vpop.f32.mrb[0].mxu0
        %1779 = vmatprep.mubr.bf16.mxu0 0
        %1780 = vmatmul.mubr.bf16.gmra.mrb[0].mxu0 %v1631
        %v1781 = vpop.f32.mrb[0].mxu0
        %v1782 = vadd.f32 0.0, %v1781
        %v1783 = vpop.f32.mrb[0].mxu0
        %v1784 = vpop.f32.mrb[0].mxu0
        %v1785 = vadd.f32 0.0, %v1784
        %v1786 = vpop.f32.mrb[0].mxu0
        %1787 = vmatprep.mubr.bf16.mxu0 0
        %1788 = vmatmul.mubr.bf16.gmra.mrb[0].mxu0 %v1632
        %v1789 = vpop.f32.mrb[0].mxu0
        %v1790 = vadd.f32 0.0, %v1789
        %v1791 = vpop.f32.mrb[0].mxu0
        %v1792 = vpop.f32.mrb[0].mxu0
        %v1793 = vadd.f32 0.0, %v1792
        %v1794 = vpop.f32.mrb[0].mxu0
        %1795 = vmatprep.mubr.bf16.mxu0 0
        %1796 = vmatmul.mubr.bf16.gmra.mrb[0].mxu0 %v1633
        %v1797 = vpop.f32.mrb[0].mxu0
        %v1798 = vadd.f32 0.0, %v1797
        %v1799 = vpop.f32.mrb[0].mxu0
        %v1800 = vpop.f32.mrb[0].mxu0
        %v1801 = vadd.f32 0.0, %v1800
        %v1802 = vpop.f32.mrb[0].mxu0
        %1803 = vmatprep.mubr.bf16.mxu0 0
        %1804 = vmatmul.mubr.bf16.gmra.mrb[0].mxu0 %v1634
        %v1805 = vpop.f32.mrb[0].mxu0
        %v1806 = vadd.f32 0.0, %v1805
        %v1807 = vpop.f32.mrb[0].mxu0
        %v1808 = vpop.f32.mrb[0].mxu0
        %v1809 = vadd.f32 0.0, %v1808
        %v1810 = vpop.f32.mrb[0].mxu0
        %1811 = vmatprep.mubr.bf16.mxu0 0
        %1812 = vmatmul.mubr.bf16.gmra.mrb[0].mxu0 %v1635
        %v1813 = vpop.f32.mrb[0].mxu0
        %v1814 = vadd.f32 0.0, %v1813
        %v1815 = vpop.f32.mrb[0].mxu0
        %v1816 = vpop.f32.mrb[0].mxu0
        %v1817 = vadd.f32 0.0, %v1816
        %v1818 = vpop.f32.mrb[0].mxu0
        %1819 = vmatprep.mubr.bf16.mxu0 0
        %1820 = vmatmul.mubr.bf16.gmra.mrb[0].mxu0 %v1636
        %v1821 = vpop.f32.mrb[0].mxu0
        %v1822 = vadd.f32 0.0, %v1821
        %v1823 = vpop.f32.mrb[0].mxu0
        %v1824 = vpop.f32.mrb[0].mxu0
        %v1825 = vadd.f32 0.0, %v1824
        %v1826 = vpop.f32.mrb[0].mxu0
        %1827 = vmatprep.mubr.bf16.mxu0 0
        %1828 = vmatmul.mubr.bf16.gmra.mrb[0].mxu0 %v1637
        %v1829 = vpop.f32.mrb[0].mxu0
        %v1830 = vadd.f32 0.0, %v1829
        %v1831 = vpop.f32.mrb[0].mxu0
        %v1832 = vpop.f32.mrb[0].mxu0
        %v1833 = vadd.f32 0.0, %v1832
        %v1834 = vpop.f32.mrb[0].mxu0
        %1835 = vmatprep.mubr.bf16.mxu0 0
        %1836 = vmatmul.mubr.bf16.gmra.mrb[0].mxu0 %v1638
        %v1837 = vpop.f32.mrb[0].mxu0
        %v1838 = vadd.f32 0.0, %v1837
        %v1839 = vpop.f32.mrb[0].mxu0
        %v1840 = vpop.f32.mrb[0].mxu0
        %v1841 = vadd.f32 0.0, %v1840
        %v1842 = vpop.f32.mrb[0].mxu0
        %1843 = vmatprep.mubr.bf16.mxu0 0
        %1844 = vmatmul.mubr.bf16.gmra.mrb[0].mxu0 %v1639
        %v1845 = vpop.f32.mrb[0].mxu0
        %v1846 = vadd.f32 0.0, %v1845
        %v1847 = vpop.f32.mrb[0].mxu0
        %v1848 = vpop.f32.mrb[0].mxu0
        %v1849 = vadd.f32 0.0, %v1848
        %v1850 = vpop.f32.mrb[0].mxu0
        %1851 = vmatprep.mubr.bf16.mxu0 0
        %1852 = vmatmul.mubr.bf16.gmra.mrb[0].mxu0 %v1640
        %v1853 = vpop.f32.mrb[0].mxu0
        %v1854 = vadd.f32 0.0, %v1853
        %v1855 = vpop.f32.mrb[0].mxu0
        %v1856 = vpop.f32.mrb[0].mxu0
        %v1857 = vadd.f32 0.0, %v1856
        %v1858 = vpop.f32.mrb[0].mxu0
        %1859 = vmatprep.mubr.bf16.mxu0 0
        %1860 = vmatmul.mubr.bf16.gmra.mrb[0].mxu0 %v1641
        %v1861 = vpop.f32.mrb[0].mxu0
        %v1862 = vadd.f32 0.0, %v1861
        %v1863 = vpop.f32.mrb[0].mxu0
        %v1864 = vpop.f32.mrb[0].mxu0
        %v1865 = vadd.f32 0.0, %v1864
        %v1866 = vpop.f32.mrb[0].mxu0
        %1867 = vdwg.mxu0
        %v1884 = vunpack.c.l.b16 %v1610
        %v1885 = vunpack.c.l.b16 %v1611
        %v1886 = vunpack.c.l.b16 %v1612
        %v1887 = vunpack.c.l.b16 %v1613
        %v1888 = vunpack.c.l.b16 %v1614
        %v1889 = vunpack.c.l.b16 %v1615
        %v1890 = vunpack.c.l.b16 %v1616
        %v1891 = vunpack.c.l.b16 %v1617
        %v1892 = vunpack.c.l.b16 %v1618
        %v1893 = vunpack.c.l.b16 %v1619
        %v1894 = vunpack.c.l.b16 %v1620
        %v1895 = vunpack.c.l.b16 %v1621
        %v1896 = vunpack.c.l.b16 %v1622
        %v1897 = vunpack.c.l.b16 %v1623
        %v1898 = vunpack.c.l.b16 %v1624
        %v1899 = vunpack.c.l.b16 %v1625
        %v1900 = vpack.c.b16 %v1885, %v1884
        %v1901 = vpack.c.b16 %v1887, %v1886
        %v1902 = vpack.c.b16 %v1889, %v1888
        %v1903 = vpack.c.b16 %v1891, %v1890
        %v1904 = vpack.c.b16 %v1893, %v1892
        %v1905 = vpack.c.b16 %v1895, %v1894
        %v1906 = vpack.c.b16 %v1897, %v1896
        %v1907 = vpack.c.b16 %v1899, %v1898
        %1916 = vmatprep.subr.bf16.mxu0 0
        %1917 = vmatpush1.bf16.msra.mxu0 %v1900
        %1918 = vmatprep.subr.bf16.mxu0 0
        %1919 = vmatpush1.bf16.msra.mxu0 %v1901
        %1920 = vmatprep.subr.bf16.mxu0 0
        %1921 = vmatpush1.bf16.msra.mxu0 %v1902
        %1922 = vmatprep.subr.bf16.mxu0 0
        %1923 = vmatpush1.bf16.msra.mxu0 %v1903
        %1924 = vmatprep.subr.bf16.mxu0 0
        %1925 = vmatpush1.bf16.msra.mxu0 %v1904
        %1926 = vmatprep.subr.bf16.mxu0 0
        %1927 = vmatpush1.bf16.msra.mxu0 %v1905
        %1928 = vmatprep.subr.bf16.mxu0 0
        %1929 = vmatpush1.bf16.msra.mxu0 %v1906
        %1930 = vmatprep.subr.bf16.mxu0 0
        %1931 = vmatpush1.bf16.msra.mxu0 %v1907
        %1932 = vmatprep.subr.bf16.mxu0 0
        %1933 = vmatpush1.bf16.msra.mxu0 0
        %1934 = vmatprep.subr.bf16.mxu0 0
        %1935 = vmatpush1.bf16.msra.mxu0 0
        %1936 = vmatprep.subr.bf16.mxu0 0
        %1937 = vmatpush1.bf16.msra.mxu0 0
        %1938 = vmatprep.subr.bf16.mxu0 0
        %1939 = vmatpush1.bf16.msra.mxu0 0
        %1940 = vmatprep.subr.bf16.mxu0 0
        %1941 = vmatpush1.bf16.msra.mxu0 0
        %1942 = vmatprep.subr.bf16.mxu0 0
        %1943 = vmatpush1.bf16.msra.mxu0 0
        %1944 = vmatprep.subr.bf16.mxu0 0
        %1945 = vmatpush1.bf16.msra.mxu0 0
        %1946 = vmatprep.subr.bf16.mxu0 0
        %1947 = vmatpush1.bf16.msra.mxu0 0
        %1948 = vmatprep.mubr.bf16.mxu0 0
        %1949 = vmatmul.mubr.bf16.gmra.mrb[0].mxu0 %v1594
        %v1950 = vpop.f32.mrb[0].mxu0
        %v1951 = vadd.f32 %v1742, %v1950
        %v1952 = vpop.f32.mrb[0].mxu0
        %v1953 = vpop.f32.mrb[0].mxu0
        %v1954 = vadd.f32 %v1745, %v1953
        %v1955 = vpop.f32.mrb[0].mxu0
        %1956 = vmatprep.mubr.bf16.mxu0 0
        %1957 = vmatmul.mubr.bf16.gmra.mrb[0].mxu0 %v1595
        %v1958 = vpop.f32.mrb[0].mxu0
        %v1959 = vadd.f32 %v1750, %v1958
        %v1960 = vpop.f32.mrb[0].mxu0
        %v1961 = vpop.f32.mrb[0].mxu0
        %v1962 = vadd.f32 %v1753, %v1961
        %v1963 = vpop.f32.mrb[0].mxu0
        %1964 = vmatprep.mubr.bf16.mxu0 0
        %1965 = vmatmul.mubr.bf16.gmra.mrb[0].mxu0 %v1596
        %v1966 = vpop.f32.mrb[0].mxu0
        %v1967 = vadd.f32 %v1758, %v1966
        %v1968 = vpop.f32.mrb[0].mxu0
        %v1969 = vpop.f32.mrb[0].mxu0
        %v1970 = vadd.f32 %v1761, %v1969
        %v1971 = vpop.f32.mrb[0].mxu0
        %1972 = vmatprep.mubr.bf16.mxu0 0
        %1973 = vmatmul.mubr.bf16.gmra.mrb[0].mxu0 %v1597
        %v1974 = vpop.f32.mrb[0].mxu0
        %v1975 = vadd.f32 %v1766, %v1974
        %v1976 = vpop.f32.mrb[0].mxu0
        %v1977 = vpop.f32.mrb[0].mxu0
        %v1978 = vadd.f32 %v1769, %v1977
        %v1979 = vpop.f32.mrb[0].mxu0
        %1980 = vmatprep.mubr.bf16.mxu0 0
        %1981 = vmatmul.mubr.bf16.gmra.mrb[0].mxu0 %v1598
        %v1982 = vpop.f32.mrb[0].mxu0
        %v1983 = vadd.f32 %v1774, %v1982
        %v1984 = vpop.f32.mrb[0].mxu0
        %v1985 = vpop.f32.mrb[0].mxu0
        %v1986 = vadd.f32 %v1777, %v1985
        %v1987 = vpop.f32.mrb[0].mxu0
        %1988 = vmatprep.mubr.bf16.mxu0 0
        %1989 = vmatmul.mubr.bf16.gmra.mrb[0].mxu0 %v1599
        %v1990 = vpop.f32.mrb[0].mxu0
        %v1991 = vadd.f32 %v1782, %v1990
        %v1992 = vpop.f32.mrb[0].mxu0
        %v1993 = vpop.f32.mrb[0].mxu0
        %v1994 = vadd.f32 %v1785, %v1993
        %v1995 = vpop.f32.mrb[0].mxu0
        %1996 = vmatprep.mubr.bf16.mxu0 0
        %1997 = vmatmul.mubr.bf16.gmra.mrb[0].mxu0 %v1600
        %v1998 = vpop.f32.mrb[0].mxu0
        %v1999 = vadd.f32 %v1790, %v1998
        %v2000 = vpop.f32.mrb[0].mxu0
        %v2001 = vpop.f32.mrb[0].mxu0
        %v2002 = vadd.f32 %v1793, %v2001
        %v2003 = vpop.f32.mrb[0].mxu0
        %2004 = vmatprep.mubr.bf16.mxu0 0
        %2005 = vmatmul.mubr.bf16.gmra.mrb[0].mxu0 %v1601
        %v2006 = vpop.f32.mrb[0].mxu0
        %v2007 = vadd.f32 %v1798, %v2006
        %v2008 = vpop.f32.mrb[0].mxu0
        %v2009 = vpop.f32.mrb[0].mxu0
        %v2010 = vadd.f32 %v1801, %v2009
        %v2011 = vpop.f32.mrb[0].mxu0
        %2012 = vmatprep.mubr.bf16.mxu0 0
        %2013 = vmatmul.mubr.bf16.gmra.mrb[0].mxu0 %v1602
        %v2014 = vpop.f32.mrb[0].mxu0
        %v2015 = vadd.f32 %v1806, %v2014
        %v2016 = vpop.f32.mrb[0].mxu0
        %v2017 = vpop.f32.mrb[0].mxu0
        %v2018 = vadd.f32 %v1809, %v2017
        %v2019 = vpop.f32.mrb[0].mxu0
        %2020 = vmatprep.mubr.bf16.mxu0 0
        %2021 = vmatmul.mubr.bf16.gmra.mrb[0].mxu0 %v1603
        %v2022 = vpop.f32.mrb[0].mxu0
        %v2023 = vadd.f32 %v1814, %v2022
        %v2024 = vpop.f32.mrb[0].mxu0
        %v2025 = vpop.f32.mrb[0].mxu0
        %v2026 = vadd.f32 %v1817, %v2025
        %v2027 = vpop.f32.mrb[0].mxu0
        %2028 = vmatprep.mubr.bf16.mxu0 0
        %2029 = vmatmul.mubr.bf16.gmra.mrb[0].mxu0 %v1604
        %v2030 = vpop.f32.mrb[0].mxu0
        %v2031 = vadd.f32 %v1822, %v2030
        %v2032 = vpop.f32.mrb[0].mxu0
        %v2033 = vpop.f32.mrb[0].mxu0
        %v2034 = vadd.f32 %v1825, %v2033
        %v2035 = vpop.f32.mrb[0].mxu0
        %2036 = vmatprep.mubr.bf16.mxu0 0
        %2037 = vmatmul.mubr.bf16.gmra.mrb[0].mxu0 %v1605
        %v2038 = vpop.f32.mrb[0].mxu0
        %v2039 = vadd.f32 %v1830, %v2038
        %v2040 = vpop.f32.mrb[0].mxu0
        %v2041 = vpop.f32.mrb[0].mxu0
        %v2042 = vadd.f32 %v1833, %v2041
        %v2043 = vpop.f32.mrb[0].mxu0
        %2044 = vmatprep.mubr.bf16.mxu0 0
        %2045 = vmatmul.mubr.bf16.gmra.mrb[0].mxu0 %v1606
        %v2046 = vpop.f32.mrb[0].mxu0
        %v2047 = vadd.f32 %v1838, %v2046
        %v2048 = vpop.f32.mrb[0].mxu0
        %v2049 = vpop.f32.mrb[0].mxu0
        %v2050 = vadd.f32 %v1841, %v2049
        %v2051 = vpop.f32.mrb[0].mxu0
        %2052 = vmatprep.mubr.bf16.mxu0 0
        %2053 = vmatmul.mubr.bf16.gmra.mrb[0].mxu0 %v1607
        %v2054 = vpop.f32.mrb[0].mxu0
        %v2055 = vadd.f32 %v1846, %v2054
        %v2056 = vpop.f32.mrb[0].mxu0
        %v2057 = vpop.f32.mrb[0].mxu0
        %v2058 = vadd.f32 %v1849, %v2057
        %v2059 = vpop.f32.mrb[0].mxu0
        %2060 = vmatprep.mubr.bf16.mxu0 0
        %2061 = vmatmul.mubr.bf16.gmra.mrb[0].mxu0 %v1608
        %v2062 = vpop.f32.mrb[0].mxu0
        %v2063 = vadd.f32 %v1854, %v2062
        %v2064 = vpop.f32.mrb[0].mxu0
        %v2065 = vpop.f32.mrb[0].mxu0
        %v2066 = vadd.f32 %v1857, %v2065
        %v2067 = vpop.f32.mrb[0].mxu0
        %2068 = vmatprep.mubr.bf16.mxu0 0
        %2069 = vmatmul.mubr.bf16.gmra.mrb[0].mxu0 %v1609
        %v2070 = vpop.f32.mrb[0].mxu0
        %v2071 = vadd.f32 %v1862, %v2070
        %v2072 = vpop.f32.mrb[0].mxu0
        %v2073 = vpop.f32.mrb[0].mxu0
        %v2074 = vadd.f32 %v1865, %v2073
        %v2075 = vpop.f32.mrb[0].mxu0
        %2076 = vdwg.mxu0
        %s2077 = scalar_lea.vmem [#allocation2], 16
        %v2078 = vld [vmem:[%s2077] sm:$0xff]
        %v2079 = vld [vmem:[%s2077 + $0x8] sm:$0xff]
        %v2080 = vld [vmem:[%s2077 + $0x10] sm:$0xff]
        %v2081 = vld [vmem:[%s2077 + $0x18] sm:$0xff]
        %v2082 = vld [vmem:[%s2077 + $0x20] sm:$0xff]
        %v2083 = vld [vmem:[%s2077 + $0x28] sm:$0xff]
        %v2084 = vld [vmem:[%s2077 + $0x30] sm:$0xff]
        %v2085 = vld [vmem:[%s2077 + $0x38] sm:$0xff]
        %v2086 = vld [vmem:[%s2077 + $0x40] sm:$0xff]
        %v2087 = vld [vmem:[%s2077 + $0x48] sm:$0xff]
        %v2088 = vld [vmem:[%s2077 + $0x50] sm:$0xff]
        %v2089 = vld [vmem:[%s2077 + $0x58] sm:$0xff]
        %v2090 = vld [vmem:[%s2077 + $0x60] sm:$0xff]
        %v2091 = vld [vmem:[%s2077 + $0x68] sm:$0xff]
        %v2092 = vld [vmem:[%s2077 + $0x70] sm:$0xff]
        %v2093 = vld [vmem:[%s2077 + $0x78] sm:$0xff]
        %s2094 = scalar_lea.vmem %s15, 128
        %v2095 = vld [vmem:[%s2094] sm:$0xf]
        %v2096 = vld [vmem:[%s2094 + $0x4] sm:$0xf]
        %v2097 = vld [vmem:[%s2094 + $0x8] sm:$0xf]
        %v2098 = vld [vmem:[%s2094 + $0xc] sm:$0xf]
        %v2099 = vld [vmem:[%s2094 + $0x10] sm:$0xf]
        %v2100 = vld [vmem:[%s2094 + $0x14] sm:$0xf]
        %v2101 = vld [vmem:[%s2094 + $0x18] sm:$0xf]
        %v2102 = vld [vmem:[%s2094 + $0x1c] sm:$0xf]
        %v2103 = vld [vmem:[%s2094 + $0x20] sm:$0xf]
        %v2104 = vld [vmem:[%s2094 + $0x24] sm:$0xf]
        %v2105 = vld [vmem:[%s2094 + $0x28] sm:$0xf]
        %v2106 = vld [vmem:[%s2094 + $0x2c] sm:$0xf]
        %v2107 = vld [vmem:[%s2094 + $0x30] sm:$0xf]
        %v2108 = vld [vmem:[%s2094 + $0x34] sm:$0xf]
        %v2109 = vld [vmem:[%s2094 + $0x38] sm:$0xf]
        %v2110 = vld [vmem:[%s2094 + $0x3c] sm:$0xf]
        %v2127 = vunpack.c.l.b16 %v2095
        %v2128 = vunpack.c.l.b16 %v2096
        %v2129 = vunpack.c.l.b16 %v2097
        %v2130 = vunpack.c.l.b16 %v2098
        %v2131 = vunpack.c.l.b16 %v2099
        %v2132 = vunpack.c.l.b16 %v2100
        %v2133 = vunpack.c.l.b16 %v2101
        %v2134 = vunpack.c.l.b16 %v2102
        %v2135 = vunpack.c.l.b16 %v2103
        %v2136 = vunpack.c.l.b16 %v2104
        %v2137 = vunpack.c.l.b16 %v2105
        %v2138 = vunpack.c.l.b16 %v2106
        %v2139 = vunpack.c.l.b16 %v2107
        %v2140 = vunpack.c.l.b16 %v2108
        %v2141 = vunpack.c.l.b16 %v2109
        %v2142 = vunpack.c.l.b16 %v2110
        %v2143 = vpack.c.b16 %v2128, %v2127
        %v2144 = vpack.c.b16 %v2130, %v2129
        %v2145 = vpack.c.b16 %v2132, %v2131
        %v2146 = vpack.c.b16 %v2134, %v2133
        %v2147 = vpack.c.b16 %v2136, %v2135
        %v2148 = vpack.c.b16 %v2138, %v2137
        %v2149 = vpack.c.b16 %v2140, %v2139
        %v2150 = vpack.c.b16 %v2142, %v2141
        %2159 = vmatprep.subr.bf16.mxu0 0
        %2160 = vmatpush1.bf16.msra.mxu0 %v2143
        %2161 = vmatprep.subr.bf16.mxu0 0
        %2162 = vmatpush1.bf16.msra.mxu0 %v2144
        %2163 = vmatprep.subr.bf16.mxu0 0
        %2164 = vmatpush1.bf16.msra.mxu0 %v2145
        %2165 = vmatprep.subr.bf16.mxu0 0
        %2166 = vmatpush1.bf16.msra.mxu0 %v2146
        %2167 = vmatprep.subr.bf16.mxu0 0
        %2168 = vmatpush1.bf16.msra.mxu0 %v2147
        %2169 = vmatprep.subr.bf16.mxu0 0
        %2170 = vmatpush1.bf16.msra.mxu0 %v2148
        %2171 = vmatprep.subr.bf16.mxu0 0
        %2172 = vmatpush1.bf16.msra.mxu0 %v2149
        %2173 = vmatprep.subr.bf16.mxu0 0
        %2174 = vmatpush1.bf16.msra.mxu0 %v2150
        %2175 = vmatprep.subr.bf16.mxu0 0
        %2176 = vmatpush1.bf16.msra.mxu0 0
        %2177 = vmatprep.subr.bf16.mxu0 0
        %2178 = vmatpush1.bf16.msra.mxu0 0
        %2179 = vmatprep.subr.bf16.mxu0 0
        %2180 = vmatpush1.bf16.msra.mxu0 0
        %2181 = vmatprep.subr.bf16.mxu0 0
        %2182 = vmatpush1.bf16.msra.mxu0 0
        %2183 = vmatprep.subr.bf16.mxu0 0
        %2184 = vmatpush1.bf16.msra.mxu0 0
        %2185 = vmatprep.subr.bf16.mxu0 0
        %2186 = vmatpush1.bf16.msra.mxu0 0
        %2187 = vmatprep.subr.bf16.mxu0 0
        %2188 = vmatpush1.bf16.msra.mxu0 0
        %2189 = vmatprep.subr.bf16.mxu0 0
        %2190 = vmatpush1.bf16.msra.mxu0 0
        %2191 = vmatprep.mubr.bf16.mxu0 0
        %2192 = vmatmul.mubr.bf16.gmra.mrb[0].mxu0 %v2078
        %v2193 = vpop.f32.mrb[0].mxu0
        %v2194 = vadd.f32 0.0, %v2193
        %v2195 = vpop.f32.mrb[0].mxu0
        %v2196 = vpop.f32.mrb[0].mxu0
        %v2197 = vadd.f32 0.0, %v2196
        %v2198 = vpop.f32.mrb[0].mxu0
        %2199 = vmatprep.mubr.bf16.mxu0 0
        %2200 = vmatmul.mubr.bf16.gmra.mrb[0].mxu0 %v2079
        %v2201 = vpop.f32.mrb[0].mxu0
        %v2202 = vadd.f32 0.0, %v2201
        %v2203 = vpop.f32.mrb[0].mxu0
        %v2204 = vpop.f32.mrb[0].mxu0
        %v2205 = vadd.f32 0.0, %v2204
        %v2206 = vpop.f32.mrb[0].mxu0
        %2207 = vmatprep.mubr.bf16.mxu0 0
        %2208 = vmatmul.mubr.bf16.gmra.mrb[0].mxu0 %v2080
        %v2209 = vpop.f32.mrb[0].mxu0
        %v2210 = vadd.f32 0.0, %v2209
        %v2211 = vpop.f32.mrb[0].mxu0
        %v2212 = vpop.f32.mrb[0].mxu0
        %v2213 = vadd.f32 0.0, %v2212
        %v2214 = vpop.f32.mrb[0].mxu0
        %2215 = vmatprep.mubr.bf16.mxu0 0
        %2216 = vmatmul.mubr.bf16.gmra.mrb[0].mxu0 %v2081
        %v2217 = vpop.f32.mrb[0].mxu0
        %v2218 = vadd.f32 0.0, %v2217
        %v2219 = vpop.f32.mrb[0].mxu0
        %v2220 = vpop.f32.mrb[0].mxu0
        %v2221 = vadd.f32 0.0, %v2220
        %v2222 = vpop.f32.mrb[0].mxu0
        %2223 = vmatprep.mubr.bf16.mxu0 0
        %2224 = vmatmul.mubr.bf16.gmra.mrb[0].mxu0 %v2082
        %v2225 = vpop.f32.mrb[0].mxu0
        %v2226 = vadd.f32 0.0, %v2225
        %v2227 = vpop.f32.mrb[0].mxu0
        %v2228 = vpop.f32.mrb[0].mxu0
        %v2229 = vadd.f32 0.0, %v2228
        %v2230 = vpop.f32.mrb[0].mxu0
        %2231 = vmatprep.mubr.bf16.mxu0 0
        %2232 = vmatmul.mubr.bf16.gmra.mrb[0].mxu0 %v2083
        %v2233 = vpop.f32.mrb[0].mxu0
        %v2234 = vadd.f32 0.0, %v2233
        %v2235 = vpop.f32.mrb[0].mxu0
        %v2236 = vpop.f32.mrb[0].mxu0
        %v2237 = vadd.f32 0.0, %v2236
        %v2238 = vpop.f32.mrb[0].mxu0
        %2239 = vmatprep.mubr.bf16.mxu0 0
        %2240 = vmatmul.mubr.bf16.gmra.mrb[0].mxu0 %v2084
        %v2241 = vpop.f32.mrb[0].mxu0
        %v2242 = vadd.f32 0.0, %v2241
        %v2243 = vpop.f32.mrb[0].mxu0
        %v2244 = vpop.f32.mrb[0].mxu0
        %v2245 = vadd.f32 0.0, %v2244
        %v2246 = vpop.f32.mrb[0].mxu0
        %2247 = vmatprep.mubr.bf16.mxu0 0
        %2248 = vmatmul.mubr.bf16.gmra.mrb[0].mxu0 %v2085
        %v2249 = vpop.f32.mrb[0].mxu0
        %v2250 = vadd.f32 0.0, %v2249
        %v2251 = vpop.f32.mrb[0].mxu0
        %v2252 = vpop.f32.mrb[0].mxu0
        %v2253 = vadd.f32 0.0, %v2252
        %v2254 = vpop.f32.mrb[0].mxu0
        %2255 = vmatprep.mubr.bf16.mxu0 0
        %2256 = vmatmul.mubr.bf16.gmra.mrb[0].mxu0 %v2086
        %v2257 = vpop.f32.mrb[0].mxu0
        %v2258 = vadd.f32 0.0, %v2257
        %v2259 = vpop.f32.mrb[0].mxu0
        %v2260 = vpop.f32.mrb[0].mxu0
        %v2261 = vadd.f32 0.0, %v2260
        %v2262 = vpop.f32.mrb[0].mxu0
        %2263 = vmatprep.mubr.bf16.mxu0 0
        %2264 = vmatmul.mubr.bf16.gmra.mrb[0].mxu0 %v2087
        %v2265 = vpop.f32.mrb[0].mxu0
        %v2266 = vadd.f32 0.0, %v2265
        %v2267 = vpop.f32.mrb[0].mxu0
        %v2268 = vpop.f32.mrb[0].mxu0
        %v2269 = vadd.f32 0.0, %v2268
        %v2270 = vpop.f32.mrb[0].mxu0
        %2271 = vmatprep.mubr.bf16.mxu0 0
        %2272 = vmatmul.mubr.bf16.gmra.mrb[0].mxu0 %v2088
        %v2273 = vpop.f32.mrb[0].mxu0
        %v2274 = vadd.f32 0.0, %v2273
        %v2275 = vpop.f32.mrb[0].mxu0
        %v2276 = vpop.f32.mrb[0].mxu0
        %v2277 = vadd.f32 0.0, %v2276
        %v2278 = vpop.f32.mrb[0].mxu0
        %2279 = vmatprep.mubr.bf16.mxu0 0
        %2280 = vmatmul.mubr.bf16.gmra.mrb[0].mxu0 %v2089
        %v2281 = vpop.f32.mrb[0].mxu0
        %v2282 = vadd.f32 0.0, %v2281
        %v2283 = vpop.f32.mrb[0].mxu0
        %v2284 = vpop.f32.mrb[0].mxu0
        %v2285 = vadd.f32 0.0, %v2284
        %v2286 = vpop.f32.mrb[0].mxu0
        %2287 = vmatprep.mubr.bf16.mxu0 0
        %2288 = vmatmul.mubr.bf16.gmra.mrb[0].mxu0 %v2090
        %v2289 = vpop.f32.mrb[0].mxu0
        %v2290 = vadd.f32 0.0, %v2289
        %v2291 = vpop.f32.mrb[0].mxu0
        %v2292 = vpop.f32.mrb[0].mxu0
        %v2293 = vadd.f32 0.0, %v2292
        %v2294 = vpop.f32.mrb[0].mxu0
        %2295 = vmatprep.mubr.bf16.mxu0 0
        %2296 = vmatmul.mubr.bf16.gmra.mrb[0].mxu0 %v2091
        %v2297 = vpop.f32.mrb[0].mxu0
        %v2298 = vadd.f32 0.0, %v2297
        %v2299 = vpop.f32.mrb[0].mxu0
        %v2300 = vpop.f32.mrb[0].mxu0
        %v2301 = vadd.f32 0.0, %v2300
        %v2302 = vpop.f32.mrb[0].mxu0
        %2303 = vmatprep.mubr.bf16.mxu0 0
        %2304 = vmatmul.mubr.bf16.gmra.mrb[0].mxu0 %v2092
        %v2305 = vpop.f32.mrb[0].mxu0
        %v2306 = vadd.f32 0.0, %v2305
        %v2307 = vpop.f32.mrb[0].mxu0
        %v2308 = vpop.f32.mrb[0].mxu0
        %v2309 = vadd.f32 0.0, %v2308
        %v2310 = vpop.f32.mrb[0].mxu0
        %2311 = vmatprep.mubr.bf16.mxu0 0
        %2312 = vmatmul.mubr.bf16.gmra.mrb[0].mxu0 %v2093
        %v2313 = vpop.f32.mrb[0].mxu0
        %v2314 = vadd.f32 0.0, %v2313
        %v2315 = vpop.f32.mrb[0].mxu0
        %v2316 = vpop.f32.mrb[0].mxu0
        %v2317 = vadd.f32 0.0, %v2316
        %v2318 = vpop.f32.mrb[0].mxu0
        %2319 = vdwg.mxu0
        %v2320 = vadd.f32 %v1951, %v2194
        %v2321 = vadd.f32 %v1954, %v2197
        %v2322 = vadd.f32 %v1959, %v2202
        %v2323 = vadd.f32 %v1962, %v2205
        %v2324 = vadd.f32 %v1967, %v2210
        %v2325 = vadd.f32 %v1970, %v2213
        %v2326 = vadd.f32 %v1975, %v2218
        %v2327 = vadd.f32 %v1978, %v2221
        %v2328 = vadd.f32 %v1983, %v2226
        %v2329 = vadd.f32 %v1986, %v2229
        %v2330 = vadd.f32 %v1991, %v2234
        %v2331 = vadd.f32 %v1994, %v2237
        %v2332 = vadd.f32 %v1999, %v2242
        %v2333 = vadd.f32 %v2002, %v2245
        %v2334 = vadd.f32 %v2007, %v2250
        %v2335 = vadd.f32 %v2010, %v2253
        %v2336 = vadd.f32 %v2015, %v2258
        %v2337 = vadd.f32 %v2018, %v2261
        %v2338 = vadd.f32 %v2023, %v2266
        %v2339 = vadd.f32 %v2026, %v2269
        %v2340 = vadd.f32 %v2031, %v2274
        %v2341 = vadd.f32 %v2034, %v2277
        %v2342 = vadd.f32 %v2039, %v2282
        %v2343 = vadd.f32 %v2042, %v2285
        %v2344 = vadd.f32 %v2047, %v2290
        %v2345 = vadd.f32 %v2050, %v2293
        %v2346 = vadd.f32 %v2055, %v2298
        %v2347 = vadd.f32 %v2058, %v2301
        %v2348 = vadd.f32 %v2063, %v2306
        %v2349 = vadd.f32 %v2066, %v2309
        %v2350 = vadd.f32 %v2071, %v2314
        %v2351 = vadd.f32 %v2074, %v2317
        %v2352 = vld [vmem:[%s17] sm:$0x1]
        %v2354 = vlaneseq
        %v2355 = vshrl.u32 %v2354, 7
        %v2356 = vsub.s32 0, %v2355
        %v2357 = vrot.slane %v2352, %v2356
        %v2359 = vadd.f32 %v2320, %v2357
        %v2360 = vadd.f32 %v2321, %v2357
        %v2361 = vadd.f32 %v2322, %v2357
        %v2362 = vadd.f32 %v2323, %v2357
        %v2363 = vadd.f32 %v2324, %v2357
        %v2364 = vadd.f32 %v2325, %v2357
        %v2365 = vadd.f32 %v2326, %v2357
        %v2366 = vadd.f32 %v2327, %v2357
        %v2367 = vadd.f32 %v2328, %v2357
        %v2368 = vadd.f32 %v2329, %v2357
        %v2369 = vadd.f32 %v2330, %v2357
        %v2370 = vadd.f32 %v2331, %v2357
        %v2371 = vadd.f32 %v2332, %v2357
        %v2372 = vadd.f32 %v2333, %v2357
        %v2373 = vadd.f32 %v2334, %v2357
        %v2374 = vadd.f32 %v2335, %v2357
        %v2375 = vadd.f32 %v2336, %v2357
        %v2376 = vadd.f32 %v2337, %v2357
        %v2377 = vadd.f32 %v2338, %v2357
        %v2378 = vadd.f32 %v2339, %v2357
        %v2379 = vadd.f32 %v2340, %v2357
        %v2380 = vadd.f32 %v2341, %v2357
        %v2381 = vadd.f32 %v2342, %v2357
        %v2382 = vadd.f32 %v2343, %v2357
        %v2383 = vadd.f32 %v2344, %v2357
        %v2384 = vadd.f32 %v2345, %v2357
        %v2385 = vadd.f32 %v2346, %v2357
        %v2386 = vadd.f32 %v2347, %v2357
        %v2387 = vadd.f32 %v2348, %v2357
        %v2388 = vadd.f32 %v2349, %v2357
        %v2389 = vadd.f32 %v2350, %v2357
        %v2390 = vadd.f32 %v2351, %v2357
        %v2391 = vmax.f32 %v2359, 0.0
        %v2392 = vmax.f32 %v2360, 0.0
        %v2393 = vmax.f32 %v2361, 0.0
        %v2394 = vmax.f32 %v2362, 0.0
        %v2395 = vmax.f32 %v2363, 0.0
        %v2396 = vmax.f32 %v2364, 0.0
        %v2397 = vmax.f32 %v2365, 0.0
        %v2398 = vmax.f32 %v2366, 0.0
        %v2399 = vmax.f32 %v2367, 0.0
        %v2400 = vmax.f32 %v2368, 0.0
        %v2401 = vmax.f32 %v2369, 0.0
        %v2402 = vmax.f32 %v2370, 0.0
        %v2403 = vmax.f32 %v2371, 0.0
        %v2404 = vmax.f32 %v2372, 0.0
        %v2405 = vmax.f32 %v2373, 0.0
        %v2406 = vmax.f32 %v2374, 0.0
        %v2407 = vmax.f32 %v2375, 0.0
        %v2408 = vmax.f32 %v2376, 0.0
        %v2409 = vmax.f32 %v2377, 0.0
        %v2410 = vmax.f32 %v2378, 0.0
        %v2411 = vmax.f32 %v2379, 0.0
        %v2412 = vmax.f32 %v2380, 0.0
        %v2413 = vmax.f32 %v2381, 0.0
        %v2414 = vmax.f32 %v2382, 0.0
        %v2415 = vmax.f32 %v2383, 0.0
        %v2416 = vmax.f32 %v2384, 0.0
        %v2417 = vmax.f32 %v2385, 0.0
        %v2418 = vmax.f32 %v2386, 0.0
        %v2419 = vmax.f32 %v2387, 0.0
        %v2420 = vmax.f32 %v2388, 0.0
        %v2421 = vmax.f32 %v2389, 0.0
        %v2422 = vmax.f32 %v2390, 0.0
        %v2423 = vpack.c.bf16 %v2392, %v2391
        %v2424 = vpack.c.bf16 %v2394, %v2393
        %v2425 = vpack.c.bf16 %v2396, %v2395
        %v2426 = vpack.c.bf16 %v2398, %v2397
        %v2427 = vpack.c.bf16 %v2400, %v2399
        %v2428 = vpack.c.bf16 %v2402, %v2401
        %v2429 = vpack.c.bf16 %v2404, %v2403
        %v2430 = vpack.c.bf16 %v2406, %v2405
        %v2431 = vpack.c.bf16 %v2408, %v2407
        %v2432 = vpack.c.bf16 %v2410, %v2409
        %v2433 = vpack.c.bf16 %v2412, %v2411
        %v2434 = vpack.c.bf16 %v2414, %v2413
        %v2435 = vpack.c.bf16 %v2416, %v2415
        %v2436 = vpack.c.bf16 %v2418, %v2417
        %v2437 = vpack.c.bf16 %v2420, %v2419
        %v2438 = vpack.c.bf16 %v2422, %v2421
        %v2440 = vshrl.u32 %v2423, 16
        %v2442 = vrot.slane %v2440, 7
        %v2443 = vshll.u32 %v2423, 16
        %v2445 = vor.u32 %v2442, %v2443
        %v2447 = vshrl.u32 %v2424, 16
        %v2449 = vrot.slane %v2447, 7
        %v2450 = vshll.u32 %v2424, 16
        %v2452 = vor.u32 %v2449, %v2450
        %v2454 = vshrl.u32 %v2425, 16
        %v2456 = vrot.slane %v2454, 7
        %v2457 = vshll.u32 %v2425, 16
        %v2459 = vor.u32 %v2456, %v2457
        %v2461 = vshrl.u32 %v2426, 16
        %v2463 = vrot.slane %v2461, 7
        %v2464 = vshll.u32 %v2426, 16
        %v2466 = vor.u32 %v2463, %v2464
        %v2468 = vshrl.u32 %v2427, 16
        %v2470 = vrot.slane %v2468, 7
        %v2471 = vshll.u32 %v2427, 16
        %v2473 = vor.u32 %v2470, %v2471
        %v2475 = vshrl.u32 %v2428, 16
        %v2477 = vrot.slane %v2475, 7
        %v2478 = vshll.u32 %v2428, 16
        %v2480 = vor.u32 %v2477, %v2478
        %v2482 = vshrl.u32 %v2429, 16
        %v2484 = vrot.slane %v2482, 7
        %v2485 = vshll.u32 %v2429, 16
        %v2487 = vor.u32 %v2484, %v2485
        %v2489 = vshrl.u32 %v2430, 16
        %v2491 = vrot.slane %v2489, 7
        %v2492 = vshll.u32 %v2430, 16
        %v2494 = vor.u32 %v2491, %v2492
        %v2496 = vshrl.u32 %v2431, 16
        %v2498 = vrot.slane %v2496, 7
        %v2499 = vshll.u32 %v2431, 16
        %v2501 = vor.u32 %v2498, %v2499
        %v2503 = vshrl.u32 %v2432, 16
        %v2505 = vrot.slane %v2503, 7
        %v2506 = vshll.u32 %v2432, 16
        %v2508 = vor.u32 %v2505, %v2506
        %v2510 = vshrl.u32 %v2433, 16
        %v2512 = vrot.slane %v2510, 7
        %v2513 = vshll.u32 %v2433, 16
        %v2515 = vor.u32 %v2512, %v2513
        %v2517 = vshrl.u32 %v2434, 16
        %v2519 = vrot.slane %v2517, 7
        %v2520 = vshll.u32 %v2434, 16
        %v2522 = vor.u32 %v2519, %v2520
        %v2524 = vshrl.u32 %v2435, 16
        %v2526 = vrot.slane %v2524, 7
        %v2527 = vshll.u32 %v2435, 16
        %v2529 = vor.u32 %v2526, %v2527
        %v2531 = vshrl.u32 %v2436, 16
        %v2533 = vrot.slane %v2531, 7
        %v2534 = vshll.u32 %v2436, 16
        %v2536 = vor.u32 %v2533, %v2534
        %v2538 = vshrl.u32 %v2437, 16
        %v2540 = vrot.slane %v2538, 7
        %v2541 = vshll.u32 %v2437, 16
        %v2543 = vor.u32 %v2540, %v2541
        %v2545 = vshrl.u32 %v2438, 16
        %v2547 = vrot.slane %v2545, 7
        %v2548 = vshll.u32 %v2438, 16
        %v2550 = vor.u32 %v2547, %v2548
        %v2567 = vsel %vm1281, 0, %v2445
        %v2568 = vsel %vm1281, 0, %v2452
        %v2569 = vsel %vm1281, 0, %v2459
        %v2570 = vsel %vm1281, 0, %v2466
        %v2571 = vsel %vm1281, 0, %v2473
        %v2572 = vsel %vm1281, 0, %v2480
        %v2573 = vsel %vm1281, 0, %v2487
        %v2574 = vsel %vm1281, 0, %v2494
        %v2575 = vsel %vm1281, 0, %v2501
        %v2576 = vsel %vm1281, 0, %v2508
        %v2577 = vsel %vm1281, 0, %v2515
        %v2578 = vsel %vm1281, 0, %v2522
        %v2579 = vsel %vm1281, 0, %v2529
        %v2580 = vsel %vm1281, 0, %v2536
        %v2581 = vsel %vm1281, 0, %v2543
        %v2582 = vsel %vm1281, 0, %v2550
        %v2583 = vrot.slane %v2443, 1
        %v2584 = vor.u32 %v2440, %v2583
        %v2585 = vrot.slane %v2450, 1
        %v2586 = vor.u32 %v2447, %v2585
        %v2587 = vrot.slane %v2457, 1
        %v2588 = vor.u32 %v2454, %v2587
        %v2589 = vrot.slane %v2464, 1
        %v2590 = vor.u32 %v2461, %v2589
        %v2591 = vrot.slane %v2471, 1
        %v2592 = vor.u32 %v2468, %v2591
        %v2593 = vrot.slane %v2478, 1
        %v2594 = vor.u32 %v2475, %v2593
        %v2595 = vrot.slane %v2485, 1
        %v2596 = vor.u32 %v2482, %v2595
        %v2597 = vrot.slane %v2492, 1
        %v2598 = vor.u32 %v2489, %v2597
        %v2599 = vrot.slane %v2499, 1
        %v2600 = vor.u32 %v2496, %v2599
        %v2601 = vrot.slane %v2506, 1
        %v2602 = vor.u32 %v2503, %v2601
        %v2603 = vrot.slane %v2513, 1
        %v2604 = vor.u32 %v2510, %v2603
        %v2605 = vrot.slane %v2520, 1
        %v2606 = vor.u32 %v2517, %v2605
        %v2607 = vrot.slane %v2527, 1
        %v2608 = vor.u32 %v2524, %v2607
        %v2609 = vrot.slane %v2534, 1
        %v2610 = vor.u32 %v2531, %v2609
        %v2611 = vrot.slane %v2541, 1
        %v2612 = vor.u32 %v2538, %v2611
        %v2613 = vrot.slane %v2548, 1
        %v2614 = vor.u32 %v2545, %v2613
        %v2631 = vsel %vm1348, %v2584, 0
        %v2632 = vsel %vm1348, %v2586, 0
        %v2633 = vsel %vm1348, %v2588, 0
        %v2634 = vsel %vm1348, %v2590, 0
        %v2635 = vsel %vm1348, %v2592, 0
        %v2636 = vsel %vm1348, %v2594, 0
        %v2637 = vsel %vm1348, %v2596, 0
        %v2638 = vsel %vm1348, %v2598, 0
        %v2639 = vsel %vm1348, %v2600, 0
        %v2640 = vsel %vm1348, %v2602, 0
        %v2641 = vsel %vm1348, %v2604, 0
        %v2642 = vsel %vm1348, %v2606, 0
        %v2643 = vsel %vm1348, %v2608, 0
        %v2644 = vsel %vm1348, %v2610, 0
        %v2645 = vsel %vm1348, %v2612, 0
        %v2646 = vsel %vm1348, %v2614, 0
        %2663 = vrot.lane.b32.xlu0 %v2423, 32
        %v2664 = vpop.permute.xlu0 %2663
        %2665 = vrot.lane.b32.xlu0 %v2424, 32
        %v2666 = vpop.permute.xlu0 %2665
        %2667 = vrot.lane.b32.xlu0 %v2425, 32
        %v2668 = vpop.permute.xlu0 %2667
        %2669 = vrot.lane.b32.xlu0 %v2426, 32
        %v2670 = vpop.permute.xlu0 %2669
        %2671 = vrot.lane.b32.xlu0 %v2427, 32
        %v2672 = vpop.permute.xlu0 %2671
        %2673 = vrot.lane.b32.xlu0 %v2428, 32
        %v2674 = vpop.permute.xlu0 %2673
        %2675 = vrot.lane.b32.xlu0 %v2429, 32
        %v2676 = vpop.permute.xlu0 %2675
        %2677 = vrot.lane.b32.xlu0 %v2430, 32
        %v2678 = vpop.permute.xlu0 %2677
        %2679 = vrot.lane.b32.xlu0 %v2431, 32
        %v2680 = vpop.permute.xlu0 %2679
        %2681 = vrot.lane.b32.xlu0 %v2432, 32
        %v2682 = vpop.permute.xlu0 %2681
        %2683 = vrot.lane.b32.xlu0 %v2433, 32
        %v2684 = vpop.permute.xlu0 %2683
        %2685 = vrot.lane.b32.xlu0 %v2434, 32
        %v2686 = vpop.permute.xlu0 %2685
        %2687 = vrot.lane.b32.xlu0 %v2435, 32
        %v2688 = vpop.permute.xlu0 %2687
        %2689 = vrot.lane.b32.xlu0 %v2436, 32
        %v2690 = vpop.permute.xlu0 %2689
        %2691 = vrot.lane.b32.xlu0 %v2437, 32
        %v2692 = vpop.permute.xlu0 %2691
        %2693 = vrot.lane.b32.xlu0 %v2438, 32
        %v2694 = vpop.permute.xlu0 %2693
        %2711 = vrot.lane.b32.xlu0 %v2631, 64
        %v2712 = vpop.permute.xlu0 %2711
        %2713 = vrot.lane.b32.xlu0 %v2632, 64
        %v2714 = vpop.permute.xlu0 %2713
        %2715 = vrot.lane.b32.xlu0 %v2633, 64
        %v2716 = vpop.permute.xlu0 %2715
        %2717 = vrot.lane.b32.xlu0 %v2634, 64
        %v2718 = vpop.permute.xlu0 %2717
        %2719 = vrot.lane.b32.xlu0 %v2635, 64
        %v2720 = vpop.permute.xlu0 %2719
        %2721 = vrot.lane.b32.xlu0 %v2636, 64
        %v2722 = vpop.permute.xlu0 %2721
        %2723 = vrot.lane.b32.xlu0 %v2637, 64
        %v2724 = vpop.permute.xlu0 %2723
        %2725 = vrot.lane.b32.xlu0 %v2638, 64
        %v2726 = vpop.permute.xlu0 %2725
        %2727 = vrot.lane.b32.xlu0 %v2639, 64
        %v2728 = vpop.permute.xlu0 %2727
        %2729 = vrot.lane.b32.xlu0 %v2640, 64
        %v2730 = vpop.permute.xlu0 %2729
        %2731 = vrot.lane.b32.xlu0 %v2641, 64
        %v2732 = vpop.permute.xlu0 %2731
        %2733 = vrot.lane.b32.xlu0 %v2642, 64
        %v2734 = vpop.permute.xlu0 %2733
        %2735 = vrot.lane.b32.xlu0 %v2643, 64
        %v2736 = vpop.permute.xlu0 %2735
        %2737 = vrot.lane.b32.xlu0 %v2644, 64
        %v2738 = vpop.permute.xlu0 %2737
        %2739 = vrot.lane.b32.xlu0 %v2645, 64
        %v2740 = vpop.permute.xlu0 %2739
        %2741 = vrot.lane.b32.xlu0 %v2646, 64
        %v2742 = vpop.permute.xlu0 %2741
        %v2745 = vsel %vm1461, %v2567, %v2664
        %v2748 = vsel %vm1461, %v2568, %v2666
        %v2751 = vsel %vm1461, %v2569, %v2668
        %v2754 = vsel %vm1461, %v2570, %v2670
        %v2757 = vsel %vm1461, %v2571, %v2672
        %v2760 = vsel %vm1461, %v2572, %v2674
        %v2763 = vsel %vm1461, %v2573, %v2676
        %v2766 = vsel %vm1461, %v2574, %v2678
        %v2769 = vsel %vm1461, %v2575, %v2680
        %v2772 = vsel %vm1461, %v2576, %v2682
        %v2775 = vsel %vm1461, %v2577, %v2684
        %v2778 = vsel %vm1461, %v2578, %v2686
        %v2781 = vsel %vm1461, %v2579, %v2688
        %v2784 = vsel %vm1461, %v2580, %v2690
        %v2787 = vsel %vm1461, %v2581, %v2692
        %v2790 = vsel %vm1461, %v2582, %v2694
        %v2792 = vsel %vm1510, %v2745, %v2712
        %v2794 = vsel %vm1510, %v2748, %v2714
        %v2796 = vsel %vm1510, %v2751, %v2716
        %v2798 = vsel %vm1510, %v2754, %v2718
        %v2800 = vsel %vm1510, %v2757, %v2720
        %v2802 = vsel %vm1510, %v2760, %v2722
        %v2804 = vsel %vm1510, %v2763, %v2724
        %v2806 = vsel %vm1510, %v2766, %v2726
        %v2808 = vsel %vm1510, %v2769, %v2728
        %v2810 = vsel %vm1510, %v2772, %v2730
        %v2812 = vsel %vm1510, %v2775, %v2732
        %v2814 = vsel %vm1510, %v2778, %v2734
        %v2816 = vsel %vm1510, %v2781, %v2736
        %v2818 = vsel %vm1510, %v2784, %v2738
        %v2820 = vsel %vm1510, %v2787, %v2740
        %v2822 = vsel %vm1510, %v2790, %v2742
        %v2823 = vsel %vm1543, %v2792, 0
        %v2825 = vsel %vm1543, %v2794, 0
        %v2827 = vsel %vm1543, %v2796, 0
        %v2829 = vsel %vm1543, %v2798, 0
        %v2831 = vsel %vm1543, %v2800, 0
        %v2833 = vsel %vm1543, %v2802, 0
        %v2835 = vsel %vm1543, %v2804, 0
        %v2837 = vsel %vm1543, %v2806, 0
        %v2839 = vsel %vm1543, %v2808, 0
        %v2841 = vsel %vm1543, %v2810, 0
        %v2843 = vsel %vm1543, %v2812, 0
        %v2845 = vsel %vm1543, %v2814, 0
        %v2847 = vsel %vm1543, %v2816, 0
        %v2849 = vsel %vm1543, %v2818, 0
        %v2851 = vsel %vm1543, %v2820, 0
        %v2853 = vsel %vm1543, %v2822, 0
        %2855 = vst [vmem:[%s1577] sm:$0xff] %v2823
        %2856 = vst [vmem:[%s1577 + $0x8] sm:$0xff] %v2825
        %2857 = vst [vmem:[%s1577 + $0x10] sm:$0xff] %v2827
        %2858 = vst [vmem:[%s1577 + $0x18] sm:$0xff] %v2829
        %2859 = vst [vmem:[%s1577 + $0x20] sm:$0xff] %v2831
        %2860 = vst [vmem:[%s1577 + $0x28] sm:$0xff] %v2833
        %2861 = vst [vmem:[%s1577 + $0x30] sm:$0xff] %v2835
        %2862 = vst [vmem:[%s1577 + $0x38] sm:$0xff] %v2837
        %2863 = vst [vmem:[%s1577 + $0x40] sm:$0xff] %v2839
        %2864 = vst [vmem:[%s1577 + $0x48] sm:$0xff] %v2841
        %2865 = vst [vmem:[%s1577 + $0x50] sm:$0xff] %v2843
        %2866 = vst [vmem:[%s1577 + $0x58] sm:$0xff] %v2845
        %2867 = vst [vmem:[%s1577 + $0x60] sm:$0xff] %v2847
        %2868 = vst [vmem:[%s1577 + $0x68] sm:$0xff] %v2849
        %2869 = vst [vmem:[%s1577 + $0x70] sm:$0xff] %v2851
        %2870 = vst [vmem:[%s1577 + $0x78] sm:$0xff] %v2853
        %v2871 = vld [vmem:[#allocation2] sm:$0xff]
        %v2872 = vld [vmem:[#allocation2 + $0x8] sm:$0xff]
        %v2873 = vld [vmem:[#allocation2 + $0x10] sm:$0xff]
        %v2874 = vld [vmem:[#allocation2 + $0x18] sm:$0xff]
        %v2875 = vld [vmem:[#allocation2 + $0x20] sm:$0xff]
        %v2876 = vld [vmem:[#allocation2 + $0x28] sm:$0xff]
        %v2877 = vld [vmem:[#allocation2 + $0x30] sm:$0xff]
        %v2878 = vld [vmem:[#allocation2 + $0x38] sm:$0xff]
        %v2879 = vld [vmem:[#allocation2 + $0x40] sm:$0xff]
        %v2880 = vld [vmem:[#allocation2 + $0x48] sm:$0xff]
        %v2881 = vld [vmem:[#allocation2 + $0x50] sm:$0xff]
        %v2882 = vld [vmem:[#allocation2 + $0x58] sm:$0xff]
        %v2883 = vld [vmem:[#allocation2 + $0x60] sm:$0xff]
        %v2884 = vld [vmem:[#allocation2 + $0x68] sm:$0xff]
        %v2885 = vld [vmem:[#allocation2 + $0x70] sm:$0xff]
        %v2886 = vld [vmem:[#allocation2 + $0x78] sm:$0xff]
        %v2887 = vld [vmem:[%s19] sm:$0xf]
        %v2888 = vld [vmem:[%s19 + $0x4] sm:$0xf]
        %v2889 = vld [vmem:[%s19 + $0x8] sm:$0xf]
        %v2890 = vld [vmem:[%s19 + $0xc] sm:$0xf]
        %v2891 = vld [vmem:[%s19 + $0x10] sm:$0xf]
        %v2892 = vld [vmem:[%s19 + $0x14] sm:$0xf]
        %v2893 = vld [vmem:[%s19 + $0x18] sm:$0xf]
        %v2894 = vld [vmem:[%s19 + $0x1c] sm:$0xf]
        %v2895 = vld [vmem:[%s19 + $0x20] sm:$0xf]
        %v2896 = vld [vmem:[%s19 + $0x24] sm:$0xf]
        %v2897 = vld [vmem:[%s19 + $0x28] sm:$0xf]
        %v2898 = vld [vmem:[%s19 + $0x2c] sm:$0xf]
        %v2899 = vld [vmem:[%s19 + $0x30] sm:$0xf]
        %v2900 = vld [vmem:[%s19 + $0x34] sm:$0xf]
        %v2901 = vld [vmem:[%s19 + $0x38] sm:$0xf]
        %v2902 = vld [vmem:[%s19 + $0x3c] sm:$0xf]
        %v2903 = vld [vmem:[%s1577] sm:$0xff]
        %v2904 = vld [vmem:[%s1577 + $0x8] sm:$0xff]
        %v2905 = vld [vmem:[%s1577 + $0x10] sm:$0xff]
        %v2906 = vld [vmem:[%s1577 + $0x18] sm:$0xff]
        %v2907 = vld [vmem:[%s1577 + $0x20] sm:$0xff]
        %v2908 = vld [vmem:[%s1577 + $0x28] sm:$0xff]
        %v2909 = vld [vmem:[%s1577 + $0x30] sm:$0xff]
        %v2910 = vld [vmem:[%s1577 + $0x38] sm:$0xff]
        %v2911 = vld [vmem:[%s1577 + $0x40] sm:$0xff]
        %v2912 = vld [vmem:[%s1577 + $0x48] sm:$0xff]
        %v2913 = vld [vmem:[%s1577 + $0x50] sm:$0xff]
        %v2914 = vld [vmem:[%s1577 + $0x58] sm:$0xff]
        %v2915 = vld [vmem:[%s1577 + $0x60] sm:$0xff]
        %v2916 = vld [vmem:[%s1577 + $0x68] sm:$0xff]
        %v2917 = vld [vmem:[%s1577 + $0x70] sm:$0xff]
        %v2918 = vld [vmem:[%s1577 + $0x78] sm:$0xff]
        %s2919 = scalar_lea.vmem %s19, 64
        %v2920 = vld [vmem:[%s2919] sm:$0xf]
        %v2921 = vld [vmem:[%s2919 + $0x4] sm:$0xf]
        %v2922 = vld [vmem:[%s2919 + $0x8] sm:$0xf]
        %v2923 = vld [vmem:[%s2919 + $0xc] sm:$0xf]
        %v2924 = vld [vmem:[%s2919 + $0x10] sm:$0xf]
        %v2925 = vld [vmem:[%s2919 + $0x14] sm:$0xf]
        %v2926 = vld [vmem:[%s2919 + $0x18] sm:$0xf]
        %v2927 = vld [vmem:[%s2919 + $0x1c] sm:$0xf]
        %v2928 = vld [vmem:[%s2919 + $0x20] sm:$0xf]
        %v2929 = vld [vmem:[%s2919 + $0x24] sm:$0xf]
        %v2930 = vld [vmem:[%s2919 + $0x28] sm:$0xf]
        %v2931 = vld [vmem:[%s2919 + $0x2c] sm:$0xf]
        %v2932 = vld [vmem:[%s2919 + $0x30] sm:$0xf]
        %v2933 = vld [vmem:[%s2919 + $0x34] sm:$0xf]
        %v2934 = vld [vmem:[%s2919 + $0x38] sm:$0xf]
        %v2935 = vld [vmem:[%s2919 + $0x3c] sm:$0xf]
        %v2952 = vunpack.c.l.b16 %v2920
        %v2953 = vunpack.c.l.b16 %v2921
        %v2954 = vunpack.c.l.b16 %v2922
        %v2955 = vunpack.c.l.b16 %v2923
        %v2956 = vunpack.c.l.b16 %v2924
        %v2957 = vunpack.c.l.b16 %v2925
        %v2958 = vunpack.c.l.b16 %v2926
        %v2959 = vunpack.c.l.b16 %v2927
        %v2960 = vunpack.c.l.b16 %v2928
        %v2961 = vunpack.c.l.b16 %v2929
        %v2962 = vunpack.c.l.b16 %v2930
        %v2963 = vunpack.c.l.b16 %v2931
        %v2964 = vunpack.c.l.b16 %v2932
        %v2965 = vunpack.c.l.b16 %v2933
        %v2966 = vunpack.c.l.b16 %v2934
        %v2967 = vunpack.c.l.b16 %v2935
        %v2968 = vpack.c.b16 %v2953, %v2952
        %v2969 = vpack.c.b16 %v2955, %v2954
        %v2970 = vpack.c.b16 %v2957, %v2956
        %v2971 = vpack.c.b16 %v2959, %v2958
        %v2972 = vpack.c.b16 %v2961, %v2960
        %v2973 = vpack.c.b16 %v2963, %v2962
        %v2974 = vpack.c.b16 %v2965, %v2964
        %v2975 = vpack.c.b16 %v2967, %v2966
        %2984 = vmatprep.subr.bf16.mxu0 0
        %2985 = vmatpush1.bf16.msra.mxu0 %v2968
        %2986 = vmatprep.subr.bf16.mxu0 0
        %2987 = vmatpush1.bf16.msra.mxu0 %v2969
        %2988 = vmatprep.subr.bf16.mxu0 0
        %2989 = vmatpush1.bf16.msra.mxu0 %v2970
        %2990 = vmatprep.subr.bf16.mxu0 0
        %2991 = vmatpush1.bf16.msra.mxu0 %v2971
        %2992 = vmatprep.subr.bf16.mxu0 0
        %2993 = vmatpush1.bf16.msra.mxu0 %v2972
        %2994 = vmatprep.subr.bf16.mxu0 0
        %2995 = vmatpush1.bf16.msra.mxu0 %v2973
        %2996 = vmatprep.subr.bf16.mxu0 0
        %2997 = vmatpush1.bf16.msra.mxu0 %v2974
        %2998 = vmatprep.subr.bf16.mxu0 0
        %2999 = vmatpush1.bf16.msra.mxu0 %v2975
        %3000 = vmatprep.subr.bf16.mxu0 0
        %3001 = vmatpush1.bf16.msra.mxu0 0
        %3002 = vmatprep.subr.bf16.mxu0 0
        %3003 = vmatpush1.bf16.msra.mxu0 0
        %3004 = vmatprep.subr.bf16.mxu0 0
        %3005 = vmatpush1.bf16.msra.mxu0 0
        %3006 = vmatprep.subr.bf16.mxu0 0
        %3007 = vmatpush1.bf16.msra.mxu0 0
        %3008 = vmatprep.subr.bf16.mxu0 0
        %3009 = vmatpush1.bf16.msra.mxu0 0
        %3010 = vmatprep.subr.bf16.mxu0 0
        %3011 = vmatpush1.bf16.msra.mxu0 0
        %3012 = vmatprep.subr.bf16.mxu0 0
        %3013 = vmatpush1.bf16.msra.mxu0 0
        %3014 = vmatprep.subr.bf16.mxu0 0
        %3015 = vmatpush1.bf16.msra.mxu0 0
        %3016 = vmatprep.mubr.bf16.mxu0 0
        %3017 = vmatmul.mubr.bf16.gmra.mrb[0].mxu0 %v2903
        %v3018 = vpop.f32.mrb[0].mxu0
        %v3019 = vadd.f32 0.0, %v3018
        %v3020 = vpop.f32.mrb[0].mxu0
        %v3021 = vpop.f32.mrb[0].mxu0
        %v3022 = vadd.f32 0.0, %v3021
        %v3023 = vpop.f32.mrb[0].mxu0
        %3024 = vmatprep.mubr.bf16.mxu0 0
        %3025 = vmatmul.mubr.bf16.gmra.mrb[0].mxu0 %v2904
        %v3026 = vpop.f32.mrb[0].mxu0
        %v3027 = vadd.f32 0.0, %v3026
        %v3028 = vpop.f32.mrb[0].mxu0
        %v3029 = vpop.f32.mrb[0].mxu0
        %v3030 = vadd.f32 0.0, %v3029
        %v3031 = vpop.f32.mrb[0].mxu0
        %3032 = vmatprep.mubr.bf16.mxu0 0
        %3033 = vmatmul.mubr.bf16.gmra.mrb[0].mxu0 %v2905
        %v3034 = vpop.f32.mrb[0].mxu0
        %v3035 = vadd.f32 0.0, %v3034
        %v3036 = vpop.f32.mrb[0].mxu0
        %v3037 = vpop.f32.mrb[0].mxu0
        %v3038 = vadd.f32 0.0, %v3037
        %v3039 = vpop.f32.mrb[0].mxu0
        %3040 = vmatprep.mubr.bf16.mxu0 0
        %3041 = vmatmul.mubr.bf16.gmra.mrb[0].mxu0 %v2906
        %v3042 = vpop.f32.mrb[0].mxu0
        %v3043 = vadd.f32 0.0, %v3042
        %v3044 = vpop.f32.mrb[0].mxu0
        %v3045 = vpop.f32.mrb[0].mxu0
        %v3046 = vadd.f32 0.0, %v3045
        %v3047 = vpop.f32.mrb[0].mxu0
        %3048 = vmatprep.mubr.bf16.mxu0 0
        %3049 = vmatmul.mubr.bf16.gmra.mrb[0].mxu0 %v2907
        %v3050 = vpop.f32.mrb[0].mxu0
        %v3051 = vadd.f32 0.0, %v3050
        %v3052 = vpop.f32.mrb[0].mxu0
        %v3053 = vpop.f32.mrb[0].mxu0
        %v3054 = vadd.f32 0.0, %v3053
        %v3055 = vpop.f32.mrb[0].mxu0
        %3056 = vmatprep.mubr.bf16.mxu0 0
        %3057 = vmatmul.mubr.bf16.gmra.mrb[0].mxu0 %v2908
        %v3058 = vpop.f32.mrb[0].mxu0
        %v3059 = vadd.f32 0.0, %v3058
        %v3060 = vpop.f32.mrb[0].mxu0
        %v3061 = vpop.f32.mrb[0].mxu0
        %v3062 = vadd.f32 0.0, %v3061
        %v3063 = vpop.f32.mrb[0].mxu0
        %3064 = vmatprep.mubr.bf16.mxu0 0
        %3065 = vmatmul.mubr.bf16.gmra.mrb[0].mxu0 %v2909
        %v3066 = vpop.f32.mrb[0].mxu0
        %v3067 = vadd.f32 0.0, %v3066
        %v3068 = vpop.f32.mrb[0].mxu0
        %v3069 = vpop.f32.mrb[0].mxu0
        %v3070 = vadd.f32 0.0, %v3069
        %v3071 = vpop.f32.mrb[0].mxu0
        %3072 = vmatprep.mubr.bf16.mxu0 0
        %3073 = vmatmul.mubr.bf16.gmra.mrb[0].mxu0 %v2910
        %v3074 = vpop.f32.mrb[0].mxu0
        %v3075 = vadd.f32 0.0, %v3074
        %v3076 = vpop.f32.mrb[0].mxu0
        %v3077 = vpop.f32.mrb[0].mxu0
        %v3078 = vadd.f32 0.0, %v3077
        %v3079 = vpop.f32.mrb[0].mxu0
        %3080 = vmatprep.mubr.bf16.mxu0 0
        %3081 = vmatmul.mubr.bf16.gmra.mrb[0].mxu0 %v2911
        %v3082 = vpop.f32.mrb[0].mxu0
        %v3083 = vadd.f32 0.0, %v3082
        %v3084 = vpop.f32.mrb[0].mxu0
        %v3085 = vpop.f32.mrb[0].mxu0
        %v3086 = vadd.f32 0.0, %v3085
        %v3087 = vpop.f32.mrb[0].mxu0
        %3088 = vmatprep.mubr.bf16.mxu0 0
        %3089 = vmatmul.mubr.bf16.gmra.mrb[0].mxu0 %v2912
        %v3090 = vpop.f32.mrb[0].mxu0
        %v3091 = vadd.f32 0.0, %v3090
        %v3092 = vpop.f32.mrb[0].mxu0
        %v3093 = vpop.f32.mrb[0].mxu0
        %v3094 = vadd.f32 0.0, %v3093
        %v3095 = vpop.f32.mrb[0].mxu0
        %3096 = vmatprep.mubr.bf16.mxu0 0
        %3097 = vmatmul.mubr.bf16.gmra.mrb[0].mxu0 %v2913
        %v3098 = vpop.f32.mrb[0].mxu0
        %v3099 = vadd.f32 0.0, %v3098
        %v3100 = vpop.f32.mrb[0].mxu0
        %v3101 = vpop.f32.mrb[0].mxu0
        %v3102 = vadd.f32 0.0, %v3101
        %v3103 = vpop.f32.mrb[0].mxu0
        %3104 = vmatprep.mubr.bf16.mxu0 0
        %3105 = vmatmul.mubr.bf16.gmra.mrb[0].mxu0 %v2914
        %v3106 = vpop.f32.mrb[0].mxu0
        %v3107 = vadd.f32 0.0, %v3106
        %v3108 = vpop.f32.mrb[0].mxu0
        %v3109 = vpop.f32.mrb[0].mxu0
        %v3110 = vadd.f32 0.0, %v3109
        %v3111 = vpop.f32.mrb[0].mxu0
        %3112 = vmatprep.mubr.bf16.mxu0 0
        %3113 = vmatmul.mubr.bf16.gmra.mrb[0].mxu0 %v2915
        %v3114 = vpop.f32.mrb[0].mxu0
        %v3115 = vadd.f32 0.0, %v3114
        %v3116 = vpop.f32.mrb[0].mxu0
        %v3117 = vpop.f32.mrb[0].mxu0
        %v3118 = vadd.f32 0.0, %v3117
        %v3119 = vpop.f32.mrb[0].mxu0
        %3120 = vmatprep.mubr.bf16.mxu0 0
        %3121 = vmatmul.mubr.bf16.gmra.mrb[0].mxu0 %v2916
        %v3122 = vpop.f32.mrb[0].mxu0
        %v3123 = vadd.f32 0.0, %v3122
        %v3124 = vpop.f32.mrb[0].mxu0
        %v3125 = vpop.f32.mrb[0].mxu0
        %v3126 = vadd.f32 0.0, %v3125
        %v3127 = vpop.f32.mrb[0].mxu0
        %3128 = vmatprep.mubr.bf16.mxu0 0
        %3129 = vmatmul.mubr.bf16.gmra.mrb[0].mxu0 %v2917
        %v3130 = vpop.f32.mrb[0].mxu0
        %v3131 = vadd.f32 0.0, %v3130
        %v3132 = vpop.f32.mrb[0].mxu0
        %v3133 = vpop.f32.mrb[0].mxu0
        %v3134 = vadd.f32 0.0, %v3133
        %v3135 = vpop.f32.mrb[0].mxu0
        %3136 = vmatprep.mubr.bf16.mxu0 0
        %3137 = vmatmul.mubr.bf16.gmra.mrb[0].mxu0 %v2918
        %v3138 = vpop.f32.mrb[0].mxu0
        %v3139 = vadd.f32 0.0, %v3138
        %v3140 = vpop.f32.mrb[0].mxu0
        %v3141 = vpop.f32.mrb[0].mxu0
        %v3142 = vadd.f32 0.0, %v3141
        %v3143 = vpop.f32.mrb[0].mxu0
        %3144 = vdwg.mxu0
        %v3161 = vunpack.c.l.b16 %v2887
        %v3162 = vunpack.c.l.b16 %v2888
        %v3163 = vunpack.c.l.b16 %v2889
        %v3164 = vunpack.c.l.b16 %v2890
        %v3165 = vunpack.c.l.b16 %v2891
        %v3166 = vunpack.c.l.b16 %v2892
        %v3167 = vunpack.c.l.b16 %v2893
        %v3168 = vunpack.c.l.b16 %v2894
        %v3169 = vunpack.c.l.b16 %v2895
        %v3170 = vunpack.c.l.b16 %v2896
        %v3171 = vunpack.c.l.b16 %v2897
        %v3172 = vunpack.c.l.b16 %v2898
        %v3173 = vunpack.c.l.b16 %v2899
        %v3174 = vunpack.c.l.b16 %v2900
        %v3175 = vunpack.c.l.b16 %v2901
        %v3176 = vunpack.c.l.b16 %v2902
        %v3177 = vpack.c.b16 %v3162, %v3161
        %v3178 = vpack.c.b16 %v3164, %v3163
        %v3179 = vpack.c.b16 %v3166, %v3165
        %v3180 = vpack.c.b16 %v3168, %v3167
        %v3181 = vpack.c.b16 %v3170, %v3169
        %v3182 = vpack.c.b16 %v3172, %v3171
        %v3183 = vpack.c.b16 %v3174, %v3173
        %v3184 = vpack.c.b16 %v3176, %v3175
        %3193 = vmatprep.subr.bf16.mxu0 0
        %3194 = vmatpush1.bf16.msra.mxu0 %v3177
        %3195 = vmatprep.subr.bf16.mxu0 0
        %3196 = vmatpush1.bf16.msra.mxu0 %v3178
        %3197 = vmatprep.subr.bf16.mxu0 0
        %3198 = vmatpush1.bf16.msra.mxu0 %v3179
        %3199 = vmatprep.subr.bf16.mxu0 0
        %3200 = vmatpush1.bf16.msra.mxu0 %v3180
        %3201 = vmatprep.subr.bf16.mxu0 0
        %3202 = vmatpush1.bf16.msra.mxu0 %v3181
        %3203 = vmatprep.subr.bf16.mxu0 0
        %3204 = vmatpush1.bf16.msra.mxu0 %v3182
        %3205 = vmatprep.subr.bf16.mxu0 0
        %3206 = vmatpush1.bf16.msra.mxu0 %v3183
        %3207 = vmatprep.subr.bf16.mxu0 0
        %3208 = vmatpush1.bf16.msra.mxu0 %v3184
        %3209 = vmatprep.subr.bf16.mxu0 0
        %3210 = vmatpush1.bf16.msra.mxu0 0
        %3211 = vmatprep.subr.bf16.mxu0 0
        %3212 = vmatpush1.bf16.msra.mxu0 0
        %3213 = vmatprep.subr.bf16.mxu0 0
        %3214 = vmatpush1.bf16.msra.mxu0 0
        %3215 = vmatprep.subr.bf16.mxu0 0
        %3216 = vmatpush1.bf16.msra.mxu0 0
        %3217 = vmatprep.subr.bf16.mxu0 0
        %3218 = vmatpush1.bf16.msra.mxu0 0
        %3219 = vmatprep.subr.bf16.mxu0 0
        %3220 = vmatpush1.bf16.msra.mxu0 0
        %3221 = vmatprep.subr.bf16.mxu0 0
        %3222 = vmatpush1.bf16.msra.mxu0 0
        %3223 = vmatprep.subr.bf16.mxu0 0
        %3224 = vmatpush1.bf16.msra.mxu0 0
        %3225 = vmatprep.mubr.bf16.mxu0 0
        %3226 = vmatmul.mubr.bf16.gmra.mrb[0].mxu0 %v2871
        %v3227 = vpop.f32.mrb[0].mxu0
        %v3228 = vadd.f32 %v3019, %v3227
        %v3229 = vpop.f32.mrb[0].mxu0
        %v3230 = vpop.f32.mrb[0].mxu0
        %v3231 = vadd.f32 %v3022, %v3230
        %v3232 = vpop.f32.mrb[0].mxu0
        %3233 = vmatprep.mubr.bf16.mxu0 0
        %3234 = vmatmul.mubr.bf16.gmra.mrb[0].mxu0 %v2872
        %v3235 = vpop.f32.mrb[0].mxu0
        %v3236 = vadd.f32 %v3027, %v3235
        %v3237 = vpop.f32.mrb[0].mxu0
        %v3238 = vpop.f32.mrb[0].mxu0
        %v3239 = vadd.f32 %v3030, %v3238
        %v3240 = vpop.f32.mrb[0].mxu0
        %3241 = vmatprep.mubr.bf16.mxu0 0
        %3242 = vmatmul.mubr.bf16.gmra.mrb[0].mxu0 %v2873
        %v3243 = vpop.f32.mrb[0].mxu0
        %v3244 = vadd.f32 %v3035, %v3243
        %v3245 = vpop.f32.mrb[0].mxu0
        %v3246 = vpop.f32.mrb[0].mxu0
        %v3247 = vadd.f32 %v3038, %v3246
        %v3248 = vpop.f32.mrb[0].mxu0
        %3249 = vmatprep.mubr.bf16.mxu0 0
        %3250 = vmatmul.mubr.bf16.gmra.mrb[0].mxu0 %v2874
        %v3251 = vpop.f32.mrb[0].mxu0
        %v3252 = vadd.f32 %v3043, %v3251
        %v3253 = vpop.f32.mrb[0].mxu0
        %v3254 = vpop.f32.mrb[0].mxu0
        %v3255 = vadd.f32 %v3046, %v3254
        %v3256 = vpop.f32.mrb[0].mxu0
        %3257 = vmatprep.mubr.bf16.mxu0 0
        %3258 = vmatmul.mubr.bf16.gmra.mrb[0].mxu0 %v2875
        %v3259 = vpop.f32.mrb[0].mxu0
        %v3260 = vadd.f32 %v3051, %v3259
        %v3261 = vpop.f32.mrb[0].mxu0
        %v3262 = vpop.f32.mrb[0].mxu0
        %v3263 = vadd.f32 %v3054, %v3262
        %v3264 = vpop.f32.mrb[0].mxu0
        %3265 = vmatprep.mubr.bf16.mxu0 0
        %3266 = vmatmul.mubr.bf16.gmra.mrb[0].mxu0 %v2876
        %v3267 = vpop.f32.mrb[0].mxu0
        %v3268 = vadd.f32 %v3059, %v3267
        %v3269 = vpop.f32.mrb[0].mxu0
        %v3270 = vpop.f32.mrb[0].mxu0
        %v3271 = vadd.f32 %v3062, %v3270
        %v3272 = vpop.f32.mrb[0].mxu0
        %3273 = vmatprep.mubr.bf16.mxu0 0
        %3274 = vmatmul.mubr.bf16.gmra.mrb[0].mxu0 %v2877
        %v3275 = vpop.f32.mrb[0].mxu0
        %v3276 = vadd.f32 %v3067, %v3275
        %v3277 = vpop.f32.mrb[0].mxu0
        %v3278 = vpop.f32.mrb[0].mxu0
        %v3279 = vadd.f32 %v3070, %v3278
        %v3280 = vpop.f32.mrb[0].mxu0
        %3281 = vmatprep.mubr.bf16.mxu0 0
        %3282 = vmatmul.mubr.bf16.gmra.mrb[0].mxu0 %v2878
        %v3283 = vpop.f32.mrb[0].mxu0
        %v3284 = vadd.f32 %v3075, %v3283
        %v3285 = vpop.f32.mrb[0].mxu0
        %v3286 = vpop.f32.mrb[0].mxu0
        %v3287 = vadd.f32 %v3078, %v3286
        %v3288 = vpop.f32.mrb[0].mxu0
        %3289 = vmatprep.mubr.bf16.mxu0 0
        %3290 = vmatmul.mubr.bf16.gmra.mrb[0].mxu0 %v2879
        %v3291 = vpop.f32.mrb[0].mxu0
        %v3292 = vadd.f32 %v3083, %v3291
        %v3293 = vpop.f32.mrb[0].mxu0
        %v3294 = vpop.f32.mrb[0].mxu0
        %v3295 = vadd.f32 %v3086, %v3294
        %v3296 = vpop.f32.mrb[0].mxu0
        %3297 = vmatprep.mubr.bf16.mxu0 0
        %3298 = vmatmul.mubr.bf16.gmra.mrb[0].mxu0 %v2880
        %v3299 = vpop.f32.mrb[0].mxu0
        %v3300 = vadd.f32 %v3091, %v3299
        %v3301 = vpop.f32.mrb[0].mxu0
        %v3302 = vpop.f32.mrb[0].mxu0
        %v3303 = vadd.f32 %v3094, %v3302
        %v3304 = vpop.f32.mrb[0].mxu0
        %3305 = vmatprep.mubr.bf16.mxu0 0
        %3306 = vmatmul.mubr.bf16.gmra.mrb[0].mxu0 %v2881
        %v3307 = vpop.f32.mrb[0].mxu0
        %v3308 = vadd.f32 %v3099, %v3307
        %v3309 = vpop.f32.mrb[0].mxu0
        %v3310 = vpop.f32.mrb[0].mxu0
        %v3311 = vadd.f32 %v3102, %v3310
        %v3312 = vpop.f32.mrb[0].mxu0
        %3313 = vmatprep.mubr.bf16.mxu0 0
        %3314 = vmatmul.mubr.bf16.gmra.mrb[0].mxu0 %v2882
        %v3315 = vpop.f32.mrb[0].mxu0
        %v3316 = vadd.f32 %v3107, %v3315
        %v3317 = vpop.f32.mrb[0].mxu0
        %v3318 = vpop.f32.mrb[0].mxu0
        %v3319 = vadd.f32 %v3110, %v3318
        %v3320 = vpop.f32.mrb[0].mxu0
        %3321 = vmatprep.mubr.bf16.mxu0 0
        %3322 = vmatmul.mubr.bf16.gmra.mrb[0].mxu0 %v2883
        %v3323 = vpop.f32.mrb[0].mxu0
        %v3324 = vadd.f32 %v3115, %v3323
        %v3325 = vpop.f32.mrb[0].mxu0
        %v3326 = vpop.f32.mrb[0].mxu0
        %v3327 = vadd.f32 %v3118, %v3326
        %v3328 = vpop.f32.mrb[0].mxu0
        %3329 = vmatprep.mubr.bf16.mxu0 0
        %3330 = vmatmul.mubr.bf16.gmra.mrb[0].mxu0 %v2884
        %v3331 = vpop.f32.mrb[0].mxu0
        %v3332 = vadd.f32 %v3123, %v3331
        %v3333 = vpop.f32.mrb[0].mxu0
        %v3334 = vpop.f32.mrb[0].mxu0
        %v3335 = vadd.f32 %v3126, %v3334
        %v3336 = vpop.f32.mrb[0].mxu0
        %3337 = vmatprep.mubr.bf16.mxu0 0
        %3338 = vmatmul.mubr.bf16.gmra.mrb[0].mxu0 %v2885
        %v3339 = vpop.f32.mrb[0].mxu0
        %v3340 = vadd.f32 %v3131, %v3339
        %v3341 = vpop.f32.mrb[0].mxu0
        %v3342 = vpop.f32.mrb[0].mxu0
        %v3343 = vadd.f32 %v3134, %v3342
        %v3344 = vpop.f32.mrb[0].mxu0
        %3345 = vmatprep.mubr.bf16.mxu0 0
        %3346 = vmatmul.mubr.bf16.gmra.mrb[0].mxu0 %v2886
        %v3347 = vpop.f32.mrb[0].mxu0
        %v3348 = vadd.f32 %v3139, %v3347
        %v3349 = vpop.f32.mrb[0].mxu0
        %v3350 = vpop.f32.mrb[0].mxu0
        %v3351 = vadd.f32 %v3142, %v3350
        %v3352 = vpop.f32.mrb[0].mxu0
        %3353 = vdwg.mxu0
        %v3354 = vld [vmem:[%s2077] sm:$0xff]
        %v3355 = vld [vmem:[%s2077 + $0x8] sm:$0xff]
        %v3356 = vld [vmem:[%s2077 + $0x10] sm:$0xff]
        %v3357 = vld [vmem:[%s2077 + $0x18] sm:$0xff]
        %v3358 = vld [vmem:[%s2077 + $0x20] sm:$0xff]
        %v3359 = vld [vmem:[%s2077 + $0x28] sm:$0xff]
        %v3360 = vld [vmem:[%s2077 + $0x30] sm:$0xff]
        %v3361 = vld [vmem:[%s2077 + $0x38] sm:$0xff]
        %v3362 = vld [vmem:[%s2077 + $0x40] sm:$0xff]
        %v3363 = vld [vmem:[%s2077 + $0x48] sm:$0xff]
        %v3364 = vld [vmem:[%s2077 + $0x50] sm:$0xff]
        %v3365 = vld [vmem:[%s2077 + $0x58] sm:$0xff]
        %v3366 = vld [vmem:[%s2077 + $0x60] sm:$0xff]
        %v3367 = vld [vmem:[%s2077 + $0x68] sm:$0xff]
        %v3368 = vld [vmem:[%s2077 + $0x70] sm:$0xff]
        %v3369 = vld [vmem:[%s2077 + $0x78] sm:$0xff]
        %s3370 = scalar_lea.vmem %s19, 128
        %v3371 = vld [vmem:[%s3370] sm:$0xf]
        %v3372 = vld [vmem:[%s3370 + $0x4] sm:$0xf]
        %v3373 = vld [vmem:[%s3370 + $0x8] sm:$0xf]
        %v3374 = vld [vmem:[%s3370 + $0xc] sm:$0xf]
        %v3375 = vld [vmem:[%s3370 + $0x10] sm:$0xf]
        %v3376 = vld [vmem:[%s3370 + $0x14] sm:$0xf]
        %v3377 = vld [vmem:[%s3370 + $0x18] sm:$0xf]
        %v3378 = vld [vmem:[%s3370 + $0x1c] sm:$0xf]
        %v3379 = vld [vmem:[%s3370 + $0x20] sm:$0xf]
        %v3380 = vld [vmem:[%s3370 + $0x24] sm:$0xf]
        %v3381 = vld [vmem:[%s3370 + $0x28] sm:$0xf]
        %v3382 = vld [vmem:[%s3370 + $0x2c] sm:$0xf]
        %v3383 = vld [vmem:[%s3370 + $0x30] sm:$0xf]
        %v3384 = vld [vmem:[%s3370 + $0x34] sm:$0xf]
        %v3385 = vld [vmem:[%s3370 + $0x38] sm:$0xf]
        %v3386 = vld [vmem:[%s3370 + $0x3c] sm:$0xf]
        %v3403 = vunpack.c.l.b16 %v3371
        %v3404 = vunpack.c.l.b16 %v3372
        %v3405 = vunpack.c.l.b16 %v3373
        %v3406 = vunpack.c.l.b16 %v3374
        %v3407 = vunpack.c.l.b16 %v3375
        %v3408 = vunpack.c.l.b16 %v3376
        %v3409 = vunpack.c.l.b16 %v3377
        %v3410 = vunpack.c.l.b16 %v3378
        %v3411 = vunpack.c.l.b16 %v3379
        %v3412 = vunpack.c.l.b16 %v3380
        %v3413 = vunpack.c.l.b16 %v3381
        %v3414 = vunpack.c.l.b16 %v3382
        %v3415 = vunpack.c.l.b16 %v3383
        %v3416 = vunpack.c.l.b16 %v3384
        %v3417 = vunpack.c.l.b16 %v3385
        %v3418 = vunpack.c.l.b16 %v3386
        %v3419 = vpack.c.b16 %v3404, %v3403
        %v3420 = vpack.c.b16 %v3406, %v3405
        %v3421 = vpack.c.b16 %v3408, %v3407
        %v3422 = vpack.c.b16 %v3410, %v3409
        %v3423 = vpack.c.b16 %v3412, %v3411
        %v3424 = vpack.c.b16 %v3414, %v3413
        %v3425 = vpack.c.b16 %v3416, %v3415
        %v3426 = vpack.c.b16 %v3418, %v3417
        %3435 = vmatprep.subr.bf16.mxu0 0
        %3436 = vmatpush1.bf16.msra.mxu0 %v3419
        %3437 = vmatprep.subr.bf16.mxu0 0
        %3438 = vmatpush1.bf16.msra.mxu0 %v3420
        %3439 = vmatprep.subr.bf16.mxu0 0
        %3440 = vmatpush1.bf16.msra.mxu0 %v3421
        %3441 = vmatprep.subr.bf16.mxu0 0
        %3442 = vmatpush1.bf16.msra.mxu0 %v3422
        %3443 = vmatprep.subr.bf16.mxu0 0
        %3444 = vmatpush1.bf16.msra.mxu0 %v3423
        %3445 = vmatprep.subr.bf16.mxu0 0
        %3446 = vmatpush1.bf16.msra.mxu0 %v3424
        %3447 = vmatprep.subr.bf16.mxu0 0
        %3448 = vmatpush1.bf16.msra.mxu0 %v3425
        %3449 = vmatprep.subr.bf16.mxu0 0
        %3450 = vmatpush1.bf16.msra.mxu0 %v3426
        %3451 = vmatprep.subr.bf16.mxu0 0
        %3452 = vmatpush1.bf16.msra.mxu0 0
        %3453 = vmatprep.subr.bf16.mxu0 0
        %3454 = vmatpush1.bf16.msra.mxu0 0
        %3455 = vmatprep.subr.bf16.mxu0 0
        %3456 = vmatpush1.bf16.msra.mxu0 0
        %3457 = vmatprep.subr.bf16.mxu0 0
        %3458 = vmatpush1.bf16.msra.mxu0 0
        %3459 = vmatprep.subr.bf16.mxu0 0
        %3460 = vmatpush1.bf16.msra.mxu0 0
        %3461 = vmatprep.subr.bf16.mxu0 0
        %3462 = vmatpush1.bf16.msra.mxu0 0
        %3463 = vmatprep.subr.bf16.mxu0 0
        %3464 = vmatpush1.bf16.msra.mxu0 0
        %3465 = vmatprep.subr.bf16.mxu0 0
        %3466 = vmatpush1.bf16.msra.mxu0 0
        %3467 = vmatprep.mubr.bf16.mxu0 0
        %3468 = vmatmul.mubr.bf16.gmra.mrb[0].mxu0 %v3354
        %v3469 = vpop.f32.mrb[0].mxu0
        %v3470 = vadd.f32 0.0, %v3469
        %v3471 = vpop.f32.mrb[0].mxu0
        %v3472 = vpop.f32.mrb[0].mxu0
        %v3473 = vadd.f32 0.0, %v3472
        %v3474 = vpop.f32.mrb[0].mxu0
        %3475 = vmatprep.mubr.bf16.mxu0 0
        %3476 = vmatmul.mubr.bf16.gmra.mrb[0].mxu0 %v3355
        %v3477 = vpop.f32.mrb[0].mxu0
        %v3478 = vadd.f32 0.0, %v3477
        %v3479 = vpop.f32.mrb[0].mxu0
        %v3480 = vpop.f32.mrb[0].mxu0
        %v3481 = vadd.f32 0.0, %v3480
        %v3482 = vpop.f32.mrb[0].mxu0
        %3483 = vmatprep.mubr.bf16.mxu0 0
        %3484 = vmatmul.mubr.bf16.gmra.mrb[0].mxu0 %v3356
        %v3485 = vpop.f32.mrb[0].mxu0
        %v3486 = vadd.f32 0.0, %v3485
        %v3487 = vpop.f32.mrb[0].mxu0
        %v3488 = vpop.f32.mrb[0].mxu0
        %v3489 = vadd.f32 0.0, %v3488
        %v3490 = vpop.f32.mrb[0].mxu0
        %3491 = vmatprep.mubr.bf16.mxu0 0
        %3492 = vmatmul.mubr.bf16.gmra.mrb[0].mxu0 %v3357
        %v3493 = vpop.f32.mrb[0].mxu0
        %v3494 = vadd.f32 0.0, %v3493
        %v3495 = vpop.f32.mrb[0].mxu0
        %v3496 = vpop.f32.mrb[0].mxu0
        %v3497 = vadd.f32 0.0, %v3496
        %v3498 = vpop.f32.mrb[0].mxu0
        %3499 = vmatprep.mubr.bf16.mxu0 0
        %3500 = vmatmul.mubr.bf16.gmra.mrb[0].mxu0 %v3358
        %v3501 = vpop.f32.mrb[0].mxu0
        %v3502 = vadd.f32 0.0, %v3501
        %v3503 = vpop.f32.mrb[0].mxu0
        %v3504 = vpop.f32.mrb[0].mxu0
        %v3505 = vadd.f32 0.0, %v3504
        %v3506 = vpop.f32.mrb[0].mxu0
        %3507 = vmatprep.mubr.bf16.mxu0 0
        %3508 = vmatmul.mubr.bf16.gmra.mrb[0].mxu0 %v3359
        %v3509 = vpop.f32.mrb[0].mxu0
        %v3510 = vadd.f32 0.0, %v3509
        %v3511 = vpop.f32.mrb[0].mxu0
        %v3512 = vpop.f32.mrb[0].mxu0
        %v3513 = vadd.f32 0.0, %v3512
        %v3514 = vpop.f32.mrb[0].mxu0
        %3515 = vmatprep.mubr.bf16.mxu0 0
        %3516 = vmatmul.mubr.bf16.gmra.mrb[0].mxu0 %v3360
        %v3517 = vpop.f32.mrb[0].mxu0
        %v3518 = vadd.f32 0.0, %v3517
        %v3519 = vpop.f32.mrb[0].mxu0
        %v3520 = vpop.f32.mrb[0].mxu0
        %v3521 = vadd.f32 0.0, %v3520
        %v3522 = vpop.f32.mrb[0].mxu0
        %3523 = vmatprep.mubr.bf16.mxu0 0
        %3524 = vmatmul.mubr.bf16.gmra.mrb[0].mxu0 %v3361
        %v3525 = vpop.f32.mrb[0].mxu0
        %v3526 = vadd.f32 0.0, %v3525
        %v3527 = vpop.f32.mrb[0].mxu0
        %v3528 = vpop.f32.mrb[0].mxu0
        %v3529 = vadd.f32 0.0, %v3528
        %v3530 = vpop.f32.mrb[0].mxu0
        %3531 = vmatprep.mubr.bf16.mxu0 0
        %3532 = vmatmul.mubr.bf16.gmra.mrb[0].mxu0 %v3362
        %v3533 = vpop.f32.mrb[0].mxu0
        %v3534 = vadd.f32 0.0, %v3533
        %v3535 = vpop.f32.mrb[0].mxu0
        %v3536 = vpop.f32.mrb[0].mxu0
        %v3537 = vadd.f32 0.0, %v3536
        %v3538 = vpop.f32.mrb[0].mxu0
        %3539 = vmatprep.mubr.bf16.mxu0 0
        %3540 = vmatmul.mubr.bf16.gmra.mrb[0].mxu0 %v3363
        %v3541 = vpop.f32.mrb[0].mxu0
        %v3542 = vadd.f32 0.0, %v3541
        %v3543 = vpop.f32.mrb[0].mxu0
        %v3544 = vpop.f32.mrb[0].mxu0
        %v3545 = vadd.f32 0.0, %v3544
        %v3546 = vpop.f32.mrb[0].mxu0
        %3547 = vmatprep.mubr.bf16.mxu0 0
        %3548 = vmatmul.mubr.bf16.gmra.mrb[0].mxu0 %v3364
        %v3549 = vpop.f32.mrb[0].mxu0
        %v3550 = vadd.f32 0.0, %v3549
        %v3551 = vpop.f32.mrb[0].mxu0
        %v3552 = vpop.f32.mrb[0].mxu0
        %v3553 = vadd.f32 0.0, %v3552
        %v3554 = vpop.f32.mrb[0].mxu0
        %3555 = vmatprep.mubr.bf16.mxu0 0
        %3556 = vmatmul.mubr.bf16.gmra.mrb[0].mxu0 %v3365
        %v3557 = vpop.f32.mrb[0].mxu0
        %v3558 = vadd.f32 0.0, %v3557
        %v3559 = vpop.f32.mrb[0].mxu0
        %v3560 = vpop.f32.mrb[0].mxu0
        %v3561 = vadd.f32 0.0, %v3560
        %v3562 = vpop.f32.mrb[0].mxu0
        %3563 = vmatprep.mubr.bf16.mxu0 0
        %3564 = vmatmul.mubr.bf16.gmra.mrb[0].mxu0 %v3366
        %v3565 = vpop.f32.mrb[0].mxu0
        %v3566 = vadd.f32 0.0, %v3565
        %v3567 = vpop.f32.mrb[0].mxu0
        %v3568 = vpop.f32.mrb[0].mxu0
        %v3569 = vadd.f32 0.0, %v3568
        %v3570 = vpop.f32.mrb[0].mxu0
        %3571 = vmatprep.mubr.bf16.mxu0 0
        %3572 = vmatmul.mubr.bf16.gmra.mrb[0].mxu0 %v3367
        %v3573 = vpop.f32.mrb[0].mxu0
        %v3574 = vadd.f32 0.0, %v3573
        %v3575 = vpop.f32.mrb[0].mxu0
        %v3576 = vpop.f32.mrb[0].mxu0
        %v3577 = vadd.f32 0.0, %v3576
        %v3578 = vpop.f32.mrb[0].mxu0
        %3579 = vmatprep.mubr.bf16.mxu0 0
        %3580 = vmatmul.mubr.bf16.gmra.mrb[0].mxu0 %v3368
        %v3581 = vpop.f32.mrb[0].mxu0
        %v3582 = vadd.f32 0.0, %v3581
        %v3583 = vpop.f32.mrb[0].mxu0
        %v3584 = vpop.f32.mrb[0].mxu0
        %v3585 = vadd.f32 0.0, %v3584
        %v3586 = vpop.f32.mrb[0].mxu0
        %3587 = vmatprep.mubr.bf16.mxu0 0
        %3588 = vmatmul.mubr.bf16.gmra.mrb[0].mxu0 %v3369
        %v3589 = vpop.f32.mrb[0].mxu0
        %v3590 = vadd.f32 0.0, %v3589
        %v3591 = vpop.f32.mrb[0].mxu0
        %v3592 = vpop.f32.mrb[0].mxu0
        %v3593 = vadd.f32 0.0, %v3592
        %v3594 = vpop.f32.mrb[0].mxu0
        %3595 = vdwg.mxu0
        %v3596 = vadd.f32 %v3228, %v3470
        %v3597 = vadd.f32 %v3231, %v3473
        %v3598 = vadd.f32 %v3236, %v3478
        %v3599 = vadd.f32 %v3239, %v3481
        %v3600 = vadd.f32 %v3244, %v3486
        %v3601 = vadd.f32 %v3247, %v3489
        %v3602 = vadd.f32 %v3252, %v3494
        %v3603 = vadd.f32 %v3255, %v3497
        %v3604 = vadd.f32 %v3260, %v3502
        %v3605 = vadd.f32 %v3263, %v3505
        %v3606 = vadd.f32 %v3268, %v3510
        %v3607 = vadd.f32 %v3271, %v3513
        %v3608 = vadd.f32 %v3276, %v3518
        %v3609 = vadd.f32 %v3279, %v3521
        %v3610 = vadd.f32 %v3284, %v3526
        %v3611 = vadd.f32 %v3287, %v3529
        %v3612 = vadd.f32 %v3292, %v3534
        %v3613 = vadd.f32 %v3295, %v3537
        %v3614 = vadd.f32 %v3300, %v3542
        %v3615 = vadd.f32 %v3303, %v3545
        %v3616 = vadd.f32 %v3308, %v3550
        %v3617 = vadd.f32 %v3311, %v3553
        %v3618 = vadd.f32 %v3316, %v3558
        %v3619 = vadd.f32 %v3319, %v3561
        %v3620 = vadd.f32 %v3324, %v3566
        %v3621 = vadd.f32 %v3327, %v3569
        %v3622 = vadd.f32 %v3332, %v3574
        %v3623 = vadd.f32 %v3335, %v3577
        %v3624 = vadd.f32 %v3340, %v3582
        %v3625 = vadd.f32 %v3343, %v3585
        %v3626 = vadd.f32 %v3348, %v3590
        %v3627 = vadd.f32 %v3351, %v3593
        %v3628 = vld [vmem:[%s21] sm:$0x1]
        %v3630 = vlaneseq
        %v3631 = vshrl.u32 %v3630, 7
        %v3632 = vsub.s32 0, %v3631
        %v3633 = vrot.slane %v3628, %v3632
        %v3635 = vadd.f32 %v3596, %v3633
        %v3636 = vadd.f32 %v3597, %v3633
        %v3637 = vadd.f32 %v3598, %v3633
        %v3638 = vadd.f32 %v3599, %v3633
        %v3639 = vadd.f32 %v3600, %v3633
        %v3640 = vadd.f32 %v3601, %v3633
        %v3641 = vadd.f32 %v3602, %v3633
        %v3642 = vadd.f32 %v3603, %v3633
        %v3643 = vadd.f32 %v3604, %v3633
        %v3644 = vadd.f32 %v3605, %v3633
        %v3645 = vadd.f32 %v3606, %v3633
        %v3646 = vadd.f32 %v3607, %v3633
        %v3647 = vadd.f32 %v3608, %v3633
        %v3648 = vadd.f32 %v3609, %v3633
        %v3649 = vadd.f32 %v3610, %v3633
        %v3650 = vadd.f32 %v3611, %v3633
        %v3651 = vadd.f32 %v3612, %v3633
        %v3652 = vadd.f32 %v3613, %v3633
        %v3653 = vadd.f32 %v3614, %v3633
        %v3654 = vadd.f32 %v3615, %v3633
        %v3655 = vadd.f32 %v3616, %v3633
        %v3656 = vadd.f32 %v3617, %v3633
        %v3657 = vadd.f32 %v3618, %v3633
        %v3658 = vadd.f32 %v3619, %v3633
        %v3659 = vadd.f32 %v3620, %v3633
        %v3660 = vadd.f32 %v3621, %v3633
        %v3661 = vadd.f32 %v3622, %v3633
        %v3662 = vadd.f32 %v3623, %v3633
        %v3663 = vadd.f32 %v3624, %v3633
        %v3664 = vadd.f32 %v3625, %v3633
        %v3665 = vadd.f32 %v3626, %v3633
        %v3666 = vadd.f32 %v3627, %v3633
        %v3667 = vld [vmem:[%s5] sm:$0xff]
        %v3668 = vld [vmem:[%s5 + $0x8] sm:$0xff]
        %v3669 = vld [vmem:[%s5 + $0x10] sm:$0xff]
        %v3670 = vld [vmem:[%s5 + $0x18] sm:$0xff]
        %v3671 = vld [vmem:[%s5 + $0x20] sm:$0xff]
        %v3672 = vld [vmem:[%s5 + $0x28] sm:$0xff]
        %v3673 = vld [vmem:[%s5 + $0x30] sm:$0xff]
        %v3674 = vld [vmem:[%s5 + $0x38] sm:$0xff]
        %v3675 = vpack.c.bf16 %v3636, %v3635
        %v3676 = vpack.c.bf16 %v3638, %v3637
        %v3677 = vpack.c.bf16 %v3640, %v3639
        %v3678 = vpack.c.bf16 %v3642, %v3641
        %v3679 = vpack.c.bf16 %v3644, %v3643
        %v3680 = vpack.c.bf16 %v3646, %v3645
        %v3681 = vpack.c.bf16 %v3648, %v3647
        %v3682 = vpack.c.bf16 %v3650, %v3649
        %v3683 = vpack.c.bf16 %v3652, %v3651
        %v3684 = vpack.c.bf16 %v3654, %v3653
        %v3685 = vpack.c.bf16 %v3656, %v3655
        %v3686 = vpack.c.bf16 %v3658, %v3657
        %v3687 = vpack.c.bf16 %v3660, %v3659
        %v3688 = vpack.c.bf16 %v3662, %v3661
        %v3689 = vpack.c.bf16 %v3664, %v3663
        %v3690 = vpack.c.bf16 %v3666, %v3665
        %v3699 = vunpack.c.l.b16 %v3667
        %v3700 = vunpack.c.h.b16 %v3667
        %v3701 = vunpack.c.l.b16 %v3668
        %v3702 = vunpack.c.h.b16 %v3668
        %v3703 = vunpack.c.l.b16 %v3669
        %v3704 = vunpack.c.h.b16 %v3669
        %v3705 = vunpack.c.l.b16 %v3670
        %v3706 = vunpack.c.h.b16 %v3670
        %v3707 = vunpack.c.l.b16 %v3671
        %v3708 = vunpack.c.h.b16 %v3671
        %v3709 = vunpack.c.l.b16 %v3672
        %v3710 = vunpack.c.h.b16 %v3672
        %v3711 = vunpack.c.l.b16 %v3673
        %v3712 = vunpack.c.h.b16 %v3673
        %v3713 = vunpack.c.l.b16 %v3674
        %v3714 = vunpack.c.h.b16 %v3674
        %v3715 = vpack.c.b16 %v3701, %v3699
        %v3716 = vpack.c.b16 %v3702, %v3700
        %v3717 = vpack.c.b16 %v3705, %v3703
        %v3718 = vpack.c.b16 %v3706, %v3704
        %v3719 = vpack.c.b16 %v3709, %v3707
        %v3720 = vpack.c.b16 %v3710, %v3708
        %v3721 = vpack.c.b16 %v3713, %v3711
        %v3722 = vpack.c.b16 %v3714, %v3712
        %3731 = vmatprep.subr.bf16.mxu0 0
        %3732 = vmatpush1.bf16.msra.mxu0 %v1135
        %3733 = vmatprep.subr.bf16.mxu0 0
        %3734 = vmatpush1.bf16.msra.mxu0 %v1136
        %3735 = vmatprep.subr.bf16.mxu0 0
        %3736 = vmatpush1.bf16.msra.mxu0 %v1137
        %3737 = vmatprep.subr.bf16.mxu0 0
        %3738 = vmatpush1.bf16.msra.mxu0 %v1138
        %3739 = vmatprep.subr.bf16.mxu0 0
        %3740 = vmatpush1.bf16.msra.mxu0 %v1139
        %3741 = vmatprep.subr.bf16.mxu0 0
        %3742 = vmatpush1.bf16.msra.mxu0 %v1140
        %3743 = vmatprep.subr.bf16.mxu0 0
        %3744 = vmatpush1.bf16.msra.mxu0 %v1141
        %3745 = vmatprep.subr.bf16.mxu0 0
        %3746 = vmatpush1.bf16.msra.mxu0 %v1142
        %3747 = vmatprep.subr.bf16.mxu0 0
        %3748 = vmatpush1.bf16.msra.mxu0 %v1143
        %3749 = vmatprep.subr.bf16.mxu0 0
        %3750 = vmatpush1.bf16.msra.mxu0 %v1144
        %3751 = vmatprep.subr.bf16.mxu0 0
        %3752 = vmatpush1.bf16.msra.mxu0 %v1145
        %3753 = vmatprep.subr.bf16.mxu0 0
        %3754 = vmatpush1.bf16.msra.mxu0 %v1146
        %3755 = vmatprep.subr.bf16.mxu0 0
        %3756 = vmatpush1.bf16.msra.mxu0 %v1147
        %3757 = vmatprep.subr.bf16.mxu0 0
        %3758 = vmatpush1.bf16.msra.mxu0 %v1148
        %3759 = vmatprep.subr.bf16.mxu0 0
        %3760 = vmatpush1.bf16.msra.mxu0 %v1149
        %3761 = vmatprep.subr.bf16.mxu0 0
        %3762 = vmatpush1.bf16.msra.mxu0 %v1150
        %3763 = vmatprep.mubr.bf16.mxu0 %v3716
        %3764 = vmatmul.mubr.bf16.gmra.mrb[0].mxu0 %v3715
        %v3765 = vpop.f32.mrb[0].mxu0
        %v3766 = vadd.f32 0.0, %v3765
        %v3767 = vpop.f32.mrb[0].mxu0
        %v3768 = vpop.f32.mrb[0].mxu0
        %v3769 = vadd.f32 0.0, %v3768
        %v3770 = vpop.f32.mrb[0].mxu0
        %3771 = vmatprep.mubr.bf16.mxu0 %v3718
        %3772 = vmatmul.mubr.bf16.gmra.mrb[0].mxu0 %v3717
        %v3773 = vpop.f32.mrb[0].mxu0
        %v3774 = vadd.f32 0.0, %v3773
        %v3775 = vpop.f32.mrb[0].mxu0
        %v3776 = vpop.f32.mrb[0].mxu0
        %v3777 = vadd.f32 0.0, %v3776
        %v3778 = vpop.f32.mrb[0].mxu0
        %3779 = vmatprep.mubr.bf16.mxu0 %v3720
        %3780 = vmatmul.mubr.bf16.gmra.mrb[0].mxu0 %v3719
        %v3781 = vpop.f32.mrb[0].mxu0
        %v3782 = vadd.f32 0.0, %v3781
        %v3783 = vpop.f32.mrb[0].mxu0
        %v3784 = vpop.f32.mrb[0].mxu0
        %v3785 = vadd.f32 0.0, %v3784
        %v3786 = vpop.f32.mrb[0].mxu0
        %3787 = vmatprep.mubr.bf16.mxu0 %v3722
        %3788 = vmatmul.mubr.bf16.gmra.mrb[0].mxu0 %v3721
        %v3789 = vpop.f32.mrb[0].mxu0
        %v3790 = vadd.f32 0.0, %v3789
        %v3791 = vpop.f32.mrb[0].mxu0
        %v3792 = vpop.f32.mrb[0].mxu0
        %v3793 = vadd.f32 0.0, %v3792
        %v3794 = vpop.f32.mrb[0].mxu0
        %3795 = vdwg.mxu0
        %v3796 = vpack.c.bf16 %v3769, %v3766
        %v3797 = vpack.c.bf16 %v3777, %v3774
        %v3798 = vpack.c.bf16 %v3785, %v3782
        %v3799 = vpack.c.bf16 %v3793, %v3790
        %v3800 = vld [vmem:[%s11] sm:$0xf]
        %v3801 = vld [vmem:[%s11 + $0x4] sm:$0xf]
        %v3802 = vld [vmem:[%s11 + $0x8] sm:$0xf]
        %v3803 = vld [vmem:[%s11 + $0xc] sm:$0xf]
        %v3804 = vld [vmem:[%s11 + $0x10] sm:$0xf]
        %v3805 = vld [vmem:[%s11 + $0x14] sm:$0xf]
        %v3806 = vld [vmem:[%s11 + $0x18] sm:$0xf]
        %v3807 = vld [vmem:[%s11 + $0x1c] sm:$0xf]
        %v3808 = vld [vmem:[%s11 + $0x20] sm:$0xf]
        %v3809 = vld [vmem:[%s11 + $0x24] sm:$0xf]
        %v3810 = vld [vmem:[%s11 + $0x28] sm:$0xf]
        %v3811 = vld [vmem:[%s11 + $0x2c] sm:$0xf]
        %v3812 = vld [vmem:[%s11 + $0x30] sm:$0xf]
        %v3813 = vld [vmem:[%s11 + $0x34] sm:$0xf]
        %v3814 = vld [vmem:[%s11 + $0x38] sm:$0xf]
        %v3815 = vld [vmem:[%s11 + $0x3c] sm:$0xf]
        %v3816 = vld [vmem:[%s13] sm:$0x1]
        %v3818 = vlaneseq
        %v3819 = vshrl.u32 %v3818, 7
        %v3820 = vsub.s32 0, %v3819
        %v3821 = vrot.slane %v3816, %v3820
        %v3839 = vunpack.c.l.b16 %v3800
        %v3840 = vunpack.c.l.b16 %v3801
        %v3841 = vunpack.c.l.b16 %v3802
        %v3842 = vunpack.c.l.b16 %v3803
        %v3843 = vunpack.c.l.b16 %v3804
        %v3844 = vunpack.c.l.b16 %v3805
        %v3845 = vunpack.c.l.b16 %v3806
        %v3846 = vunpack.c.l.b16 %v3807
        %v3847 = vunpack.c.l.b16 %v3808
        %v3848 = vunpack.c.l.b16 %v3809
        %v3849 = vunpack.c.l.b16 %v3810
        %v3850 = vunpack.c.l.b16 %v3811
        %v3851 = vunpack.c.l.b16 %v3812
        %v3852 = vunpack.c.l.b16 %v3813
        %v3853 = vunpack.c.l.b16 %v3814
        %v3854 = vunpack.c.l.b16 %v3815
        %v3855 = vpack.c.b16 %v3840, %v3839
        %v3856 = vpack.c.b16 %v3842, %v3841
        %v3857 = vpack.c.b16 %v3844, %v3843
        %v3858 = vpack.c.b16 %v3846, %v3845
        %v3859 = vpack.c.b16 %v3848, %v3847
        %v3860 = vpack.c.b16 %v3850, %v3849
        %v3861 = vpack.c.b16 %v3852, %v3851
        %v3862 = vpack.c.b16 %v3854, %v3853
        %3871 = vmatprep.subr.bf16.mxu0 0
        %3872 = vmatpush1.bf16.msra.mxu0 %v3855
        %3873 = vmatprep.subr.bf16.mxu0 0
        %3874 = vmatpush1.bf16.msra.mxu0 %v3856
        %3875 = vmatprep.subr.bf16.mxu0 0
        %3876 = vmatpush1.bf16.msra.mxu0 %v3857
        %3877 = vmatprep.subr.bf16.mxu0 0
        %3878 = vmatpush1.bf16.msra.mxu0 %v3858
        %3879 = vmatprep.subr.bf16.mxu0 0
        %3880 = vmatpush1.bf16.msra.mxu0 %v3859
        %3881 = vmatprep.subr.bf16.mxu0 0
        %3882 = vmatpush1.bf16.msra.mxu0 %v3860
        %3883 = vmatprep.subr.bf16.mxu0 0
        %3884 = vmatpush1.bf16.msra.mxu0 %v3861
        %3885 = vmatprep.subr.bf16.mxu0 0
        %3886 = vmatpush1.bf16.msra.mxu0 %v3862
        %3887 = vmatprep.subr.bf16.mxu0 0
        %3888 = vmatpush1.bf16.msra.mxu0 0
        %3889 = vmatprep.subr.bf16.mxu0 0
        %3890 = vmatpush1.bf16.msra.mxu0 0
        %3891 = vmatprep.subr.bf16.mxu0 0
        %3892 = vmatpush1.bf16.msra.mxu0 0
        %3893 = vmatprep.subr.bf16.mxu0 0
        %3894 = vmatpush1.bf16.msra.mxu0 0
        %3895 = vmatprep.subr.bf16.mxu0 0
        %3896 = vmatpush1.bf16.msra.mxu0 0
        %3897 = vmatprep.subr.bf16.mxu0 0
        %3898 = vmatpush1.bf16.msra.mxu0 0
        %3899 = vmatprep.subr.bf16.mxu0 0
        %3900 = vmatpush1.bf16.msra.mxu0 0
        %3901 = vmatprep.subr.bf16.mxu0 0
        %3902 = vmatpush1.bf16.msra.mxu0 0
        %3903 = vmatprep.mubr.bf16.mxu0 0
        %3904 = vmatmul.mubr.bf16.gmra.mrb[0].mxu0 %v3796
        %v3905 = vpop.f32.mrb[0].mxu0
        %v3906 = vadd.f32 %v3821, %v3905
        %v3907 = vpop.f32.mrb[0].mxu0
        %v3908 = vpop.f32.mrb[0].mxu0
        %v3909 = vadd.f32 %v3821, %v3908
        %v3910 = vpop.f32.mrb[0].mxu0
        %3911 = vmatprep.mubr.bf16.mxu0 0
        %3912 = vmatmul.mubr.bf16.gmra.mrb[0].mxu0 %v3797
        %v3913 = vpop.f32.mrb[0].mxu0
        %v3914 = vadd.f32 %v3821, %v3913
        %v3915 = vpop.f32.mrb[0].mxu0
        %v3916 = vpop.f32.mrb[0].mxu0
        %v3917 = vadd.f32 %v3821, %v3916
        %v3918 = vpop.f32.mrb[0].mxu0
        %3919 = vmatprep.mubr.bf16.mxu0 0
        %3920 = vmatmul.mubr.bf16.gmra.mrb[0].mxu0 %v3798
        %v3921 = vpop.f32.mrb[0].mxu0
        %v3922 = vadd.f32 %v3821, %v3921
        %v3923 = vpop.f32.mrb[0].mxu0
        %v3924 = vpop.f32.mrb[0].mxu0
        %v3925 = vadd.f32 %v3821, %v3924
        %v3926 = vpop.f32.mrb[0].mxu0
        %3927 = vmatprep.mubr.bf16.mxu0 0
        %3928 = vmatmul.mubr.bf16.gmra.mrb[0].mxu0 %v3799
        %v3929 = vpop.f32.mrb[0].mxu0
        %v3930 = vadd.f32 %v3821, %v3929
        %v3931 = vpop.f32.mrb[0].mxu0
        %v3932 = vpop.f32.mrb[0].mxu0
        %v3933 = vadd.f32 %v3821, %v3932
        %v3934 = vpop.f32.mrb[0].mxu0
        %3935 = vdwg.mxu0
        %3936 = vmatprep.subr.bf16.mxu0 0
        %3937 = vmatpush1.bf16.msra.mxu0 %v3675
        %3938 = vmatprep.subr.bf16.mxu0 0
        %3939 = vmatpush1.bf16.msra.mxu0 %v3676
        %3940 = vmatprep.subr.bf16.mxu0 0
        %3941 = vmatpush1.bf16.msra.mxu0 %v3677
        %3942 = vmatprep.subr.bf16.mxu0 0
        %3943 = vmatpush1.bf16.msra.mxu0 %v3678
        %3944 = vmatprep.subr.bf16.mxu0 0
        %3945 = vmatpush1.bf16.msra.mxu0 %v3679
        %3946 = vmatprep.subr.bf16.mxu0 0
        %3947 = vmatpush1.bf16.msra.mxu0 %v3680
        %3948 = vmatprep.subr.bf16.mxu0 0
        %3949 = vmatpush1.bf16.msra.mxu0 %v3681
        %3950 = vmatprep.subr.bf16.mxu0 0
        %3951 = vmatpush1.bf16.msra.mxu0 %v3682
        %3952 = vmatprep.subr.bf16.mxu0 0
        %3953 = vmatpush1.bf16.msra.mxu0 %v3683
        %3954 = vmatprep.subr.bf16.mxu0 0
        %3955 = vmatpush1.bf16.msra.mxu0 %v3684
        %3956 = vmatprep.subr.bf16.mxu0 0
        %3957 = vmatpush1.bf16.msra.mxu0 %v3685
        %3958 = vmatprep.subr.bf16.mxu0 0
        %3959 = vmatpush1.bf16.msra.mxu0 %v3686
        %3960 = vmatprep.subr.bf16.mxu0 0
        %3961 = vmatpush1.bf16.msra.mxu0 %v3687
        %3962 = vmatprep.subr.bf16.mxu0 0
        %3963 = vmatpush1.bf16.msra.mxu0 %v3688
        %3964 = vmatprep.subr.bf16.mxu0 0
        %3965 = vmatpush1.bf16.msra.mxu0 %v3689
        %3966 = vmatprep.subr.bf16.mxu0 0
        %3967 = vmatpush1.bf16.msra.mxu0 %v3690
        %3968 = vmatprep.mubr.bf16.mxu0 %v3716
        %3969 = vmatmul.mubr.bf16.gmra.mrb[0].mxu0 %v3715
        %v3970 = vpop.f32.mrb[0].mxu0
        %v3971 = vadd.f32 %v3906, %v3970
        %v3972 = vpop.f32.mrb[0].mxu0
        %v3973 = vpop.f32.mrb[0].mxu0
        %v3974 = vadd.f32 %v3909, %v3973
        %v3975 = vpop.f32.mrb[0].mxu0
        %3976 = vmatprep.mubr.bf16.mxu0 %v3718
        %3977 = vmatmul.mubr.bf16.gmra.mrb[0].mxu0 %v3717
        %v3978 = vpop.f32.mrb[0].mxu0
        %v3979 = vadd.f32 %v3914, %v3978
        %v3980 = vpop.f32.mrb[0].mxu0
        %v3981 = vpop.f32.mrb[0].mxu0
        %v3982 = vadd.f32 %v3917, %v3981
        %v3983 = vpop.f32.mrb[0].mxu0
        %3984 = vmatprep.mubr.bf16.mxu0 %v3720
        %3985 = vmatmul.mubr.bf16.gmra.mrb[0].mxu0 %v3719
        %v3986 = vpop.f32.mrb[0].mxu0
        %v3987 = vadd.f32 %v3922, %v3986
        %v3988 = vpop.f32.mrb[0].mxu0
        %v3989 = vpop.f32.mrb[0].mxu0
        %v3990 = vadd.f32 %v3925, %v3989
        %v3991 = vpop.f32.mrb[0].mxu0
        %3992 = vmatprep.mubr.bf16.mxu0 %v3722
        %3993 = vmatmul.mubr.bf16.gmra.mrb[0].mxu0 %v3721
        %v3994 = vpop.f32.mrb[0].mxu0
        %v3995 = vadd.f32 %v3930, %v3994
        %v3996 = vpop.f32.mrb[0].mxu0
        %v3997 = vpop.f32.mrb[0].mxu0
        %v3998 = vadd.f32 %v3933, %v3997
        %v3999 = vpop.f32.mrb[0].mxu0
        %4000 = vdwg.mxu0
        %v4001 = vpack.c.bf16 %v3974, %v3971
        %v4002 = vpack.c.bf16 %v3982, %v3979
        %v4003 = vpack.c.bf16 %v3990, %v3987
        %v4004 = vpack.c.bf16 %v3998, %v3995
        %v4005 = vld [vmem:[%s23] sm:$0xf]
        %v4006 = vld [vmem:[%s23 + $0x4] sm:$0xf]
        %v4007 = vld [vmem:[%s23 + $0x8] sm:$0xf]
        %v4008 = vld [vmem:[%s23 + $0xc] sm:$0xf]
        %v4009 = vld [vmem:[%s23 + $0x10] sm:$0xf]
        %v4010 = vld [vmem:[%s23 + $0x14] sm:$0xf]
        %v4011 = vld [vmem:[%s23 + $0x18] sm:$0xf]
        %v4012 = vld [vmem:[%s23 + $0x1c] sm:$0xf]
        %v4013 = vld [vmem:[%s23 + $0x20] sm:$0xf]
        %v4014 = vld [vmem:[%s23 + $0x24] sm:$0xf]
        %v4015 = vld [vmem:[%s23 + $0x28] sm:$0xf]
        %v4016 = vld [vmem:[%s23 + $0x2c] sm:$0xf]
        %v4017 = vld [vmem:[%s23 + $0x30] sm:$0xf]
        %v4018 = vld [vmem:[%s23 + $0x34] sm:$0xf]
        %v4019 = vld [vmem:[%s23 + $0x38] sm:$0xf]
        %v4020 = vld [vmem:[%s23 + $0x3c] sm:$0xf]
        %v4037 = vunpack.c.l.b16 %v4005
        %v4038 = vunpack.c.l.b16 %v4006
        %v4039 = vunpack.c.l.b16 %v4007
        %v4040 = vunpack.c.l.b16 %v4008
        %v4041 = vunpack.c.l.b16 %v4009
        %v4042 = vunpack.c.l.b16 %v4010
        %v4043 = vunpack.c.l.b16 %v4011
        %v4044 = vunpack.c.l.b16 %v4012
        %v4045 = vunpack.c.l.b16 %v4013
        %v4046 = vunpack.c.l.b16 %v4014
        %v4047 = vunpack.c.l.b16 %v4015
        %v4048 = vunpack.c.l.b16 %v4016
        %v4049 = vunpack.c.l.b16 %v4017
        %v4050 = vunpack.c.l.b16 %v4018
        %v4051 = vunpack.c.l.b16 %v4019
        %v4052 = vunpack.c.l.b16 %v4020
        %v4053 = vpack.c.b16 %v4038, %v4037
        %v4054 = vpack.c.b16 %v4040, %v4039
        %v4055 = vpack.c.b16 %v4042, %v4041
        %v4056 = vpack.c.b16 %v4044, %v4043
        %v4057 = vpack.c.b16 %v4046, %v4045
        %v4058 = vpack.c.b16 %v4048, %v4047
        %v4059 = vpack.c.b16 %v4050, %v4049
        %v4060 = vpack.c.b16 %v4052, %v4051
        %4069 = vmatprep.subr.bf16.mxu0 0
        %4070 = vmatpush1.bf16.msra.mxu0 %v4053
        %4071 = vmatprep.subr.bf16.mxu0 0
        %4072 = vmatpush1.bf16.msra.mxu0 %v4054
        %4073 = vmatprep.subr.bf16.mxu0 0
        %4074 = vmatpush1.bf16.msra.mxu0 %v4055
        %4075 = vmatprep.subr.bf16.mxu0 0
        %4076 = vmatpush1.bf16.msra.mxu0 %v4056
        %4077 = vmatprep.subr.bf16.mxu0 0
        %4078 = vmatpush1.bf16.msra.mxu0 %v4057
        %4079 = vmatprep.subr.bf16.mxu0 0
        %4080 = vmatpush1.bf16.msra.mxu0 %v4058
        %4081 = vmatprep.subr.bf16.mxu0 0
        %4082 = vmatpush1.bf16.msra.mxu0 %v4059
        %4083 = vmatprep.subr.bf16.mxu0 0
        %4084 = vmatpush1.bf16.msra.mxu0 %v4060
        %4085 = vmatprep.subr.bf16.mxu0 0
        %4086 = vmatpush1.bf16.msra.mxu0 0
        %4087 = vmatprep.subr.bf16.mxu0 0
        %4088 = vmatpush1.bf16.msra.mxu0 0
        %4089 = vmatprep.subr.bf16.mxu0 0
        %4090 = vmatpush1.bf16.msra.mxu0 0
        %4091 = vmatprep.subr.bf16.mxu0 0
        %4092 = vmatpush1.bf16.msra.mxu0 0
        %4093 = vmatprep.subr.bf16.mxu0 0
        %4094 = vmatpush1.bf16.msra.mxu0 0
        %4095 = vmatprep.subr.bf16.mxu0 0
        %4096 = vmatpush1.bf16.msra.mxu0 0
        %4097 = vmatprep.subr.bf16.mxu0 0
        %4098 = vmatpush1.bf16.msra.mxu0 0
        %4099 = vmatprep.subr.bf16.mxu0 0
        %4100 = vmatpush1.bf16.msra.mxu0 0
        %4101 = vmatprep.mubr.bf16.mxu0 0
        %4102 = vmatmul.mubr.bf16.gmra.mrb[0].mxu0 %v4001
        %v4103 = vpop.f32.mrb[0].mxu0
        %v4104 = vadd.f32 0.0, %v4103
        %v4105 = vpop.f32.mrb[0].mxu0
        %v4106 = vpop.f32.mrb[0].mxu0
        %v4107 = vadd.f32 0.0, %v4106
        %v4108 = vpop.f32.mrb[0].mxu0
        %4109 = vmatprep.mubr.bf16.mxu0 0
        %4110 = vmatmul.mubr.bf16.gmra.mrb[0].mxu0 %v4002
        %v4111 = vpop.f32.mrb[0].mxu0
        %v4112 = vadd.f32 0.0, %v4111
        %v4113 = vpop.f32.mrb[0].mxu0
        %v4114 = vpop.f32.mrb[0].mxu0
        %v4115 = vadd.f32 0.0, %v4114
        %v4116 = vpop.f32.mrb[0].mxu0
        %4117 = vmatprep.mubr.bf16.mxu0 0
        %4118 = vmatmul.mubr.bf16.gmra.mrb[0].mxu0 %v4003
        %v4119 = vpop.f32.mrb[0].mxu0
        %v4120 = vadd.f32 0.0, %v4119
        %v4121 = vpop.f32.mrb[0].mxu0
        %v4122 = vpop.f32.mrb[0].mxu0
        %v4123 = vadd.f32 0.0, %v4122
        %v4124 = vpop.f32.mrb[0].mxu0
        %4125 = vmatprep.mubr.bf16.mxu0 0
        %4126 = vmatmul.mubr.bf16.gmra.mrb[0].mxu0 %v4004
        %v4127 = vpop.f32.mrb[0].mxu0
        %v4128 = vadd.f32 0.0, %v4127
        %v4129 = vpop.f32.mrb[0].mxu0
        %v4130 = vpop.f32.mrb[0].mxu0
        %v4131 = vadd.f32 0.0, %v4130
        %v4132 = vpop.f32.mrb[0].mxu0
        %4133 = vdwg.mxu0
        %v4134 = vld [vmem:[%s25] sm:$0xf]
        %v4135 = vld [vmem:[%s25 + $0x4] sm:$0xf]
        %v4136 = vld [vmem:[%s25 + $0x8] sm:$0xf]
        %v4137 = vld [vmem:[%s25 + $0xc] sm:$0xf]
        %v4138 = vld [vmem:[%s25 + $0x10] sm:$0xf]
        %v4139 = vld [vmem:[%s25 + $0x14] sm:$0xf]
        %v4140 = vld [vmem:[%s25 + $0x18] sm:$0xf]
        %v4141 = vld [vmem:[%s25 + $0x1c] sm:$0xf]
        %v4142 = vld [vmem:[%s25 + $0x20] sm:$0xf]
        %v4143 = vld [vmem:[%s25 + $0x24] sm:$0xf]
        %v4144 = vld [vmem:[%s25 + $0x28] sm:$0xf]
        %v4145 = vld [vmem:[%s25 + $0x2c] sm:$0xf]
        %v4146 = vld [vmem:[%s25 + $0x30] sm:$0xf]
        %v4147 = vld [vmem:[%s25 + $0x34] sm:$0xf]
        %v4148 = vld [vmem:[%s25 + $0x38] sm:$0xf]
        %v4149 = vld [vmem:[%s25 + $0x3c] sm:$0xf]
        %v4166 = vunpack.c.l.b16 %v4134
        %v4167 = vunpack.c.l.b16 %v4135
        %v4168 = vunpack.c.l.b16 %v4136
        %v4169 = vunpack.c.l.b16 %v4137
        %v4170 = vunpack.c.l.b16 %v4138
        %v4171 = vunpack.c.l.b16 %v4139
        %v4172 = vunpack.c.l.b16 %v4140
        %v4173 = vunpack.c.l.b16 %v4141
        %v4174 = vunpack.c.l.b16 %v4142
        %v4175 = vunpack.c.l.b16 %v4143
        %v4176 = vunpack.c.l.b16 %v4144
        %v4177 = vunpack.c.l.b16 %v4145
        %v4178 = vunpack.c.l.b16 %v4146
        %v4179 = vunpack.c.l.b16 %v4147
        %v4180 = vunpack.c.l.b16 %v4148
        %v4181 = vunpack.c.l.b16 %v4149
        %v4182 = vpack.c.b16 %v4167, %v4166
        %v4183 = vpack.c.b16 %v4169, %v4168
        %v4184 = vpack.c.b16 %v4171, %v4170
        %v4185 = vpack.c.b16 %v4173, %v4172
        %v4186 = vpack.c.b16 %v4175, %v4174
        %v4187 = vpack.c.b16 %v4177, %v4176
        %v4188 = vpack.c.b16 %v4179, %v4178
        %v4189 = vpack.c.b16 %v4181, %v4180
        %4198 = vmatprep.subr.bf16.mxu0 0
        %4199 = vmatpush1.bf16.msra.mxu0 %v4182
        %4200 = vmatprep.subr.bf16.mxu0 0
        %4201 = vmatpush1.bf16.msra.mxu0 %v4183
        %4202 = vmatprep.subr.bf16.mxu0 0
        %4203 = vmatpush1.bf16.msra.mxu0 %v4184
        %4204 = vmatprep.subr.bf16.mxu0 0
        %4205 = vmatpush1.bf16.msra.mxu0 %v4185
        %4206 = vmatprep.subr.bf16.mxu0 0
        %4207 = vmatpush1.bf16.msra.mxu0 %v4186
        %4208 = vmatprep.subr.bf16.mxu0 0
        %4209 = vmatpush1.bf16.msra.mxu0 %v4187
        %4210 = vmatprep.subr.bf16.mxu0 0
        %4211 = vmatpush1.bf16.msra.mxu0 %v4188
        %4212 = vmatprep.subr.bf16.mxu0 0
        %4213 = vmatpush1.bf16.msra.mxu0 %v4189
        %4214 = vmatprep.subr.bf16.mxu0 0
        %4215 = vmatpush1.bf16.msra.mxu0 0
        %4216 = vmatprep.subr.bf16.mxu0 0
        %4217 = vmatpush1.bf16.msra.mxu0 0
        %4218 = vmatprep.subr.bf16.mxu0 0
        %4219 = vmatpush1.bf16.msra.mxu0 0
        %4220 = vmatprep.subr.bf16.mxu0 0
        %4221 = vmatpush1.bf16.msra.mxu0 0
        %4222 = vmatprep.subr.bf16.mxu0 0
        %4223 = vmatpush1.bf16.msra.mxu0 0
        %4224 = vmatprep.subr.bf16.mxu0 0
        %4225 = vmatpush1.bf16.msra.mxu0 0
        %4226 = vmatprep.subr.bf16.mxu0 0
        %4227 = vmatpush1.bf16.msra.mxu0 0
        %4228 = vmatprep.subr.bf16.mxu0 0
        %4229 = vmatpush1.bf16.msra.mxu0 0
        %4230 = vmatprep.mubr.bf16.mxu0 0
        %4231 = vmatmul.mubr.bf16.gmra.mrb[0].mxu0 %v4001
        %v4232 = vpop.f32.mrb[0].mxu0
        %v4233 = vadd.f32 0.0, %v4232
        %v4234 = vpop.f32.mrb[0].mxu0
        %v4235 = vpop.f32.mrb[0].mxu0
        %v4236 = vadd.f32 0.0, %v4235
        %v4237 = vpop.f32.mrb[0].mxu0
        %4238 = vmatprep.mubr.bf16.mxu0 0
        %4239 = vmatmul.mubr.bf16.gmra.mrb[0].mxu0 %v4002
        %v4240 = vpop.f32.mrb[0].mxu0
        %v4241 = vadd.f32 0.0, %v4240
        %v4242 = vpop.f32.mrb[0].mxu0
        %v4243 = vpop.f32.mrb[0].mxu0
        %v4244 = vadd.f32 0.0, %v4243
        %v4245 = vpop.f32.mrb[0].mxu0
        %4246 = vmatprep.mubr.bf16.mxu0 0
        %4247 = vmatmul.mubr.bf16.gmra.mrb[0].mxu0 %v4003
        %v4248 = vpop.f32.mrb[0].mxu0
        %v4249 = vadd.f32 0.0, %v4248
        %v4250 = vpop.f32.mrb[0].mxu0
        %v4251 = vpop.f32.mrb[0].mxu0
        %v4252 = vadd.f32 0.0, %v4251
        %v4253 = vpop.f32.mrb[0].mxu0
        %4254 = vmatprep.mubr.bf16.mxu0 0
        %4255 = vmatmul.mubr.bf16.gmra.mrb[0].mxu0 %v4004
        %v4256 = vpop.f32.mrb[0].mxu0
        %v4257 = vadd.f32 0.0, %v4256
        %v4258 = vpop.f32.mrb[0].mxu0
        %v4259 = vpop.f32.mrb[0].mxu0
        %v4260 = vadd.f32 0.0, %v4259
        %v4261 = vpop.f32.mrb[0].mxu0
        %4262 = vdwg.mxu0
        %v4263 = vpack.c.bf16 %v4236, %v4233
        %v4264 = vpack.c.bf16 %v4244, %v4241
        %v4265 = vpack.c.bf16 %v4252, %v4249
        %v4266 = vpack.c.bf16 %v4260, %v4257
        %v4267 = vld [vmem:[%s9] sm:$0xf]
        %v4268 = vld [vmem:[%s9 + $0x4] sm:$0xf]
        %v4271 = vunpack.c.l.b16 %v4267
        %v4272 = vunpack.c.l.b16 %v4268
        %v4273 = vpack.c.b16 %v4272, %v4271
        %v4275 = vsel %vm1510, %v4273, 0
        %4277 = vmatprep.subr.bf16.mxu0 0
        %4278 = vmatpush1.bf16.msra.mxu0 %v4263
        %4279 = vmatprep.subr.bf16.mxu0 0
        %4280 = vmatpush1.bf16.msra.mxu0 %v4264
        %4281 = vmatprep.subr.bf16.mxu0 0
        %4282 = vmatpush1.bf16.msra.mxu0 %v4265
        %4283 = vmatprep.subr.bf16.mxu0 0
        %4284 = vmatpush1.bf16.msra.mxu0 %v4266
        %4285 = vmatprep.subr.bf16.mxu0 0
        %4286 = vmatpush1.bf16.msra.mxu0 0
        %4287 = vmatprep.subr.bf16.mxu0 0
        %4288 = vmatpush1.bf16.msra.mxu0 0
        %4289 = vmatprep.subr.bf16.mxu0 0
        %4290 = vmatpush1.bf16.msra.mxu0 0
        %4291 = vmatprep.subr.bf16.mxu0 0
        %4292 = vmatpush1.bf16.msra.mxu0 0
        %4293 = vmatprep.subr.bf16.mxu0 0
        %4294 = vmatpush1.bf16.msra.mxu0 0
        %4295 = vmatprep.subr.bf16.mxu0 0
        %4296 = vmatpush1.bf16.msra.mxu0 0
        %4297 = vmatprep.subr.bf16.mxu0 0
        %4298 = vmatpush1.bf16.msra.mxu0 0
        %4299 = vmatprep.subr.bf16.mxu0 0
        %4300 = vmatpush1.bf16.msra.mxu0 0
        %4301 = vmatprep.subr.bf16.mxu0 0
        %4302 = vmatpush1.bf16.msra.mxu0 0
        %4303 = vmatprep.subr.bf16.mxu0 0
        %4304 = vmatpush1.bf16.msra.mxu0 0
        %4305 = vmatprep.subr.bf16.mxu0 0
        %4306 = vmatpush1.bf16.msra.mxu0 0
        %4307 = vmatprep.subr.bf16.mxu0 0
        %4308 = vmatpush1.bf16.msra.mxu0 0
        %4309 = vmatprep.mubr.bf16.mxu0 0
        %4310 = vmatmul.mubr.bf16.gmra.mrb[0].mxu0 %v4275
        %v4311 = vpop.f32.mrb[0].mxu0
        %v4312 = vadd.f32 0.0, %v4311
        %v4313 = vpop.f32.mrb[0].mxu0
        %v4314 = vpop.f32.mrb[0].mxu0
        %v4315 = vadd.f32 0.0, %v4314
        %v4316 = vpop.f32.mrb[0].mxu0
        %4317 = vdwg.mxu0
        %s4318 = scalar_lea.vmem %s9, 8
        %v4319 = vld [vmem:[%s4318] sm:$0xf]
        %v4320 = vld [vmem:[%s4318 + $0x4] sm:$0xf]
        %v4323 = vunpack.c.l.b16 %v4319
        %v4324 = vunpack.c.l.b16 %v4320
        %v4325 = vpack.c.b16 %v4324, %v4323
        %v4327 = vsel %vm1510, %v4325, 0
        %4329 = vmatprep.subr.bf16.mxu0 0
        %4330 = vmatpush1.bf16.msra.mxu0 %v4263
        %4331 = vmatprep.subr.bf16.mxu0 0
        %4332 = vmatpush1.bf16.msra.mxu0 %v4264
        %4333 = vmatprep.subr.bf16.mxu0 0
        %4334 = vmatpush1.bf16.msra.mxu0 %v4265
        %4335 = vmatprep.subr.bf16.mxu0 0
        %4336 = vmatpush1.bf16.msra.mxu0 %v4266
        %4337 = vmatprep.subr.bf16.mxu0 0
        %4338 = vmatpush1.bf16.msra.mxu0 0
        %4339 = vmatprep.subr.bf16.mxu0 0
        %4340 = vmatpush1.bf16.msra.mxu0 0
        %4341 = vmatprep.subr.bf16.mxu0 0
        %4342 = vmatpush1.bf16.msra.mxu0 0
        %4343 = vmatprep.subr.bf16.mxu0 0
        %4344 = vmatpush1.bf16.msra.mxu0 0
        %4345 = vmatprep.subr.bf16.mxu0 0
        %4346 = vmatpush1.bf16.msra.mxu0 0
        %4347 = vmatprep.subr.bf16.mxu0 0
        %4348 = vmatpush1.bf16.msra.mxu0 0
        %4349 = vmatprep.subr.bf16.mxu0 0
        %4350 = vmatpush1.bf16.msra.mxu0 0
        %4351 = vmatprep.subr.bf16.mxu0 0
        %4352 = vmatpush1.bf16.msra.mxu0 0
        %4353 = vmatprep.subr.bf16.mxu0 0
        %4354 = vmatpush1.bf16.msra.mxu0 0
        %4355 = vmatprep.subr.bf16.mxu0 0
        %4356 = vmatpush1.bf16.msra.mxu0 0
        %4357 = vmatprep.subr.bf16.mxu0 0
        %4358 = vmatpush1.bf16.msra.mxu0 0
        %4359 = vmatprep.subr.bf16.mxu0 0
        %4360 = vmatpush1.bf16.msra.mxu0 0
        %4361 = vmatprep.mubr.bf16.mxu0 0
        %4362 = vmatmul.mubr.bf16.gmra.mrb[0].mxu0 %v4327
        %v4363 = vpop.f32.mrb[0].mxu0
        %v4364 = vadd.f32 0.0, %v4363
        %v4365 = vpop.f32.mrb[0].mxu0
        %v4366 = vpop.f32.mrb[0].mxu0
        %v4367 = vadd.f32 0.0, %v4366
        %v4368 = vpop.f32.mrb[0].mxu0
        %4369 = vdwg.mxu0
        %v4370 = vmax.f32 %v4312, %v4364
        %v4371 = vmax.f32 %v4315, %v4367
        %s4372 = scalar_lea.vmem %s9, 16
        %v4373 = vld [vmem:[%s4372] sm:$0xf]
        %v4374 = vld [vmem:[%s4372 + $0x4] sm:$0xf]
        %v4377 = vunpack.c.l.b16 %v4373
        %v4378 = vunpack.c.l.b16 %v4374
        %v4379 = vpack.c.b16 %v4378, %v4377
        %v4381 = vsel %vm1510, %v4379, 0
        %4383 = vmatprep.subr.bf16.mxu0 0
        %4384 = vmatpush1.bf16.msra.mxu0 %v4263
        %4385 = vmatprep.subr.bf16.mxu0 0
        %4386 = vmatpush1.bf16.msra.mxu0 %v4264
        %4387 = vmatprep.subr.bf16.mxu0 0
        %4388 = vmatpush1.bf16.msra.mxu0 %v4265
        %4389 = vmatprep.subr.bf16.mxu0 0
        %4390 = vmatpush1.bf16.msra.mxu0 %v4266
        %4391 = vmatprep.subr.bf16.mxu0 0
        %4392 = vmatpush1.bf16.msra.mxu0 0
        %4393 = vmatprep.subr.bf16.mxu0 0
        %4394 = vmatpush1.bf16.msra.mxu0 0
        %4395 = vmatprep.subr.bf16.mxu0 0
        %4396 = vmatpush1.bf16.msra.mxu0 0
        %4397 = vmatprep.subr.bf16.mxu0 0
        %4398 = vmatpush1.bf16.msra.mxu0 0
        %4399 = vmatprep.subr.bf16.mxu0 0
        %4400 = vmatpush1.bf16.msra.mxu0 0
        %4401 = vmatprep.subr.bf16.mxu0 0
        %4402 = vmatpush1.bf16.msra.mxu0 0
        %4403 = vmatprep.subr.bf16.mxu0 0
        %4404 = vmatpush1.bf16.msra.mxu0 0
        %4405 = vmatprep.subr.bf16.mxu0 0
        %4406 = vmatpush1.bf16.msra.mxu0 0
        %4407 = vmatprep.subr.bf16.mxu0 0
        %4408 = vmatpush1.bf16.msra.mxu0 0
        %4409 = vmatprep.subr.bf16.mxu0 0
        %4410 = vmatpush1.bf16.msra.mxu0 0
        %4411 = vmatprep.subr.bf16.mxu0 0
        %4412 = vmatpush1.bf16.msra.mxu0 0
        %4413 = vmatprep.subr.bf16.mxu0 0
        %4414 = vmatpush1.bf16.msra.mxu0 0
        %4415 = vmatprep.mubr.bf16.mxu0 0
        %4416 = vmatmul.mubr.bf16.gmra.mrb[0].mxu0 %v4381
        %v4417 = vpop.f32.mrb[0].mxu0
        %v4418 = vadd.f32 0.0, %v4417
        %v4419 = vpop.f32.mrb[0].mxu0
        %v4420 = vpop.f32.mrb[0].mxu0
        %v4421 = vadd.f32 0.0, %v4420
        %v4422 = vpop.f32.mrb[0].mxu0
        %4423 = vdwg.mxu0
        %v4424 = vmax.f32 %v4370, %v4418
        %v4425 = vmax.f32 %v4371, %v4421
        %s4426 = scalar_lea.vmem %s9, 24
        %v4427 = vld [vmem:[%s4426] sm:$0xf]
        %v4428 = vld [vmem:[%s4426 + $0x4] sm:$0xf]
        %v4431 = vunpack.c.l.b16 %v4427
        %v4432 = vunpack.c.l.b16 %v4428
        %v4433 = vpack.c.b16 %v4432, %v4431
        %v4435 = vsel %vm1510, %v4433, 0
        %4437 = vmatprep.subr.bf16.mxu0 0
        %4438 = vmatpush1.bf16.msra.mxu0 %v4263
        %4439 = vmatprep.subr.bf16.mxu0 0
        %4440 = vmatpush1.bf16.msra.mxu0 %v4264
        %4441 = vmatprep.subr.bf16.mxu0 0
        %4442 = vmatpush1.bf16.msra.mxu0 %v4265
        %4443 = vmatprep.subr.bf16.mxu0 0
        %4444 = vmatpush1.bf16.msra.mxu0 %v4266
        %4445 = vmatprep.subr.bf16.mxu0 0
        %4446 = vmatpush1.bf16.msra.mxu0 0
        %4447 = vmatprep.subr.bf16.mxu0 0
        %4448 = vmatpush1.bf16.msra.mxu0 0
        %4449 = vmatprep.subr.bf16.mxu0 0
        %4450 = vmatpush1.bf16.msra.mxu0 0
        %4451 = vmatprep.subr.bf16.mxu0 0
        %4452 = vmatpush1.bf16.msra.mxu0 0
        %4453 = vmatprep.subr.bf16.mxu0 0
        %4454 = vmatpush1.bf16.msra.mxu0 0
        %4455 = vmatprep.subr.bf16.mxu0 0
        %4456 = vmatpush1.bf16.msra.mxu0 0
        %4457 = vmatprep.subr.bf16.mxu0 0
        %4458 = vmatpush1.bf16.msra.mxu0 0
        %4459 = vmatprep.subr.bf16.mxu0 0
        %4460 = vmatpush1.bf16.msra.mxu0 0
        %4461 = vmatprep.subr.bf16.mxu0 0
        %4462 = vmatpush1.bf16.msra.mxu0 0
        %4463 = vmatprep.subr.bf16.mxu0 0
        %4464 = vmatpush1.bf16.msra.mxu0 0
        %4465 = vmatprep.subr.bf16.mxu0 0
        %4466 = vmatpush1.bf16.msra.mxu0 0
        %4467 = vmatprep.subr.bf16.mxu0 0
        %4468 = vmatpush1.bf16.msra.mxu0 0
        %4469 = vmatprep.mubr.bf16.mxu0 0
        %4470 = vmatmul.mubr.bf16.gmra.mrb[0].mxu0 %v4435
        %v4471 = vpop.f32.mrb[0].mxu0
        %v4472 = vadd.f32 0.0, %v4471
        %v4473 = vpop.f32.mrb[0].mxu0
        %v4474 = vpop.f32.mrb[0].mxu0
        %v4475 = vadd.f32 0.0, %v4474
        %v4476 = vpop.f32.mrb[0].mxu0
        %4477 = vdwg.mxu0
        %v4478 = vmax.f32 %v4424, %v4472
        %v4479 = vmax.f32 %v4425, %v4475
        %v4480 = vld [vmem:[%s27] sm:$0xf]
        %v4481 = vld [vmem:[%s27 + $0x4] sm:$0xf]
        %v4482 = vld [vmem:[%s27 + $0x8] sm:$0xf]
        %v4483 = vld [vmem:[%s27 + $0xc] sm:$0xf]
        %v4484 = vld [vmem:[%s27 + $0x10] sm:$0xf]
        %v4485 = vld [vmem:[%s27 + $0x14] sm:$0xf]
        %v4486 = vld [vmem:[%s27 + $0x18] sm:$0xf]
        %v4487 = vld [vmem:[%s27 + $0x1c] sm:$0xf]
        %v4488 = vld [vmem:[%s27 + $0x20] sm:$0xf]
        %v4489 = vld [vmem:[%s27 + $0x24] sm:$0xf]
        %v4490 = vld [vmem:[%s27 + $0x28] sm:$0xf]
        %v4491 = vld [vmem:[%s27 + $0x2c] sm:$0xf]
        %v4492 = vld [vmem:[%s27 + $0x30] sm:$0xf]
        %v4493 = vld [vmem:[%s27 + $0x34] sm:$0xf]
        %v4494 = vld [vmem:[%s27 + $0x38] sm:$0xf]
        %v4495 = vld [vmem:[%s27 + $0x3c] sm:$0xf]
        %v4512 = vunpack.c.l.b16 %v4480
        %v4513 = vunpack.c.l.b16 %v4481
        %v4514 = vunpack.c.l.b16 %v4482
        %v4515 = vunpack.c.l.b16 %v4483
        %v4516 = vunpack.c.l.b16 %v4484
        %v4517 = vunpack.c.l.b16 %v4485
        %v4518 = vunpack.c.l.b16 %v4486
        %v4519 = vunpack.c.l.b16 %v4487
        %v4520 = vunpack.c.l.b16 %v4488
        %v4521 = vunpack.c.l.b16 %v4489
        %v4522 = vunpack.c.l.b16 %v4490
        %v4523 = vunpack.c.l.b16 %v4491
        %v4524 = vunpack.c.l.b16 %v4492
        %v4525 = vunpack.c.l.b16 %v4493
        %v4526 = vunpack.c.l.b16 %v4494
        %v4527 = vunpack.c.l.b16 %v4495
        %v4528 = vpack.c.b16 %v4513, %v4512
        %v4529 = vpack.c.b16 %v4515, %v4514
        %v4530 = vpack.c.b16 %v4517, %v4516
        %v4531 = vpack.c.b16 %v4519, %v4518
        %v4532 = vpack.c.b16 %v4521, %v4520
        %v4533 = vpack.c.b16 %v4523, %v4522
        %v4534 = vpack.c.b16 %v4525, %v4524
        %v4535 = vpack.c.b16 %v4527, %v4526
        %4544 = vmatprep.subr.bf16.mxu0 0
        %4545 = vmatpush1.bf16.msra.mxu0 %v4528
        %4546 = vmatprep.subr.bf16.mxu0 0
        %4547 = vmatpush1.bf16.msra.mxu0 %v4529
        %4548 = vmatprep.subr.bf16.mxu0 0
        %4549 = vmatpush1.bf16.msra.mxu0 %v4530
        %4550 = vmatprep.subr.bf16.mxu0 0
        %4551 = vmatpush1.bf16.msra.mxu0 %v4531
        %4552 = vmatprep.subr.bf16.mxu0 0
        %4553 = vmatpush1.bf16.msra.mxu0 %v4532
        %4554 = vmatprep.subr.bf16.mxu0 0
        %4555 = vmatpush1.bf16.msra.mxu0 %v4533
        %4556 = vmatprep.subr.bf16.mxu0 0
        %4557 = vmatpush1.bf16.msra.mxu0 %v4534
        %4558 = vmatprep.subr.bf16.mxu0 0
        %4559 = vmatpush1.bf16.msra.mxu0 %v4535
        %4560 = vmatprep.subr.bf16.mxu0 0
        %4561 = vmatpush1.bf16.msra.mxu0 0
        %4562 = vmatprep.subr.bf16.mxu0 0
        %4563 = vmatpush1.bf16.msra.mxu0 0
        %4564 = vmatprep.subr.bf16.mxu0 0
        %4565 = vmatpush1.bf16.msra.mxu0 0
        %4566 = vmatprep.subr.bf16.mxu0 0
        %4567 = vmatpush1.bf16.msra.mxu0 0
        %4568 = vmatprep.subr.bf16.mxu0 0
        %4569 = vmatpush1.bf16.msra.mxu0 0
        %4570 = vmatprep.subr.bf16.mxu0 0
        %4571 = vmatpush1.bf16.msra.mxu0 0
        %4572 = vmatprep.subr.bf16.mxu0 0
        %4573 = vmatpush1.bf16.msra.mxu0 0
        %4574 = vmatprep.subr.bf16.mxu0 0
        %4575 = vmatpush1.bf16.msra.mxu0 0
        %4576 = vmatprep.mubr.bf16.mxu0 0
        %4577 = vmatmul.mubr.bf16.gmra.mrb[0].mxu0 %v4001
        %v4578 = vpop.f32.mrb[0].mxu0
        %v4579 = vadd.f32 0.0, %v4578
        %v4580 = vpop.f32.mrb[0].mxu0
        %v4581 = vpop.f32.mrb[0].mxu0
        %v4582 = vadd.f32 0.0, %v4581
        %v4583 = vpop.f32.mrb[0].mxu0
        %4584 = vmatprep.mubr.bf16.mxu0 0
        %4585 = vmatmul.mubr.bf16.gmra.mrb[0].mxu0 %v4002
        %v4586 = vpop.f32.mrb[0].mxu0
        %v4587 = vadd.f32 0.0, %v4586
        %v4588 = vpop.f32.mrb[0].mxu0
        %v4589 = vpop.f32.mrb[0].mxu0
        %v4590 = vadd.f32 0.0, %v4589
        %v4591 = vpop.f32.mrb[0].mxu0
        %4592 = vmatprep.mubr.bf16.mxu0 0
        %4593 = vmatmul.mubr.bf16.gmra.mrb[0].mxu0 %v4003
        %v4594 = vpop.f32.mrb[0].mxu0
        %v4595 = vadd.f32 0.0, %v4594
        %v4596 = vpop.f32.mrb[0].mxu0
        %v4597 = vpop.f32.mrb[0].mxu0
        %v4598 = vadd.f32 0.0, %v4597
        %v4599 = vpop.f32.mrb[0].mxu0
        %4600 = vmatprep.mubr.bf16.mxu0 0
        %4601 = vmatmul.mubr.bf16.gmra.mrb[0].mxu0 %v4004
        %v4602 = vpop.f32.mrb[0].mxu0
        %v4603 = vadd.f32 0.0, %v4602
        %v4604 = vpop.f32.mrb[0].mxu0
        %v4605 = vpop.f32.mrb[0].mxu0
        %v4606 = vadd.f32 0.0, %v4605
        %v4607 = vpop.f32.mrb[0].mxu0
        %4608 = vdwg.mxu0
        %v4609 = vpack.c.bf16 %v4582, %v4579
        %v4610 = vpack.c.bf16 %v4590, %v4587
        %v4611 = vpack.c.bf16 %v4598, %v4595
        %v4612 = vpack.c.bf16 %v4606, %v4603
        %4613 = vmatprep.subr.bf16.mxu0 0
        %4614 = vmatpush1.bf16.msra.mxu0 %v4609
        %4615 = vmatprep.subr.bf16.mxu0 0
        %4616 = vmatpush1.bf16.msra.mxu0 %v4610
        %4617 = vmatprep.subr.bf16.mxu0 0
        %4618 = vmatpush1.bf16.msra.mxu0 %v4611
        %4619 = vmatprep.subr.bf16.mxu0 0
        %4620 = vmatpush1.bf16.msra.mxu0 %v4612
        %4621 = vmatprep.subr.bf16.mxu0 0
        %4622 = vmatpush1.bf16.msra.mxu0 0
        %4623 = vmatprep.subr.bf16.mxu0 0
        %4624 = vmatpush1.bf16.msra.mxu0 0
        %4625 = vmatprep.subr.bf16.mxu0 0
        %4626 = vmatpush1.bf16.msra.mxu0 0
        %4627 = vmatprep.subr.bf16.mxu0 0
        %4628 = vmatpush1.bf16.msra.mxu0 0
        %4629 = vmatprep.subr.bf16.mxu0 0
        %4630 = vmatpush1.bf16.msra.mxu0 0
        %4631 = vmatprep.subr.bf16.mxu0 0
        %4632 = vmatpush1.bf16.msra.mxu0 0
        %4633 = vmatprep.subr.bf16.mxu0 0
        %4634 = vmatpush1.bf16.msra.mxu0 0
        %4635 = vmatprep.subr.bf16.mxu0 0
        %4636 = vmatpush1.bf16.msra.mxu0 0
        %4637 = vmatprep.subr.bf16.mxu0 0
        %4638 = vmatpush1.bf16.msra.mxu0 0
        %4639 = vmatprep.subr.bf16.mxu0 0
        %4640 = vmatpush1.bf16.msra.mxu0 0
        %4641 = vmatprep.subr.bf16.mxu0 0
        %4642 = vmatpush1.bf16.msra.mxu0 0
        %4643 = vmatprep.subr.bf16.mxu0 0
        %4644 = vmatpush1.bf16.msra.mxu0 0
        %4645 = vmatprep.mubr.bf16.mxu0 0
        %4646 = vmatmul.mubr.bf16.gmra.mrb[0].mxu0 %v4275
        %v4647 = vpop.f32.mrb[0].mxu0
        %v4648 = vadd.f32 0.0, %v4647
        %v4649 = vpop.f32.mrb[0].mxu0
        %v4650 = vpop.f32.mrb[0].mxu0
        %v4651 = vadd.f32 0.0, %v4650
        %v4652 = vpop.f32.mrb[0].mxu0
        %4653 = vdwg.mxu0
        %4654 = vmatprep.subr.bf16.mxu0 0
        %4655 = vmatpush1.bf16.msra.mxu0 %v4609
        %4656 = vmatprep.subr.bf16.mxu0 0
        %4657 = vmatpush1.bf16.msra.mxu0 %v4610
        %4658 = vmatprep.subr.bf16.mxu0 0
        %4659 = vmatpush1.bf16.msra.mxu0 %v4611
        %4660 = vmatprep.subr.bf16.mxu0 0
        %4661 = vmatpush1.bf16.msra.mxu0 %v4612
        %4662 = vmatprep.subr.bf16.mxu0 0
        %4663 = vmatpush1.bf16.msra.mxu0 0
        %4664 = vmatprep.subr.bf16.mxu0 0
        %4665 = vmatpush1.bf16.msra.mxu0 0
        %4666 = vmatprep.subr.bf16.mxu0 0
        %4667 = vmatpush1.bf16.msra.mxu0 0
        %4668 = vmatprep.subr.bf16.mxu0 0
        %4669 = vmatpush1.bf16.msra.mxu0 0
        %4670 = vmatprep.subr.bf16.mxu0 0
        %4671 = vmatpush1.bf16.msra.mxu0 0
        %4672 = vmatprep.subr.bf16.mxu0 0
        %4673 = vmatpush1.bf16.msra.mxu0 0
        %4674 = vmatprep.subr.bf16.mxu0 0
        %4675 = vmatpush1.bf16.msra.mxu0 0
        %4676 = vmatprep.subr.bf16.mxu0 0
        %4677 = vmatpush1.bf16.msra.mxu0 0
        %4678 = vmatprep.subr.bf16.mxu0 0
        %4679 = vmatpush1.bf16.msra.mxu0 0
        %4680 = vmatprep.subr.bf16.mxu0 0
        %4681 = vmatpush1.bf16.msra.mxu0 0
        %4682 = vmatprep.subr.bf16.mxu0 0
        %4683 = vmatpush1.bf16.msra.mxu0 0
        %4684 = vmatprep.subr.bf16.mxu0 0
        %4685 = vmatpush1.bf16.msra.mxu0 0
        %4686 = vmatprep.mubr.bf16.mxu0 0
        %4687 = vmatmul.mubr.bf16.gmra.mrb[0].mxu0 %v4327
        %v4688 = vpop.f32.mrb[0].mxu0
        %v4689 = vadd.f32 0.0, %v4688
        %v4690 = vpop.f32.mrb[0].mxu0
        %v4691 = vpop.f32.mrb[0].mxu0
        %v4692 = vadd.f32 0.0, %v4691
        %v4693 = vpop.f32.mrb[0].mxu0
        %4694 = vdwg.mxu0
        %v4695 = vmax.f32 %v4648, %v4689
        %v4696 = vmax.f32 %v4651, %v4692
        %4697 = vmatprep.subr.bf16.mxu0 0
        %4698 = vmatpush1.bf16.msra.mxu0 %v4609
        %4699 = vmatprep.subr.bf16.mxu0 0
        %4700 = vmatpush1.bf16.msra.mxu0 %v4610
        %4701 = vmatprep.subr.bf16.mxu0 0
        %4702 = vmatpush1.bf16.msra.mxu0 %v4611
        %4703 = vmatprep.subr.bf16.mxu0 0
        %4704 = vmatpush1.bf16.msra.mxu0 %v4612
        %4705 = vmatprep.subr.bf16.mxu0 0
        %4706 = vmatpush1.bf16.msra.mxu0 0
        %4707 = vmatprep.subr.bf16.mxu0 0
        %4708 = vmatpush1.bf16.msra.mxu0 0
        %4709 = vmatprep.subr.bf16.mxu0 0
        %4710 = vmatpush1.bf16.msra.mxu0 0
        %4711 = vmatprep.subr.bf16.mxu0 0
        %4712 = vmatpush1.bf16.msra.mxu0 0
        %4713 = vmatprep.subr.bf16.mxu0 0
        %4714 = vmatpush1.bf16.msra.mxu0 0
        %4715 = vmatprep.subr.bf16.mxu0 0
        %4716 = vmatpush1.bf16.msra.mxu0 0
        %4717 = vmatprep.subr.bf16.mxu0 0
        %4718 = vmatpush1.bf16.msra.mxu0 0
        %4719 = vmatprep.subr.bf16.mxu0 0
        %4720 = vmatpush1.bf16.msra.mxu0 0
        %4721 = vmatprep.subr.bf16.mxu0 0
        %4722 = vmatpush1.bf16.msra.mxu0 0
        %4723 = vmatprep.subr.bf16.mxu0 0
        %4724 = vmatpush1.bf16.msra.mxu0 0
        %4725 = vmatprep.subr.bf16.mxu0 0
        %4726 = vmatpush1.bf16.msra.mxu0 0
        %4727 = vmatprep.subr.bf16.mxu0 0
        %4728 = vmatpush1.bf16.msra.mxu0 0
        %4729 = vmatprep.mubr.bf16.mxu0 0
        %4730 = vmatmul.mubr.bf16.gmra.mrb[0].mxu0 %v4381
        %v4731 = vpop.f32.mrb[0].mxu0
        %v4732 = vadd.f32 0.0, %v4731
        %v4733 = vpop.f32.mrb[0].mxu0
        %v4734 = vpop.f32.mrb[0].mxu0
        %v4735 = vadd.f32 0.0, %v4734
        %v4736 = vpop.f32.mrb[0].mxu0
        %4737 = vdwg.mxu0
        %v4738 = vmax.f32 %v4695, %v4732
        %v4739 = vmax.f32 %v4696, %v4735
        %4740 = vmatprep.subr.bf16.mxu0 0
        %4741 = vmatpush1.bf16.msra.mxu0 %v4609
        %4742 = vmatprep.subr.bf16.mxu0 0
        %4743 = vmatpush1.bf16.msra.mxu0 %v4610
        %4744 = vmatprep.subr.bf16.mxu0 0
        %4745 = vmatpush1.bf16.msra.mxu0 %v4611
        %4746 = vmatprep.subr.bf16.mxu0 0
        %4747 = vmatpush1.bf16.msra.mxu0 %v4612
        %4748 = vmatprep.subr.bf16.mxu0 0
        %4749 = vmatpush1.bf16.msra.mxu0 0
        %4750 = vmatprep.subr.bf16.mxu0 0
        %4751 = vmatpush1.bf16.msra.mxu0 0
        %4752 = vmatprep.subr.bf16.mxu0 0
        %4753 = vmatpush1.bf16.msra.mxu0 0
        %4754 = vmatprep.subr.bf16.mxu0 0
        %4755 = vmatpush1.bf16.msra.mxu0 0
        %4756 = vmatprep.subr.bf16.mxu0 0
        %4757 = vmatpush1.bf16.msra.mxu0 0
        %4758 = vmatprep.subr.bf16.mxu0 0
        %4759 = vmatpush1.bf16.msra.mxu0 0
        %4760 = vmatprep.subr.bf16.mxu0 0
        %4761 = vmatpush1.bf16.msra.mxu0 0
        %4762 = vmatprep.subr.bf16.mxu0 0
        %4763 = vmatpush1.bf16.msra.mxu0 0
        %4764 = vmatprep.subr.bf16.mxu0 0
        %4765 = vmatpush1.bf16.msra.mxu0 0
        %4766 = vmatprep.subr.bf16.mxu0 0
        %4767 = vmatpush1.bf16.msra.mxu0 0
        %4768 = vmatprep.subr.bf16.mxu0 0
        %4769 = vmatpush1.bf16.msra.mxu0 0
        %4770 = vmatprep.subr.bf16.mxu0 0
        %4771 = vmatpush1.bf16.msra.mxu0 0
        %4772 = vmatprep.mubr.bf16.mxu0 0
        %4773 = vmatmul.mubr.bf16.gmra.mrb[0].mxu0 %v4435
        %v4774 = vpop.f32.mrb[0].mxu0
        %v4775 = vadd.f32 0.0, %v4774
        %v4776 = vpop.f32.mrb[0].mxu0
        %v4777 = vpop.f32.mrb[0].mxu0
        %v4778 = vadd.f32 0.0, %v4777
        %v4779 = vpop.f32.mrb[0].mxu0
        %4780 = vdwg.mxu0
        %v4781 = vmax.f32 %v4738, %v4775
        %v4782 = vmax.f32 %v4739, %v4778
        %v4783 = vpack.c.bf16 %v4107, %v4104
        %v4784 = vpack.c.bf16 %v4115, %v4112
        %v4785 = vpack.c.bf16 %v4123, %v4120
        %v4786 = vpack.c.bf16 %v4131, %v4128
        %v4787 = vpack.c.bf16 %v4479, %v4478
        %4788 = vmatprep.subr.bf16.mxu0 0
        %4789 = vmatpush1.bf16.xpose.msra.mxu0 %v4787
        %4790 = vmatprep.subr.bf16.mxu0 0
        %4791 = vmatpush1.bf16.xpose.msra.mxu0 0
        %4792 = vmatprep.subr.bf16.mxu0 0
        %4793 = vmatpush1.bf16.xpose.msra.mxu0 0
        %4794 = vmatprep.subr.bf16.mxu0 0
        %4795 = vmatpush1.bf16.xpose.msra.mxu0 0
        %4796 = vmatprep.subr.bf16.mxu0 0
        %4797 = vmatpush1.bf16.xpose.msra.mxu0 0
        %4798 = vmatprep.subr.bf16.mxu0 0
        %4799 = vmatpush1.bf16.xpose.msra.mxu0 0
        %4800 = vmatprep.subr.bf16.mxu0 0
        %4801 = vmatpush1.bf16.xpose.msra.mxu0 0
        %4802 = vmatprep.subr.bf16.mxu0 0
        %4803 = vmatpush1.bf16.xpose.msra.mxu0 0
        %4804 = vmatprep.subr.bf16.mxu0 0
        %4805 = vmatpush1.bf16.xpose.msra.mxu0 0
        %4806 = vmatprep.subr.bf16.mxu0 0
        %4807 = vmatpush1.bf16.xpose.msra.mxu0 0
        %4808 = vmatprep.subr.bf16.mxu0 0
        %4809 = vmatpush1.bf16.xpose.msra.mxu0 0
        %4810 = vmatprep.subr.bf16.mxu0 0
        %4811 = vmatpush1.bf16.xpose.msra.mxu0 0
        %4812 = vmatprep.subr.bf16.mxu0 0
        %4813 = vmatpush1.bf16.xpose.msra.mxu0 0
        %4814 = vmatprep.subr.bf16.mxu0 0
        %4815 = vmatpush1.bf16.xpose.msra.mxu0 0
        %4816 = vmatprep.subr.bf16.mxu0 0
        %4817 = vmatpush1.bf16.xpose.msra.mxu0 0
        %4818 = vmatprep.subr.bf16.mxu0 0
        %4819 = vmatpush1.bf16.xpose.msra.mxu0 0
        %4820 = vmatprep.mubr.bf16.mxu0 0
        %4821 = vmatmul.mubr.bf16.gmra.mrb[0].mxu0 %v4783
        %v4822 = vpop.f32.mrb[0].mxu0
        %v4823 = vadd.f32 0.0, %v4822
        %v4824 = vpop.f32.mrb[0].mxu0
        %v4825 = vpop.f32.mrb[0].mxu0
        %v4826 = vadd.f32 0.0, %v4825
        %v4827 = vpop.f32.mrb[0].mxu0
        %4828 = vmatprep.mubr.bf16.mxu0 0
        %4829 = vmatmul.mubr.bf16.gmra.mrb[0].mxu0 %v4784
        %v4830 = vpop.f32.mrb[0].mxu0
        %v4831 = vadd.f32 0.0, %v4830
        %v4832 = vpop.f32.mrb[0].mxu0
        %v4833 = vpop.f32.mrb[0].mxu0
        %v4834 = vadd.f32 0.0, %v4833
        %v4835 = vpop.f32.mrb[0].mxu0
        %4836 = vmatprep.mubr.bf16.mxu0 0
        %4837 = vmatmul.mubr.bf16.gmra.mrb[0].mxu0 %v4785
        %v4838 = vpop.f32.mrb[0].mxu0
        %v4839 = vadd.f32 0.0, %v4838
        %v4840 = vpop.f32.mrb[0].mxu0
        %v4841 = vpop.f32.mrb[0].mxu0
        %v4842 = vadd.f32 0.0, %v4841
        %v4843 = vpop.f32.mrb[0].mxu0
        %4844 = vmatprep.mubr.bf16.mxu0 0
        %4845 = vmatmul.mubr.bf16.gmra.mrb[0].mxu0 %v4786
        %v4846 = vpop.f32.mrb[0].mxu0
        %v4847 = vadd.f32 0.0, %v4846
        %v4848 = vpop.f32.mrb[0].mxu0
        %v4849 = vpop.f32.mrb[0].mxu0
        %v4850 = vadd.f32 0.0, %v4849
        %v4851 = vpop.f32.mrb[0].mxu0
        %4852 = vdwg.mxu0
        %vm4853 = vcmask 130048
        %v4854 = vsel %vm4853, %v4823, -inf
        %4855 = vmax.xlane.f32.xlu0 %v4854
        %v4856 = vpop.xlane.xlu0 %4855
        %v4857 = vsel %vm4853, %v4826, -inf
        %4858 = vmax.xlane.f32.xlu0 %v4857
        %v4859 = vpop.xlane.xlu0 %4858
        %v4860 = vsel %vm4853, %v4831, -inf
        %4861 = vmax.xlane.f32.xlu0 %v4860
        %v4862 = vpop.xlane.xlu0 %4861
        %v4863 = vsel %vm4853, %v4834, -inf
        %4864 = vmax.xlane.f32.xlu0 %v4863
        %v4865 = vpop.xlane.xlu0 %4864
        %v4866 = vsel %vm4853, %v4839, -inf
        %4867 = vmax.xlane.f32.xlu0 %v4866
        %v4868 = vpop.xlane.xlu0 %4867
        %v4869 = vsel %vm4853, %v4842, -inf
        %4870 = vmax.xlane.f32.xlu0 %v4869
        %v4871 = vpop.xlane.xlu0 %4870
        %v4872 = vsel %vm4853, %v4847, -inf
        %4873 = vmax.xlane.f32.xlu0 %v4872
        %v4874 = vpop.xlane.xlu0 %4873
        %v4875 = vsel %vm4853, %v4850, -inf
        %4876 = vmax.xlane.f32.xlu0 %v4875
        %v4877 = vpop.xlane.xlu0 %4876
        %v4878 = vsub.f32 %v4823, %v4856
        %v4879 = vsub.f32 %v4826, %v4859
        %v4880 = vsub.f32 %v4831, %v4862
        %v4881 = vsub.f32 %v4834, %v4865
        %v4882 = vsub.f32 %v4839, %v4868
        %v4883 = vsub.f32 %v4842, %v4871
        %v4884 = vsub.f32 %v4847, %v4874
        %v4885 = vsub.f32 %v4850, %v4877
        %v4886 = vmul.f32 %v4878, 1.442695
        %v4887 = vpow.pop %v4886
        %v4888 = vmul.f32 %v4879, 1.442695
        %v4889 = vpow.pop %v4888
        %v4890 = vmul.f32 %v4880, 1.442695
        %v4891 = vpow.pop %v4890
        %v4892 = vmul.f32 %v4881, 1.442695
        %v4893 = vpow.pop %v4892
        %v4894 = vmul.f32 %v4882, 1.442695
        %v4895 = vpow.pop %v4894
        %v4896 = vmul.f32 %v4883, 1.442695
        %v4897 = vpow.pop %v4896
        %v4898 = vmul.f32 %v4884, 1.442695
        %v4899 = vpow.pop %v4898
        %v4900 = vmul.f32 %v4885, 1.442695
        %v4901 = vpow.pop %v4900
        %v4902 = vsel %vm4853, %v4887, 0.0
        %4903 = vadd.xlane.f32.xlu0 %v4902
        %v4904 = vpop.xlane.xlu0 %4903
        %v4905 = vsel %vm4853, %v4889, 0.0
        %4906 = vadd.xlane.f32.xlu0 %v4905
        %v4907 = vpop.xlane.xlu0 %4906
        %v4908 = vsel %vm4853, %v4891, 0.0
        %4909 = vadd.xlane.f32.xlu0 %v4908
        %v4910 = vpop.xlane.xlu0 %4909
        %v4911 = vsel %vm4853, %v4893, 0.0
        %4912 = vadd.xlane.f32.xlu0 %v4911
        %v4913 = vpop.xlane.xlu0 %4912
        %v4914 = vsel %vm4853, %v4895, 0.0
        %4915 = vadd.xlane.f32.xlu0 %v4914
        %v4916 = vpop.xlane.xlu0 %4915
        %v4917 = vsel %vm4853, %v4897, 0.0
        %4918 = vadd.xlane.f32.xlu0 %v4917
        %v4919 = vpop.xlane.xlu0 %4918
        %v4920 = vsel %vm4853, %v4899, 0.0
        %4921 = vadd.xlane.f32.xlu0 %v4920
        %v4922 = vpop.xlane.xlu0 %4921
        %v4923 = vsel %vm4853, %v4901, 0.0
        %4924 = vadd.xlane.f32.xlu0 %v4923
        %v4925 = vpop.xlane.xlu0 %4924
        %v4926 = vrcp.pop %v4904
        %v4927 = vmul.f32 %v4887, %v4926
        %v4928 = vrcp.pop %v4907
        %v4929 = vmul.f32 %v4889, %v4928
        %v4930 = vrcp.pop %v4910
        %v4931 = vmul.f32 %v4891, %v4930
        %v4932 = vrcp.pop %v4913
        %v4933 = vmul.f32 %v4893, %v4932
        %v4934 = vrcp.pop %v4916
        %v4935 = vmul.f32 %v4895, %v4934
        %v4936 = vrcp.pop %v4919
        %v4937 = vmul.f32 %v4897, %v4936
        %v4938 = vrcp.pop %v4922
        %v4939 = vmul.f32 %v4899, %v4938
        %v4940 = vrcp.pop %v4925
        %v4941 = vmul.f32 %v4901, %v4940
        %v4942 = vpack.c.bf16 %v4929, %v4927
        %v4943 = vpack.c.bf16 %v4933, %v4931
        %v4944 = vpack.c.bf16 %v4937, %v4935
        %v4945 = vpack.c.bf16 %v4941, %v4939
        %v4946 = vpack.c.bf16 %v4782, %v4781
        %v4948 = vsel %vm4853, %v4942, 0
        %v4951 = vsel %vm4853, %v4943, 0
        %v4954 = vsel %vm4853, %v4944, 0
        %v4957 = vsel %vm4853, %v4945, 0
        %4959 = vmatprep.subr.bf16.mxu0 0
        %4960 = vmatpush1.bf16.msra.mxu0 %v4946
        %4961 = vmatprep.subr.bf16.mxu0 0
        %4962 = vmatpush1.bf16.msra.mxu0 0
        %4963 = vmatprep.subr.bf16.mxu0 0
        %4964 = vmatpush1.bf16.msra.mxu0 0
        %4965 = vmatprep.subr.bf16.mxu0 0
        %4966 = vmatpush1.bf16.msra.mxu0 0
        %4967 = vmatprep.subr.bf16.mxu0 0
        %4968 = vmatpush1.bf16.msra.mxu0 0
        %4969 = vmatprep.subr.bf16.mxu0 0
        %4970 = vmatpush1.bf16.msra.mxu0 0
        %4971 = vmatprep.subr.bf16.mxu0 0
        %4972 = vmatpush1.bf16.msra.mxu0 0
        %4973 = vmatprep.subr.bf16.mxu0 0
        %4974 = vmatpush1.bf16.msra.mxu0 0
        %4975 = vmatprep.subr.bf16.mxu0 0
        %4976 = vmatpush1.bf16.msra.mxu0 0
        %4977 = vmatprep.subr.bf16.mxu0 0
        %4978 = vmatpush1.bf16.msra.mxu0 0
        %4979 = vmatprep.subr.bf16.mxu0 0
        %4980 = vmatpush1.bf16.msra.mxu0 0
        %4981 = vmatprep.subr.bf16.mxu0 0
        %4982 = vmatpush1.bf16.msra.mxu0 0
        %4983 = vmatprep.subr.bf16.mxu0 0
        %4984 = vmatpush1.bf16.msra.mxu0 0
        %4985 = vmatprep.subr.bf16.mxu0 0
        %4986 = vmatpush1.bf16.msra.mxu0 0
        %4987 = vmatprep.subr.bf16.mxu0 0
        %4988 = vmatpush1.bf16.msra.mxu0 0
        %4989 = vmatprep.subr.bf16.mxu0 0
        %4990 = vmatpush1.bf16.msra.mxu0 0
        %4991 = vmatprep.mubr.bf16.mxu0 0
        %4992 = vmatmul.mubr.bf16.gmra.mrb[0].mxu0 %v4948
        %v4993 = vpop.f32.mrb[0].mxu0
        %v4994 = vadd.f32 0.0, %v4993
        %v4995 = vpop.f32.mrb[0].mxu0
        %v4996 = vpop.f32.mrb[0].mxu0
        %v4997 = vadd.f32 0.0, %v4996
        %v4998 = vpop.f32.mrb[0].mxu0
        %4999 = vmatprep.mubr.bf16.mxu0 0
        %5000 = vmatmul.mubr.bf16.gmra.mrb[0].mxu0 %v4951
        %v5001 = vpop.f32.mrb[0].mxu0
        %v5002 = vadd.f32 0.0, %v5001
        %v5003 = vpop.f32.mrb[0].mxu0
        %v5004 = vpop.f32.mrb[0].mxu0
        %v5005 = vadd.f32 0.0, %v5004
        %v5006 = vpop.f32.mrb[0].mxu0
        %5007 = vmatprep.mubr.bf16.mxu0 0
        %5008 = vmatmul.mubr.bf16.gmra.mrb[0].mxu0 %v4954
        %v5009 = vpop.f32.mrb[0].mxu0
        %v5010 = vadd.f32 0.0, %v5009
        %v5011 = vpop.f32.mrb[0].mxu0
        %v5012 = vpop.f32.mrb[0].mxu0
        %v5013 = vadd.f32 0.0, %v5012
        %v5014 = vpop.f32.mrb[0].mxu0
        %5015 = vmatprep.mubr.bf16.mxu0 0
        %5016 = vmatmul.mubr.bf16.gmra.mrb[0].mxu0 %v4957
        %v5017 = vpop.f32.mrb[0].mxu0
        %v5018 = vadd.f32 0.0, %v5017
        %v5019 = vpop.f32.mrb[0].mxu0
        %v5020 = vpop.f32.mrb[0].mxu0
        %v5021 = vadd.f32 0.0, %v5020
        %v5022 = vpop.f32.mrb[0].mxu0
        %5023 = vdwg.mxu0
        %v5024 = vpack.c.bf16 %v4997, %v4994
        %v5025 = vpack.c.bf16 %v5005, %v5002
        %v5026 = vpack.c.bf16 %v5013, %v5010
        %v5027 = vpack.c.bf16 %v5021, %v5018
        %v5028 = vld [vmem:[#allocation7] sm:$0xf]
        %v5029 = vld [vmem:[#allocation7 + $0x4] sm:$0xf]
        %v5030 = vld [vmem:[#allocation7 + $0x8] sm:$0xf]
        %v5031 = vld [vmem:[#allocation7 + $0xc] sm:$0xf]
        %v5032 = vld [vmem:[#allocation7 + $0x10] sm:$0xf]
        %v5033 = vld [vmem:[#allocation7 + $0x14] sm:$0xf]
        %v5034 = vld [vmem:[#allocation7 + $0x18] sm:$0xf]
        %v5035 = vld [vmem:[#allocation7 + $0x1c] sm:$0xf]
        %v5036 = vld [vmem:[#allocation7 + $0x20] sm:$0xf]
        %v5037 = vld [vmem:[#allocation7 + $0x24] sm:$0xf]
        %v5038 = vld [vmem:[#allocation7 + $0x28] sm:$0xf]
        %v5039 = vld [vmem:[#allocation7 + $0x2c] sm:$0xf]
        %v5040 = vld [vmem:[#allocation7 + $0x30] sm:$0xf]
        %v5041 = vld [vmem:[#allocation7 + $0x34] sm:$0xf]
        %v5042 = vld [vmem:[#allocation7 + $0x38] sm:$0xf]
        %v5043 = vld [vmem:[#allocation7 + $0x3c] sm:$0xf]
        %v5060 = vunpack.c.l.b16 %v5028
        %v5061 = vunpack.c.l.b16 %v5029
        %v5062 = vunpack.c.l.b16 %v5030
        %v5063 = vunpack.c.l.b16 %v5031
        %v5064 = vunpack.c.l.b16 %v5032
        %v5065 = vunpack.c.l.b16 %v5033
        %v5066 = vunpack.c.l.b16 %v5034
        %v5067 = vunpack.c.l.b16 %v5035
        %v5068 = vunpack.c.l.b16 %v5036
        %v5069 = vunpack.c.l.b16 %v5037
        %v5070 = vunpack.c.l.b16 %v5038
        %v5071 = vunpack.c.l.b16 %v5039
        %v5072 = vunpack.c.l.b16 %v5040
        %v5073 = vunpack.c.l.b16 %v5041
        %v5074 = vunpack.c.l.b16 %v5042
        %v5075 = vunpack.c.l.b16 %v5043
        %v5076 = vpack.c.b16 %v5061, %v5060
        %v5077 = vpack.c.b16 %v5063, %v5062
        %v5078 = vpack.c.b16 %v5065, %v5064
        %v5079 = vpack.c.b16 %v5067, %v5066
        %v5080 = vpack.c.b16 %v5069, %v5068
        %v5081 = vpack.c.b16 %v5071, %v5070
        %v5082 = vpack.c.b16 %v5073, %v5072
        %v5083 = vpack.c.b16 %v5075, %v5074
        %5092 = vmatprep.subr.bf16.mxu0 0
        %5093 = vmatpush1.bf16.msra.mxu0 %v5076
        %5094 = vmatprep.subr.bf16.mxu0 0
        %5095 = vmatpush1.bf16.msra.mxu0 %v5077
        %5096 = vmatprep.subr.bf16.mxu0 0
        %5097 = vmatpush1.bf16.msra.mxu0 %v5078
        %5098 = vmatprep.subr.bf16.mxu0 0
        %5099 = vmatpush1.bf16.msra.mxu0 %v5079
        %5100 = vmatprep.subr.bf16.mxu0 0
        %5101 = vmatpush1.bf16.msra.mxu0 %v5080
        %5102 = vmatprep.subr.bf16.mxu0 0
        %5103 = vmatpush1.bf16.msra.mxu0 %v5081
        %5104 = vmatprep.subr.bf16.mxu0 0
        %5105 = vmatpush1.bf16.msra.mxu0 %v5082
        %5106 = vmatprep.subr.bf16.mxu0 0
        %5107 = vmatpush1.bf16.msra.mxu0 %v5083
        %5108 = vmatprep.subr.bf16.mxu0 0
        %5109 = vmatpush1.bf16.msra.mxu0 0
        %5110 = vmatprep.subr.bf16.mxu0 0
        %5111 = vmatpush1.bf16.msra.mxu0 0
        %5112 = vmatprep.subr.bf16.mxu0 0
        %5113 = vmatpush1.bf16.msra.mxu0 0
        %5114 = vmatprep.subr.bf16.mxu0 0
        %5115 = vmatpush1.bf16.msra.mxu0 0
        %5116 = vmatprep.subr.bf16.mxu0 0
        %5117 = vmatpush1.bf16.msra.mxu0 0
        %5118 = vmatprep.subr.bf16.mxu0 0
        %5119 = vmatpush1.bf16.msra.mxu0 0
        %5120 = vmatprep.subr.bf16.mxu0 0
        %5121 = vmatpush1.bf16.msra.mxu0 0
        %5122 = vmatprep.subr.bf16.mxu0 0
        %5123 = vmatpush1.bf16.msra.mxu0 0
        %5124 = vmatprep.mubr.bf16.mxu0 0
        %5125 = vmatmul.mubr.bf16.gmra.mrb[0].mxu0 %v5024
        %v5126 = vpop.f32.mrb[0].mxu0
        %v5127 = vadd.f32 0.0, %v5126
        %v5128 = vpop.f32.mrb[0].mxu0
        %v5129 = vpop.f32.mrb[0].mxu0
        %v5130 = vadd.f32 0.0, %v5129
        %v5131 = vpop.f32.mrb[0].mxu0
        %5132 = vmatprep.mubr.bf16.mxu0 0
        %5133 = vmatmul.mubr.bf16.gmra.mrb[0].mxu0 %v5025
        %v5134 = vpop.f32.mrb[0].mxu0
        %v5135 = vadd.f32 0.0, %v5134
        %v5136 = vpop.f32.mrb[0].mxu0
        %v5137 = vpop.f32.mrb[0].mxu0
        %v5138 = vadd.f32 0.0, %v5137
        %v5139 = vpop.f32.mrb[0].mxu0
        %5140 = vmatprep.mubr.bf16.mxu0 0
        %5141 = vmatmul.mubr.bf16.gmra.mrb[0].mxu0 %v5026
        %v5142 = vpop.f32.mrb[0].mxu0
        %v5143 = vadd.f32 0.0, %v5142
        %v5144 = vpop.f32.mrb[0].mxu0
        %v5145 = vpop.f32.mrb[0].mxu0
        %v5146 = vadd.f32 0.0, %v5145
        %v5147 = vpop.f32.mrb[0].mxu0
        %5148 = vmatprep.mubr.bf16.mxu0 0
        %5149 = vmatmul.mubr.bf16.gmra.mrb[0].mxu0 %v5027
        %v5150 = vpop.f32.mrb[0].mxu0
        %v5151 = vadd.f32 0.0, %v5150
        %v5152 = vpop.f32.mrb[0].mxu0
        %v5153 = vpop.f32.mrb[0].mxu0
        %v5154 = vadd.f32 0.0, %v5153
        %v5155 = vpop.f32.mrb[0].mxu0
        %5156 = vdwg.mxu0
        %v5157 = vld [vmem:[#allocation5] sm:$0x1]
        %v5159 = vlaneseq
        %v5160 = vshrl.u32 %v5159, 7
        %v5161 = vsub.s32 0, %v5160
        %v5162 = vrot.slane %v5157, %v5161
        %5163 = vset.pattern.permute.xlu0 0
        %5164 = vperm.xlu0 %5163, %v5162
        %v5165 = vpop.permute.xlu0 %5164
        %v5167 = vmul.f32 %v5165, %v5127
        %v5168 = vmul.f32 %v5165, %v5130
        %v5169 = vmul.f32 %v5165, %v5135
        %v5170 = vmul.f32 %v5165, %v5138
        %v5171 = vmul.f32 %v5165, %v5143
        %v5172 = vmul.f32 %v5165, %v5146
        %v5173 = vmul.f32 %v5165, %v5151
        %v5174 = vmul.f32 %v5165, %v5154
        %v5175 = vadd.f32 %v3971, %v5167
        %v5176 = vadd.f32 %v3974, %v5168
        %v5177 = vadd.f32 %v3979, %v5169
        %v5178 = vadd.f32 %v3982, %v5170
        %v5179 = vadd.f32 %v3987, %v5171
        %v5180 = vadd.f32 %v3990, %v5172
        %v5181 = vadd.f32 %v3995, %v5173
        %v5182 = vadd.f32 %v3998, %v5174
        %v5183 = vpack.c.bf16 %v5176, %v5175
        %v5184 = vpack.c.bf16 %v5178, %v5177
        %v5185 = vpack.c.bf16 %v5180, %v5179
        %v5186 = vpack.c.bf16 %v5182, %v5181
        %v5187 = vld [vmem:[#allocation9] sm:$0xf]
        %v5188 = vld [vmem:[#allocation9 + $0x4] sm:$0xf]
        %v5189 = vld [vmem:[#allocation9 + $0x8] sm:$0xf]
        %v5190 = vld [vmem:[#allocation9 + $0xc] sm:$0xf]
        %v5191 = vld [vmem:[#allocation9 + $0x10] sm:$0xf]
        %v5192 = vld [vmem:[#allocation9 + $0x14] sm:$0xf]
        %v5193 = vld [vmem:[#allocation9 + $0x18] sm:$0xf]
        %v5194 = vld [vmem:[#allocation9 + $0x1c] sm:$0xf]
        %v5195 = vld [vmem:[#allocation9 + $0x20] sm:$0xf]
        %v5196 = vld [vmem:[#allocation9 + $0x24] sm:$0xf]
        %v5197 = vld [vmem:[#allocation9 + $0x28] sm:$0xf]
        %v5198 = vld [vmem:[#allocation9 + $0x2c] sm:$0xf]
        %v5199 = vld [vmem:[#allocation9 + $0x30] sm:$0xf]
        %v5200 = vld [vmem:[#allocation9 + $0x34] sm:$0xf]
        %v5201 = vld [vmem:[#allocation9 + $0x38] sm:$0xf]
        %v5202 = vld [vmem:[#allocation9 + $0x3c] sm:$0xf]
        %v5203 = vld [vmem:[%s35] sm:$0x1]
        %v5205 = vlaneseq
        %v5206 = vshrl.u32 %v5205, 7
        %v5207 = vsub.s32 0, %v5206
        %v5208 = vrot.slane %v5203, %v5207
        %v5226 = vunpack.c.l.b16 %v5187
        %v5227 = vunpack.c.l.b16 %v5188
        %v5228 = vunpack.c.l.b16 %v5189
        %v5229 = vunpack.c.l.b16 %v5190
        %v5230 = vunpack.c.l.b16 %v5191
        %v5231 = vunpack.c.l.b16 %v5192
        %v5232 = vunpack.c.l.b16 %v5193
        %v5233 = vunpack.c.l.b16 %v5194
        %v5234 = vunpack.c.l.b16 %v5195
        %v5235 = vunpack.c.l.b16 %v5196
        %v5236 = vunpack.c.l.b16 %v5197
        %v5237 = vunpack.c.l.b16 %v5198
        %v5238 = vunpack.c.l.b16 %v5199
        %v5239 = vunpack.c.l.b16 %v5200
        %v5240 = vunpack.c.l.b16 %v5201
        %v5241 = vunpack.c.l.b16 %v5202
        %v5242 = vpack.c.b16 %v5227, %v5226
        %v5243 = vpack.c.b16 %v5229, %v5228
        %v5244 = vpack.c.b16 %v5231, %v5230
        %v5245 = vpack.c.b16 %v5233, %v5232
        %v5246 = vpack.c.b16 %v5235, %v5234
        %v5247 = vpack.c.b16 %v5237, %v5236
        %v5248 = vpack.c.b16 %v5239, %v5238
        %v5249 = vpack.c.b16 %v5241, %v5240
        %5258 = vmatprep.subr.bf16.mxu0 0
        %5259 = vmatpush1.bf16.msra.mxu0 %v5242
        %5260 = vmatprep.subr.bf16.mxu0 0
        %5261 = vmatpush1.bf16.msra.mxu0 %v5243
        %5262 = vmatprep.subr.bf16.mxu0 0
        %5263 = vmatpush1.bf16.msra.mxu0 %v5244
        %5264 = vmatprep.subr.bf16.mxu0 0
        %5265 = vmatpush1.bf16.msra.mxu0 %v5245
        %5266 = vmatprep.subr.bf16.mxu0 0
        %5267 = vmatpush1.bf16.msra.mxu0 %v5246
        %5268 = vmatprep.subr.bf16.mxu0 0
        %5269 = vmatpush1.bf16.msra.mxu0 %v5247
        %5270 = vmatprep.subr.bf16.mxu0 0
        %5271 = vmatpush1.bf16.msra.mxu0 %v5248
        %5272 = vmatprep.subr.bf16.mxu0 0
        %5273 = vmatpush1.bf16.msra.mxu0 %v5249
        %5274 = vmatprep.subr.bf16.mxu0 0
        %5275 = vmatpush1.bf16.msra.mxu0 0
        %5276 = vmatprep.subr.bf16.mxu0 0
        %5277 = vmatpush1.bf16.msra.mxu0 0
        %5278 = vmatprep.subr.bf16.mxu0 0
        %5279 = vmatpush1.bf16.msra.mxu0 0
        %5280 = vmatprep.subr.bf16.mxu0 0
        %5281 = vmatpush1.bf16.msra.mxu0 0
        %5282 = vmatprep.subr.bf16.mxu0 0
        %5283 = vmatpush1.bf16.msra.mxu0 0
        %5284 = vmatprep.subr.bf16.mxu0 0
        %5285 = vmatpush1.bf16.msra.mxu0 0
        %5286 = vmatprep.subr.bf16.mxu0 0
        %5287 = vmatpush1.bf16.msra.mxu0 0
        %5288 = vmatprep.subr.bf16.mxu0 0
        %5289 = vmatpush1.bf16.msra.mxu0 0
        %5290 = vmatprep.mubr.bf16.mxu0 0
        %5291 = vmatmul.mubr.bf16.gmra.mrb[0].mxu0 %v5183
        %v5292 = vpop.f32.mrb[0].mxu0
        %v5293 = vadd.f32 %v5208, %v5292
        %v5294 = vpop.f32.mrb[0].mxu0
        %v5295 = vpop.f32.mrb[0].mxu0
        %v5296 = vadd.f32 %v5208, %v5295
        %v5297 = vpop.f32.mrb[0].mxu0
        %5298 = vmatprep.mubr.bf16.mxu0 0
        %5299 = vmatmul.mubr.bf16.gmra.mrb[0].mxu0 %v5184
        %v5300 = vpop.f32.mrb[0].mxu0
        %v5301 = vadd.f32 %v5208, %v5300
        %v5302 = vpop.f32.mrb[0].mxu0
        %v5303 = vpop.f32.mrb[0].mxu0
        %v5304 = vadd.f32 %v5208, %v5303
        %v5305 = vpop.f32.mrb[0].mxu0
        %5306 = vmatprep.mubr.bf16.mxu0 0
        %5307 = vmatmul.mubr.bf16.gmra.mrb[0].mxu0 %v5185
        %v5308 = vpop.f32.mrb[0].mxu0
        %v5309 = vadd.f32 %v5208, %v5308
        %v5310 = vpop.f32.mrb[0].mxu0
        %v5311 = vpop.f32.mrb[0].mxu0
        %v5312 = vadd.f32 %v5208, %v5311
        %v5313 = vpop.f32.mrb[0].mxu0
        %5314 = vmatprep.mubr.bf16.mxu0 0
        %5315 = vmatmul.mubr.bf16.gmra.mrb[0].mxu0 %v5186
        %v5316 = vpop.f32.mrb[0].mxu0
        %v5317 = vadd.f32 %v5208, %v5316
        %v5318 = vpop.f32.mrb[0].mxu0
        %v5319 = vpop.f32.mrb[0].mxu0
        %v5320 = vadd.f32 %v5208, %v5319
        %v5321 = vpop.f32.mrb[0].mxu0
        %5322 = vdwg.mxu0
        %v5323 = vld [vmem:[%s7] sm:$0xf]
        %v5324 = vld [vmem:[%s7 + $0x4] sm:$0xf]
        %v5325 = vpack.c.bf16 %v5296, %v5293
        %v5326 = vpack.c.bf16 %v5304, %v5301
        %v5327 = vpack.c.bf16 %v5312, %v5309
        %v5328 = vpack.c.bf16 %v5320, %v5317
        %v5331 = vunpack.c.l.b16 %v5323
        %v5332 = vunpack.c.l.b16 %v5324
        %v5333 = vpack.c.b16 %v5332, %v5331
        %v5335 = vsel %vm1510, %v5333, 0
        %5337 = vmatprep.subr.bf16.mxu0 0
        %5338 = vmatpush1.bf16.msra.mxu0 %v5325
        %5339 = vmatprep.subr.bf16.mxu0 0
        %5340 = vmatpush1.bf16.msra.mxu0 %v5326
        %5341 = vmatprep.subr.bf16.mxu0 0
        %5342 = vmatpush1.bf16.msra.mxu0 %v5327
        %5343 = vmatprep.subr.bf16.mxu0 0
        %5344 = vmatpush1.bf16.msra.mxu0 %v5328
        %5345 = vmatprep.subr.bf16.mxu0 0
        %5346 = vmatpush1.bf16.msra.mxu0 0
        %5347 = vmatprep.subr.bf16.mxu0 0
        %5348 = vmatpush1.bf16.msra.mxu0 0
        %5349 = vmatprep.subr.bf16.mxu0 0
        %5350 = vmatpush1.bf16.msra.mxu0 0
        %5351 = vmatprep.subr.bf16.mxu0 0
        %5352 = vmatpush1.bf16.msra.mxu0 0
        %5353 = vmatprep.subr.bf16.mxu0 0
        %5354 = vmatpush1.bf16.msra.mxu0 0
        %5355 = vmatprep.subr.bf16.mxu0 0
        %5356 = vmatpush1.bf16.msra.mxu0 0
        %5357 = vmatprep.subr.bf16.mxu0 0
        %5358 = vmatpush1.bf16.msra.mxu0 0
        %5359 = vmatprep.subr.bf16.mxu0 0
        %5360 = vmatpush1.bf16.msra.mxu0 0
        %5361 = vmatprep.subr.bf16.mxu0 0
        %5362 = vmatpush1.bf16.msra.mxu0 0
        %5363 = vmatprep.subr.bf16.mxu0 0
        %5364 = vmatpush1.bf16.msra.mxu0 0
        %5365 = vmatprep.subr.bf16.mxu0 0
        %5366 = vmatpush1.bf16.msra.mxu0 0
        %5367 = vmatprep.subr.bf16.mxu0 0
        %5368 = vmatpush1.bf16.msra.mxu0 0
        %5369 = vmatprep.mubr.bf16.mxu0 0
        %5370 = vmatmul.mubr.bf16.gmra.mrb[0].mxu0 %v5335
        %v5371 = vpop.f32.mrb[0].mxu0
        %v5372 = vadd.f32 0.0, %v5371
        %v5373 = vpop.f32.mrb[0].mxu0
        %v5374 = vpop.f32.mrb[0].mxu0
        %v5375 = vadd.f32 0.0, %v5374
        %v5376 = vpop.f32.mrb[0].mxu0
        %5377 = vdwg.mxu0
        %v5378 = vmax.f32 %v5175, 0.0
        %v5379 = vmax.f32 %v5176, 0.0
        %v5380 = vmax.f32 %v5177, 0.0
        %v5381 = vmax.f32 %v5178, 0.0
        %v5382 = vmax.f32 %v5179, 0.0
        %v5383 = vmax.f32 %v5180, 0.0
        %v5384 = vmax.f32 %v5181, 0.0
        %v5385 = vmax.f32 %v5182, 0.0
        %v5386 = vpack.c.bf16 %v5378, %v5378
        %v5387 = vpack.c.bf16 %v5379, %v5379
        %v5388 = vpack.c.bf16 %v5380, %v5380
        %v5389 = vpack.c.bf16 %v5381, %v5381
        %v5390 = vpack.c.bf16 %v5382, %v5382
        %v5391 = vpack.c.bf16 %v5383, %v5383
        %v5392 = vpack.c.bf16 %v5384, %v5384
        %v5393 = vpack.c.bf16 %v5385, %v5385
        %v5395 = vshrl.u32 %v5386, 16
        %v5397 = vrot.slane %v5395, 7
        %v5398 = vshll.u32 %v5386, 16
        %v5400 = vor.u32 %v5397, %v5398
        %v5402 = vshrl.u32 %v5387, 16
        %v5404 = vrot.slane %v5402, 7
        %v5405 = vshll.u32 %v5387, 16
        %v5407 = vor.u32 %v5404, %v5405
        %v5409 = vshrl.u32 %v5388, 16
        %v5411 = vrot.slane %v5409, 7
        %v5412 = vshll.u32 %v5388, 16
        %v5414 = vor.u32 %v5411, %v5412
        %v5416 = vshrl.u32 %v5389, 16
        %v5418 = vrot.slane %v5416, 7
        %v5419 = vshll.u32 %v5389, 16
        %v5421 = vor.u32 %v5418, %v5419
        %v5423 = vshrl.u32 %v5390, 16
        %v5425 = vrot.slane %v5423, 7
        %v5426 = vshll.u32 %v5390, 16
        %v5428 = vor.u32 %v5425, %v5426
        %v5430 = vshrl.u32 %v5391, 16
        %v5432 = vrot.slane %v5430, 7
        %v5433 = vshll.u32 %v5391, 16
        %v5435 = vor.u32 %v5432, %v5433
        %v5437 = vshrl.u32 %v5392, 16
        %v5439 = vrot.slane %v5437, 7
        %v5440 = vshll.u32 %v5392, 16
        %v5442 = vor.u32 %v5439, %v5440
        %v5444 = vshrl.u32 %v5393, 16
        %v5446 = vrot.slane %v5444, 7
        %v5447 = vshll.u32 %v5393, 16
        %v5449 = vor.u32 %v5446, %v5447
        %v5458 = vsel %vm1281, 0, %v5400
        %v5459 = vsel %vm1281, 0, %v5407
        %v5460 = vsel %vm1281, 0, %v5414
        %v5461 = vsel %vm1281, 0, %v5421
        %v5462 = vsel %vm1281, 0, %v5428
        %v5463 = vsel %vm1281, 0, %v5435
        %v5464 = vsel %vm1281, 0, %v5442
        %v5465 = vsel %vm1281, 0, %v5449
        %v5466 = vrot.slane %v5398, 1
        %v5467 = vor.u32 %v5395, %v5466
        %v5468 = vrot.slane %v5405, 1
        %v5469 = vor.u32 %v5402, %v5468
        %v5470 = vrot.slane %v5412, 1
        %v5471 = vor.u32 %v5409, %v5470
        %v5472 = vrot.slane %v5419, 1
        %v5473 = vor.u32 %v5416, %v5472
        %v5474 = vrot.slane %v5426, 1
        %v5475 = vor.u32 %v5423, %v5474
        %v5476 = vrot.slane %v5433, 1
        %v5477 = vor.u32 %v5430, %v5476
        %v5478 = vrot.slane %v5440, 1
        %v5479 = vor.u32 %v5437, %v5478
        %v5480 = vrot.slane %v5447, 1
        %v5481 = vor.u32 %v5444, %v5480
        %vm5490 = vcmask 1043456
        %vm5491 = vsmask.f32 3328
        %vm5492 = vmand %vm5490, %vm5491
        %v5493 = vsel %vm5492, %v5467, 0
        %v5494 = vsel %vm5492, %v5469, 0
        %v5495 = vsel %vm5492, %v5471, 0
        %v5496 = vsel %vm5492, %v5473, 0
        %v5497 = vsel %vm5492, %v5475, 0
        %v5498 = vsel %vm5492, %v5477, 0
        %v5499 = vsel %vm5492, %v5479, 0
        %v5500 = vsel %vm5492, %v5481, 0
        %5509 = vrot.lane.b32.xlu0 %v5386, 32
        %v5510 = vpop.permute.xlu0 %5509
        %5511 = vrot.lane.b32.xlu0 %v5387, 32
        %v5512 = vpop.permute.xlu0 %5511
        %5513 = vrot.lane.b32.xlu0 %v5388, 32
        %v5514 = vpop.permute.xlu0 %5513
        %5515 = vrot.lane.b32.xlu0 %v5389, 32
        %v5516 = vpop.permute.xlu0 %5515
        %5517 = vrot.lane.b32.xlu0 %v5390, 32
        %v5518 = vpop.permute.xlu0 %5517
        %5519 = vrot.lane.b32.xlu0 %v5391, 32
        %v5520 = vpop.permute.xlu0 %5519
        %5521 = vrot.lane.b32.xlu0 %v5392, 32
        %v5522 = vpop.permute.xlu0 %5521
        %5523 = vrot.lane.b32.xlu0 %v5393, 32
        %v5524 = vpop.permute.xlu0 %5523
        %5533 = vrot.lane.b32.xlu0 %v5493, 64
        %v5534 = vpop.permute.xlu0 %5533
        %5535 = vrot.lane.b32.xlu0 %v5494, 64
        %v5536 = vpop.permute.xlu0 %5535
        %5537 = vrot.lane.b32.xlu0 %v5495, 64
        %v5538 = vpop.permute.xlu0 %5537
        %5539 = vrot.lane.b32.xlu0 %v5496, 64
        %v5540 = vpop.permute.xlu0 %5539
        %5541 = vrot.lane.b32.xlu0 %v5497, 64
        %v5542 = vpop.permute.xlu0 %5541
        %5543 = vrot.lane.b32.xlu0 %v5498, 64
        %v5544 = vpop.permute.xlu0 %5543
        %5545 = vrot.lane.b32.xlu0 %v5499, 64
        %v5546 = vpop.permute.xlu0 %5545
        %5547 = vrot.lane.b32.xlu0 %v5500, 64
        %v5548 = vpop.permute.xlu0 %5547
        %v5551 = vsel %vm1461, %v5458, %v5510
        %v5554 = vsel %vm1461, %v5459, %v5512
        %v5557 = vsel %vm1461, %v5460, %v5514
        %v5560 = vsel %vm1461, %v5461, %v5516
        %v5563 = vsel %vm1461, %v5462, %v5518
        %v5566 = vsel %vm1461, %v5463, %v5520
        %v5569 = vsel %vm1461, %v5464, %v5522
        %v5572 = vsel %vm1461, %v5465, %v5524
        %v5574 = vsel %vm1510, %v5551, %v5534
        %v5576 = vsel %vm1510, %v5554, %v5536
        %v5578 = vsel %vm1510, %v5557, %v5538
        %v5580 = vsel %vm1510, %v5560, %v5540
        %v5582 = vsel %vm1510, %v5563, %v5542
        %v5584 = vsel %vm1510, %v5566, %v5544
        %v5586 = vsel %vm1510, %v5569, %v5546
        %v5588 = vsel %vm1510, %v5572, %v5548
        %v5589 = vsel %vm1543, %v5574, 0
        %v5591 = vsel %vm1543, %v5576, 0
        %v5593 = vsel %vm1543, %v5578, 0
        %v5595 = vsel %vm1543, %v5580, 0
        %v5597 = vsel %vm1543, %v5582, 0
        %v5599 = vsel %vm1543, %v5584, 0
        %v5601 = vsel %vm1543, %v5586, 0
        %v5603 = vsel %vm1543, %v5588, 0
        %s5605 = scalar_lea.vmem [#allocation3], 4
        %5606 = vst [vmem:[%s5605] sm:$0xf] %v5589
        %5607 = vst [vmem:[%s5605 + $0x4] sm:$0xf] %v5591
        %5608 = vst [vmem:[%s5605 + $0x8] sm:$0xf] %v5593
        %5609 = vst [vmem:[%s5605 + $0xc] sm:$0xf] %v5595
        %5610 = vst [vmem:[%s5605 + $0x10] sm:$0xf] %v5597
        %5611 = vst [vmem:[%s5605 + $0x14] sm:$0xf] %v5599
        %5612 = vst [vmem:[%s5605 + $0x18] sm:$0xf] %v5601
        %5613 = vst [vmem:[%s5605 + $0x1c] sm:$0xf] %v5603
        %v5614 = vld [vmem:[#allocation3] sm:$0xf]
        %v5615 = vld [vmem:[#allocation3 + $0x4] sm:$0xf]
        %v5616 = vld [vmem:[#allocation3 + $0x8] sm:$0xf]
        %v5617 = vld [vmem:[#allocation3 + $0xc] sm:$0xf]
        %v5618 = vld [vmem:[#allocation3 + $0x10] sm:$0xf]
        %v5619 = vld [vmem:[#allocation3 + $0x14] sm:$0xf]
        %v5620 = vld [vmem:[#allocation3 + $0x18] sm:$0xf]
        %v5621 = vld [vmem:[#allocation3 + $0x1c] sm:$0xf]
        %v5622 = vld [vmem:[%s37] sm:$0xf]
        %v5623 = vld [vmem:[%s37 + $0x4] sm:$0xf]
        %v5624 = vld [vmem:[%s37 + $0x8] sm:$0xf]
        %v5625 = vld [vmem:[%s37 + $0xc] sm:$0xf]
        %v5626 = vld [vmem:[%s37 + $0x10] sm:$0xf]
        %v5627 = vld [vmem:[%s37 + $0x14] sm:$0xf]
        %v5628 = vld [vmem:[%s37 + $0x18] sm:$0xf]
        %v5629 = vld [vmem:[%s37 + $0x1c] sm:$0xf]
        %v5630 = vld [vmem:[%s37 + $0x20] sm:$0xf]
        %v5631 = vld [vmem:[%s37 + $0x24] sm:$0xf]
        %v5632 = vld [vmem:[%s37 + $0x28] sm:$0xf]
        %v5633 = vld [vmem:[%s37 + $0x2c] sm:$0xf]
        %v5634 = vld [vmem:[%s37 + $0x30] sm:$0xf]
        %v5635 = vld [vmem:[%s37 + $0x34] sm:$0xf]
        %v5636 = vld [vmem:[%s37 + $0x38] sm:$0xf]
        %v5637 = vld [vmem:[%s37 + $0x3c] sm:$0xf]
        %v5638 = vld [vmem:[%s5605] sm:$0xf]
        %v5639 = vld [vmem:[%s5605 + $0x4] sm:$0xf]
        %v5640 = vld [vmem:[%s5605 + $0x8] sm:$0xf]
        %v5641 = vld [vmem:[%s5605 + $0xc] sm:$0xf]
        %v5642 = vld [vmem:[%s5605 + $0x10] sm:$0xf]
        %v5643 = vld [vmem:[%s5605 + $0x14] sm:$0xf]
        %v5644 = vld [vmem:[%s5605 + $0x18] sm:$0xf]
        %v5645 = vld [vmem:[%s5605 + $0x1c] sm:$0xf]
        %s5646 = scalar_lea.vmem %s37, 64
        %v5647 = vld [vmem:[%s5646] sm:$0xf]
        %v5648 = vld [vmem:[%s5646 + $0x4] sm:$0xf]
        %v5649 = vld [vmem:[%s5646 + $0x8] sm:$0xf]
        %v5650 = vld [vmem:[%s5646 + $0xc] sm:$0xf]
        %v5651 = vld [vmem:[%s5646 + $0x10] sm:$0xf]
        %v5652 = vld [vmem:[%s5646 + $0x14] sm:$0xf]
        %v5653 = vld [vmem:[%s5646 + $0x18] sm:$0xf]
        %v5654 = vld [vmem:[%s5646 + $0x1c] sm:$0xf]
        %v5655 = vld [vmem:[%s5646 + $0x20] sm:$0xf]
        %v5656 = vld [vmem:[%s5646 + $0x24] sm:$0xf]
        %v5657 = vld [vmem:[%s5646 + $0x28] sm:$0xf]
        %v5658 = vld [vmem:[%s5646 + $0x2c] sm:$0xf]
        %v5659 = vld [vmem:[%s5646 + $0x30] sm:$0xf]
        %v5660 = vld [vmem:[%s5646 + $0x34] sm:$0xf]
        %v5661 = vld [vmem:[%s5646 + $0x38] sm:$0xf]
        %v5662 = vld [vmem:[%s5646 + $0x3c] sm:$0xf]
        %v5671 = vunpack.c.l.b16 %v5638
        %v5672 = vunpack.c.l.b16 %v5639
        %v5673 = vunpack.c.l.b16 %v5640
        %v5674 = vunpack.c.l.b16 %v5641
        %v5675 = vunpack.c.l.b16 %v5642
        %v5676 = vunpack.c.l.b16 %v5643
        %v5677 = vunpack.c.l.b16 %v5644
        %v5678 = vunpack.c.l.b16 %v5645
        %v5679 = vpack.c.b16 %v5672, %v5671
        %v5680 = vpack.c.b16 %v5674, %v5673
        %v5681 = vpack.c.b16 %v5676, %v5675
        %v5682 = vpack.c.b16 %v5678, %v5677
        %v5703 = vunpack.c.l.b16 %v5647
        %v5704 = vunpack.c.l.b16 %v5648
        %v5705 = vunpack.c.l.b16 %v5649
        %v5706 = vunpack.c.l.b16 %v5650
        %v5707 = vunpack.c.l.b16 %v5651
        %v5708 = vunpack.c.l.b16 %v5652
        %v5709 = vunpack.c.l.b16 %v5653
        %v5710 = vunpack.c.l.b16 %v5654
        %v5711 = vunpack.c.l.b16 %v5655
        %v5712 = vunpack.c.l.b16 %v5656
        %v5713 = vunpack.c.l.b16 %v5657
        %v5714 = vunpack.c.l.b16 %v5658
        %v5715 = vunpack.c.l.b16 %v5659
        %v5716 = vunpack.c.l.b16 %v5660
        %v5717 = vunpack.c.l.b16 %v5661
        %v5718 = vunpack.c.l.b16 %v5662
        %v5719 = vpack.c.b16 %v5704, %v5703
        %v5720 = vpack.c.b16 %v5706, %v5705
        %v5721 = vpack.c.b16 %v5708, %v5707
        %v5722 = vpack.c.b16 %v5710, %v5709
        %v5723 = vpack.c.b16 %v5712, %v5711
        %v5724 = vpack.c.b16 %v5714, %v5713
        %v5725 = vpack.c.b16 %v5716, %v5715
        %v5726 = vpack.c.b16 %v5718, %v5717
        %5735 = vmatprep.subr.bf16.mxu0 0
        %5736 = vmatpush1.bf16.msra.mxu0 %v5719
        %5737 = vmatprep.subr.bf16.mxu0 0
        %5738 = vmatpush1.bf16.msra.mxu0 %v5720
        %5739 = vmatprep.subr.bf16.mxu0 0
        %5740 = vmatpush1.bf16.msra.mxu0 %v5721
        %5741 = vmatprep.subr.bf16.mxu0 0
        %5742 = vmatpush1.bf16.msra.mxu0 %v5722
        %5743 = vmatprep.subr.bf16.mxu0 0
        %5744 = vmatpush1.bf16.msra.mxu0 %v5723
        %5745 = vmatprep.subr.bf16.mxu0 0
        %5746 = vmatpush1.bf16.msra.mxu0 %v5724
        %5747 = vmatprep.subr.bf16.mxu0 0
        %5748 = vmatpush1.bf16.msra.mxu0 %v5725
        %5749 = vmatprep.subr.bf16.mxu0 0
        %5750 = vmatpush1.bf16.msra.mxu0 %v5726
        %5751 = vmatprep.subr.bf16.mxu0 0
        %5752 = vmatpush1.bf16.msra.mxu0 0
        %5753 = vmatprep.subr.bf16.mxu0 0
        %5754 = vmatpush1.bf16.msra.mxu0 0
        %5755 = vmatprep.subr.bf16.mxu0 0
        %5756 = vmatpush1.bf16.msra.mxu0 0
        %5757 = vmatprep.subr.bf16.mxu0 0
        %5758 = vmatpush1.bf16.msra.mxu0 0
        %5759 = vmatprep.subr.bf16.mxu0 0
        %5760 = vmatpush1.bf16.msra.mxu0 0
        %5761 = vmatprep.subr.bf16.mxu0 0
        %5762 = vmatpush1.bf16.msra.mxu0 0
        %5763 = vmatprep.subr.bf16.mxu0 0
        %5764 = vmatpush1.bf16.msra.mxu0 0
        %5765 = vmatprep.subr.bf16.mxu0 0
        %5766 = vmatpush1.bf16.msra.mxu0 0
        %5767 = vmatprep.mubr.bf16.mxu0 0
        %5768 = vmatmul.mubr.bf16.gmra.mrb[0].mxu0 %v5679
        %v5769 = vpop.f32.mrb[0].mxu0
        %v5770 = vadd.f32 0.0, %v5769
        %v5771 = vpop.f32.mrb[0].mxu0
        %v5772 = vpop.f32.mrb[0].mxu0
        %v5773 = vadd.f32 0.0, %v5772
        %v5774 = vpop.f32.mrb[0].mxu0
        %5775 = vmatprep.mubr.bf16.mxu0 0
        %5776 = vmatmul.mubr.bf16.gmra.mrb[0].mxu0 %v5680
        %v5777 = vpop.f32.mrb[0].mxu0
        %v5778 = vadd.f32 0.0, %v5777
        %v5779 = vpop.f32.mrb[0].mxu0
        %v5780 = vpop.f32.mrb[0].mxu0
        %v5781 = vadd.f32 0.0, %v5780
        %v5782 = vpop.f32.mrb[0].mxu0
        %5783 = vmatprep.mubr.bf16.mxu0 0
        %5784 = vmatmul.mubr.bf16.gmra.mrb[0].mxu0 %v5681
        %v5785 = vpop.f32.mrb[0].mxu0
        %v5786 = vadd.f32 0.0, %v5785
        %v5787 = vpop.f32.mrb[0].mxu0
        %v5788 = vpop.f32.mrb[0].mxu0
        %v5789 = vadd.f32 0.0, %v5788
        %v5790 = vpop.f32.mrb[0].mxu0
        %5791 = vmatprep.mubr.bf16.mxu0 0
        %5792 = vmatmul.mubr.bf16.gmra.mrb[0].mxu0 %v5682
        %v5793 = vpop.f32.mrb[0].mxu0
        %v5794 = vadd.f32 0.0, %v5793
        %v5795 = vpop.f32.mrb[0].mxu0
        %v5796 = vpop.f32.mrb[0].mxu0
        %v5797 = vadd.f32 0.0, %v5796
        %v5798 = vpop.f32.mrb[0].mxu0
        %5799 = vdwg.mxu0
        %v5808 = vunpack.c.l.b16 %v5614
        %v5809 = vunpack.c.l.b16 %v5615
        %v5810 = vunpack.c.l.b16 %v5616
        %v5811 = vunpack.c.l.b16 %v5617
        %v5812 = vunpack.c.l.b16 %v5618
        %v5813 = vunpack.c.l.b16 %v5619
        %v5814 = vunpack.c.l.b16 %v5620
        %v5815 = vunpack.c.l.b16 %v5621
        %v5816 = vpack.c.b16 %v5809, %v5808
        %v5817 = vpack.c.b16 %v5811, %v5810
        %v5818 = vpack.c.b16 %v5813, %v5812
        %v5819 = vpack.c.b16 %v5815, %v5814
        %v5840 = vunpack.c.l.b16 %v5622
        %v5841 = vunpack.c.l.b16 %v5623
        %v5842 = vunpack.c.l.b16 %v5624
        %v5843 = vunpack.c.l.b16 %v5625
        %v5844 = vunpack.c.l.b16 %v5626
        %v5845 = vunpack.c.l.b16 %v5627
        %v5846 = vunpack.c.l.b16 %v5628
        %v5847 = vunpack.c.l.b16 %v5629
        %v5848 = vunpack.c.l.b16 %v5630
        %v5849 = vunpack.c.l.b16 %v5631
        %v5850 = vunpack.c.l.b16 %v5632
        %v5851 = vunpack.c.l.b16 %v5633
        %v5852 = vunpack.c.l.b16 %v5634
        %v5853 = vunpack.c.l.b16 %v5635
        %v5854 = vunpack.c.l.b16 %v5636
        %v5855 = vunpack.c.l.b16 %v5637
        %v5856 = vpack.c.b16 %v5841, %v5840
        %v5857 = vpack.c.b16 %v5843, %v5842
        %v5858 = vpack.c.b16 %v5845, %v5844
        %v5859 = vpack.c.b16 %v5847, %v5846
        %v5860 = vpack.c.b16 %v5849, %v5848
        %v5861 = vpack.c.b16 %v5851, %v5850
        %v5862 = vpack.c.b16 %v5853, %v5852
        %v5863 = vpack.c.b16 %v5855, %v5854
        %5872 = vmatprep.subr.bf16.mxu0 0
        %5873 = vmatpush1.bf16.msra.mxu0 %v5856
        %5874 = vmatprep.subr.bf16.mxu0 0
        %5875 = vmatpush1.bf16.msra.mxu0 %v5857
        %5876 = vmatprep.subr.bf16.mxu0 0
        %5877 = vmatpush1.bf16.msra.mxu0 %v5858
        %5878 = vmatprep.subr.bf16.mxu0 0
        %5879 = vmatpush1.bf16.msra.mxu0 %v5859
        %5880 = vmatprep.subr.bf16.mxu0 0
        %5881 = vmatpush1.bf16.msra.mxu0 %v5860
        %5882 = vmatprep.subr.bf16.mxu0 0
        %5883 = vmatpush1.bf16.msra.mxu0 %v5861
        %5884 = vmatprep.subr.bf16.mxu0 0
        %5885 = vmatpush1.bf16.msra.mxu0 %v5862
        %5886 = vmatprep.subr.bf16.mxu0 0
        %5887 = vmatpush1.bf16.msra.mxu0 %v5863
        %5888 = vmatprep.subr.bf16.mxu0 0
        %5889 = vmatpush1.bf16.msra.mxu0 0
        %5890 = vmatprep.subr.bf16.mxu0 0
        %5891 = vmatpush1.bf16.msra.mxu0 0
        %5892 = vmatprep.subr.bf16.mxu0 0
        %5893 = vmatpush1.bf16.msra.mxu0 0
        %5894 = vmatprep.subr.bf16.mxu0 0
        %5895 = vmatpush1.bf16.msra.mxu0 0
        %5896 = vmatprep.subr.bf16.mxu0 0
        %5897 = vmatpush1.bf16.msra.mxu0 0
        %5898 = vmatprep.subr.bf16.mxu0 0
        %5899 = vmatpush1.bf16.msra.mxu0 0
        %5900 = vmatprep.subr.bf16.mxu0 0
        %5901 = vmatpush1.bf16.msra.mxu0 0
        %5902 = vmatprep.subr.bf16.mxu0 0
        %5903 = vmatpush1.bf16.msra.mxu0 0
        %5904 = vmatprep.mubr.bf16.mxu0 0
        %5905 = vmatmul.mubr.bf16.gmra.mrb[0].mxu0 %v5816
        %v5906 = vpop.f32.mrb[0].mxu0
        %v5907 = vadd.f32 %v5770, %v5906
        %v5908 = vpop.f32.mrb[0].mxu0
        %v5909 = vpop.f32.mrb[0].mxu0
        %v5910 = vadd.f32 %v5773, %v5909
        %v5911 = vpop.f32.mrb[0].mxu0
        %5912 = vmatprep.mubr.bf16.mxu0 0
        %5913 = vmatmul.mubr.bf16.gmra.mrb[0].mxu0 %v5817
        %v5914 = vpop.f32.mrb[0].mxu0
        %v5915 = vadd.f32 %v5778, %v5914
        %v5916 = vpop.f32.mrb[0].mxu0
        %v5917 = vpop.f32.mrb[0].mxu0
        %v5918 = vadd.f32 %v5781, %v5917
        %v5919 = vpop.f32.mrb[0].mxu0
        %5920 = vmatprep.mubr.bf16.mxu0 0
        %5921 = vmatmul.mubr.bf16.gmra.mrb[0].mxu0 %v5818
        %v5922 = vpop.f32.mrb[0].mxu0
        %v5923 = vadd.f32 %v5786, %v5922
        %v5924 = vpop.f32.mrb[0].mxu0
        %v5925 = vpop.f32.mrb[0].mxu0
        %v5926 = vadd.f32 %v5789, %v5925
        %v5927 = vpop.f32.mrb[0].mxu0
        %5928 = vmatprep.mubr.bf16.mxu0 0
        %5929 = vmatmul.mubr.bf16.gmra.mrb[0].mxu0 %v5819
        %v5930 = vpop.f32.mrb[0].mxu0
        %v5931 = vadd.f32 %v5794, %v5930
        %v5932 = vpop.f32.mrb[0].mxu0
        %v5933 = vpop.f32.mrb[0].mxu0
        %v5934 = vadd.f32 %v5797, %v5933
        %v5935 = vpop.f32.mrb[0].mxu0
        %5936 = vdwg.mxu0
        %s5937 = scalar_lea.vmem [#allocation3], 8
        %v5938 = vld [vmem:[%s5937] sm:$0xf]
        %v5939 = vld [vmem:[%s5937 + $0x4] sm:$0xf]
        %v5940 = vld [vmem:[%s5937 + $0x8] sm:$0xf]
        %v5941 = vld [vmem:[%s5937 + $0xc] sm:$0xf]
        %v5942 = vld [vmem:[%s5937 + $0x10] sm:$0xf]
        %v5943 = vld [vmem:[%s5937 + $0x14] sm:$0xf]
        %v5944 = vld [vmem:[%s5937 + $0x18] sm:$0xf]
        %v5945 = vld [vmem:[%s5937 + $0x1c] sm:$0xf]
        %s5946 = scalar_lea.vmem %s37, 128
        %v5947 = vld [vmem:[%s5946] sm:$0xf]
        %v5948 = vld [vmem:[%s5946 + $0x4] sm:$0xf]
        %v5949 = vld [vmem:[%s5946 + $0x8] sm:$0xf]
        %v5950 = vld [vmem:[%s5946 + $0xc] sm:$0xf]
        %v5951 = vld [vmem:[%s5946 + $0x10] sm:$0xf]
        %v5952 = vld [vmem:[%s5946 + $0x14] sm:$0xf]
        %v5953 = vld [vmem:[%s5946 + $0x18] sm:$0xf]
        %v5954 = vld [vmem:[%s5946 + $0x1c] sm:$0xf]
        %v5955 = vld [vmem:[%s5946 + $0x20] sm:$0xf]
        %v5956 = vld [vmem:[%s5946 + $0x24] sm:$0xf]
        %v5957 = vld [vmem:[%s5946 + $0x28] sm:$0xf]
        %v5958 = vld [vmem:[%s5946 + $0x2c] sm:$0xf]
        %v5959 = vld [vmem:[%s5946 + $0x30] sm:$0xf]
        %v5960 = vld [vmem:[%s5946 + $0x34] sm:$0xf]
        %v5961 = vld [vmem:[%s5946 + $0x38] sm:$0xf]
        %v5962 = vld [vmem:[%s5946 + $0x3c] sm:$0xf]
        %v5971 = vunpack.c.l.b16 %v5938
        %v5972 = vunpack.c.l.b16 %v5939
        %v5973 = vunpack.c.l.b16 %v5940
        %v5974 = vunpack.c.l.b16 %v5941
        %v5975 = vunpack.c.l.b16 %v5942
        %v5976 = vunpack.c.l.b16 %v5943
        %v5977 = vunpack.c.l.b16 %v5944
        %v5978 = vunpack.c.l.b16 %v5945
        %v5979 = vpack.c.b16 %v5972, %v5971
        %v5980 = vpack.c.b16 %v5974, %v5973
        %v5981 = vpack.c.b16 %v5976, %v5975
        %v5982 = vpack.c.b16 %v5978, %v5977
        %v6003 = vunpack.c.l.b16 %v5947
        %v6004 = vunpack.c.l.b16 %v5948
        %v6005 = vunpack.c.l.b16 %v5949
        %v6006 = vunpack.c.l.b16 %v5950
        %v6007 = vunpack.c.l.b16 %v5951
        %v6008 = vunpack.c.l.b16 %v5952
        %v6009 = vunpack.c.l.b16 %v5953
        %v6010 = vunpack.c.l.b16 %v5954
        %v6011 = vunpack.c.l.b16 %v5955
        %v6012 = vunpack.c.l.b16 %v5956
        %v6013 = vunpack.c.l.b16 %v5957
        %v6014 = vunpack.c.l.b16 %v5958
        %v6015 = vunpack.c.l.b16 %v5959
        %v6016 = vunpack.c.l.b16 %v5960
        %v6017 = vunpack.c.l.b16 %v5961
        %v6018 = vunpack.c.l.b16 %v5962
        %v6019 = vpack.c.b16 %v6004, %v6003
        %v6020 = vpack.c.b16 %v6006, %v6005
        %v6021 = vpack.c.b16 %v6008, %v6007
        %v6022 = vpack.c.b16 %v6010, %v6009
        %v6023 = vpack.c.b16 %v6012, %v6011
        %v6024 = vpack.c.b16 %v6014, %v6013
        %v6025 = vpack.c.b16 %v6016, %v6015
        %v6026 = vpack.c.b16 %v6018, %v6017
        %6035 = vmatprep.subr.bf16.mxu0 0
        %6036 = vmatpush1.bf16.msra.mxu0 %v6019
        %6037 = vmatprep.subr.bf16.mxu0 0
        %6038 = vmatpush1.bf16.msra.mxu0 %v6020
        %6039 = vmatprep.subr.bf16.mxu0 0
        %6040 = vmatpush1.bf16.msra.mxu0 %v6021
        %6041 = vmatprep.subr.bf16.mxu0 0
        %6042 = vmatpush1.bf16.msra.mxu0 %v6022
        %6043 = vmatprep.subr.bf16.mxu0 0
        %6044 = vmatpush1.bf16.msra.mxu0 %v6023
        %6045 = vmatprep.subr.bf16.mxu0 0
        %6046 = vmatpush1.bf16.msra.mxu0 %v6024
        %6047 = vmatprep.subr.bf16.mxu0 0
        %6048 = vmatpush1.bf16.msra.mxu0 %v6025
        %6049 = vmatprep.subr.bf16.mxu0 0
        %6050 = vmatpush1.bf16.msra.mxu0 %v6026
        %6051 = vmatprep.subr.bf16.mxu0 0
        %6052 = vmatpush1.bf16.msra.mxu0 0
        %6053 = vmatprep.subr.bf16.mxu0 0
        %6054 = vmatpush1.bf16.msra.mxu0 0
        %6055 = vmatprep.subr.bf16.mxu0 0
        %6056 = vmatpush1.bf16.msra.mxu0 0
        %6057 = vmatprep.subr.bf16.mxu0 0
        %6058 = vmatpush1.bf16.msra.mxu0 0
        %6059 = vmatprep.subr.bf16.mxu0 0
        %6060 = vmatpush1.bf16.msra.mxu0 0
        %6061 = vmatprep.subr.bf16.mxu0 0
        %6062 = vmatpush1.bf16.msra.mxu0 0
        %6063 = vmatprep.subr.bf16.mxu0 0
        %6064 = vmatpush1.bf16.msra.mxu0 0
        %6065 = vmatprep.subr.bf16.mxu0 0
        %6066 = vmatpush1.bf16.msra.mxu0 0
        %6067 = vmatprep.mubr.bf16.mxu0 0
        %6068 = vmatmul.mubr.bf16.gmra.mrb[0].mxu0 %v5979
        %v6069 = vpop.f32.mrb[0].mxu0
        %v6070 = vadd.f32 0.0, %v6069
        %v6071 = vpop.f32.mrb[0].mxu0
        %v6072 = vpop.f32.mrb[0].mxu0
        %v6073 = vadd.f32 0.0, %v6072
        %v6074 = vpop.f32.mrb[0].mxu0
        %6075 = vmatprep.mubr.bf16.mxu0 0
        %6076 = vmatmul.mubr.bf16.gmra.mrb[0].mxu0 %v5980
        %v6077 = vpop.f32.mrb[0].mxu0
        %v6078 = vadd.f32 0.0, %v6077
        %v6079 = vpop.f32.mrb[0].mxu0
        %v6080 = vpop.f32.mrb[0].mxu0
        %v6081 = vadd.f32 0.0, %v6080
        %v6082 = vpop.f32.mrb[0].mxu0
        %6083 = vmatprep.mubr.bf16.mxu0 0
        %6084 = vmatmul.mubr.bf16.gmra.mrb[0].mxu0 %v5981
        %v6085 = vpop.f32.mrb[0].mxu0
        %v6086 = vadd.f32 0.0, %v6085
        %v6087 = vpop.f32.mrb[0].mxu0
        %v6088 = vpop.f32.mrb[0].mxu0
        %v6089 = vadd.f32 0.0, %v6088
        %v6090 = vpop.f32.mrb[0].mxu0
        %6091 = vmatprep.mubr.bf16.mxu0 0
        %6092 = vmatmul.mubr.bf16.gmra.mrb[0].mxu0 %v5982
        %v6093 = vpop.f32.mrb[0].mxu0
        %v6094 = vadd.f32 0.0, %v6093
        %v6095 = vpop.f32.mrb[0].mxu0
        %v6096 = vpop.f32.mrb[0].mxu0
        %v6097 = vadd.f32 0.0, %v6096
        %v6098 = vpop.f32.mrb[0].mxu0
        %6099 = vdwg.mxu0
        %v6100 = vadd.f32 %v5907, %v6070
        %v6101 = vadd.f32 %v5910, %v6073
        %v6102 = vadd.f32 %v5915, %v6078
        %v6103 = vadd.f32 %v5918, %v6081
        %v6104 = vadd.f32 %v5923, %v6086
        %v6105 = vadd.f32 %v5926, %v6089
        %v6106 = vadd.f32 %v5931, %v6094
        %v6107 = vadd.f32 %v5934, %v6097
        %v6108 = vld [vmem:[%s39] sm:$0x1]
        %v6110 = vlaneseq
        %v6111 = vshrl.u32 %v6110, 7
        %v6112 = vsub.s32 0, %v6111
        %v6113 = vrot.slane %v6108, %v6112
        %v6115 = vadd.f32 %v6100, %v6113
        %v6116 = vadd.f32 %v6101, %v6113
        %v6117 = vadd.f32 %v6102, %v6113
        %v6118 = vadd.f32 %v6103, %v6113
        %v6119 = vadd.f32 %v6104, %v6113
        %v6120 = vadd.f32 %v6105, %v6113
        %v6121 = vadd.f32 %v6106, %v6113
        %v6122 = vadd.f32 %v6107, %v6113
        %v6123 = vmax.f32 %v6115, 0.0
        %v6124 = vmax.f32 %v6116, 0.0
        %v6125 = vmax.f32 %v6117, 0.0
        %v6126 = vmax.f32 %v6118, 0.0
        %v6127 = vmax.f32 %v6119, 0.0
        %v6128 = vmax.f32 %v6120, 0.0
        %v6129 = vmax.f32 %v6121, 0.0
        %v6130 = vmax.f32 %v6122, 0.0
        %v6131 = vpack.c.bf16 %v6123, %v6123
        %v6132 = vpack.c.bf16 %v6124, %v6124
        %v6133 = vpack.c.bf16 %v6125, %v6125
        %v6134 = vpack.c.bf16 %v6126, %v6126
        %v6135 = vpack.c.bf16 %v6127, %v6127
        %v6136 = vpack.c.bf16 %v6128, %v6128
        %v6137 = vpack.c.bf16 %v6129, %v6129
        %v6138 = vpack.c.bf16 %v6130, %v6130
        %v6140 = vshrl.u32 %v6131, 16
        %v6142 = vrot.slane %v6140, 7
        %v6143 = vshll.u32 %v6131, 16
        %v6145 = vor.u32 %v6142, %v6143
        %v6147 = vshrl.u32 %v6132, 16
        %v6149 = vrot.slane %v6147, 7
        %v6150 = vshll.u32 %v6132, 16
        %v6152 = vor.u32 %v6149, %v6150
        %v6154 = vshrl.u32 %v6133, 16
        %v6156 = vrot.slane %v6154, 7
        %v6157 = vshll.u32 %v6133, 16
        %v6159 = vor.u32 %v6156, %v6157
        %v6161 = vshrl.u32 %v6134, 16
        %v6163 = vrot.slane %v6161, 7
        %v6164 = vshll.u32 %v6134, 16
        %v6166 = vor.u32 %v6163, %v6164
        %v6168 = vshrl.u32 %v6135, 16
        %v6170 = vrot.slane %v6168, 7
        %v6171 = vshll.u32 %v6135, 16
        %v6173 = vor.u32 %v6170, %v6171
        %v6175 = vshrl.u32 %v6136, 16
        %v6177 = vrot.slane %v6175, 7
        %v6178 = vshll.u32 %v6136, 16
        %v6180 = vor.u32 %v6177, %v6178
        %v6182 = vshrl.u32 %v6137, 16
        %v6184 = vrot.slane %v6182, 7
        %v6185 = vshll.u32 %v6137, 16
        %v6187 = vor.u32 %v6184, %v6185
        %v6189 = vshrl.u32 %v6138, 16
        %v6191 = vrot.slane %v6189, 7
        %v6192 = vshll.u32 %v6138, 16
        %v6194 = vor.u32 %v6191, %v6192
        %v6203 = vsel %vm1281, 0, %v6145
        %v6204 = vsel %vm1281, 0, %v6152
        %v6205 = vsel %vm1281, 0, %v6159
        %v6206 = vsel %vm1281, 0, %v6166
        %v6207 = vsel %vm1281, 0, %v6173
        %v6208 = vsel %vm1281, 0, %v6180
        %v6209 = vsel %vm1281, 0, %v6187
        %v6210 = vsel %vm1281, 0, %v6194
        %v6211 = vrot.slane %v6143, 1
        %v6212 = vor.u32 %v6140, %v6211
        %v6213 = vrot.slane %v6150, 1
        %v6214 = vor.u32 %v6147, %v6213
        %v6215 = vrot.slane %v6157, 1
        %v6216 = vor.u32 %v6154, %v6215
        %v6217 = vrot.slane %v6164, 1
        %v6218 = vor.u32 %v6161, %v6217
        %v6219 = vrot.slane %v6171, 1
        %v6220 = vor.u32 %v6168, %v6219
        %v6221 = vrot.slane %v6178, 1
        %v6222 = vor.u32 %v6175, %v6221
        %v6223 = vrot.slane %v6185, 1
        %v6224 = vor.u32 %v6182, %v6223
        %v6225 = vrot.slane %v6192, 1
        %v6226 = vor.u32 %v6189, %v6225
        %v6235 = vsel %vm5492, %v6212, 0
        %v6236 = vsel %vm5492, %v6214, 0
        %v6237 = vsel %vm5492, %v6216, 0
        %v6238 = vsel %vm5492, %v6218, 0
        %v6239 = vsel %vm5492, %v6220, 0
        %v6240 = vsel %vm5492, %v6222, 0
        %v6241 = vsel %vm5492, %v6224, 0
        %v6242 = vsel %vm5492, %v6226, 0
        %6251 = vrot.lane.b32.xlu0 %v6131, 32
        %v6252 = vpop.permute.xlu0 %6251
        %6253 = vrot.lane.b32.xlu0 %v6132, 32
        %v6254 = vpop.permute.xlu0 %6253
        %6255 = vrot.lane.b32.xlu0 %v6133, 32
        %v6256 = vpop.permute.xlu0 %6255
        %6257 = vrot.lane.b32.xlu0 %v6134, 32
        %v6258 = vpop.permute.xlu0 %6257
        %6259 = vrot.lane.b32.xlu0 %v6135, 32
        %v6260 = vpop.permute.xlu0 %6259
        %6261 = vrot.lane.b32.xlu0 %v6136, 32
        %v6262 = vpop.permute.xlu0 %6261
        %6263 = vrot.lane.b32.xlu0 %v6137, 32
        %v6264 = vpop.permute.xlu0 %6263
        %6265 = vrot.lane.b32.xlu0 %v6138, 32
        %v6266 = vpop.permute.xlu0 %6265
        %6275 = vrot.lane.b32.xlu0 %v6235, 64
        %v6276 = vpop.permute.xlu0 %6275
        %6277 = vrot.lane.b32.xlu0 %v6236, 64
        %v6278 = vpop.permute.xlu0 %6277
        %6279 = vrot.lane.b32.xlu0 %v6237, 64
        %v6280 = vpop.permute.xlu0 %6279
        %6281 = vrot.lane.b32.xlu0 %v6238, 64
        %v6282 = vpop.permute.xlu0 %6281
        %6283 = vrot.lane.b32.xlu0 %v6239, 64
        %v6284 = vpop.permute.xlu0 %6283
        %6285 = vrot.lane.b32.xlu0 %v6240, 64
        %v6286 = vpop.permute.xlu0 %6285
        %6287 = vrot.lane.b32.xlu0 %v6241, 64
        %v6288 = vpop.permute.xlu0 %6287
        %6289 = vrot.lane.b32.xlu0 %v6242, 64
        %v6290 = vpop.permute.xlu0 %6289
        %v6293 = vsel %vm1461, %v6203, %v6252
        %v6296 = vsel %vm1461, %v6204, %v6254
        %v6299 = vsel %vm1461, %v6205, %v6256
        %v6302 = vsel %vm1461, %v6206, %v6258
        %v6305 = vsel %vm1461, %v6207, %v6260
        %v6308 = vsel %vm1461, %v6208, %v6262
        %v6311 = vsel %vm1461, %v6209, %v6264
        %v6314 = vsel %vm1461, %v6210, %v6266
        %v6316 = vsel %vm1510, %v6293, %v6276
        %v6318 = vsel %vm1510, %v6296, %v6278
        %v6320 = vsel %vm1510, %v6299, %v6280
        %v6322 = vsel %vm1510, %v6302, %v6282
        %v6324 = vsel %vm1510, %v6305, %v6284
        %v6326 = vsel %vm1510, %v6308, %v6286
        %v6328 = vsel %vm1510, %v6311, %v6288
        %v6330 = vsel %vm1510, %v6314, %v6290
        %v6331 = vsel %vm1543, %v6316, 0
        %v6333 = vsel %vm1543, %v6318, 0
        %v6335 = vsel %vm1543, %v6320, 0
        %v6337 = vsel %vm1543, %v6322, 0
        %v6339 = vsel %vm1543, %v6324, 0
        %v6341 = vsel %vm1543, %v6326, 0
        %v6343 = vsel %vm1543, %v6328, 0
        %v6345 = vsel %vm1543, %v6330, 0
        %6347 = vst [vmem:[%s5605] sm:$0xf] %v6331
        %6348 = vst [vmem:[%s5605 + $0x4] sm:$0xf] %v6333
        %6349 = vst [vmem:[%s5605 + $0x8] sm:$0xf] %v6335
        %6350 = vst [vmem:[%s5605 + $0xc] sm:$0xf] %v6337
        %6351 = vst [vmem:[%s5605 + $0x10] sm:$0xf] %v6339
        %6352 = vst [vmem:[%s5605 + $0x14] sm:$0xf] %v6341
        %6353 = vst [vmem:[%s5605 + $0x18] sm:$0xf] %v6343
        %6354 = vst [vmem:[%s5605 + $0x1c] sm:$0xf] %v6345
        %v6355 = vld [vmem:[#allocation3] sm:$0xf]
        %v6356 = vld [vmem:[#allocation3 + $0x4] sm:$0xf]
        %v6357 = vld [vmem:[#allocation3 + $0x8] sm:$0xf]
        %v6358 = vld [vmem:[#allocation3 + $0xc] sm:$0xf]
        %v6359 = vld [vmem:[#allocation3 + $0x10] sm:$0xf]
        %v6360 = vld [vmem:[#allocation3 + $0x14] sm:$0xf]
        %v6361 = vld [vmem:[#allocation3 + $0x18] sm:$0xf]
        %v6362 = vld [vmem:[#allocation3 + $0x1c] sm:$0xf]
        %v6363 = vld [vmem:[%s41] sm:$0xf]
        %v6364 = vld [vmem:[%s41 + $0x4] sm:$0xf]
        %v6365 = vld [vmem:[%s41 + $0x8] sm:$0xf]
        %v6366 = vld [vmem:[%s41 + $0xc] sm:$0xf]
        %v6367 = vld [vmem:[%s41 + $0x10] sm:$0xf]
        %v6368 = vld [vmem:[%s41 + $0x14] sm:$0xf]
        %v6369 = vld [vmem:[%s41 + $0x18] sm:$0xf]
        %v6370 = vld [vmem:[%s41 + $0x1c] sm:$0xf]
        %v6371 = vld [vmem:[%s41 + $0x20] sm:$0xf]
        %v6372 = vld [vmem:[%s41 + $0x24] sm:$0xf]
        %v6373 = vld [vmem:[%s41 + $0x28] sm:$0xf]
        %v6374 = vld [vmem:[%s41 + $0x2c] sm:$0xf]
        %v6375 = vld [vmem:[%s41 + $0x30] sm:$0xf]
        %v6376 = vld [vmem:[%s41 + $0x34] sm:$0xf]
        %v6377 = vld [vmem:[%s41 + $0x38] sm:$0xf]
        %v6378 = vld [vmem:[%s41 + $0x3c] sm:$0xf]
        %v6379 = vld [vmem:[%s5605] sm:$0xf]
        %v6380 = vld [vmem:[%s5605 + $0x4] sm:$0xf]
        %v6381 = vld [vmem:[%s5605 + $0x8] sm:$0xf]
        %v6382 = vld [vmem:[%s5605 + $0xc] sm:$0xf]
        %v6383 = vld [vmem:[%s5605 + $0x10] sm:$0xf]
        %v6384 = vld [vmem:[%s5605 + $0x14] sm:$0xf]
        %v6385 = vld [vmem:[%s5605 + $0x18] sm:$0xf]
        %v6386 = vld [vmem:[%s5605 + $0x1c] sm:$0xf]
        %s6387 = scalar_lea.vmem %s41, 64
        %v6388 = vld [vmem:[%s6387] sm:$0xf]
        %v6389 = vld [vmem:[%s6387 + $0x4] sm:$0xf]
        %v6390 = vld [vmem:[%s6387 + $0x8] sm:$0xf]
        %v6391 = vld [vmem:[%s6387 + $0xc] sm:$0xf]
        %v6392 = vld [vmem:[%s6387 + $0x10] sm:$0xf]
        %v6393 = vld [vmem:[%s6387 + $0x14] sm:$0xf]
        %v6394 = vld [vmem:[%s6387 + $0x18] sm:$0xf]
        %v6395 = vld [vmem:[%s6387 + $0x1c] sm:$0xf]
        %v6396 = vld [vmem:[%s6387 + $0x20] sm:$0xf]
        %v6397 = vld [vmem:[%s6387 + $0x24] sm:$0xf]
        %v6398 = vld [vmem:[%s6387 + $0x28] sm:$0xf]
        %v6399 = vld [vmem:[%s6387 + $0x2c] sm:$0xf]
        %v6400 = vld [vmem:[%s6387 + $0x30] sm:$0xf]
        %v6401 = vld [vmem:[%s6387 + $0x34] sm:$0xf]
        %v6402 = vld [vmem:[%s6387 + $0x38] sm:$0xf]
        %v6403 = vld [vmem:[%s6387 + $0x3c] sm:$0xf]
        %v6412 = vunpack.c.l.b16 %v6379
        %v6413 = vunpack.c.l.b16 %v6380
        %v6414 = vunpack.c.l.b16 %v6381
        %v6415 = vunpack.c.l.b16 %v6382
        %v6416 = vunpack.c.l.b16 %v6383
        %v6417 = vunpack.c.l.b16 %v6384
        %v6418 = vunpack.c.l.b16 %v6385
        %v6419 = vunpack.c.l.b16 %v6386
        %v6420 = vpack.c.b16 %v6413, %v6412
        %v6421 = vpack.c.b16 %v6415, %v6414
        %v6422 = vpack.c.b16 %v6417, %v6416
        %v6423 = vpack.c.b16 %v6419, %v6418
        %v6444 = vunpack.c.l.b16 %v6388
        %v6445 = vunpack.c.l.b16 %v6389
        %v6446 = vunpack.c.l.b16 %v6390
        %v6447 = vunpack.c.l.b16 %v6391
        %v6448 = vunpack.c.l.b16 %v6392
        %v6449 = vunpack.c.l.b16 %v6393
        %v6450 = vunpack.c.l.b16 %v6394
        %v6451 = vunpack.c.l.b16 %v6395
        %v6452 = vunpack.c.l.b16 %v6396
        %v6453 = vunpack.c.l.b16 %v6397
        %v6454 = vunpack.c.l.b16 %v6398
        %v6455 = vunpack.c.l.b16 %v6399
        %v6456 = vunpack.c.l.b16 %v6400
        %v6457 = vunpack.c.l.b16 %v6401
        %v6458 = vunpack.c.l.b16 %v6402
        %v6459 = vunpack.c.l.b16 %v6403
        %v6460 = vpack.c.b16 %v6445, %v6444
        %v6461 = vpack.c.b16 %v6447, %v6446
        %v6462 = vpack.c.b16 %v6449, %v6448
        %v6463 = vpack.c.b16 %v6451, %v6450
        %v6464 = vpack.c.b16 %v6453, %v6452
        %v6465 = vpack.c.b16 %v6455, %v6454
        %v6466 = vpack.c.b16 %v6457, %v6456
        %v6467 = vpack.c.b16 %v6459, %v6458
        %6476 = vmatprep.subr.bf16.mxu0 0
        %6477 = vmatpush1.bf16.msra.mxu0 %v6460
        %6478 = vmatprep.subr.bf16.mxu0 0
        %6479 = vmatpush1.bf16.msra.mxu0 %v6461
        %6480 = vmatprep.subr.bf16.mxu0 0
        %6481 = vmatpush1.bf16.msra.mxu0 %v6462
        %6482 = vmatprep.subr.bf16.mxu0 0
        %6483 = vmatpush1.bf16.msra.mxu0 %v6463
        %6484 = vmatprep.subr.bf16.mxu0 0
        %6485 = vmatpush1.bf16.msra.mxu0 %v6464
        %6486 = vmatprep.subr.bf16.mxu0 0
        %6487 = vmatpush1.bf16.msra.mxu0 %v6465
        %6488 = vmatprep.subr.bf16.mxu0 0
        %6489 = vmatpush1.bf16.msra.mxu0 %v6466
        %6490 = vmatprep.subr.bf16.mxu0 0
        %6491 = vmatpush1.bf16.msra.mxu0 %v6467
        %6492 = vmatprep.subr.bf16.mxu0 0
        %6493 = vmatpush1.bf16.msra.mxu0 0
        %6494 = vmatprep.subr.bf16.mxu0 0
        %6495 = vmatpush1.bf16.msra.mxu0 0
        %6496 = vmatprep.subr.bf16.mxu0 0
        %6497 = vmatpush1.bf16.msra.mxu0 0
        %6498 = vmatprep.subr.bf16.mxu0 0
        %6499 = vmatpush1.bf16.msra.mxu0 0
        %6500 = vmatprep.subr.bf16.mxu0 0
        %6501 = vmatpush1.bf16.msra.mxu0 0
        %6502 = vmatprep.subr.bf16.mxu0 0
        %6503 = vmatpush1.bf16.msra.mxu0 0
        %6504 = vmatprep.subr.bf16.mxu0 0
        %6505 = vmatpush1.bf16.msra.mxu0 0
        %6506 = vmatprep.subr.bf16.mxu0 0
        %6507 = vmatpush1.bf16.msra.mxu0 0
        %6508 = vmatprep.mubr.bf16.mxu0 0
        %6509 = vmatmul.mubr.bf16.gmra.mrb[0].mxu0 %v6420
        %v6510 = vpop.f32.mrb[0].mxu0
        %v6511 = vadd.f32 0.0, %v6510
        %v6512 = vpop.f32.mrb[0].mxu0
        %v6513 = vpop.f32.mrb[0].mxu0
        %v6514 = vadd.f32 0.0, %v6513
        %v6515 = vpop.f32.mrb[0].mxu0
        %6516 = vmatprep.mubr.bf16.mxu0 0
        %6517 = vmatmul.mubr.bf16.gmra.mrb[0].mxu0 %v6421
        %v6518 = vpop.f32.mrb[0].mxu0
        %v6519 = vadd.f32 0.0, %v6518
        %v6520 = vpop.f32.mrb[0].mxu0
        %v6521 = vpop.f32.mrb[0].mxu0
        %v6522 = vadd.f32 0.0, %v6521
        %v6523 = vpop.f32.mrb[0].mxu0
        %6524 = vmatprep.mubr.bf16.mxu0 0
        %6525 = vmatmul.mubr.bf16.gmra.mrb[0].mxu0 %v6422
        %v6526 = vpop.f32.mrb[0].mxu0
        %v6527 = vadd.f32 0.0, %v6526
        %v6528 = vpop.f32.mrb[0].mxu0
        %v6529 = vpop.f32.mrb[0].mxu0
        %v6530 = vadd.f32 0.0, %v6529
        %v6531 = vpop.f32.mrb[0].mxu0
        %6532 = vmatprep.mubr.bf16.mxu0 0
        %6533 = vmatmul.mubr.bf16.gmra.mrb[0].mxu0 %v6423
        %v6534 = vpop.f32.mrb[0].mxu0
        %v6535 = vadd.f32 0.0, %v6534
        %v6536 = vpop.f32.mrb[0].mxu0
        %v6537 = vpop.f32.mrb[0].mxu0
        %v6538 = vadd.f32 0.0, %v6537
        %v6539 = vpop.f32.mrb[0].mxu0
        %6540 = vdwg.mxu0
        %v6549 = vunpack.c.l.b16 %v6355
        %v6550 = vunpack.c.l.b16 %v6356
        %v6551 = vunpack.c.l.b16 %v6357
        %v6552 = vunpack.c.l.b16 %v6358
        %v6553 = vunpack.c.l.b16 %v6359
        %v6554 = vunpack.c.l.b16 %v6360
        %v6555 = vunpack.c.l.b16 %v6361
        %v6556 = vunpack.c.l.b16 %v6362
        %v6557 = vpack.c.b16 %v6550, %v6549
        %v6558 = vpack.c.b16 %v6552, %v6551
        %v6559 = vpack.c.b16 %v6554, %v6553
        %v6560 = vpack.c.b16 %v6556, %v6555
        %v6581 = vunpack.c.l.b16 %v6363
        %v6582 = vunpack.c.l.b16 %v6364
        %v6583 = vunpack.c.l.b16 %v6365
        %v6584 = vunpack.c.l.b16 %v6366
        %v6585 = vunpack.c.l.b16 %v6367
        %v6586 = vunpack.c.l.b16 %v6368
        %v6587 = vunpack.c.l.b16 %v6369
        %v6588 = vunpack.c.l.b16 %v6370
        %v6589 = vunpack.c.l.b16 %v6371
        %v6590 = vunpack.c.l.b16 %v6372
        %v6591 = vunpack.c.l.b16 %v6373
        %v6592 = vunpack.c.l.b16 %v6374
        %v6593 = vunpack.c.l.b16 %v6375
        %v6594 = vunpack.c.l.b16 %v6376
        %v6595 = vunpack.c.l.b16 %v6377
        %v6596 = vunpack.c.l.b16 %v6378
        %v6597 = vpack.c.b16 %v6582, %v6581
        %v6598 = vpack.c.b16 %v6584, %v6583
        %v6599 = vpack.c.b16 %v6586, %v6585
        %v6600 = vpack.c.b16 %v6588, %v6587
        %v6601 = vpack.c.b16 %v6590, %v6589
        %v6602 = vpack.c.b16 %v6592, %v6591
        %v6603 = vpack.c.b16 %v6594, %v6593
        %v6604 = vpack.c.b16 %v6596, %v6595
        %6613 = vmatprep.subr.bf16.mxu0 0
        %6614 = vmatpush1.bf16.msra.mxu0 %v6597
        %6615 = vmatprep.subr.bf16.mxu0 0
        %6616 = vmatpush1.bf16.msra.mxu0 %v6598
        %6617 = vmatprep.subr.bf16.mxu0 0
        %6618 = vmatpush1.bf16.msra.mxu0 %v6599
        %6619 = vmatprep.subr.bf16.mxu0 0
        %6620 = vmatpush1.bf16.msra.mxu0 %v6600
        %6621 = vmatprep.subr.bf16.mxu0 0
        %6622 = vmatpush1.bf16.msra.mxu0 %v6601
        %6623 = vmatprep.subr.bf16.mxu0 0
        %6624 = vmatpush1.bf16.msra.mxu0 %v6602
        %6625 = vmatprep.subr.bf16.mxu0 0
        %6626 = vmatpush1.bf16.msra.mxu0 %v6603
        %6627 = vmatprep.subr.bf16.mxu0 0
        %6628 = vmatpush1.bf16.msra.mxu0 %v6604
        %6629 = vmatprep.subr.bf16.mxu0 0
        %6630 = vmatpush1.bf16.msra.mxu0 0
        %6631 = vmatprep.subr.bf16.mxu0 0
        %6632 = vmatpush1.bf16.msra.mxu0 0
        %6633 = vmatprep.subr.bf16.mxu0 0
        %6634 = vmatpush1.bf16.msra.mxu0 0
        %6635 = vmatprep.subr.bf16.mxu0 0
        %6636 = vmatpush1.bf16.msra.mxu0 0
        %6637 = vmatprep.subr.bf16.mxu0 0
        %6638 = vmatpush1.bf16.msra.mxu0 0
        %6639 = vmatprep.subr.bf16.mxu0 0
        %6640 = vmatpush1.bf16.msra.mxu0 0
        %6641 = vmatprep.subr.bf16.mxu0 0
        %6642 = vmatpush1.bf16.msra.mxu0 0
        %6643 = vmatprep.subr.bf16.mxu0 0
        %6644 = vmatpush1.bf16.msra.mxu0 0
        %6645 = vmatprep.mubr.bf16.mxu0 0
        %6646 = vmatmul.mubr.bf16.gmra.mrb[0].mxu0 %v6557
        %v6647 = vpop.f32.mrb[0].mxu0
        %v6648 = vadd.f32 %v6511, %v6647
        %v6649 = vpop.f32.mrb[0].mxu0
        %v6650 = vpop.f32.mrb[0].mxu0
        %v6651 = vadd.f32 %v6514, %v6650
        %v6652 = vpop.f32.mrb[0].mxu0
        %6653 = vmatprep.mubr.bf16.mxu0 0
        %6654 = vmatmul.mubr.bf16.gmra.mrb[0].mxu0 %v6558
        %v6655 = vpop.f32.mrb[0].mxu0
        %v6656 = vadd.f32 %v6519, %v6655
        %v6657 = vpop.f32.mrb[0].mxu0
        %v6658 = vpop.f32.mrb[0].mxu0
        %v6659 = vadd.f32 %v6522, %v6658
        %v6660 = vpop.f32.mrb[0].mxu0
        %6661 = vmatprep.mubr.bf16.mxu0 0
        %6662 = vmatmul.mubr.bf16.gmra.mrb[0].mxu0 %v6559
        %v6663 = vpop.f32.mrb[0].mxu0
        %v6664 = vadd.f32 %v6527, %v6663
        %v6665 = vpop.f32.mrb[0].mxu0
        %v6666 = vpop.f32.mrb[0].mxu0
        %v6667 = vadd.f32 %v6530, %v6666
        %v6668 = vpop.f32.mrb[0].mxu0
        %6669 = vmatprep.mubr.bf16.mxu0 0
        %6670 = vmatmul.mubr.bf16.gmra.mrb[0].mxu0 %v6560
        %v6671 = vpop.f32.mrb[0].mxu0
        %v6672 = vadd.f32 %v6535, %v6671
        %v6673 = vpop.f32.mrb[0].mxu0
        %v6674 = vpop.f32.mrb[0].mxu0
        %v6675 = vadd.f32 %v6538, %v6674
        %v6676 = vpop.f32.mrb[0].mxu0
        %6677 = vdwg.mxu0
        %v6678 = vld [vmem:[%s5937] sm:$0xf]
        %v6679 = vld [vmem:[%s5937 + $0x4] sm:$0xf]
        %v6680 = vld [vmem:[%s5937 + $0x8] sm:$0xf]
        %v6681 = vld [vmem:[%s5937 + $0xc] sm:$0xf]
        %v6682 = vld [vmem:[%s5937 + $0x10] sm:$0xf]
        %v6683 = vld [vmem:[%s5937 + $0x14] sm:$0xf]
        %v6684 = vld [vmem:[%s5937 + $0x18] sm:$0xf]
        %v6685 = vld [vmem:[%s5937 + $0x1c] sm:$0xf]
        %s6686 = scalar_lea.vmem %s41, 128
        %v6687 = vld [vmem:[%s6686] sm:$0xf]
        %v6688 = vld [vmem:[%s6686 + $0x4] sm:$0xf]
        %v6689 = vld [vmem:[%s6686 + $0x8] sm:$0xf]
        %v6690 = vld [vmem:[%s6686 + $0xc] sm:$0xf]
        %v6691 = vld [vmem:[%s6686 + $0x10] sm:$0xf]
        %v6692 = vld [vmem:[%s6686 + $0x14] sm:$0xf]
        %v6693 = vld [vmem:[%s6686 + $0x18] sm:$0xf]
        %v6694 = vld [vmem:[%s6686 + $0x1c] sm:$0xf]
        %v6695 = vld [vmem:[%s6686 + $0x20] sm:$0xf]
        %v6696 = vld [vmem:[%s6686 + $0x24] sm:$0xf]
        %v6697 = vld [vmem:[%s6686 + $0x28] sm:$0xf]
        %v6698 = vld [vmem:[%s6686 + $0x2c] sm:$0xf]
        %v6699 = vld [vmem:[%s6686 + $0x30] sm:$0xf]
        %v6700 = vld [vmem:[%s6686 + $0x34] sm:$0xf]
        %v6701 = vld [vmem:[%s6686 + $0x38] sm:$0xf]
        %v6702 = vld [vmem:[%s6686 + $0x3c] sm:$0xf]
        %v6711 = vunpack.c.l.b16 %v6678
        %v6712 = vunpack.c.l.b16 %v6679
        %v6713 = vunpack.c.l.b16 %v6680
        %v6714 = vunpack.c.l.b16 %v6681
        %v6715 = vunpack.c.l.b16 %v6682
        %v6716 = vunpack.c.l.b16 %v6683
        %v6717 = vunpack.c.l.b16 %v6684
        %v6718 = vunpack.c.l.b16 %v6685
        %v6719 = vpack.c.b16 %v6712, %v6711
        %v6720 = vpack.c.b16 %v6714, %v6713
        %v6721 = vpack.c.b16 %v6716, %v6715
        %v6722 = vpack.c.b16 %v6718, %v6717
        %v6743 = vunpack.c.l.b16 %v6687
        %v6744 = vunpack.c.l.b16 %v6688
        %v6745 = vunpack.c.l.b16 %v6689
        %v6746 = vunpack.c.l.b16 %v6690
        %v6747 = vunpack.c.l.b16 %v6691
        %v6748 = vunpack.c.l.b16 %v6692
        %v6749 = vunpack.c.l.b16 %v6693
        %v6750 = vunpack.c.l.b16 %v6694
        %v6751 = vunpack.c.l.b16 %v6695
        %v6752 = vunpack.c.l.b16 %v6696
        %v6753 = vunpack.c.l.b16 %v6697
        %v6754 = vunpack.c.l.b16 %v6698
        %v6755 = vunpack.c.l.b16 %v6699
        %v6756 = vunpack.c.l.b16 %v6700
        %v6757 = vunpack.c.l.b16 %v6701
        %v6758 = vunpack.c.l.b16 %v6702
        %v6759 = vpack.c.b16 %v6744, %v6743
        %v6760 = vpack.c.b16 %v6746, %v6745
        %v6761 = vpack.c.b16 %v6748, %v6747
        %v6762 = vpack.c.b16 %v6750, %v6749
        %v6763 = vpack.c.b16 %v6752, %v6751
        %v6764 = vpack.c.b16 %v6754, %v6753
        %v6765 = vpack.c.b16 %v6756, %v6755
        %v6766 = vpack.c.b16 %v6758, %v6757
        %6775 = vmatprep.subr.bf16.mxu0 0
        %6776 = vmatpush1.bf16.msra.mxu0 %v6759
        %6777 = vmatprep.subr.bf16.mxu0 0
        %6778 = vmatpush1.bf16.msra.mxu0 %v6760
        %6779 = vmatprep.subr.bf16.mxu0 0
        %6780 = vmatpush1.bf16.msra.mxu0 %v6761
        %6781 = vmatprep.subr.bf16.mxu0 0
        %6782 = vmatpush1.bf16.msra.mxu0 %v6762
        %6783 = vmatprep.subr.bf16.mxu0 0
        %6784 = vmatpush1.bf16.msra.mxu0 %v6763
        %6785 = vmatprep.subr.bf16.mxu0 0
        %6786 = vmatpush1.bf16.msra.mxu0 %v6764
        %6787 = vmatprep.subr.bf16.mxu0 0
        %6788 = vmatpush1.bf16.msra.mxu0 %v6765
        %6789 = vmatprep.subr.bf16.mxu0 0
        %6790 = vmatpush1.bf16.msra.mxu0 %v6766
        %6791 = vmatprep.subr.bf16.mxu0 0
        %6792 = vmatpush1.bf16.msra.mxu0 0
        %6793 = vmatprep.subr.bf16.mxu0 0
        %6794 = vmatpush1.bf16.msra.mxu0 0
        %6795 = vmatprep.subr.bf16.mxu0 0
        %6796 = vmatpush1.bf16.msra.mxu0 0
        %6797 = vmatprep.subr.bf16.mxu0 0
        %6798 = vmatpush1.bf16.msra.mxu0 0
        %6799 = vmatprep.subr.bf16.mxu0 0
        %6800 = vmatpush1.bf16.msra.mxu0 0
        %6801 = vmatprep.subr.bf16.mxu0 0
        %6802 = vmatpush1.bf16.msra.mxu0 0
        %6803 = vmatprep.subr.bf16.mxu0 0
        %6804 = vmatpush1.bf16.msra.mxu0 0
        %6805 = vmatprep.subr.bf16.mxu0 0
        %6806 = vmatpush1.bf16.msra.mxu0 0
        %6807 = vmatprep.mubr.bf16.mxu0 0
        %6808 = vmatmul.mubr.bf16.gmra.mrb[0].mxu0 %v6719
        %v6809 = vpop.f32.mrb[0].mxu0
        %v6810 = vadd.f32 0.0, %v6809
        %v6811 = vpop.f32.mrb[0].mxu0
        %v6812 = vpop.f32.mrb[0].mxu0
        %v6813 = vadd.f32 0.0, %v6812
        %v6814 = vpop.f32.mrb[0].mxu0
        %6815 = vmatprep.mubr.bf16.mxu0 0
        %6816 = vmatmul.mubr.bf16.gmra.mrb[0].mxu0 %v6720
        %v6817 = vpop.f32.mrb[0].mxu0
        %v6818 = vadd.f32 0.0, %v6817
        %v6819 = vpop.f32.mrb[0].mxu0
        %v6820 = vpop.f32.mrb[0].mxu0
        %v6821 = vadd.f32 0.0, %v6820
        %v6822 = vpop.f32.mrb[0].mxu0
        %6823 = vmatprep.mubr.bf16.mxu0 0
        %6824 = vmatmul.mubr.bf16.gmra.mrb[0].mxu0 %v6721
        %v6825 = vpop.f32.mrb[0].mxu0
        %v6826 = vadd.f32 0.0, %v6825
        %v6827 = vpop.f32.mrb[0].mxu0
        %v6828 = vpop.f32.mrb[0].mxu0
        %v6829 = vadd.f32 0.0, %v6828
        %v6830 = vpop.f32.mrb[0].mxu0
        %6831 = vmatprep.mubr.bf16.mxu0 0
        %6832 = vmatmul.mubr.bf16.gmra.mrb[0].mxu0 %v6722
        %v6833 = vpop.f32.mrb[0].mxu0
        %v6834 = vadd.f32 0.0, %v6833
        %v6835 = vpop.f32.mrb[0].mxu0
        %v6836 = vpop.f32.mrb[0].mxu0
        %v6837 = vadd.f32 0.0, %v6836
        %v6838 = vpop.f32.mrb[0].mxu0
        %6839 = vdwg.mxu0
        %v6840 = vadd.f32 %v6648, %v6810
        %v6841 = vadd.f32 %v6651, %v6813
        %v6842 = vadd.f32 %v6656, %v6818
        %v6843 = vadd.f32 %v6659, %v6821
        %v6844 = vadd.f32 %v6664, %v6826
        %v6845 = vadd.f32 %v6667, %v6829
        %v6846 = vadd.f32 %v6672, %v6834
        %v6847 = vadd.f32 %v6675, %v6837
        %v6848 = vld [vmem:[%s43] sm:$0x1]
        %v6850 = vlaneseq
        %v6851 = vshrl.u32 %v6850, 7
        %v6852 = vsub.s32 0, %v6851
        %v6853 = vrot.slane %v6848, %v6852
        %v6855 = vadd.f32 %v6840, %v6853
        %v6856 = vadd.f32 %v6841, %v6853
        %v6857 = vadd.f32 %v6842, %v6853
        %v6858 = vadd.f32 %v6843, %v6853
        %v6859 = vadd.f32 %v6844, %v6853
        %v6860 = vadd.f32 %v6845, %v6853
        %v6861 = vadd.f32 %v6846, %v6853
        %v6862 = vadd.f32 %v6847, %v6853
        %v6863 = vld [vmem:[%s7] sm:$0xf]
        %v6864 = vld [vmem:[%s7 + $0x4] sm:$0xf]
        %v6865 = vpack.c.bf16 %v6856, %v6855
        %v6866 = vpack.c.bf16 %v6858, %v6857
        %v6867 = vpack.c.bf16 %v6860, %v6859
        %v6868 = vpack.c.bf16 %v6862, %v6861
        %v6871 = vunpack.c.l.b16 %v6863
        %v6872 = vunpack.c.l.b16 %v6864
        %v6873 = vpack.c.b16 %v6872, %v6871
        %v6875 = vsel %vm1510, %v6873, 0
        %6877 = vmatprep.subr.bf16.mxu0 0
        %6878 = vmatpush1.bf16.msra.mxu0 %v6865
        %6879 = vmatprep.subr.bf16.mxu0 0
        %6880 = vmatpush1.bf16.msra.mxu0 %v6866
        %6881 = vmatprep.subr.bf16.mxu0 0
        %6882 = vmatpush1.bf16.msra.mxu0 %v6867
        %6883 = vmatprep.subr.bf16.mxu0 0
        %6884 = vmatpush1.bf16.msra.mxu0 %v6868
        %6885 = vmatprep.subr.bf16.mxu0 0
        %6886 = vmatpush1.bf16.msra.mxu0 0
        %6887 = vmatprep.subr.bf16.mxu0 0
        %6888 = vmatpush1.bf16.msra.mxu0 0
        %6889 = vmatprep.subr.bf16.mxu0 0
        %6890 = vmatpush1.bf16.msra.mxu0 0
        %6891 = vmatprep.subr.bf16.mxu0 0
        %6892 = vmatpush1.bf16.msra.mxu0 0
        %6893 = vmatprep.subr.bf16.mxu0 0
        %6894 = vmatpush1.bf16.msra.mxu0 0
        %6895 = vmatprep.subr.bf16.mxu0 0
        %6896 = vmatpush1.bf16.msra.mxu0 0
        %6897 = vmatprep.subr.bf16.mxu0 0
        %6898 = vmatpush1.bf16.msra.mxu0 0
        %6899 = vmatprep.subr.bf16.mxu0 0
        %6900 = vmatpush1.bf16.msra.mxu0 0
        %6901 = vmatprep.subr.bf16.mxu0 0
        %6902 = vmatpush1.bf16.msra.mxu0 0
        %6903 = vmatprep.subr.bf16.mxu0 0
        %6904 = vmatpush1.bf16.msra.mxu0 0
        %6905 = vmatprep.subr.bf16.mxu0 0
        %6906 = vmatpush1.bf16.msra.mxu0 0
        %6907 = vmatprep.subr.bf16.mxu0 0
        %6908 = vmatpush1.bf16.msra.mxu0 0
        %6909 = vmatprep.mubr.bf16.mxu0 0
        %6910 = vmatmul.mubr.bf16.gmra.mrb[0].mxu0 %v6875
        %v6911 = vpop.f32.mrb[0].mxu0
        %v6912 = vadd.f32 %v5372, %v6911
        %v6913 = vpop.f32.mrb[0].mxu0
        %v6914 = vpop.f32.mrb[0].mxu0
        %v6915 = vadd.f32 %v5375, %v6914
        %v6916 = vpop.f32.mrb[0].mxu0
        %6917 = vdwg.mxu0
        %v6918 = vmax.f32 %v6912, 0.0
        %v6919 = vmax.f32 %v6915, 0.0
        %v6922 = vcombine.high %v6918, %v6918
        %v6923 = vcombine.high %v6919, %v6919
        %v6926 = vpack.c.bf16 %v6918, %v6918
        %v6927 = vpack.c.bf16 %v6922, %v6922
        %v6928 = vpack.c.bf16 %v6919, %v6919
        %v6929 = vpack.c.bf16 %v6923, %v6923
        %v6931 = vshrl.u32 %v6926, 16
        %v6933 = vrot.slane %v6931, 7
        %v6934 = vshll.u32 %v6926, 16
        %v6936 = vor.u32 %v6933, %v6934
        %v6938 = vshrl.u32 %v6927, 16
        %v6940 = vrot.slane %v6938, 7
        %v6941 = vshll.u32 %v6927, 16
        %v6943 = vor.u32 %v6940, %v6941
        %v6945 = vshrl.u32 %v6928, 16
        %v6947 = vrot.slane %v6945, 7
        %v6948 = vshll.u32 %v6928, 16
        %v6950 = vor.u32 %v6947, %v6948
        %v6952 = vshrl.u32 %v6929, 16
        %v6954 = vrot.slane %v6952, 7
        %v6955 = vshll.u32 %v6929, 16
        %v6957 = vor.u32 %v6954, %v6955
        %v6962 = vsel %vm1281, 0, %v6936
        %v6963 = vsel %vm1281, 0, %v6943
        %v6964 = vsel %vm1281, 0, %v6950
        %v6965 = vsel %vm1281, 0, %v6957
        %v6966 = vrot.slane %v6934, 1
        %v6967 = vor.u32 %v6931, %v6966
        %v6968 = vrot.slane %v6941, 1
        %v6969 = vor.u32 %v6938, %v6968
        %v6970 = vrot.slane %v6948, 1
        %v6971 = vor.u32 %v6945, %v6970
        %v6972 = vrot.slane %v6955, 1
        %v6973 = vor.u32 %v6952, %v6972
        %vm6978 = vcmask 1041408
        %vm6979 = vsmask.f32 1280
        %vm6980 = vmand %vm6978, %vm6979
        %v6981 = vsel %vm6980, %v6967, 0
        %v6982 = vsel %vm6980, %v6969, 0
        %v6983 = vsel %vm6980, %v6971, 0
        %v6984 = vsel %vm6980, %v6973, 0
        %6989 = vrot.lane.b32.xlu0 %v6926, 32
        %v6990 = vpop.permute.xlu0 %6989
        %6991 = vrot.lane.b32.xlu0 %v6927, 32
        %v6992 = vpop.permute.xlu0 %6991
        %6993 = vrot.lane.b32.xlu0 %v6928, 32
        %v6994 = vpop.permute.xlu0 %6993
        %6995 = vrot.lane.b32.xlu0 %v6929, 32
        %v6996 = vpop.permute.xlu0 %6995
        %7001 = vrot.lane.b32.xlu0 %v6981, 64
        %v7002 = vpop.permute.xlu0 %7001
        %7003 = vrot.lane.b32.xlu0 %v6982, 64
        %v7004 = vpop.permute.xlu0 %7003
        %7005 = vrot.lane.b32.xlu0 %v6983, 64
        %v7006 = vpop.permute.xlu0 %7005
        %7007 = vrot.lane.b32.xlu0 %v6984, 64
        %v7008 = vpop.permute.xlu0 %7007
        %v7011 = vsel %vm1461, %v6962, %v6990
        %v7014 = vsel %vm1461, %v6963, %v6992
        %v7017 = vsel %vm1461, %v6964, %v6994
        %v7020 = vsel %vm1461, %v6965, %v6996
        %v7022 = vsel %vm1510, %v7011, %v7002
        %v7024 = vsel %vm1510, %v7014, %v7004
        %v7026 = vsel %vm1510, %v7017, %v7006
        %v7028 = vsel %vm1510, %v7020, %v7008
        %v7029 = vsel %vm1543, %v7022, 0
        %v7031 = vsel %vm1543, %v7024, 0
        %v7033 = vsel %vm1543, %v7026, 0
        %v7035 = vsel %vm1543, %v7028, 0
        %s7037 = scalar_lea.vmem [#allocation4], 2
        %7038 = vst [vmem:[%s7037] sm:$0x3] %v7029
        %7039 = vst [vmem:[%s7037 + $0x2] sm:$0x3] %v7031
        %7040 = vst [vmem:[%s7037 + $0x4] sm:$0x3] %v7033
        %7041 = vst [vmem:[%s7037 + $0x6] sm:$0x3] %v7035
        %v7042 = vld [vmem:[#allocation4] sm:$0x3]
        %v7043 = vld [vmem:[#allocation4 + $0x2] sm:$0x3]
        %v7044 = vld [vmem:[#allocation4 + $0x4] sm:$0x3]
        %v7045 = vld [vmem:[#allocation4 + $0x6] sm:$0x3]
        %v7046 = vld [vmem:[%s45] sm:$0xf]
        %v7047 = vld [vmem:[%s45 + $0x4] sm:$0xf]
        %v7048 = vld [vmem:[%s45 + $0x8] sm:$0xf]
        %v7049 = vld [vmem:[%s45 + $0xc] sm:$0xf]
        %v7050 = vld [vmem:[%s45 + $0x10] sm:$0xf]
        %v7051 = vld [vmem:[%s45 + $0x14] sm:$0xf]
        %v7052 = vld [vmem:[%s45 + $0x18] sm:$0xf]
        %v7053 = vld [vmem:[%s45 + $0x1c] sm:$0xf]
        %v7054 = vld [vmem:[%s45 + $0x20] sm:$0xf]
        %v7055 = vld [vmem:[%s45 + $0x24] sm:$0xf]
        %v7056 = vld [vmem:[%s45 + $0x28] sm:$0xf]
        %v7057 = vld [vmem:[%s45 + $0x2c] sm:$0xf]
        %v7058 = vld [vmem:[%s45 + $0x30] sm:$0xf]
        %v7059 = vld [vmem:[%s45 + $0x34] sm:$0xf]
        %v7060 = vld [vmem:[%s45 + $0x38] sm:$0xf]
        %v7061 = vld [vmem:[%s45 + $0x3c] sm:$0xf]
        %v7062 = vld [vmem:[%s7037] sm:$0x3]
        %v7063 = vld [vmem:[%s7037 + $0x2] sm:$0x3]
        %v7064 = vld [vmem:[%s7037 + $0x4] sm:$0x3]
        %v7065 = vld [vmem:[%s7037 + $0x6] sm:$0x3]
        %s7066 = scalar_lea.vmem %s45, 64
        %v7067 = vld [vmem:[%s7066] sm:$0xf]
        %v7068 = vld [vmem:[%s7066 + $0x4] sm:$0xf]
        %v7069 = vld [vmem:[%s7066 + $0x8] sm:$0xf]
        %v7070 = vld [vmem:[%s7066 + $0xc] sm:$0xf]
        %v7071 = vld [vmem:[%s7066 + $0x10] sm:$0xf]
        %v7072 = vld [vmem:[%s7066 + $0x14] sm:$0xf]
        %v7073 = vld [vmem:[%s7066 + $0x18] sm:$0xf]
        %v7074 = vld [vmem:[%s7066 + $0x1c] sm:$0xf]
        %v7075 = vld [vmem:[%s7066 + $0x20] sm:$0xf]
        %v7076 = vld [vmem:[%s7066 + $0x24] sm:$0xf]
        %v7077 = vld [vmem:[%s7066 + $0x28] sm:$0xf]
        %v7078 = vld [vmem:[%s7066 + $0x2c] sm:$0xf]
        %v7079 = vld [vmem:[%s7066 + $0x30] sm:$0xf]
        %v7080 = vld [vmem:[%s7066 + $0x34] sm:$0xf]
        %v7081 = vld [vmem:[%s7066 + $0x38] sm:$0xf]
        %v7082 = vld [vmem:[%s7066 + $0x3c] sm:$0xf]
        %v7087 = vcombine.low %v7062, %v7063
        %v7088 = vcombine.low %v7064, %v7065
        %v7090 = vunpack.c.l.s4 1983009808
        %v7091 = vunpack.c.0.s8 %v7090
        %v7092 = vlaneseq
        %v7093 = vshrl.u32 %v7092, 7
        %v7094 = vsub.s32 %v7091, %v7093
        %v7095 = vrot.slane %v7087, %v7094
        %v7097 = vunpack.c.l.s4 1983009808
        %v7098 = vunpack.c.0.s8 %v7097
        %v7099 = vlaneseq
        %v7100 = vshrl.u32 %v7099, 7
        %v7101 = vsub.s32 %v7098, %v7100
        %v7102 = vrot.slane %v7088, %v7101
        %v7103 = vcombine.low %v7095, %v7102
        %v7121 = vunpack.c.l.b16 %v7067
        %v7122 = vunpack.c.l.b16 %v7068
        %v7123 = vunpack.c.l.b16 %v7069
        %v7124 = vunpack.c.l.b16 %v7070
        %v7125 = vunpack.c.l.b16 %v7071
        %v7126 = vunpack.c.l.b16 %v7072
        %v7127 = vunpack.c.l.b16 %v7073
        %v7128 = vunpack.c.l.b16 %v7074
        %v7129 = vunpack.c.l.b16 %v7075
        %v7130 = vunpack.c.l.b16 %v7076
        %v7131 = vunpack.c.l.b16 %v7077
        %v7132 = vunpack.c.l.b16 %v7078
        %v7133 = vunpack.c.l.b16 %v7079
        %v7134 = vunpack.c.l.b16 %v7080
        %v7135 = vunpack.c.l.b16 %v7081
        %v7136 = vunpack.c.l.b16 %v7082
        %v7137 = vpack.c.b16 %v7122, %v7121
        %v7138 = vpack.c.b16 %v7124, %v7123
        %v7139 = vpack.c.b16 %v7126, %v7125
        %v7140 = vpack.c.b16 %v7128, %v7127
        %v7141 = vpack.c.b16 %v7130, %v7129
        %v7142 = vpack.c.b16 %v7132, %v7131
        %v7143 = vpack.c.b16 %v7134, %v7133
        %v7144 = vpack.c.b16 %v7136, %v7135
        %7153 = vmatprep.subr.bf16.mxu0 0
        %7154 = vmatpush1.bf16.msra.mxu0 %v7137
        %7155 = vmatprep.subr.bf16.mxu0 0
        %7156 = vmatpush1.bf16.msra.mxu0 %v7138
        %7157 = vmatprep.subr.bf16.mxu0 0
        %7158 = vmatpush1.bf16.msra.mxu0 %v7139
        %7159 = vmatprep.subr.bf16.mxu0 0
        %7160 = vmatpush1.bf16.msra.mxu0 %v7140
        %7161 = vmatprep.subr.bf16.mxu0 0
        %7162 = vmatpush1.bf16.msra.mxu0 %v7141
        %7163 = vmatprep.subr.bf16.mxu0 0
        %7164 = vmatpush1.bf16.msra.mxu0 %v7142
        %7165 = vmatprep.subr.bf16.mxu0 0
        %7166 = vmatpush1.bf16.msra.mxu0 %v7143
        %7167 = vmatprep.subr.bf16.mxu0 0
        %7168 = vmatpush1.bf16.msra.mxu0 %v7144
        %7169 = vmatprep.subr.bf16.mxu0 0
        %7170 = vmatpush1.bf16.msra.mxu0 0
        %7171 = vmatprep.subr.bf16.mxu0 0
        %7172 = vmatpush1.bf16.msra.mxu0 0
        %7173 = vmatprep.subr.bf16.mxu0 0
        %7174 = vmatpush1.bf16.msra.mxu0 0
        %7175 = vmatprep.subr.bf16.mxu0 0
        %7176 = vmatpush1.bf16.msra.mxu0 0
        %7177 = vmatprep.subr.bf16.mxu0 0
        %7178 = vmatpush1.bf16.msra.mxu0 0
        %7179 = vmatprep.subr.bf16.mxu0 0
        %7180 = vmatpush1.bf16.msra.mxu0 0
        %7181 = vmatprep.subr.bf16.mxu0 0
        %7182 = vmatpush1.bf16.msra.mxu0 0
        %7183 = vmatprep.subr.bf16.mxu0 0
        %7184 = vmatpush1.bf16.msra.mxu0 0
        %7185 = vmatprep.mubr.bf16.mxu0 0
        %7186 = vmatmul.mubr.bf16.gmra.mrb[0].mxu0 %v7103
        %v7187 = vpop.f32.mrb[0].mxu0
        %v7188 = vadd.f32 0.0, %v7187
        %v7189 = vpop.f32.mrb[0].mxu0
        %v7190 = vpop.f32.mrb[0].mxu0
        %v7191 = vadd.f32 0.0, %v7190
        %v7192 = vpop.f32.mrb[0].mxu0
        %7193 = vdwg.mxu0
        %v7198 = vcombine.low %v7042, %v7043
        %v7199 = vcombine.low %v7044, %v7045
        %v7201 = vunpack.c.l.s4 1983009808
        %v7202 = vunpack.c.0.s8 %v7201
        %v7203 = vlaneseq
        %v7204 = vshrl.u32 %v7203, 7
        %v7205 = vsub.s32 %v7202, %v7204
        %v7206 = vrot.slane %v7198, %v7205
        %v7208 = vunpack.c.l.s4 1983009808
        %v7209 = vunpack.c.0.s8 %v7208
        %v7210 = vlaneseq
        %v7211 = vshrl.u32 %v7210, 7
        %v7212 = vsub.s32 %v7209, %v7211
        %v7213 = vrot.slane %v7199, %v7212
        %v7214 = vcombine.low %v7206, %v7213
        %v7232 = vunpack.c.l.b16 %v7046
        %v7233 = vunpack.c.l.b16 %v7047
        %v7234 = vunpack.c.l.b16 %v7048
        %v7235 = vunpack.c.l.b16 %v7049
        %v7236 = vunpack.c.l.b16 %v7050
        %v7237 = vunpack.c.l.b16 %v7051
        %v7238 = vunpack.c.l.b16 %v7052
        %v7239 = vunpack.c.l.b16 %v7053
        %v7240 = vunpack.c.l.b16 %v7054
        %v7241 = vunpack.c.l.b16 %v7055
        %v7242 = vunpack.c.l.b16 %v7056
        %v7243 = vunpack.c.l.b16 %v7057
        %v7244 = vunpack.c.l.b16 %v7058
        %v7245 = vunpack.c.l.b16 %v7059
        %v7246 = vunpack.c.l.b16 %v7060
        %v7247 = vunpack.c.l.b16 %v7061
        %v7248 = vpack.c.b16 %v7233, %v7232
        %v7249 = vpack.c.b16 %v7235, %v7234
        %v7250 = vpack.c.b16 %v7237, %v7236
        %v7251 = vpack.c.b16 %v7239, %v7238
        %v7252 = vpack.c.b16 %v7241, %v7240
        %v7253 = vpack.c.b16 %v7243, %v7242
        %v7254 = vpack.c.b16 %v7245, %v7244
        %v7255 = vpack.c.b16 %v7247, %v7246
        %7264 = vmatprep.subr.bf16.mxu0 0
        %7265 = vmatpush1.bf16.msra.mxu0 %v7248
        %7266 = vmatprep.subr.bf16.mxu0 0
        %7267 = vmatpush1.bf16.msra.mxu0 %v7249
        %7268 = vmatprep.subr.bf16.mxu0 0
        %7269 = vmatpush1.bf16.msra.mxu0 %v7250
        %7270 = vmatprep.subr.bf16.mxu0 0
        %7271 = vmatpush1.bf16.msra.mxu0 %v7251
        %7272 = vmatprep.subr.bf16.mxu0 0
        %7273 = vmatpush1.bf16.msra.mxu0 %v7252
        %7274 = vmatprep.subr.bf16.mxu0 0
        %7275 = vmatpush1.bf16.msra.mxu0 %v7253
        %7276 = vmatprep.subr.bf16.mxu0 0
        %7277 = vmatpush1.bf16.msra.mxu0 %v7254
        %7278 = vmatprep.subr.bf16.mxu0 0
        %7279 = vmatpush1.bf16.msra.mxu0 %v7255
        %7280 = vmatprep.subr.bf16.mxu0 0
        %7281 = vmatpush1.bf16.msra.mxu0 0
        %7282 = vmatprep.subr.bf16.mxu0 0
        %7283 = vmatpush1.bf16.msra.mxu0 0
        %7284 = vmatprep.subr.bf16.mxu0 0
        %7285 = vmatpush1.bf16.msra.mxu0 0
        %7286 = vmatprep.subr.bf16.mxu0 0
        %7287 = vmatpush1.bf16.msra.mxu0 0
        %7288 = vmatprep.subr.bf16.mxu0 0
        %7289 = vmatpush1.bf16.msra.mxu0 0
        %7290 = vmatprep.subr.bf16.mxu0 0
        %7291 = vmatpush1.bf16.msra.mxu0 0
        %7292 = vmatprep.subr.bf16.mxu0 0
        %7293 = vmatpush1.bf16.msra.mxu0 0
        %7294 = vmatprep.subr.bf16.mxu0 0
        %7295 = vmatpush1.bf16.msra.mxu0 0
        %7296 = vmatprep.mubr.bf16.mxu0 0
        %7297 = vmatmul.mubr.bf16.gmra.mrb[0].mxu0 %v7214
        %v7298 = vpop.f32.mrb[0].mxu0
        %v7299 = vadd.f32 %v7188, %v7298
        %v7300 = vpop.f32.mrb[0].mxu0
        %v7301 = vpop.f32.mrb[0].mxu0
        %v7302 = vadd.f32 %v7191, %v7301
        %v7303 = vpop.f32.mrb[0].mxu0
        %7304 = vdwg.mxu0
        %s7305 = scalar_lea.vmem [#allocation4], 4
        %v7306 = vld [vmem:[%s7305] sm:$0x3]
        %v7307 = vld [vmem:[%s7305 + $0x2] sm:$0x3]
        %v7308 = vld [vmem:[%s7305 + $0x4] sm:$0x3]
        %v7309 = vld [vmem:[%s7305 + $0x6] sm:$0x3]
        %s7310 = scalar_lea.vmem %s45, 128
        %v7311 = vld [vmem:[%s7310] sm:$0xf]
        %v7312 = vld [vmem:[%s7310 + $0x4] sm:$0xf]
        %v7313 = vld [vmem:[%s7310 + $0x8] sm:$0xf]
        %v7314 = vld [vmem:[%s7310 + $0xc] sm:$0xf]
        %v7315 = vld [vmem:[%s7310 + $0x10] sm:$0xf]
        %v7316 = vld [vmem:[%s7310 + $0x14] sm:$0xf]
        %v7317 = vld [vmem:[%s7310 + $0x18] sm:$0xf]
        %v7318 = vld [vmem:[%s7310 + $0x1c] sm:$0xf]
        %v7319 = vld [vmem:[%s7310 + $0x20] sm:$0xf]
        %v7320 = vld [vmem:[%s7310 + $0x24] sm:$0xf]
        %v7321 = vld [vmem:[%s7310 + $0x28] sm:$0xf]
        %v7322 = vld [vmem:[%s7310 + $0x2c] sm:$0xf]
        %v7323 = vld [vmem:[%s7310 + $0x30] sm:$0xf]
        %v7324 = vld [vmem:[%s7310 + $0x34] sm:$0xf]
        %v7325 = vld [vmem:[%s7310 + $0x38] sm:$0xf]
        %v7326 = vld [vmem:[%s7310 + $0x3c] sm:$0xf]
        %v7331 = vcombine.low %v7306, %v7307
        %v7332 = vcombine.low %v7308, %v7309
        %v7334 = vunpack.c.l.s4 1983009808
        %v7335 = vunpack.c.0.s8 %v7334
        %v7336 = vlaneseq
        %v7337 = vshrl.u32 %v7336, 7
        %v7338 = vsub.s32 %v7335, %v7337
        %v7339 = vrot.slane %v7331, %v7338
        %v7341 = vunpack.c.l.s4 1983009808
        %v7342 = vunpack.c.0.s8 %v7341
        %v7343 = vlaneseq
        %v7344 = vshrl.u32 %v7343, 7
        %v7345 = vsub.s32 %v7342, %v7344
        %v7346 = vrot.slane %v7332, %v7345
        %v7347 = vcombine.low %v7339, %v7346
        %v7365 = vunpack.c.l.b16 %v7311
        %v7366 = vunpack.c.l.b16 %v7312
        %v7367 = vunpack.c.l.b16 %v7313
        %v7368 = vunpack.c.l.b16 %v7314
        %v7369 = vunpack.c.l.b16 %v7315
        %v7370 = vunpack.c.l.b16 %v7316
        %v7371 = vunpack.c.l.b16 %v7317
        %v7372 = vunpack.c.l.b16 %v7318
        %v7373 = vunpack.c.l.b16 %v7319
        %v7374 = vunpack.c.l.b16 %v7320
        %v7375 = vunpack.c.l.b16 %v7321
        %v7376 = vunpack.c.l.b16 %v7322
        %v7377 = vunpack.c.l.b16 %v7323
        %v7378 = vunpack.c.l.b16 %v7324
        %v7379 = vunpack.c.l.b16 %v7325
        %v7380 = vunpack.c.l.b16 %v7326
        %v7381 = vpack.c.b16 %v7366, %v7365
        %v7382 = vpack.c.b16 %v7368, %v7367
        %v7383 = vpack.c.b16 %v7370, %v7369
        %v7384 = vpack.c.b16 %v7372, %v7371
        %v7385 = vpack.c.b16 %v7374, %v7373
        %v7386 = vpack.c.b16 %v7376, %v7375
        %v7387 = vpack.c.b16 %v7378, %v7377
        %v7388 = vpack.c.b16 %v7380, %v7379
        %7397 = vmatprep.subr.bf16.mxu0 0
        %7398 = vmatpush1.bf16.msra.mxu0 %v7381
        %7399 = vmatprep.subr.bf16.mxu0 0
        %7400 = vmatpush1.bf16.msra.mxu0 %v7382
        %7401 = vmatprep.subr.bf16.mxu0 0
        %7402 = vmatpush1.bf16.msra.mxu0 %v7383
        %7403 = vmatprep.subr.bf16.mxu0 0
        %7404 = vmatpush1.bf16.msra.mxu0 %v7384
        %7405 = vmatprep.subr.bf16.mxu0 0
        %7406 = vmatpush1.bf16.msra.mxu0 %v7385
        %7407 = vmatprep.subr.bf16.mxu0 0
        %7408 = vmatpush1.bf16.msra.mxu0 %v7386
        %7409 = vmatprep.subr.bf16.mxu0 0
        %7410 = vmatpush1.bf16.msra.mxu0 %v7387
        %7411 = vmatprep.subr.bf16.mxu0 0
        %7412 = vmatpush1.bf16.msra.mxu0 %v7388
        %7413 = vmatprep.subr.bf16.mxu0 0
        %7414 = vmatpush1.bf16.msra.mxu0 0
        %7415 = vmatprep.subr.bf16.mxu0 0
        %7416 = vmatpush1.bf16.msra.mxu0 0
        %7417 = vmatprep.subr.bf16.mxu0 0
        %7418 = vmatpush1.bf16.msra.mxu0 0
        %7419 = vmatprep.subr.bf16.mxu0 0
        %7420 = vmatpush1.bf16.msra.mxu0 0
        %7421 = vmatprep.subr.bf16.mxu0 0
        %7422 = vmatpush1.bf16.msra.mxu0 0
        %7423 = vmatprep.subr.bf16.mxu0 0
        %7424 = vmatpush1.bf16.msra.mxu0 0
        %7425 = vmatprep.subr.bf16.mxu0 0
        %7426 = vmatpush1.bf16.msra.mxu0 0
        %7427 = vmatprep.subr.bf16.mxu0 0
        %7428 = vmatpush1.bf16.msra.mxu0 0
        %7429 = vmatprep.mubr.bf16.mxu0 0
        %7430 = vmatmul.mubr.bf16.gmra.mrb[0].mxu0 %v7347
        %v7431 = vpop.f32.mrb[0].mxu0
        %v7432 = vadd.f32 0.0, %v7431
        %v7433 = vpop.f32.mrb[0].mxu0
        %v7434 = vpop.f32.mrb[0].mxu0
        %v7435 = vadd.f32 0.0, %v7434
        %v7436 = vpop.f32.mrb[0].mxu0
        %7437 = vdwg.mxu0
        %v7438 = vadd.f32 %v7299, %v7432
        %v7439 = vadd.f32 %v7302, %v7435
        %v7440 = vld [vmem:[#allocation11] sm:$0x1]
        %v7442 = vlaneseq
        %v7443 = vshrl.u32 %v7442, 7
        %v7444 = vsub.s32 0, %v7443
        %v7445 = vrot.slane %v7440, %v7444
        %v7447 = vadd.f32 %v7438, %v7445
        %v7448 = vadd.f32 %v7439, %v7445
        %v7449 = vmax.f32 %v7447, 0.0
        %v7450 = vmax.f32 %v7448, 0.0
        %v7453 = vcombine.high %v7449, %v7449
        %v7454 = vcombine.high %v7450, %v7450
        %v7457 = vpack.c.bf16 %v7449, %v7449
        %v7458 = vpack.c.bf16 %v7453, %v7453
        %v7459 = vpack.c.bf16 %v7450, %v7450
        %v7460 = vpack.c.bf16 %v7454, %v7454
        %v7462 = vshrl.u32 %v7457, 16
        %v7464 = vrot.slane %v7462, 7
        %v7465 = vshll.u32 %v7457, 16
        %v7467 = vor.u32 %v7464, %v7465
        %v7469 = vshrl.u32 %v7458, 16
        %v7471 = vrot.slane %v7469, 7
        %v7472 = vshll.u32 %v7458, 16
        %v7474 = vor.u32 %v7471, %v7472
        %v7476 = vshrl.u32 %v7459, 16
        %v7478 = vrot.slane %v7476, 7
        %v7479 = vshll.u32 %v7459, 16
        %v7481 = vor.u32 %v7478, %v7479
        %v7483 = vshrl.u32 %v7460, 16
        %v7485 = vrot.slane %v7483, 7
        %v7486 = vshll.u32 %v7460, 16
        %v7488 = vor.u32 %v7485, %v7486
        %v7493 = vsel %vm1281, 0, %v7467
        %v7494 = vsel %vm1281, 0, %v7474
        %v7495 = vsel %vm1281, 0, %v7481
        %v7496 = vsel %vm1281, 0, %v7488
        %v7497 = vrot.slane %v7465, 1
        %v7498 = vor.u32 %v7462, %v7497
        %v7499 = vrot.slane %v7472, 1
        %v7500 = vor.u32 %v7469, %v7499
        %v7501 = vrot.slane %v7479, 1
        %v7502 = vor.u32 %v7476, %v7501
        %v7503 = vrot.slane %v7486, 1
        %v7504 = vor.u32 %v7483, %v7503
        %v7509 = vsel %vm6980, %v7498, 0
        %v7510 = vsel %vm6980, %v7500, 0
        %v7511 = vsel %vm6980, %v7502, 0
        %v7512 = vsel %vm6980, %v7504, 0
        %7517 = vrot.lane.b32.xlu0 %v7457, 32
        %v7518 = vpop.permute.xlu0 %7517
        %7519 = vrot.lane.b32.xlu0 %v7458, 32
        %v7520 = vpop.permute.xlu0 %7519
        %7521 = vrot.lane.b32.xlu0 %v7459, 32
        %v7522 = vpop.permute.xlu0 %7521
        %7523 = vrot.lane.b32.xlu0 %v7460, 32
        %v7524 = vpop.permute.xlu0 %7523
        %7529 = vrot.lane.b32.xlu0 %v7509, 64
        %v7530 = vpop.permute.xlu0 %7529
        %7531 = vrot.lane.b32.xlu0 %v7510, 64
        %v7532 = vpop.permute.xlu0 %7531
        %7533 = vrot.lane.b32.xlu0 %v7511, 64
        %v7534 = vpop.permute.xlu0 %7533
        %7535 = vrot.lane.b32.xlu0 %v7512, 64
        %v7536 = vpop.permute.xlu0 %7535
        %v7539 = vsel %vm1461, %v7493, %v7518
        %v7542 = vsel %vm1461, %v7494, %v7520
        %v7545 = vsel %vm1461, %v7495, %v7522
        %v7548 = vsel %vm1461, %v7496, %v7524
        %v7550 = vsel %vm1510, %v7539, %v7530
        %v7552 = vsel %vm1510, %v7542, %v7532
        %v7554 = vsel %vm1510, %v7545, %v7534
        %v7556 = vsel %vm1510, %v7548, %v7536
        %v7557 = vsel %vm1543, %v7550, 0
        %v7559 = vsel %vm1543, %v7552, 0
        %v7561 = vsel %vm1543, %v7554, 0
        %v7563 = vsel %vm1543, %v7556, 0
        %7565 = vst [vmem:[%s7037] sm:$0x3] %v7557
        %7566 = vst [vmem:[%s7037 + $0x2] sm:$0x3] %v7559
        %7567 = vst [vmem:[%s7037 + $0x4] sm:$0x3] %v7561
        %7568 = vst [vmem:[%s7037 + $0x6] sm:$0x3] %v7563
        %v7569 = vld [vmem:[#allocation4] sm:$0x3]
        %v7570 = vld [vmem:[#allocation4 + $0x2] sm:$0x3]
        %v7571 = vld [vmem:[#allocation4 + $0x4] sm:$0x3]
        %v7572 = vld [vmem:[#allocation4 + $0x6] sm:$0x3]
        %v7573 = vld [vmem:[%s49] sm:$0xf]
        %v7574 = vld [vmem:[%s49 + $0x4] sm:$0xf]
        %v7575 = vld [vmem:[%s49 + $0x8] sm:$0xf]
        %v7576 = vld [vmem:[%s49 + $0xc] sm:$0xf]
        %v7577 = vld [vmem:[%s49 + $0x10] sm:$0xf]
        %v7578 = vld [vmem:[%s49 + $0x14] sm:$0xf]
        %v7579 = vld [vmem:[%s49 + $0x18] sm:$0xf]
        %v7580 = vld [vmem:[%s49 + $0x1c] sm:$0xf]
        %v7581 = vld [vmem:[%s49 + $0x20] sm:$0xf]
        %v7582 = vld [vmem:[%s49 + $0x24] sm:$0xf]
        %v7583 = vld [vmem:[%s49 + $0x28] sm:$0xf]
        %v7584 = vld [vmem:[%s49 + $0x2c] sm:$0xf]
        %v7585 = vld [vmem:[%s49 + $0x30] sm:$0xf]
        %v7586 = vld [vmem:[%s49 + $0x34] sm:$0xf]
        %v7587 = vld [vmem:[%s49 + $0x38] sm:$0xf]
        %v7588 = vld [vmem:[%s49 + $0x3c] sm:$0xf]
        %v7589 = vld [vmem:[%s7037] sm:$0x3]
        %v7590 = vld [vmem:[%s7037 + $0x2] sm:$0x3]
        %v7591 = vld [vmem:[%s7037 + $0x4] sm:$0x3]
        %v7592 = vld [vmem:[%s7037 + $0x6] sm:$0x3]
        %s7593 = scalar_lea.vmem %s49, 64
        %v7594 = vld [vmem:[%s7593] sm:$0xf]
        %v7595 = vld [vmem:[%s7593 + $0x4] sm:$0xf]
        %v7596 = vld [vmem:[%s7593 + $0x8] sm:$0xf]
        %v7597 = vld [vmem:[%s7593 + $0xc] sm:$0xf]
        %v7598 = vld [vmem:[%s7593 + $0x10] sm:$0xf]
        %v7599 = vld [vmem:[%s7593 + $0x14] sm:$0xf]
        %v7600 = vld [vmem:[%s7593 + $0x18] sm:$0xf]
        %v7601 = vld [vmem:[%s7593 + $0x1c] sm:$0xf]
        %v7602 = vld [vmem:[%s7593 + $0x20] sm:$0xf]
        %v7603 = vld [vmem:[%s7593 + $0x24] sm:$0xf]
        %v7604 = vld [vmem:[%s7593 + $0x28] sm:$0xf]
        %v7605 = vld [vmem:[%s7593 + $0x2c] sm:$0xf]
        %v7606 = vld [vmem:[%s7593 + $0x30] sm:$0xf]
        %v7607 = vld [vmem:[%s7593 + $0x34] sm:$0xf]
        %v7608 = vld [vmem:[%s7593 + $0x38] sm:$0xf]
        %v7609 = vld [vmem:[%s7593 + $0x3c] sm:$0xf]
        %v7614 = vcombine.low %v7589, %v7590
        %v7615 = vcombine.low %v7591, %v7592
        %v7617 = vunpack.c.l.s4 1983009808
        %v7618 = vunpack.c.0.s8 %v7617
        %v7619 = vlaneseq
        %v7620 = vshrl.u32 %v7619, 7
        %v7621 = vsub.s32 %v7618, %v7620
        %v7622 = vrot.slane %v7614, %v7621
        %v7624 = vunpack.c.l.s4 1983009808
        %v7625 = vunpack.c.0.s8 %v7624
        %v7626 = vlaneseq
        %v7627 = vshrl.u32 %v7626, 7
        %v7628 = vsub.s32 %v7625, %v7627
        %v7629 = vrot.slane %v7615, %v7628
        %v7630 = vcombine.low %v7622, %v7629
        %v7648 = vunpack.c.l.b16 %v7594
        %v7649 = vunpack.c.l.b16 %v7595
        %v7650 = vunpack.c.l.b16 %v7596
        %v7651 = vunpack.c.l.b16 %v7597
        %v7652 = vunpack.c.l.b16 %v7598
        %v7653 = vunpack.c.l.b16 %v7599
        %v7654 = vunpack.c.l.b16 %v7600
        %v7655 = vunpack.c.l.b16 %v7601
        %v7656 = vunpack.c.l.b16 %v7602
        %v7657 = vunpack.c.l.b16 %v7603
        %v7658 = vunpack.c.l.b16 %v7604
        %v7659 = vunpack.c.l.b16 %v7605
        %v7660 = vunpack.c.l.b16 %v7606
        %v7661 = vunpack.c.l.b16 %v7607
        %v7662 = vunpack.c.l.b16 %v7608
        %v7663 = vunpack.c.l.b16 %v7609
        %v7664 = vpack.c.b16 %v7649, %v7648
        %v7665 = vpack.c.b16 %v7651, %v7650
        %v7666 = vpack.c.b16 %v7653, %v7652
        %v7667 = vpack.c.b16 %v7655, %v7654
        %v7668 = vpack.c.b16 %v7657, %v7656
        %v7669 = vpack.c.b16 %v7659, %v7658
        %v7670 = vpack.c.b16 %v7661, %v7660
        %v7671 = vpack.c.b16 %v7663, %v7662
        %7680 = vmatprep.subr.bf16.mxu0 0
        %7681 = vmatpush1.bf16.msra.mxu0 %v7664
        %7682 = vmatprep.subr.bf16.mxu0 0
        %7683 = vmatpush1.bf16.msra.mxu0 %v7665
        %7684 = vmatprep.subr.bf16.mxu0 0
        %7685 = vmatpush1.bf16.msra.mxu0 %v7666
        %7686 = vmatprep.subr.bf16.mxu0 0
        %7687 = vmatpush1.bf16.msra.mxu0 %v7667
        %7688 = vmatprep.subr.bf16.mxu0 0
        %7689 = vmatpush1.bf16.msra.mxu0 %v7668
        %7690 = vmatprep.subr.bf16.mxu0 0
        %7691 = vmatpush1.bf16.msra.mxu0 %v7669
        %7692 = vmatprep.subr.bf16.mxu0 0
        %7693 = vmatpush1.bf16.msra.mxu0 %v7670
        %7694 = vmatprep.subr.bf16.mxu0 0
        %7695 = vmatpush1.bf16.msra.mxu0 %v7671
        %7696 = vmatprep.subr.bf16.mxu0 0
        %7697 = vmatpush1.bf16.msra.mxu0 0
        %7698 = vmatprep.subr.bf16.mxu0 0
        %7699 = vmatpush1.bf16.msra.mxu0 0
        %7700 = vmatprep.subr.bf16.mxu0 0
        %7701 = vmatpush1.bf16.msra.mxu0 0
        %7702 = vmatprep.subr.bf16.mxu0 0
        %7703 = vmatpush1.bf16.msra.mxu0 0
        %7704 = vmatprep.subr.bf16.mxu0 0
        %7705 = vmatpush1.bf16.msra.mxu0 0
        %7706 = vmatprep.subr.bf16.mxu0 0
        %7707 = vmatpush1.bf16.msra.mxu0 0
        %7708 = vmatprep.subr.bf16.mxu0 0
        %7709 = vmatpush1.bf16.msra.mxu0 0
        %7710 = vmatprep.subr.bf16.mxu0 0
        %7711 = vmatpush1.bf16.msra.mxu0 0
        %7712 = vmatprep.mubr.bf16.mxu0 0
        %7713 = vmatmul.mubr.bf16.gmra.mrb[0].mxu0 %v7630
        %v7714 = vpop.f32.mrb[0].mxu0
        %v7715 = vadd.f32 0.0, %v7714
        %v7716 = vpop.f32.mrb[0].mxu0
        %v7717 = vpop.f32.mrb[0].mxu0
        %v7718 = vadd.f32 0.0, %v7717
        %v7719 = vpop.f32.mrb[0].mxu0
        %7720 = vdwg.mxu0
        %v7725 = vcombine.low %v7569, %v7570
        %v7726 = vcombine.low %v7571, %v7572
        %v7728 = vunpack.c.l.s4 1983009808
        %v7729 = vunpack.c.0.s8 %v7728
        %v7730 = vlaneseq
        %v7731 = vshrl.u32 %v7730, 7
        %v7732 = vsub.s32 %v7729, %v7731
        %v7733 = vrot.slane %v7725, %v7732
        %v7735 = vunpack.c.l.s4 1983009808
        %v7736 = vunpack.c.0.s8 %v7735
        %v7737 = vlaneseq
        %v7738 = vshrl.u32 %v7737, 7
        %v7739 = vsub.s32 %v7736, %v7738
        %v7740 = vrot.slane %v7726, %v7739
        %v7741 = vcombine.low %v7733, %v7740
        %v7759 = vunpack.c.l.b16 %v7573
        %v7760 = vunpack.c.l.b16 %v7574
        %v7761 = vunpack.c.l.b16 %v7575
        %v7762 = vunpack.c.l.b16 %v7576
        %v7763 = vunpack.c.l.b16 %v7577
        %v7764 = vunpack.c.l.b16 %v7578
        %v7765 = vunpack.c.l.b16 %v7579
        %v7766 = vunpack.c.l.b16 %v7580
        %v7767 = vunpack.c.l.b16 %v7581
        %v7768 = vunpack.c.l.b16 %v7582
        %v7769 = vunpack.c.l.b16 %v7583
        %v7770 = vunpack.c.l.b16 %v7584
        %v7771 = vunpack.c.l.b16 %v7585
        %v7772 = vunpack.c.l.b16 %v7586
        %v7773 = vunpack.c.l.b16 %v7587
        %v7774 = vunpack.c.l.b16 %v7588
        %v7775 = vpack.c.b16 %v7760, %v7759
        %v7776 = vpack.c.b16 %v7762, %v7761
        %v7777 = vpack.c.b16 %v7764, %v7763
        %v7778 = vpack.c.b16 %v7766, %v7765
        %v7779 = vpack.c.b16 %v7768, %v7767
        %v7780 = vpack.c.b16 %v7770, %v7769
        %v7781 = vpack.c.b16 %v7772, %v7771
        %v7782 = vpack.c.b16 %v7774, %v7773
        %7791 = vmatprep.subr.bf16.mxu0 0
        %7792 = vmatpush1.bf16.msra.mxu0 %v7775
        %7793 = vmatprep.subr.bf16.mxu0 0
        %7794 = vmatpush1.bf16.msra.mxu0 %v7776
        %7795 = vmatprep.subr.bf16.mxu0 0
        %7796 = vmatpush1.bf16.msra.mxu0 %v7777
        %7797 = vmatprep.subr.bf16.mxu0 0
        %7798 = vmatpush1.bf16.msra.mxu0 %v7778
        %7799 = vmatprep.subr.bf16.mxu0 0
        %7800 = vmatpush1.bf16.msra.mxu0 %v7779
        %7801 = vmatprep.subr.bf16.mxu0 0
        %7802 = vmatpush1.bf16.msra.mxu0 %v7780
        %7803 = vmatprep.subr.bf16.mxu0 0
        %7804 = vmatpush1.bf16.msra.mxu0 %v7781
        %7805 = vmatprep.subr.bf16.mxu0 0
        %7806 = vmatpush1.bf16.msra.mxu0 %v7782
        %7807 = vmatprep.subr.bf16.mxu0 0
        %7808 = vmatpush1.bf16.msra.mxu0 0
        %7809 = vmatprep.subr.bf16.mxu0 0
        %7810 = vmatpush1.bf16.msra.mxu0 0
        %7811 = vmatprep.subr.bf16.mxu0 0
        %7812 = vmatpush1.bf16.msra.mxu0 0
        %7813 = vmatprep.subr.bf16.mxu0 0
        %7814 = vmatpush1.bf16.msra.mxu0 0
        %7815 = vmatprep.subr.bf16.mxu0 0
        %7816 = vmatpush1.bf16.msra.mxu0 0
        %7817 = vmatprep.subr.bf16.mxu0 0
        %7818 = vmatpush1.bf16.msra.mxu0 0
        %7819 = vmatprep.subr.bf16.mxu0 0
        %7820 = vmatpush1.bf16.msra.mxu0 0
        %7821 = vmatprep.subr.bf16.mxu0 0
        %7822 = vmatpush1.bf16.msra.mxu0 0
        %7823 = vmatprep.mubr.bf16.mxu0 0
        %7824 = vmatmul.mubr.bf16.gmra.mrb[0].mxu0 %v7741
        %v7825 = vpop.f32.mrb[0].mxu0
        %v7826 = vadd.f32 %v7715, %v7825
        %v7827 = vpop.f32.mrb[0].mxu0
        %v7828 = vpop.f32.mrb[0].mxu0
        %v7829 = vadd.f32 %v7718, %v7828
        %v7830 = vpop.f32.mrb[0].mxu0
        %7831 = vdwg.mxu0
        %v7832 = vld [vmem:[%s7305] sm:$0x3]
        %v7833 = vld [vmem:[%s7305 + $0x2] sm:$0x3]
        %v7834 = vld [vmem:[%s7305 + $0x4] sm:$0x3]
        %v7835 = vld [vmem:[%s7305 + $0x6] sm:$0x3]
        %s7836 = scalar_lea.vmem %s49, 128
        %v7837 = vld [vmem:[%s7836] sm:$0xf]
        %v7838 = vld [vmem:[%s7836 + $0x4] sm:$0xf]
        %v7839 = vld [vmem:[%s7836 + $0x8] sm:$0xf]
        %v7840 = vld [vmem:[%s7836 + $0xc] sm:$0xf]
        %v7841 = vld [vmem:[%s7836 + $0x10] sm:$0xf]
        %v7842 = vld [vmem:[%s7836 + $0x14] sm:$0xf]
        %v7843 = vld [vmem:[%s7836 + $0x18] sm:$0xf]
        %v7844 = vld [vmem:[%s7836 + $0x1c] sm:$0xf]
        %v7845 = vld [vmem:[%s7836 + $0x20] sm:$0xf]
        %v7846 = vld [vmem:[%s7836 + $0x24] sm:$0xf]
        %v7847 = vld [vmem:[%s7836 + $0x28] sm:$0xf]
        %v7848 = vld [vmem:[%s7836 + $0x2c] sm:$0xf]
        %v7849 = vld [vmem:[%s7836 + $0x30] sm:$0xf]
        %v7850 = vld [vmem:[%s7836 + $0x34] sm:$0xf]
        %v7851 = vld [vmem:[%s7836 + $0x38] sm:$0xf]
        %v7852 = vld [vmem:[%s7836 + $0x3c] sm:$0xf]
        %v7857 = vcombine.low %v7832, %v7833
        %v7858 = vcombine.low %v7834, %v7835
        %v7860 = vunpack.c.l.s4 1983009808
        %v7861 = vunpack.c.0.s8 %v7860
        %v7862 = vlaneseq
        %v7863 = vshrl.u32 %v7862, 7
        %v7864 = vsub.s32 %v7861, %v7863
        %v7865 = vrot.slane %v7857, %v7864
        %v7867 = vunpack.c.l.s4 1983009808
        %v7868 = vunpack.c.0.s8 %v7867
        %v7869 = vlaneseq
        %v7870 = vshrl.u32 %v7869, 7
        %v7871 = vsub.s32 %v7868, %v7870
        %v7872 = vrot.slane %v7858, %v7871
        %v7873 = vcombine.low %v7865, %v7872
        %v7891 = vunpack.c.l.b16 %v7837
        %v7892 = vunpack.c.l.b16 %v7838
        %v7893 = vunpack.c.l.b16 %v7839
        %v7894 = vunpack.c.l.b16 %v7840
        %v7895 = vunpack.c.l.b16 %v7841
        %v7896 = vunpack.c.l.b16 %v7842
        %v7897 = vunpack.c.l.b16 %v7843
        %v7898 = vunpack.c.l.b16 %v7844
        %v7899 = vunpack.c.l.b16 %v7845
        %v7900 = vunpack.c.l.b16 %v7846
        %v7901 = vunpack.c.l.b16 %v7847
        %v7902 = vunpack.c.l.b16 %v7848
        %v7903 = vunpack.c.l.b16 %v7849
        %v7904 = vunpack.c.l.b16 %v7850
        %v7905 = vunpack.c.l.b16 %v7851
        %v7906 = vunpack.c.l.b16 %v7852
        %v7907 = vpack.c.b16 %v7892, %v7891
        %v7908 = vpack.c.b16 %v7894, %v7893
        %v7909 = vpack.c.b16 %v7896, %v7895
        %v7910 = vpack.c.b16 %v7898, %v7897
        %v7911 = vpack.c.b16 %v7900, %v7899
        %v7912 = vpack.c.b16 %v7902, %v7901
        %v7913 = vpack.c.b16 %v7904, %v7903
        %v7914 = vpack.c.b16 %v7906, %v7905
        %7923 = vmatprep.subr.bf16.mxu0 0
        %7924 = vmatpush1.bf16.msra.mxu0 %v7907
        %7925 = vmatprep.subr.bf16.mxu0 0
        %7926 = vmatpush1.bf16.msra.mxu0 %v7908
        %7927 = vmatprep.subr.bf16.mxu0 0
        %7928 = vmatpush1.bf16.msra.mxu0 %v7909
        %7929 = vmatprep.subr.bf16.mxu0 0
        %7930 = vmatpush1.bf16.msra.mxu0 %v7910
        %7931 = vmatprep.subr.bf16.mxu0 0
        %7932 = vmatpush1.bf16.msra.mxu0 %v7911
        %7933 = vmatprep.subr.bf16.mxu0 0
        %7934 = vmatpush1.bf16.msra.mxu0 %v7912
        %7935 = vmatprep.subr.bf16.mxu0 0
        %7936 = vmatpush1.bf16.msra.mxu0 %v7913
        %7937 = vmatprep.subr.bf16.mxu0 0
        %7938 = vmatpush1.bf16.msra.mxu0 %v7914
        %7939 = vmatprep.subr.bf16.mxu0 0
        %7940 = vmatpush1.bf16.msra.mxu0 0
        %7941 = vmatprep.subr.bf16.mxu0 0
        %7942 = vmatpush1.bf16.msra.mxu0 0
        %7943 = vmatprep.subr.bf16.mxu0 0
        %7944 = vmatpush1.bf16.msra.mxu0 0
        %7945 = vmatprep.subr.bf16.mxu0 0
        %7946 = vmatpush1.bf16.msra.mxu0 0
        %7947 = vmatprep.subr.bf16.mxu0 0
        %7948 = vmatpush1.bf16.msra.mxu0 0
        %7949 = vmatprep.subr.bf16.mxu0 0
        %7950 = vmatpush1.bf16.msra.mxu0 0
        %7951 = vmatprep.subr.bf16.mxu0 0
        %7952 = vmatpush1.bf16.msra.mxu0 0
        %7953 = vmatprep.subr.bf16.mxu0 0
        %7954 = vmatpush1.bf16.msra.mxu0 0
        %7955 = vmatprep.mubr.bf16.mxu0 0
        %7956 = vmatmul.mubr.bf16.gmra.mrb[0].mxu0 %v7873
        %v7957 = vpop.f32.mrb[0].mxu0
        %v7958 = vadd.f32 0.0, %v7957
        %v7959 = vpop.f32.mrb[0].mxu0
        %v7960 = vpop.f32.mrb[0].mxu0
        %v7961 = vadd.f32 0.0, %v7960
        %v7962 = vpop.f32.mrb[0].mxu0
        %7963 = vdwg.mxu0
        %v7964 = vadd.f32 %v7826, %v7958
        %v7965 = vadd.f32 %v7829, %v7961
        %v7966 = vld [vmem:[#allocation12] sm:$0x1]
        %v7968 = vlaneseq
        %v7969 = vshrl.u32 %v7968, 7
        %v7970 = vsub.s32 0, %v7969
        %v7971 = vrot.slane %v7966, %v7970
        %v7973 = vadd.f32 %v7964, %v7971
        %v7974 = vadd.f32 %v7965, %v7971
        %v7975 = vadd.f32 %v6912, %v7973
        %v7976 = vadd.f32 %v6915, %v7974
        %v7977 = vmax.f32 %v7975, 0.0
        %v7978 = vmax.f32 %v7976, 0.0
        %v7981 = vcombine.high %v7977, %v7977
        %v7982 = vcombine.high %v7978, %v7978
        %v7985 = vpack.c.bf16 %v7977, %v7977
        %v7986 = vpack.c.bf16 %v7981, %v7981
        %v7987 = vpack.c.bf16 %v7978, %v7978
        %v7988 = vpack.c.bf16 %v7982, %v7982
        %v7990 = vshrl.u32 %v7985, 16
        %v7992 = vrot.slane %v7990, 7
        %v7993 = vshll.u32 %v7985, 16
        %v7995 = vor.u32 %v7992, %v7993
        %v7997 = vshrl.u32 %v7986, 16
        %v7999 = vrot.slane %v7997, 7
        %v8000 = vshll.u32 %v7986, 16
        %v8002 = vor.u32 %v7999, %v8000
        %v8004 = vshrl.u32 %v7987, 16
        %v8006 = vrot.slane %v8004, 7
        %v8007 = vshll.u32 %v7987, 16
        %v8009 = vor.u32 %v8006, %v8007
        %v8011 = vshrl.u32 %v7988, 16
        %v8013 = vrot.slane %v8011, 7
        %v8014 = vshll.u32 %v7988, 16
        %v8016 = vor.u32 %v8013, %v8014
        %v8021 = vsel %vm1281, 0, %v7995
        %v8022 = vsel %vm1281, 0, %v8002
        %v8023 = vsel %vm1281, 0, %v8009
        %v8024 = vsel %vm1281, 0, %v8016
        %v8025 = vrot.slane %v7993, 1
        %v8026 = vor.u32 %v7990, %v8025
        %v8027 = vrot.slane %v8000, 1
        %v8028 = vor.u32 %v7997, %v8027
        %v8029 = vrot.slane %v8007, 1
        %v8030 = vor.u32 %v8004, %v8029
        %v8031 = vrot.slane %v8014, 1
        %v8032 = vor.u32 %v8011, %v8031
        %v8037 = vsel %vm6980, %v8026, 0
        %v8038 = vsel %vm6980, %v8028, 0
        %v8039 = vsel %vm6980, %v8030, 0
        %v8040 = vsel %vm6980, %v8032, 0
        %8045 = vrot.lane.b32.xlu0 %v7985, 32
        %v8046 = vpop.permute.xlu0 %8045
        %8047 = vrot.lane.b32.xlu0 %v7986, 32
        %v8048 = vpop.permute.xlu0 %8047
        %8049 = vrot.lane.b32.xlu0 %v7987, 32
        %v8050 = vpop.permute.xlu0 %8049
        %8051 = vrot.lane.b32.xlu0 %v7988, 32
        %v8052 = vpop.permute.xlu0 %8051
        %8057 = vrot.lane.b32.xlu0 %v8037, 64
        %v8058 = vpop.permute.xlu0 %8057
        %8059 = vrot.lane.b32.xlu0 %v8038, 64
        %v8060 = vpop.permute.xlu0 %8059
        %8061 = vrot.lane.b32.xlu0 %v8039, 64
        %v8062 = vpop.permute.xlu0 %8061
        %8063 = vrot.lane.b32.xlu0 %v8040, 64
        %v8064 = vpop.permute.xlu0 %8063
        %v8067 = vsel %vm1461, %v8021, %v8046
        %v8070 = vsel %vm1461, %v8022, %v8048
        %v8073 = vsel %vm1461, %v8023, %v8050
        %v8076 = vsel %vm1461, %v8024, %v8052
        %v8078 = vsel %vm1510, %v8067, %v8058
        %v8080 = vsel %vm1510, %v8070, %v8060
        %v8082 = vsel %vm1510, %v8073, %v8062
        %v8084 = vsel %vm1510, %v8076, %v8064
        %v8085 = vsel %vm1543, %v8078, 0
        %v8087 = vsel %vm1543, %v8080, 0
        %v8089 = vsel %vm1543, %v8082, 0
        %v8091 = vsel %vm1543, %v8084, 0
        %8093 = vst [vmem:[%s7037] sm:$0x3] %v8085
        %8094 = vst [vmem:[%s7037 + $0x2] sm:$0x3] %v8087
        %8095 = vst [vmem:[%s7037 + $0x4] sm:$0x3] %v8089
        %8096 = vst [vmem:[%s7037 + $0x6] sm:$0x3] %v8091
        %v8097 = vld [vmem:[#allocation4] sm:$0x3]
        %v8098 = vld [vmem:[#allocation4 + $0x2] sm:$0x3]
        %v8099 = vld [vmem:[#allocation4 + $0x4] sm:$0x3]
        %v8100 = vld [vmem:[#allocation4 + $0x6] sm:$0x3]
        %v8101 = vld [vmem:[%s53] sm:$0xf]
        %v8102 = vld [vmem:[%s53 + $0x4] sm:$0xf]
        %v8103 = vld [vmem:[%s53 + $0x8] sm:$0xf]
        %v8104 = vld [vmem:[%s53 + $0xc] sm:$0xf]
        %v8105 = vld [vmem:[%s53 + $0x10] sm:$0xf]
        %v8106 = vld [vmem:[%s53 + $0x14] sm:$0xf]
        %v8107 = vld [vmem:[%s53 + $0x18] sm:$0xf]
        %v8108 = vld [vmem:[%s53 + $0x1c] sm:$0xf]
        %v8109 = vld [vmem:[%s53 + $0x20] sm:$0xf]
        %v8110 = vld [vmem:[%s53 + $0x24] sm:$0xf]
        %v8111 = vld [vmem:[%s53 + $0x28] sm:$0xf]
        %v8112 = vld [vmem:[%s53 + $0x2c] sm:$0xf]
        %v8113 = vld [vmem:[%s53 + $0x30] sm:$0xf]
        %v8114 = vld [vmem:[%s53 + $0x34] sm:$0xf]
        %v8115 = vld [vmem:[%s53 + $0x38] sm:$0xf]
        %v8116 = vld [vmem:[%s53 + $0x3c] sm:$0xf]
        %v8117 = vld [vmem:[%s7037] sm:$0x3]
        %v8118 = vld [vmem:[%s7037 + $0x2] sm:$0x3]
        %v8119 = vld [vmem:[%s7037 + $0x4] sm:$0x3]
        %v8120 = vld [vmem:[%s7037 + $0x6] sm:$0x3]
        %s8121 = scalar_lea.vmem %s53, 64
        %v8122 = vld [vmem:[%s8121] sm:$0xf]
        %v8123 = vld [vmem:[%s8121 + $0x4] sm:$0xf]
        %v8124 = vld [vmem:[%s8121 + $0x8] sm:$0xf]
        %v8125 = vld [vmem:[%s8121 + $0xc] sm:$0xf]
        %v8126 = vld [vmem:[%s8121 + $0x10] sm:$0xf]
        %v8127 = vld [vmem:[%s8121 + $0x14] sm:$0xf]
        %v8128 = vld [vmem:[%s8121 + $0x18] sm:$0xf]
        %v8129 = vld [vmem:[%s8121 + $0x1c] sm:$0xf]
        %v8130 = vld [vmem:[%s8121 + $0x20] sm:$0xf]
        %v8131 = vld [vmem:[%s8121 + $0x24] sm:$0xf]
        %v8132 = vld [vmem:[%s8121 + $0x28] sm:$0xf]
        %v8133 = vld [vmem:[%s8121 + $0x2c] sm:$0xf]
        %v8134 = vld [vmem:[%s8121 + $0x30] sm:$0xf]
        %v8135 = vld [vmem:[%s8121 + $0x34] sm:$0xf]
        %v8136 = vld [vmem:[%s8121 + $0x38] sm:$0xf]
        %v8137 = vld [vmem:[%s8121 + $0x3c] sm:$0xf]
        %v8142 = vcombine.low %v8117, %v8118
        %v8143 = vcombine.low %v8119, %v8120
        %v8145 = vunpack.c.l.s4 1983009808
        %v8146 = vunpack.c.0.s8 %v8145
        %v8147 = vlaneseq
        %v8148 = vshrl.u32 %v8147, 7
        %v8149 = vsub.s32 %v8146, %v8148
        %v8150 = vrot.slane %v8142, %v8149
        %v8152 = vunpack.c.l.s4 1983009808
        %v8153 = vunpack.c.0.s8 %v8152
        %v8154 = vlaneseq
        %v8155 = vshrl.u32 %v8154, 7
        %v8156 = vsub.s32 %v8153, %v8155
        %v8157 = vrot.slane %v8143, %v8156
        %v8158 = vcombine.low %v8150, %v8157
        %v8176 = vunpack.c.l.b16 %v8122
        %v8177 = vunpack.c.l.b16 %v8123
        %v8178 = vunpack.c.l.b16 %v8124
        %v8179 = vunpack.c.l.b16 %v8125
        %v8180 = vunpack.c.l.b16 %v8126
        %v8181 = vunpack.c.l.b16 %v8127
        %v8182 = vunpack.c.l.b16 %v8128
        %v8183 = vunpack.c.l.b16 %v8129
        %v8184 = vunpack.c.l.b16 %v8130
        %v8185 = vunpack.c.l.b16 %v8131
        %v8186 = vunpack.c.l.b16 %v8132
        %v8187 = vunpack.c.l.b16 %v8133
        %v8188 = vunpack.c.l.b16 %v8134
        %v8189 = vunpack.c.l.b16 %v8135
        %v8190 = vunpack.c.l.b16 %v8136
        %v8191 = vunpack.c.l.b16 %v8137
        %v8192 = vpack.c.b16 %v8177, %v8176
        %v8193 = vpack.c.b16 %v8179, %v8178
        %v8194 = vpack.c.b16 %v8181, %v8180
        %v8195 = vpack.c.b16 %v8183, %v8182
        %v8196 = vpack.c.b16 %v8185, %v8184
        %v8197 = vpack.c.b16 %v8187, %v8186
        %v8198 = vpack.c.b16 %v8189, %v8188
        %v8199 = vpack.c.b16 %v8191, %v8190
        %8208 = vmatprep.subr.bf16.mxu0 0
        %8209 = vmatpush1.bf16.msra.mxu0 %v8192
        %8210 = vmatprep.subr.bf16.mxu0 0
        %8211 = vmatpush1.bf16.msra.mxu0 %v8193
        %8212 = vmatprep.subr.bf16.mxu0 0
        %8213 = vmatpush1.bf16.msra.mxu0 %v8194
        %8214 = vmatprep.subr.bf16.mxu0 0
        %8215 = vmatpush1.bf16.msra.mxu0 %v8195
        %8216 = vmatprep.subr.bf16.mxu0 0
        %8217 = vmatpush1.bf16.msra.mxu0 %v8196
        %8218 = vmatprep.subr.bf16.mxu0 0
        %8219 = vmatpush1.bf16.msra.mxu0 %v8197
        %8220 = vmatprep.subr.bf16.mxu0 0
        %8221 = vmatpush1.bf16.msra.mxu0 %v8198
        %8222 = vmatprep.subr.bf16.mxu0 0
        %8223 = vmatpush1.bf16.msra.mxu0 %v8199
        %8224 = vmatprep.subr.bf16.mxu0 0
        %8225 = vmatpush1.bf16.msra.mxu0 0
        %8226 = vmatprep.subr.bf16.mxu0 0
        %8227 = vmatpush1.bf16.msra.mxu0 0
        %8228 = vmatprep.subr.bf16.mxu0 0
        %8229 = vmatpush1.bf16.msra.mxu0 0
        %8230 = vmatprep.subr.bf16.mxu0 0
        %8231 = vmatpush1.bf16.msra.mxu0 0
        %8232 = vmatprep.subr.bf16.mxu0 0
        %8233 = vmatpush1.bf16.msra.mxu0 0
        %8234 = vmatprep.subr.bf16.mxu0 0
        %8235 = vmatpush1.bf16.msra.mxu0 0
        %8236 = vmatprep.subr.bf16.mxu0 0
        %8237 = vmatpush1.bf16.msra.mxu0 0
        %8238 = vmatprep.subr.bf16.mxu0 0
        %8239 = vmatpush1.bf16.msra.mxu0 0
        %8240 = vmatprep.mubr.bf16.mxu0 0
        %8241 = vmatmul.mubr.bf16.gmra.mrb[0].mxu0 %v8158
        %v8242 = vpop.f32.mrb[0].mxu0
        %v8243 = vadd.f32 0.0, %v8242
        %v8244 = vpop.f32.mrb[0].mxu0
        %v8245 = vpop.f32.mrb[0].mxu0
        %v8246 = vadd.f32 0.0, %v8245
        %v8247 = vpop.f32.mrb[0].mxu0
        %8248 = vdwg.mxu0
        %v8253 = vcombine.low %v8097, %v8098
        %v8254 = vcombine.low %v8099, %v8100
        %v8256 = vunpack.c.l.s4 1983009808
        %v8257 = vunpack.c.0.s8 %v8256
        %v8258 = vlaneseq
        %v8259 = vshrl.u32 %v8258, 7
        %v8260 = vsub.s32 %v8257, %v8259
        %v8261 = vrot.slane %v8253, %v8260
        %v8263 = vunpack.c.l.s4 1983009808
        %v8264 = vunpack.c.0.s8 %v8263
        %v8265 = vlaneseq
        %v8266 = vshrl.u32 %v8265, 7
        %v8267 = vsub.s32 %v8264, %v8266
        %v8268 = vrot.slane %v8254, %v8267
        %v8269 = vcombine.low %v8261, %v8268
        %v8287 = vunpack.c.l.b16 %v8101
        %v8288 = vunpack.c.l.b16 %v8102
        %v8289 = vunpack.c.l.b16 %v8103
        %v8290 = vunpack.c.l.b16 %v8104
        %v8291 = vunpack.c.l.b16 %v8105
        %v8292 = vunpack.c.l.b16 %v8106
        %v8293 = vunpack.c.l.b16 %v8107
        %v8294 = vunpack.c.l.b16 %v8108
        %v8295 = vunpack.c.l.b16 %v8109
        %v8296 = vunpack.c.l.b16 %v8110
        %v8297 = vunpack.c.l.b16 %v8111
        %v8298 = vunpack.c.l.b16 %v8112
        %v8299 = vunpack.c.l.b16 %v8113
        %v8300 = vunpack.c.l.b16 %v8114
        %v8301 = vunpack.c.l.b16 %v8115
        %v8302 = vunpack.c.l.b16 %v8116
        %v8303 = vpack.c.b16 %v8288, %v8287
        %v8304 = vpack.c.b16 %v8290, %v8289
        %v8305 = vpack.c.b16 %v8292, %v8291
        %v8306 = vpack.c.b16 %v8294, %v8293
        %v8307 = vpack.c.b16 %v8296, %v8295
        %v8308 = vpack.c.b16 %v8298, %v8297
        %v8309 = vpack.c.b16 %v8300, %v8299
        %v8310 = vpack.c.b16 %v8302, %v8301
        %8319 = vmatprep.subr.bf16.mxu0 0
        %8320 = vmatpush1.bf16.msra.mxu0 %v8303
        %8321 = vmatprep.subr.bf16.mxu0 0
        %8322 = vmatpush1.bf16.msra.mxu0 %v8304
        %8323 = vmatprep.subr.bf16.mxu0 0
        %8324 = vmatpush1.bf16.msra.mxu0 %v8305
        %8325 = vmatprep.subr.bf16.mxu0 0
        %8326 = vmatpush1.bf16.msra.mxu0 %v8306
        %8327 = vmatprep.subr.bf16.mxu0 0
        %8328 = vmatpush1.bf16.msra.mxu0 %v8307
        %8329 = vmatprep.subr.bf16.mxu0 0
        %8330 = vmatpush1.bf16.msra.mxu0 %v8308
        %8331 = vmatprep.subr.bf16.mxu0 0
        %8332 = vmatpush1.bf16.msra.mxu0 %v8309
        %8333 = vmatprep.subr.bf16.mxu0 0
        %8334 = vmatpush1.bf16.msra.mxu0 %v8310
        %8335 = vmatprep.subr.bf16.mxu0 0
        %8336 = vmatpush1.bf16.msra.mxu0 0
        %8337 = vmatprep.subr.bf16.mxu0 0
        %8338 = vmatpush1.bf16.msra.mxu0 0
        %8339 = vmatprep.subr.bf16.mxu0 0
        %8340 = vmatpush1.bf16.msra.mxu0 0
        %8341 = vmatprep.subr.bf16.mxu0 0
        %8342 = vmatpush1.bf16.msra.mxu0 0
        %8343 = vmatprep.subr.bf16.mxu0 0
        %8344 = vmatpush1.bf16.msra.mxu0 0
        %8345 = vmatprep.subr.bf16.mxu0 0
        %8346 = vmatpush1.bf16.msra.mxu0 0
        %8347 = vmatprep.subr.bf16.mxu0 0
        %8348 = vmatpush1.bf16.msra.mxu0 0
        %8349 = vmatprep.subr.bf16.mxu0 0
        %8350 = vmatpush1.bf16.msra.mxu0 0
        %8351 = vmatprep.mubr.bf16.mxu0 0
        %8352 = vmatmul.mubr.bf16.gmra.mrb[0].mxu0 %v8269
        %v8353 = vpop.f32.mrb[0].mxu0
        %v8354 = vadd.f32 %v8243, %v8353
        %v8355 = vpop.f32.mrb[0].mxu0
        %v8356 = vpop.f32.mrb[0].mxu0
        %v8357 = vadd.f32 %v8246, %v8356
        %v8358 = vpop.f32.mrb[0].mxu0
        %8359 = vdwg.mxu0
        %v8360 = vld [vmem:[%s7305] sm:$0x3]
        %v8361 = vld [vmem:[%s7305 + $0x2] sm:$0x3]
        %v8362 = vld [vmem:[%s7305 + $0x4] sm:$0x3]
        %v8363 = vld [vmem:[%s7305 + $0x6] sm:$0x3]
        %s8364 = scalar_lea.vmem %s53, 128
        %v8365 = vld [vmem:[%s8364] sm:$0xf]
        %v8366 = vld [vmem:[%s8364 + $0x4] sm:$0xf]
        %v8367 = vld [vmem:[%s8364 + $0x8] sm:$0xf]
        %v8368 = vld [vmem:[%s8364 + $0xc] sm:$0xf]
        %v8369 = vld [vmem:[%s8364 + $0x10] sm:$0xf]
        %v8370 = vld [vmem:[%s8364 + $0x14] sm:$0xf]
        %v8371 = vld [vmem:[%s8364 + $0x18] sm:$0xf]
        %v8372 = vld [vmem:[%s8364 + $0x1c] sm:$0xf]
        %v8373 = vld [vmem:[%s8364 + $0x20] sm:$0xf]
        %v8374 = vld [vmem:[%s8364 + $0x24] sm:$0xf]
        %v8375 = vld [vmem:[%s8364 + $0x28] sm:$0xf]
        %v8376 = vld [vmem:[%s8364 + $0x2c] sm:$0xf]
        %v8377 = vld [vmem:[%s8364 + $0x30] sm:$0xf]
        %v8378 = vld [vmem:[%s8364 + $0x34] sm:$0xf]
        %v8379 = vld [vmem:[%s8364 + $0x38] sm:$0xf]
        %v8380 = vld [vmem:[%s8364 + $0x3c] sm:$0xf]
        %v8385 = vcombine.low %v8360, %v8361
        %v8386 = vcombine.low %v8362, %v8363
        %v8388 = vunpack.c.l.s4 1983009808
        %v8389 = vunpack.c.0.s8 %v8388
        %v8390 = vlaneseq
        %v8391 = vshrl.u32 %v8390, 7
        %v8392 = vsub.s32 %v8389, %v8391
        %v8393 = vrot.slane %v8385, %v8392
        %v8395 = vunpack.c.l.s4 1983009808
        %v8396 = vunpack.c.0.s8 %v8395
        %v8397 = vlaneseq
        %v8398 = vshrl.u32 %v8397, 7
        %v8399 = vsub.s32 %v8396, %v8398
        %v8400 = vrot.slane %v8386, %v8399
        %v8401 = vcombine.low %v8393, %v8400
        %v8419 = vunpack.c.l.b16 %v8365
        %v8420 = vunpack.c.l.b16 %v8366
        %v8421 = vunpack.c.l.b16 %v8367
        %v8422 = vunpack.c.l.b16 %v8368
        %v8423 = vunpack.c.l.b16 %v8369
        %v8424 = vunpack.c.l.b16 %v8370
        %v8425 = vunpack.c.l.b16 %v8371
        %v8426 = vunpack.c.l.b16 %v8372
        %v8427 = vunpack.c.l.b16 %v8373
        %v8428 = vunpack.c.l.b16 %v8374
        %v8429 = vunpack.c.l.b16 %v8375
        %v8430 = vunpack.c.l.b16 %v8376
        %v8431 = vunpack.c.l.b16 %v8377
        %v8432 = vunpack.c.l.b16 %v8378
        %v8433 = vunpack.c.l.b16 %v8379
        %v8434 = vunpack.c.l.b16 %v8380
        %v8435 = vpack.c.b16 %v8420, %v8419
        %v8436 = vpack.c.b16 %v8422, %v8421
        %v8437 = vpack.c.b16 %v8424, %v8423
        %v8438 = vpack.c.b16 %v8426, %v8425
        %v8439 = vpack.c.b16 %v8428, %v8427
        %v8440 = vpack.c.b16 %v8430, %v8429
        %v8441 = vpack.c.b16 %v8432, %v8431
        %v8442 = vpack.c.b16 %v8434, %v8433
        %8451 = vmatprep.subr.bf16.mxu0 0
        %8452 = vmatpush1.bf16.msra.mxu0 %v8435
        %8453 = vmatprep.subr.bf16.mxu0 0
        %8454 = vmatpush1.bf16.msra.mxu0 %v8436
        %8455 = vmatprep.subr.bf16.mxu0 0
        %8456 = vmatpush1.bf16.msra.mxu0 %v8437
        %8457 = vmatprep.subr.bf16.mxu0 0
        %8458 = vmatpush1.bf16.msra.mxu0 %v8438
        %8459 = vmatprep.subr.bf16.mxu0 0
        %8460 = vmatpush1.bf16.msra.mxu0 %v8439
        %8461 = vmatprep.subr.bf16.mxu0 0
        %8462 = vmatpush1.bf16.msra.mxu0 %v8440
        %8463 = vmatprep.subr.bf16.mxu0 0
        %8464 = vmatpush1.bf16.msra.mxu0 %v8441
        %8465 = vmatprep.subr.bf16.mxu0 0
        %8466 = vmatpush1.bf16.msra.mxu0 %v8442
        %8467 = vmatprep.subr.bf16.mxu0 0
        %8468 = vmatpush1.bf16.msra.mxu0 0
        %8469 = vmatprep.subr.bf16.mxu0 0
        %8470 = vmatpush1.bf16.msra.mxu0 0
        %8471 = vmatprep.subr.bf16.mxu0 0
        %8472 = vmatpush1.bf16.msra.mxu0 0
        %8473 = vmatprep.subr.bf16.mxu0 0
        %8474 = vmatpush1.bf16.msra.mxu0 0
        %8475 = vmatprep.subr.bf16.mxu0 0
        %8476 = vmatpush1.bf16.msra.mxu0 0
        %8477 = vmatprep.subr.bf16.mxu0 0
        %8478 = vmatpush1.bf16.msra.mxu0 0
        %8479 = vmatprep.subr.bf16.mxu0 0
        %8480 = vmatpush1.bf16.msra.mxu0 0
        %8481 = vmatprep.subr.bf16.mxu0 0
        %8482 = vmatpush1.bf16.msra.mxu0 0
        %8483 = vmatprep.mubr.bf16.mxu0 0
        %8484 = vmatmul.mubr.bf16.gmra.mrb[0].mxu0 %v8401
        %v8485 = vpop.f32.mrb[0].mxu0
        %v8486 = vadd.f32 0.0, %v8485
        %v8487 = vpop.f32.mrb[0].mxu0
        %v8488 = vpop.f32.mrb[0].mxu0
        %v8489 = vadd.f32 0.0, %v8488
        %v8490 = vpop.f32.mrb[0].mxu0
        %8491 = vdwg.mxu0
        %v8492 = vadd.f32 %v8354, %v8486
        %v8493 = vadd.f32 %v8357, %v8489
        %v8494 = vld [vmem:[#allocation14] sm:$0x1]
        %v8496 = vlaneseq
        %v8497 = vshrl.u32 %v8496, 7
        %v8498 = vsub.s32 0, %v8497
        %v8499 = vrot.slane %v8494, %v8498
        %v8501 = vadd.f32 %v8492, %v8499
        %v8502 = vadd.f32 %v8493, %v8499
        %v8503 = vmax.f32 %v8501, 0.0
        %v8504 = vmax.f32 %v8502, 0.0
        %v8507 = vcombine.high %v8503, %v8503
        %v8508 = vcombine.high %v8504, %v8504
        %v8511 = vpack.c.bf16 %v8503, %v8503
        %v8512 = vpack.c.bf16 %v8507, %v8507
        %v8513 = vpack.c.bf16 %v8504, %v8504
        %v8514 = vpack.c.bf16 %v8508, %v8508
        %v8516 = vshrl.u32 %v8511, 16
        %v8518 = vrot.slane %v8516, 7
        %v8519 = vshll.u32 %v8511, 16
        %v8521 = vor.u32 %v8518, %v8519
        %v8523 = vshrl.u32 %v8512, 16
        %v8525 = vrot.slane %v8523, 7
        %v8526 = vshll.u32 %v8512, 16
        %v8528 = vor.u32 %v8525, %v8526
        %v8530 = vshrl.u32 %v8513, 16
        %v8532 = vrot.slane %v8530, 7
        %v8533 = vshll.u32 %v8513, 16
        %v8535 = vor.u32 %v8532, %v8533
        %v8537 = vshrl.u32 %v8514, 16
        %v8539 = vrot.slane %v8537, 7
        %v8540 = vshll.u32 %v8514, 16
        %v8542 = vor.u32 %v8539, %v8540
        %v8547 = vsel %vm1281, 0, %v8521
        %v8548 = vsel %vm1281, 0, %v8528
        %v8549 = vsel %vm1281, 0, %v8535
        %v8550 = vsel %vm1281, 0, %v8542
        %v8551 = vrot.slane %v8519, 1
        %v8552 = vor.u32 %v8516, %v8551
        %v8553 = vrot.slane %v8526, 1
        %v8554 = vor.u32 %v8523, %v8553
        %v8555 = vrot.slane %v8533, 1
        %v8556 = vor.u32 %v8530, %v8555
        %v8557 = vrot.slane %v8540, 1
        %v8558 = vor.u32 %v8537, %v8557
        %v8563 = vsel %vm6980, %v8552, 0
        %v8564 = vsel %vm6980, %v8554, 0
        %v8565 = vsel %vm6980, %v8556, 0
        %v8566 = vsel %vm6980, %v8558, 0
        %8571 = vrot.lane.b32.xlu0 %v8511, 32
        %v8572 = vpop.permute.xlu0 %8571
        %8573 = vrot.lane.b32.xlu0 %v8512, 32
        %v8574 = vpop.permute.xlu0 %8573
        %8575 = vrot.lane.b32.xlu0 %v8513, 32
        %v8576 = vpop.permute.xlu0 %8575
        %8577 = vrot.lane.b32.xlu0 %v8514, 32
        %v8578 = vpop.permute.xlu0 %8577
        %8583 = vrot.lane.b32.xlu0 %v8563, 64
        %v8584 = vpop.permute.xlu0 %8583
        %8585 = vrot.lane.b32.xlu0 %v8564, 64
        %v8586 = vpop.permute.xlu0 %8585
        %8587 = vrot.lane.b32.xlu0 %v8565, 64
        %v8588 = vpop.permute.xlu0 %8587
        %8589 = vrot.lane.b32.xlu0 %v8566, 64
        %v8590 = vpop.permute.xlu0 %8589
        %v8593 = vsel %vm1461, %v8547, %v8572
        %v8596 = vsel %vm1461, %v8548, %v8574
        %v8599 = vsel %vm1461, %v8549, %v8576
        %v8602 = vsel %vm1461, %v8550, %v8578
        %v8604 = vsel %vm1510, %v8593, %v8584
        %v8606 = vsel %vm1510, %v8596, %v8586
        %v8608 = vsel %vm1510, %v8599, %v8588
        %v8610 = vsel %vm1510, %v8602, %v8590
        %v8611 = vsel %vm1543, %v8604, 0
        %v8613 = vsel %vm1543, %v8606, 0
        %v8615 = vsel %vm1543, %v8608, 0
        %v8617 = vsel %vm1543, %v8610, 0
        %8619 = vst [vmem:[%s7037] sm:$0x3] %v8611
        %8620 = vst [vmem:[%s7037 + $0x2] sm:$0x3] %v8613
        %8621 = vst [vmem:[%s7037 + $0x4] sm:$0x3] %v8615
        %8622 = vst [vmem:[%s7037 + $0x6] sm:$0x3] %v8617
        %v8623 = vld [vmem:[#allocation4] sm:$0x3]
        %v8624 = vld [vmem:[#allocation4 + $0x2] sm:$0x3]
        %v8625 = vld [vmem:[#allocation4 + $0x4] sm:$0x3]
        %v8626 = vld [vmem:[#allocation4 + $0x6] sm:$0x3]
        %v8627 = vld [vmem:[%s57] sm:$0xf]
        %v8628 = vld [vmem:[%s57 + $0x4] sm:$0xf]
        %v8629 = vld [vmem:[%s57 + $0x8] sm:$0xf]
        %v8630 = vld [vmem:[%s57 + $0xc] sm:$0xf]
        %v8631 = vld [vmem:[%s57 + $0x10] sm:$0xf]
        %v8632 = vld [vmem:[%s57 + $0x14] sm:$0xf]
        %v8633 = vld [vmem:[%s57 + $0x18] sm:$0xf]
        %v8634 = vld [vmem:[%s57 + $0x1c] sm:$0xf]
        %v8635 = vld [vmem:[%s57 + $0x20] sm:$0xf]
        %v8636 = vld [vmem:[%s57 + $0x24] sm:$0xf]
        %v8637 = vld [vmem:[%s57 + $0x28] sm:$0xf]
        %v8638 = vld [vmem:[%s57 + $0x2c] sm:$0xf]
        %v8639 = vld [vmem:[%s57 + $0x30] sm:$0xf]
        %v8640 = vld [vmem:[%s57 + $0x34] sm:$0xf]
        %v8641 = vld [vmem:[%s57 + $0x38] sm:$0xf]
        %v8642 = vld [vmem:[%s57 + $0x3c] sm:$0xf]
        %v8643 = vld [vmem:[%s7037] sm:$0x3]
        %v8644 = vld [vmem:[%s7037 + $0x2] sm:$0x3]
        %v8645 = vld [vmem:[%s7037 + $0x4] sm:$0x3]
        %v8646 = vld [vmem:[%s7037 + $0x6] sm:$0x3]
        %s8647 = scalar_lea.vmem %s57, 64
        %v8648 = vld [vmem:[%s8647] sm:$0xf]
        %v8649 = vld [vmem:[%s8647 + $0x4] sm:$0xf]
        %v8650 = vld [vmem:[%s8647 + $0x8] sm:$0xf]
        %v8651 = vld [vmem:[%s8647 + $0xc] sm:$0xf]
        %v8652 = vld [vmem:[%s8647 + $0x10] sm:$0xf]
        %v8653 = vld [vmem:[%s8647 + $0x14] sm:$0xf]
        %v8654 = vld [vmem:[%s8647 + $0x18] sm:$0xf]
        %v8655 = vld [vmem:[%s8647 + $0x1c] sm:$0xf]
        %v8656 = vld [vmem:[%s8647 + $0x20] sm:$0xf]
        %v8657 = vld [vmem:[%s8647 + $0x24] sm:$0xf]
        %v8658 = vld [vmem:[%s8647 + $0x28] sm:$0xf]
        %v8659 = vld [vmem:[%s8647 + $0x2c] sm:$0xf]
        %v8660 = vld [vmem:[%s8647 + $0x30] sm:$0xf]
        %v8661 = vld [vmem:[%s8647 + $0x34] sm:$0xf]
        %v8662 = vld [vmem:[%s8647 + $0x38] sm:$0xf]
        %v8663 = vld [vmem:[%s8647 + $0x3c] sm:$0xf]
        %v8668 = vcombine.low %v8643, %v8644
        %v8669 = vcombine.low %v8645, %v8646
        %v8671 = vunpack.c.l.s4 1983009808
        %v8672 = vunpack.c.0.s8 %v8671
        %v8673 = vlaneseq
        %v8674 = vshrl.u32 %v8673, 7
        %v8675 = vsub.s32 %v8672, %v8674
        %v8676 = vrot.slane %v8668, %v8675
        %v8678 = vunpack.c.l.s4 1983009808
        %v8679 = vunpack.c.0.s8 %v8678
        %v8680 = vlaneseq
        %v8681 = vshrl.u32 %v8680, 7
        %v8682 = vsub.s32 %v8679, %v8681
        %v8683 = vrot.slane %v8669, %v8682
        %v8684 = vcombine.low %v8676, %v8683
        %v8702 = vunpack.c.l.b16 %v8648
        %v8703 = vunpack.c.l.b16 %v8649
        %v8704 = vunpack.c.l.b16 %v8650
        %v8705 = vunpack.c.l.b16 %v8651
        %v8706 = vunpack.c.l.b16 %v8652
        %v8707 = vunpack.c.l.b16 %v8653
        %v8708 = vunpack.c.l.b16 %v8654
        %v8709 = vunpack.c.l.b16 %v8655
        %v8710 = vunpack.c.l.b16 %v8656
        %v8711 = vunpack.c.l.b16 %v8657
        %v8712 = vunpack.c.l.b16 %v8658
        %v8713 = vunpack.c.l.b16 %v8659
        %v8714 = vunpack.c.l.b16 %v8660
        %v8715 = vunpack.c.l.b16 %v8661
        %v8716 = vunpack.c.l.b16 %v8662
        %v8717 = vunpack.c.l.b16 %v8663
        %v8718 = vpack.c.b16 %v8703, %v8702
        %v8719 = vpack.c.b16 %v8705, %v8704
        %v8720 = vpack.c.b16 %v8707, %v8706
        %v8721 = vpack.c.b16 %v8709, %v8708
        %v8722 = vpack.c.b16 %v8711, %v8710
        %v8723 = vpack.c.b16 %v8713, %v8712
        %v8724 = vpack.c.b16 %v8715, %v8714
        %v8725 = vpack.c.b16 %v8717, %v8716
        %8734 = vmatprep.subr.bf16.mxu0 0
        %8735 = vmatpush1.bf16.msra.mxu0 %v8718
        %8736 = vmatprep.subr.bf16.mxu0 0
        %8737 = vmatpush1.bf16.msra.mxu0 %v8719
        %8738 = vmatprep.subr.bf16.mxu0 0
        %8739 = vmatpush1.bf16.msra.mxu0 %v8720
        %8740 = vmatprep.subr.bf16.mxu0 0
        %8741 = vmatpush1.bf16.msra.mxu0 %v8721
        %8742 = vmatprep.subr.bf16.mxu0 0
        %8743 = vmatpush1.bf16.msra.mxu0 %v8722
        %8744 = vmatprep.subr.bf16.mxu0 0
        %8745 = vmatpush1.bf16.msra.mxu0 %v8723
        %8746 = vmatprep.subr.bf16.mxu0 0
        %8747 = vmatpush1.bf16.msra.mxu0 %v8724
        %8748 = vmatprep.subr.bf16.mxu0 0
        %8749 = vmatpush1.bf16.msra.mxu0 %v8725
        %8750 = vmatprep.subr.bf16.mxu0 0
        %8751 = vmatpush1.bf16.msra.mxu0 0
        %8752 = vmatprep.subr.bf16.mxu0 0
        %8753 = vmatpush1.bf16.msra.mxu0 0
        %8754 = vmatprep.subr.bf16.mxu0 0
        %8755 = vmatpush1.bf16.msra.mxu0 0
        %8756 = vmatprep.subr.bf16.mxu0 0
        %8757 = vmatpush1.bf16.msra.mxu0 0
        %8758 = vmatprep.subr.bf16.mxu0 0
        %8759 = vmatpush1.bf16.msra.mxu0 0
        %8760 = vmatprep.subr.bf16.mxu0 0
        %8761 = vmatpush1.bf16.msra.mxu0 0
        %8762 = vmatprep.subr.bf16.mxu0 0
        %8763 = vmatpush1.bf16.msra.mxu0 0
        %8764 = vmatprep.subr.bf16.mxu0 0
        %8765 = vmatpush1.bf16.msra.mxu0 0
        %8766 = vmatprep.mubr.bf16.mxu0 0
        %8767 = vmatmul.mubr.bf16.gmra.mrb[0].mxu0 %v8684
        %v8768 = vpop.f32.mrb[0].mxu0
        %v8769 = vadd.f32 0.0, %v8768
        %v8770 = vpop.f32.mrb[0].mxu0
        %v8771 = vpop.f32.mrb[0].mxu0
        %v8772 = vadd.f32 0.0, %v8771
        %v8773 = vpop.f32.mrb[0].mxu0
        %8774 = vdwg.mxu0
        %v8779 = vcombine.low %v8623, %v8624
        %v8780 = vcombine.low %v8625, %v8626
        %v8782 = vunpack.c.l.s4 1983009808
        %v8783 = vunpack.c.0.s8 %v8782
        %v8784 = vlaneseq
        %v8785 = vshrl.u32 %v8784, 7
        %v8786 = vsub.s32 %v8783, %v8785
        %v8787 = vrot.slane %v8779, %v8786
        %v8789 = vunpack.c.l.s4 1983009808
        %v8790 = vunpack.c.0.s8 %v8789
        %v8791 = vlaneseq
        %v8792 = vshrl.u32 %v8791, 7
        %v8793 = vsub.s32 %v8790, %v8792
        %v8794 = vrot.slane %v8780, %v8793
        %v8795 = vcombine.low %v8787, %v8794
        %v8813 = vunpack.c.l.b16 %v8627
        %v8814 = vunpack.c.l.b16 %v8628
        %v8815 = vunpack.c.l.b16 %v8629
        %v8816 = vunpack.c.l.b16 %v8630
        %v8817 = vunpack.c.l.b16 %v8631
        %v8818 = vunpack.c.l.b16 %v8632
        %v8819 = vunpack.c.l.b16 %v8633
        %v8820 = vunpack.c.l.b16 %v8634
        %v8821 = vunpack.c.l.b16 %v8635
        %v8822 = vunpack.c.l.b16 %v8636
        %v8823 = vunpack.c.l.b16 %v8637
        %v8824 = vunpack.c.l.b16 %v8638
        %v8825 = vunpack.c.l.b16 %v8639
        %v8826 = vunpack.c.l.b16 %v8640
        %v8827 = vunpack.c.l.b16 %v8641
        %v8828 = vunpack.c.l.b16 %v8642
        %v8829 = vpack.c.b16 %v8814, %v8813
        %v8830 = vpack.c.b16 %v8816, %v8815
        %v8831 = vpack.c.b16 %v8818, %v8817
        %v8832 = vpack.c.b16 %v8820, %v8819
        %v8833 = vpack.c.b16 %v8822, %v8821
        %v8834 = vpack.c.b16 %v8824, %v8823
        %v8835 = vpack.c.b16 %v8826, %v8825
        %v8836 = vpack.c.b16 %v8828, %v8827
        %8845 = vmatprep.subr.bf16.mxu0 0
        %8846 = vmatpush1.bf16.msra.mxu0 %v8829
        %8847 = vmatprep.subr.bf16.mxu0 0
        %8848 = vmatpush1.bf16.msra.mxu0 %v8830
        %8849 = vmatprep.subr.bf16.mxu0 0
        %8850 = vmatpush1.bf16.msra.mxu0 %v8831
        %8851 = vmatprep.subr.bf16.mxu0 0
        %8852 = vmatpush1.bf16.msra.mxu0 %v8832
        %8853 = vmatprep.subr.bf16.mxu0 0
        %8854 = vmatpush1.bf16.msra.mxu0 %v8833
        %8855 = vmatprep.subr.bf16.mxu0 0
        %8856 = vmatpush1.bf16.msra.mxu0 %v8834
        %8857 = vmatprep.subr.bf16.mxu0 0
        %8858 = vmatpush1.bf16.msra.mxu0 %v8835
        %8859 = vmatprep.subr.bf16.mxu0 0
        %8860 = vmatpush1.bf16.msra.mxu0 %v8836
        %8861 = vmatprep.subr.bf16.mxu0 0
        %8862 = vmatpush1.bf16.msra.mxu0 0
        %8863 = vmatprep.subr.bf16.mxu0 0
        %8864 = vmatpush1.bf16.msra.mxu0 0
        %8865 = vmatprep.subr.bf16.mxu0 0
        %8866 = vmatpush1.bf16.msra.mxu0 0
        %8867 = vmatprep.subr.bf16.mxu0 0
        %8868 = vmatpush1.bf16.msra.mxu0 0
        %8869 = vmatprep.subr.bf16.mxu0 0
        %8870 = vmatpush1.bf16.msra.mxu0 0
        %8871 = vmatprep.subr.bf16.mxu0 0
        %8872 = vmatpush1.bf16.msra.mxu0 0
        %8873 = vmatprep.subr.bf16.mxu0 0
        %8874 = vmatpush1.bf16.msra.mxu0 0
        %8875 = vmatprep.subr.bf16.mxu0 0
        %8876 = vmatpush1.bf16.msra.mxu0 0
        %8877 = vmatprep.mubr.bf16.mxu0 0
        %8878 = vmatmul.mubr.bf16.gmra.mrb[0].mxu0 %v8795
        %v8879 = vpop.f32.mrb[0].mxu0
        %v8880 = vadd.f32 %v8769, %v8879
        %v8881 = vpop.f32.mrb[0].mxu0
        %v8882 = vpop.f32.mrb[0].mxu0
        %v8883 = vadd.f32 %v8772, %v8882
        %v8884 = vpop.f32.mrb[0].mxu0
        %8885 = vdwg.mxu0
        %v8886 = vld [vmem:[%s7305] sm:$0x3]
        %v8887 = vld [vmem:[%s7305 + $0x2] sm:$0x3]
        %v8888 = vld [vmem:[%s7305 + $0x4] sm:$0x3]
        %v8889 = vld [vmem:[%s7305 + $0x6] sm:$0x3]
        %s8890 = scalar_lea.vmem %s57, 128
        %v8891 = vld [vmem:[%s8890] sm:$0xf]
        %v8892 = vld [vmem:[%s8890 + $0x4] sm:$0xf]
        %v8893 = vld [vmem:[%s8890 + $0x8] sm:$0xf]
        %v8894 = vld [vmem:[%s8890 + $0xc] sm:$0xf]
        %v8895 = vld [vmem:[%s8890 + $0x10] sm:$0xf]
        %v8896 = vld [vmem:[%s8890 + $0x14] sm:$0xf]
        %v8897 = vld [vmem:[%s8890 + $0x18] sm:$0xf]
        %v8898 = vld [vmem:[%s8890 + $0x1c] sm:$0xf]
        %v8899 = vld [vmem:[%s8890 + $0x20] sm:$0xf]
        %v8900 = vld [vmem:[%s8890 + $0x24] sm:$0xf]
        %v8901 = vld [vmem:[%s8890 + $0x28] sm:$0xf]
        %v8902 = vld [vmem:[%s8890 + $0x2c] sm:$0xf]
        %v8903 = vld [vmem:[%s8890 + $0x30] sm:$0xf]
        %v8904 = vld [vmem:[%s8890 + $0x34] sm:$0xf]
        %v8905 = vld [vmem:[%s8890 + $0x38] sm:$0xf]
        %v8906 = vld [vmem:[%s8890 + $0x3c] sm:$0xf]
        %v8911 = vcombine.low %v8886, %v8887
        %v8912 = vcombine.low %v8888, %v8889
        %v8914 = vunpack.c.l.s4 1983009808
        %v8915 = vunpack.c.0.s8 %v8914
        %v8916 = vlaneseq
        %v8917 = vshrl.u32 %v8916, 7
        %v8918 = vsub.s32 %v8915, %v8917
        %v8919 = vrot.slane %v8911, %v8918
        %v8921 = vunpack.c.l.s4 1983009808
        %v8922 = vunpack.c.0.s8 %v8921
        %v8923 = vlaneseq
        %v8924 = vshrl.u32 %v8923, 7
        %v8925 = vsub.s32 %v8922, %v8924
        %v8926 = vrot.slane %v8912, %v8925
        %v8927 = vcombine.low %v8919, %v8926
        %v8945 = vunpack.c.l.b16 %v8891
        %v8946 = vunpack.c.l.b16 %v8892
        %v8947 = vunpack.c.l.b16 %v8893
        %v8948 = vunpack.c.l.b16 %v8894
        %v8949 = vunpack.c.l.b16 %v8895
        %v8950 = vunpack.c.l.b16 %v8896
        %v8951 = vunpack.c.l.b16 %v8897
        %v8952 = vunpack.c.l.b16 %v8898
        %v8953 = vunpack.c.l.b16 %v8899
        %v8954 = vunpack.c.l.b16 %v8900
        %v8955 = vunpack.c.l.b16 %v8901
        %v8956 = vunpack.c.l.b16 %v8902
        %v8957 = vunpack.c.l.b16 %v8903
        %v8958 = vunpack.c.l.b16 %v8904
        %v8959 = vunpack.c.l.b16 %v8905
        %v8960 = vunpack.c.l.b16 %v8906
        %v8961 = vpack.c.b16 %v8946, %v8945
        %v8962 = vpack.c.b16 %v8948, %v8947
        %v8963 = vpack.c.b16 %v8950, %v8949
        %v8964 = vpack.c.b16 %v8952, %v8951
        %v8965 = vpack.c.b16 %v8954, %v8953
        %v8966 = vpack.c.b16 %v8956, %v8955
        %v8967 = vpack.c.b16 %v8958, %v8957
        %v8968 = vpack.c.b16 %v8960, %v8959
        %8977 = vmatprep.subr.bf16.mxu0 0
        %8978 = vmatpush1.bf16.msra.mxu0 %v8961
        %8979 = vmatprep.subr.bf16.mxu0 0
        %8980 = vmatpush1.bf16.msra.mxu0 %v8962
        %8981 = vmatprep.subr.bf16.mxu0 0
        %8982 = vmatpush1.bf16.msra.mxu0 %v8963
        %8983 = vmatprep.subr.bf16.mxu0 0
        %8984 = vmatpush1.bf16.msra.mxu0 %v8964
        %8985 = vmatprep.subr.bf16.mxu0 0
        %8986 = vmatpush1.bf16.msra.mxu0 %v8965
        %8987 = vmatprep.subr.bf16.mxu0 0
        %8988 = vmatpush1.bf16.msra.mxu0 %v8966
        %8989 = vmatprep.subr.bf16.mxu0 0
        %8990 = vmatpush1.bf16.msra.mxu0 %v8967
        %8991 = vmatprep.subr.bf16.mxu0 0
        %8992 = vmatpush1.bf16.msra.mxu0 %v8968
        %8993 = vmatprep.subr.bf16.mxu0 0
        %8994 = vmatpush1.bf16.msra.mxu0 0
        %8995 = vmatprep.subr.bf16.mxu0 0
        %8996 = vmatpush1.bf16.msra.mxu0 0
        %8997 = vmatprep.subr.bf16.mxu0 0
        %8998 = vmatpush1.bf16.msra.mxu0 0
        %8999 = vmatprep.subr.bf16.mxu0 0
        %9000 = vmatpush1.bf16.msra.mxu0 0
        %9001 = vmatprep.subr.bf16.mxu0 0
        %9002 = vmatpush1.bf16.msra.mxu0 0
        %9003 = vmatprep.subr.bf16.mxu0 0
        %9004 = vmatpush1.bf16.msra.mxu0 0
        %9005 = vmatprep.subr.bf16.mxu0 0
        %9006 = vmatpush1.bf16.msra.mxu0 0
        %9007 = vmatprep.subr.bf16.mxu0 0
        %9008 = vmatpush1.bf16.msra.mxu0 0
        %9009 = vmatprep.mubr.bf16.mxu0 0
        %9010 = vmatmul.mubr.bf16.gmra.mrb[0].mxu0 %v8927
        %v9011 = vpop.f32.mrb[0].mxu0
        %v9012 = vadd.f32 0.0, %v9011
        %v9013 = vpop.f32.mrb[0].mxu0
        %v9014 = vpop.f32.mrb[0].mxu0
        %v9015 = vadd.f32 0.0, %v9014
        %v9016 = vpop.f32.mrb[0].mxu0
        %9017 = vdwg.mxu0
        %v9018 = vadd.f32 %v8880, %v9012
        %v9019 = vadd.f32 %v8883, %v9015
        %v9020 = vld [vmem:[#allocation15] sm:$0x1]
        %v9022 = vlaneseq
        %v9023 = vshrl.u32 %v9022, 7
        %v9024 = vsub.s32 0, %v9023
        %v9025 = vrot.slane %v9020, %v9024
        %v9027 = vadd.f32 %v9018, %v9025
        %v9028 = vadd.f32 %v9019, %v9025
        %v9029 = vadd.f32 %v7975, %v9027
        %v9030 = vadd.f32 %v7976, %v9028
        %v9031 = vmax.f32 %v9029, 0.0
        %v9032 = vmax.f32 %v9030, 0.0
        %v9033 = vadd.f32 %v9031, %v9032
        %v9034 = vrot.slane %v9033, 4
        %v9035 = vadd.f32 %v9033, %v9034
        %v9036 = vrot.slane %v9035, 2
        %v9037 = vadd.f32 %v9035, %v9036
        %v9038 = vrot.slane %v9037, 1
        %v9039 = vadd.f32 %v9037, %v9038
        %v9040 = vld [vmem:[#allocation17] sm:$0x1]
        %v9041 = vld [vmem:[%s1089] sm:$0x1]
        %v9042 = vadd.f32 %v9040, %v9041
        %v9043 = vmul.f32 %v9039, %v9042
        %vm9044 = vcmask 1040384
        %v9045 = vsel %vm9044, %v9043, 0.0
        %9046 = vadd.xlane.f32.xlu0 %v9045
        %v9047 = vpop.xlane.xlu0 %9046
        %v9048 = vld [vmem:[#allocation6] sm:$0x1]
        %v9049 = vadd.f32 %v9047, %v9048
        %vm9050 = vcmask 0
        %9051 = vst.msk [vmem:[%s1092] sm:$0x1] %vm9050, %v9049
        %p9052 = scmp.lt.s32.totalorder %s84, 1
        %s9053 = scalar_select %p9052, %s84, 1
        %s9054 = scalar_lea.vmem %s65, %s9053
        // Predicated region
        $region177: #{discriminator_forward.1} parent=147 // pred_check
          %p9055 = pneg %p784
        $region178: #{discriminator_forward.1} parent=147 // pred_check_branch
          %9057 = sbr.rel (%p9055) target = $region180
        $region179: #{discriminator_forward.1} parent=147 // pred_region
          _
        $region180: #{discriminator_forward.1} parent=147 // pred_fallthru
          _
      $region148: #{discriminator_forward.1} parent=5 // pred_fallthru
        _
      %p9058 = scmp.le.s32.totalorder 2, %s79
      // Predicated region
      $region181: #{discriminator_forward.1} parent=5 // pred_check
        %p9059 = pneg %p9058
      $region182: #{discriminator_forward.1} parent=5 // pred_check_branch
        %9061 = sbr.rel (%p9059) target = $region184
      $region183: #{discriminator_forward.1} parent=5 // pred_region
        %s9062 = ssub.s32 %s79, 2
        // Predicated region
        $region185: #{discriminator_forward.1} parent=183 // pred_check
          %p9063 = pneg %p790
        $region186: #{discriminator_forward.1} parent=183 // pred_check_branch
          %9065 = sbr.rel (%p9063) target = $region188
        $region187: #{discriminator_forward.1} parent=183 // pred_region
          %p9066 = scmp.lt.s32.totalorder %s85, 1
          %s9067 = scalar_select %p9066, %s85, 1
          %s9068 = scalar_lea.vmem %s65, %s9067
        $region188: #{discriminator_forward.1} parent=183 // pred_fallthru
          _
      $region184: #{discriminator_forward.1} parent=5 // pred_fallthru
        _
    $region6: #{discriminator_forward.1} parent=1 // loop_footer
      %s83 = sadd.s32 1, %s79
    $region7: #{discriminator_forward.1} parent=1 // loop_footer_branch
      %78 = sbr.rel target = $region3
    $region8: #{discriminator_forward.1} parent=1 // loop_exit
      _
    %9069 = vsyncpa [#allocation8], 1
    %s9070 = scalar_lea.sflag [#allocation8], 1
    %9071 = vsyncpa %s9070, 1
    %9072 = vsyncpa [#allocation10], 1
    %9073 = vsyncpa [#allocation13], 1
    %9074 = vsyncpa [#allocation16], 1

</llo_original>
